<compile_context>
chip_gen: v5e
topology: v5e:2x2
jax: 0.10.0
libtpu: 0.0.40
codegen_flags: <defaults>
</compile_context>

<pallas_src>
import numpy as np
import jax
import jax.numpy as jnp
from jax.experimental import pallas as pl
from jax.experimental.pallas import tpu as pltpu

_LANE = 128  # channel axis of the shared padded scratch is padded to one lane tile


# ----------------------------------------------------------------------------
# Wrapper-side parameter preparation (outside the kernel, runs once)
# ----------------------------------------------------------------------------
def _w2d(w):
    """(3,3,Cin,Cout) f32 HWIO -> (9*_LANE, Cout) bf16, Cin zero-padded to _LANE."""
    cin, cout = w.shape[2], w.shape[3]
    wp = jnp.zeros((3, 3, _LANE, cout), jnp.float32).at[:, :, :cin, :].set(w)
    return wp.reshape(9 * _LANE, cout).astype(jnp.bfloat16)


def _b2d(b):
    return jnp.asarray(b, jnp.float32).reshape(1, -1)


def _sel_matrix(h, w):
    """(h//2*w//2, h*w) 0/1 matrix selecting rows (2i, 2j) of a row-major (h, w) grid."""
    ho, wo = h // 2, w // 2
    s = np.zeros((ho * wo, h * w), np.float32)
    rows = np.arange(ho * wo)
    s[rows, (rows // wo) * 2 * w + (rows % wo) * 2] = 1.0
    return jnp.asarray(s)


# ----------------------------------------------------------------------------
# Fused forward pass (single pallas_call)
# ----------------------------------------------------------------------------
def full_conv_encoder_forward(layers, x_nchw, output_c, min_std=0.01):
    x = jnp.transpose(x_nchw, (0, 2, 3, 1)).astype(jnp.float32)   # NCHW -> NHWC
    N, H, W, input_c = x.shape

    # ---- walk the layer list: flat param arrays + a static per-op schedule ----
    ops, params, sel_mats = [], [], []
    ah, aw, ac = H, W, input_c
    for layer in layers:
        kind = layer[0]
        if kind == "conv_s1_relu":
            _, w, b = layer
            ops.append(("conv", ah, aw, ac, w.shape[-1], len(params)))
            params += [_w2d(w), _b2d(b)]
            ac = w.shape[-1]
        elif kind == "conv_s2_relu":
            _, w, b = layer
            ops.append(("conv_s2", ah, aw, ac, w.shape[-1], len(params), len(sel_mats)))
            params += [_w2d(w), _b2d(b)]
            sel_mats.append(_sel_matrix(ah, aw))
            ah, aw, ac = ah // 2, aw // 2, w.shape[-1]
        elif kind == "res":
            _, (w1, b1), (w2, b2) = layer
            ops.append(("res", ah, aw, ac, ac, len(params)))
            params += [_w2d(w1), _b2d(b1), _w2d(w2), _b2d(b2)]
        elif kind == "final":
            _, w, b = layer
            oc = output_c
            ops.append(("final", ah, aw, ac, oc, len(params)))
            params += [_w2d(w[..., :oc]), _b2d(b[:oc]),
                       _w2d(w[..., oc:]), _b2d(b[oc:])]
    out_h, out_w = ah, aw
    n_params, n_sel = len(params), len(sel_mats)

    # ---- fused kernel: one batch element per grid step, everything in VMEM ----
    def kernel(*refs):
        x_ref = refs[0]
        p_refs = refs[1:1 + n_params]
        s_refs = refs[1 + n_params:1 + n_params + n_sel]
        mu_ref = refs[1 + n_params + n_sel]
        std_ref = refs[2 + n_params + n_sel]
        pad_ref = refs[3 + n_params + n_sel]          # shared (H+2, W+2, 128) scratch

        def store_padded(val, h, w, c):
            # zero the (h+2, w+2) sub-box (borders + unused lanes), then write interior
            pad_ref[pl.ds(0, h + 2), pl.ds(0, w + 2), :] = jnp.zeros(
                (h + 2, w + 2, _LANE), jnp.float32)
            pad_ref[pl.ds(1, h), pl.ds(1, w), pl.ds(0, c)] = val.reshape(h, w, c)

        def im2col(h, w):
            # nine lane-aligned (h*w, 128) tap slices -> one (h*w, 9*128) bf16 slab
            cols = [pad_ref[pl.ds(kh, h), pl.ds(kw, w), :].reshape(h * w, _LANE)
                    for kh in range(3) for kw in range(3)]
            return jnp.concatenate(cols, axis=-1).astype(jnp.bfloat16)

        def conv(widx, h, w, relu):
            y = jnp.dot(im2col(h, w), p_refs[widx][...],
                        preferred_element_type=jnp.float32) + p_refs[widx + 1][...]
            return jnp.maximum(y, 0.0) if relu else y

        act = x_ref[0]                                 # (H, W, Cin); (h*w, c) afterwards
        for op in ops:
            kind, h, w, cin, cout, widx = op[:6]
            store_padded(act, h, w, cin)
            if kind == "conv":
                act = conv(widx, h, w, relu=True)
            elif kind == "conv_s2":
                full = conv(widx, h, w, relu=True)     # (h*w, cout) at full resolution
                act = jnp.dot(s_refs[op[6]][...], full,  # keep rows (2i, 2j): exact
                              preferred_element_type=jnp.float32)
            elif kind == "res":
                mid = conv(widx, h, w, relu=True)
                store_padded(mid, h, w, cin)
                act = jnp.maximum(act + conv(widx + 2, h, w, relu=False), 0.0)
            else:  # "final": two matmuls on a shared patch slab -> gauss head
                patches = im2col(h, w)
                mu = jnp.dot(patches, p_refs[widx][...],
                             preferred_element_type=jnp.float32) + p_refs[widx + 1][...]
                pre = jnp.dot(patches, p_refs[widx + 2][...],
                              preferred_element_type=jnp.float32) + p_refs[widx + 3][...]
                mu_ref[0] = mu.reshape(h, w, cout)
                std_ref[0] = (jax.nn.softplus(pre) + min_std).reshape(h, w, cout)

    in_specs = [pl.BlockSpec((1, H, W, input_c), lambda n: (n, 0, 0, 0))]
    for p in params:
        in_specs.append(pl.BlockSpec(p.shape, lambda n: (0, 0)))
    for s in sel_mats:
        in_specs.append(pl.BlockSpec(s.shape, lambda n: (0, 0)))

    out_shape = (jax.ShapeDtypeStruct((N, out_h, out_w, output_c), jnp.float32),
                 jax.ShapeDtypeStruct((N, out_h, out_w, output_c), jnp.float32))
    out_specs = (pl.BlockSpec((1, out_h, out_w, output_c), lambda n: (n, 0, 0, 0)),
                 pl.BlockSpec((1, out_h, out_w, output_c), lambda n: (n, 0, 0, 0)))

    mu, std = pl.pallas_call(
        kernel,
        out_shape=out_shape,
        grid=(N,),
        in_specs=in_specs,
        out_specs=out_specs,
        scratch_shapes=[pltpu.VMEM((H + 2, W + 2, _LANE), jnp.float32)],
        compiler_params=pltpu.CompilerParams(dimension_semantics=("parallel",)),
    )(x, *params, *sel_mats)

    # back to NCHW, matching torch.chunk(out, 2, dim=1)
    return jnp.transpose(mu, (0, 3, 1, 2)), jnp.transpose(std, (0, 3, 1, 2))


# ----------------------------------------------------------------------------
# Parameter construction (deterministic, PyTorch-Conv2d-style uniform init)
# ----------------------------------------------------------------------------
def _conv_init(key, cin, cout):
    k1, k2 = jax.random.split(key)
    bound = 1.0 / np.sqrt(cin * 9)
    w = jax.random.uniform(k1, (3, 3, cin, cout), jnp.float32, -bound, bound)
    b = jax.random.uniform(k2, (cout,), jnp.float32, -bound, bound)
    return w, b


def build_params(key, input_c, output_c, conv_features, down_sampling, res_layers):
    layers = []
    cf = conv_features // (2 ** down_sampling)
    key, sub = jax.random.split(key)
    layers.append(("conv_s1_relu",) + _conv_init(sub, input_c, cf))
    for i in range(down_sampling):
        key, sub = jax.random.split(key)
        layers.append(("conv_s2_relu",) + _conv_init(sub, cf, cf * 2))
        cf *= 2
        for _ in range(res_layers[i]):
            key, s1 = jax.random.split(key)
            key, s2 = jax.random.split(key)
            layers.append(("res", _conv_init(s1, cf, cf), _conv_init(s2, cf, cf)))
    key, sub = jax.random.split(key)
    layers.append(("final",) + _conv_init(sub, cf, 2 * output_c))
    return layers


# ----------------------------------------------------------------------------
# Pure-JAX reference
# ----------------------------------------------------------------------------
def _conv_ref(x, w, b, stride):
    y = jax.lax.conv_general_dilated(
        x, w, window_strides=(stride, stride), padding=((1, 1), (1, 1)),
        dimension_numbers=("NHWC", "HWIO", "NHWC"))
    return y + b[None, None, None, :]


def reference_forward(layers, x_nchw, output_c, min_std=0.01):
    x = jnp.transpose(x_nchw, (0, 2, 3, 1)).astype(jnp.float32)
    mu = std = None
    for layer in layers:
        kind = layer[0]
        if kind == "conv_s1_relu":
            _, w, b = layer
            x = jax.nn.relu(_conv_ref(x, w, b, 1))
        elif kind == "conv_s2_relu":
            _, w, b = layer
            x = jax.nn.relu(_conv_ref(x, w, b, 2))
        elif kind == "res":
            _, (w1, b1), (w2, b2) = layer
            h = jax.nn.relu(_conv_ref(x, w1, b1, 1))
            x = jax.nn.relu(x + _conv_ref(h, w2, b2, 1))
        elif kind == "final":
            _, w, b = layer
            out = _conv_ref(x, w, b, 1)
            mu = out[..., :output_c]
            std = jax.nn.softplus(out[..., output_c:]) + min_std
    return jnp.transpose(mu, (0, 3, 1, 2)), jnp.transpose(std, (0, 3, 1, 2))


# ----------------------------------------------------------------------------
if __name__ == "__main__":
    # Module config (small): input_c=4, h=w=16, output_c=4, conv_features=32,
    # down_sampling=2, res_layers=[1, 1], batchnorm=False, activation='relu',
    # dist_type='gauss', min_std=0.01
    N, input_c, H, W = 2, 4, 16, 16
    output_c, conv_features, down_sampling = 4, 32, 2
    res_layers = [1, 1]
    min_std = 0.01

    x = jax.random.normal(jax.random.PRNGKey(0), (N, input_c, H, W), jnp.float32)
    params = build_params(jax.random.PRNGKey(1), input_c, output_c,
                          conv_features, down_sampling, res_layers)

    mu, std = full_conv_encoder_forward(params, x, output_c, min_std)
    mu = jax.block_until_ready(mu)
    std = jax.block_until_ready(std)

    mu_ref, std_ref = reference_forward(params, x, output_c, min_std)
    assert mu.shape == (N, output_c, H // 4, W // 4), mu.shape
    assert std.shape == (N, output_c, H // 4, W // 4), std.shape
    assert bool(jnp.all(std > 0.0))
    # bf16 matmul inputs (f32 accumulation) => slightly looser tolerance than pure f32
    assert bool(jnp.allclose(mu, mu_ref, rtol=3e-2, atol=3e-2)), "mu mismatch"
    assert bool(jnp.allclose(std, std_ref, rtol=3e-2, atol=3e-2)), "std mismatch"

    print("KERNEL_OK")
</pallas_src>

<mosaic_0001>
module attributes {stable_mosaic.version = 11 : i64} {
  func.func @kernel(%arg0: i32, %arg1: memref<1x16x16x4xf32, #tpu.memory_space<vmem>>, %arg2: memref<1152x8xbf16, #tpu.memory_space<vmem>>, %arg3: memref<1x8xf32, #tpu.memory_space<vmem>>, %arg4: memref<1152x16xbf16, #tpu.memory_space<vmem>>, %arg5: memref<1x16xf32, #tpu.memory_space<vmem>>, %arg6: memref<1152x16xbf16, #tpu.memory_space<vmem>>, %arg7: memref<1x16xf32, #tpu.memory_space<vmem>>, %arg8: memref<1152x16xbf16, #tpu.memory_space<vmem>>, %arg9: memref<1x16xf32, #tpu.memory_space<vmem>>, %arg10: memref<1152x32xbf16, #tpu.memory_space<vmem>>, %arg11: memref<1x32xf32, #tpu.memory_space<vmem>>, %arg12: memref<1152x32xbf16, #tpu.memory_space<vmem>>, %arg13: memref<1x32xf32, #tpu.memory_space<vmem>>, %arg14: memref<1152x32xbf16, #tpu.memory_space<vmem>>, %arg15: memref<1x32xf32, #tpu.memory_space<vmem>>, %arg16: memref<1152x4xbf16, #tpu.memory_space<vmem>>, %arg17: memref<1x4xf32, #tpu.memory_space<vmem>>, %arg18: memref<1152x4xbf16, #tpu.memory_space<vmem>>, %arg19: memref<1x4xf32, #tpu.memory_space<vmem>>, %arg20: memref<64x256xf32, #tpu.memory_space<vmem>>, %arg21: memref<16x64xf32, #tpu.memory_space<vmem>>, %arg22: memref<1x4x4x4xf32, #tpu.memory_space<vmem>>, %arg23: memref<1x4x4x4xf32, #tpu.memory_space<vmem>>, %arg24: memref<18x18x128xf32, #tpu.memory_space<vmem>>) attributes {dimension_semantics = [#tpu.dimension_semantics<parallel>], iteration_bounds = array<i64: 2>, scalar_prefetch = 0 : i64, scratch_operands = 1 : i64, tpu.core_type = #tpu.core_type<tc>, window_params = [{transform_indices = @transform_0, window_bounds = array<i64: 1, 16, 16, 4>}, {pipeline_mode = #tpu.pipeline_mode<synchronous>, transform_indices = @transform_1, window_bounds = array<i64: 1152, 8>}, {pipeline_mode = #tpu.pipeline_mode<synchronous>, transform_indices = @transform_2, window_bounds = array<i64: 1, 8>}, {pipeline_mode = #tpu.pipeline_mode<synchronous>, transform_indices = @transform_3, window_bounds = array<i64: 1152, 16>}, {pipeline_mode = #tpu.pipeline_mode<synchronous>, transform_indices = @transform_4, window_bounds = array<i64: 1, 16>}, {pipeline_mode = #tpu.pipeline_mode<synchronous>, transform_indices = @transform_5, window_bounds = array<i64: 1152, 16>}, {pipeline_mode = #tpu.pipeline_mode<synchronous>, transform_indices = @transform_6, window_bounds = array<i64: 1, 16>}, {pipeline_mode = #tpu.pipeline_mode<synchronous>, transform_indices = @transform_7, window_bounds = array<i64: 1152, 16>}, {pipeline_mode = #tpu.pipeline_mode<synchronous>, transform_indices = @transform_8, window_bounds = array<i64: 1, 16>}, {pipeline_mode = #tpu.pipeline_mode<synchronous>, transform_indices = @transform_9, window_bounds = array<i64: 1152, 32>}, {pipeline_mode = #tpu.pipeline_mode<synchronous>, transform_indices = @transform_10, window_bounds = array<i64: 1, 32>}, {pipeline_mode = #tpu.pipeline_mode<synchronous>, transform_indices = @transform_11, window_bounds = array<i64: 1152, 32>}, {pipeline_mode = #tpu.pipeline_mode<synchronous>, transform_indices = @transform_12, window_bounds = array<i64: 1, 32>}, {pipeline_mode = #tpu.pipeline_mode<synchronous>, transform_indices = @transform_13, window_bounds = array<i64: 1152, 32>}, {pipeline_mode = #tpu.pipeline_mode<synchronous>, transform_indices = @transform_14, window_bounds = array<i64: 1, 32>}, {pipeline_mode = #tpu.pipeline_mode<synchronous>, transform_indices = @transform_15, window_bounds = array<i64: 1152, 4>}, {pipeline_mode = #tpu.pipeline_mode<synchronous>, transform_indices = @transform_16, window_bounds = array<i64: 1, 4>}, {pipeline_mode = #tpu.pipeline_mode<synchronous>, transform_indices = @transform_17, window_bounds = array<i64: 1152, 4>}, {pipeline_mode = #tpu.pipeline_mode<synchronous>, transform_indices = @transform_18, window_bounds = array<i64: 1, 4>}, {pipeline_mode = #tpu.pipeline_mode<synchronous>, transform_indices = @transform_19, window_bounds = array<i64: 64, 256>}, {pipeline_mode = #tpu.pipeline_mode<synchronous>, transform_indices = @transform_20, window_bounds = array<i64: 16, 64>}, {transform_indices = @transform_21, window_bounds = array<i64: 1, 4, 4, 4>}, {transform_indices = @transform_22, window_bounds = array<i64: 1, 4, 4, 4>}]} {
    %c0 = arith.constant 0 : index
    %c0_0 = arith.constant 0 : index
    %c0_1 = arith.constant 0 : index
    %c0_2 = arith.constant 0 : index
    %0 = vector.load %arg1[%c0, %c0_0, %c0_1, %c0_2] : memref<1x16x16x4xf32, #tpu.memory_space<vmem>>, vector<1x16x16x4xf32>
    %1 = vector.shape_cast %0 : vector<1x16x16x4xf32> to vector<16x16x4xf32>
    %cst = arith.constant 0.000000e+00 : f32
    %2 = vector.broadcast %cst : f32 to vector<18x18x128xf32>
    %c0_3 = arith.constant 0 : index
    %c0_4 = arith.constant 0 : index
    %c0_5 = arith.constant 0 : index
    %3 = vector.load %arg24[%c0_3, %c0_4, %c0_5] : memref<18x18x128xf32, #tpu.memory_space<vmem>>, vector<18x18x128xf32>
    tpu.vector_store %arg24[%c0_3, %c0_4, %c0_5], %2 {strides = array<i32>} : memref<18x18x128xf32, #tpu.memory_space<vmem>>, vector<18x18x128xf32>,
    %c1 = arith.constant 1 : index
    %c1_6 = arith.constant 1 : index
    %c0_7 = arith.constant 0 : index
    %4 = vector.load %arg24[%c1, %c1_6, %c0_7] : memref<18x18x128xf32, #tpu.memory_space<vmem>>, vector<16x16x4xf32>
    tpu.vector_store %arg24[%c1, %c1_6, %c0_7], %1 {strides = array<i32>} : memref<18x18x128xf32, #tpu.memory_space<vmem>>, vector<16x16x4xf32>,
    %c0_8 = arith.constant 0 : index
    %c0_9 = arith.constant 0 : index
    %c0_10 = arith.constant 0 : index
    %5 = vector.load %arg24[%c0_8, %c0_9, %c0_10] : memref<18x18x128xf32, #tpu.memory_space<vmem>>, vector<16x16x128xf32>
    %6 = vector.shape_cast %5 : vector<16x16x128xf32> to vector<256x128xf32>
    %c0_11 = arith.constant 0 : index
    %c1_12 = arith.constant 1 : index
    %c0_13 = arith.constant 0 : index
    %7 = vector.load %arg24[%c0_11, %c1_12, %c0_13] : memref<18x18x128xf32, #tpu.memory_space<vmem>>, vector<16x16x128xf32>
    %8 = vector.shape_cast %7 : vector<16x16x128xf32> to vector<256x128xf32>
    %c0_14 = arith.constant 0 : index
    %c2 = arith.constant 2 : index
    %c0_15 = arith.constant 0 : index
    %9 = vector.load %arg24[%c0_14, %c2, %c0_15] : memref<18x18x128xf32, #tpu.memory_space<vmem>>, vector<16x16x128xf32>
    %10 = vector.shape_cast %9 : vector<16x16x128xf32> to vector<256x128xf32>
    %c1_16 = arith.constant 1 : index
    %c0_17 = arith.constant 0 : index
    %c0_18 = arith.constant 0 : index
    %11 = vector.load %arg24[%c1_16, %c0_17, %c0_18] : memref<18x18x128xf32, #tpu.memory_space<vmem>>, vector<16x16x128xf32>
    %12 = vector.shape_cast %11 : vector<16x16x128xf32> to vector<256x128xf32>
    %c1_19 = arith.constant 1 : index
    %c1_20 = arith.constant 1 : index
    %c0_21 = arith.constant 0 : index
    %13 = vector.load %arg24[%c1_19, %c1_20, %c0_21] : memref<18x18x128xf32, #tpu.memory_space<vmem>>, vector<16x16x128xf32>
    %14 = vector.shape_cast %13 : vector<16x16x128xf32> to vector<256x128xf32>
    %c1_22 = arith.constant 1 : index
    %c2_23 = arith.constant 2 : index
    %c0_24 = arith.constant 0 : index
    %15 = vector.load %arg24[%c1_22, %c2_23, %c0_24] : memref<18x18x128xf32, #tpu.memory_space<vmem>>, vector<16x16x128xf32>
    %16 = vector.shape_cast %15 : vector<16x16x128xf32> to vector<256x128xf32>
    %c2_25 = arith.constant 2 : index
    %c0_26 = arith.constant 0 : index
    %c0_27 = arith.constant 0 : index
    %17 = vector.load %arg24[%c2_25, %c0_26, %c0_27] : memref<18x18x128xf32, #tpu.memory_space<vmem>>, vector<16x16x128xf32>
    %18 = vector.shape_cast %17 : vector<16x16x128xf32> to vector<256x128xf32>
    %c2_28 = arith.constant 2 : index
    %c1_29 = arith.constant 1 : index
    %c0_30 = arith.constant 0 : index
    %19 = vector.load %arg24[%c2_28, %c1_29, %c0_30] : memref<18x18x128xf32, #tpu.memory_space<vmem>>, vector<16x16x128xf32>
    %20 = vector.shape_cast %19 : vector<16x16x128xf32> to vector<256x128xf32>
    %c2_31 = arith.constant 2 : index
    %c2_32 = arith.constant 2 : index
    %c0_33 = arith.constant 0 : index
    %21 = vector.load %arg24[%c2_31, %c2_32, %c0_33] : memref<18x18x128xf32, #tpu.memory_space<vmem>>, vector<16x16x128xf32>
    %22 = vector.shape_cast %21 : vector<16x16x128xf32> to vector<256x128xf32>
    %23 = tpu.concatenate %6, %8, %10, %12, %14, %16, %18, %20, %22 in 1 : vector<256x128xf32>, vector<256x128xf32>, vector<256x128xf32>, vector<256x128xf32>, vector<256x128xf32>, vector<256x128xf32>, vector<256x128xf32>, vector<256x128xf32>, vector<256x128xf32> -> vector<256x1152xf32>
    %24 = arith.truncf %23 : vector<256x1152xf32> to vector<256x1152xbf16>
    %c0_34 = arith.constant 0 : index
    %c0_35 = arith.constant 0 : index
    %25 = vector.load %arg2[%c0_34, %c0_35] : memref<1152x8xbf16, #tpu.memory_space<vmem>>, vector<1152x8xbf16>
    %cst_36 = arith.constant dense<0.000000e+00> : vector<256x8xf32>
    %26 = tpu.matmul %24, %25, %cst_36 {dimension_numbers = #tpu.dot_dimension_numbers<[1], [0], [0], [1], [0, 0, 1, 1], [], []>} : vector<256x1152xbf16>, vector<1152x8xbf16>, vector<256x8xf32> -> vector<256x8xf32>
    %c0_37 = arith.constant 0 : index
    %c0_38 = arith.constant 0 : index
    %27 = vector.load %arg3[%c0_37, %c0_38] : memref<1x8xf32, #tpu.memory_space<vmem>>, vector<1x8xf32>
    %28 = vector.broadcast %27 : vector<1x8xf32> to vector<256x8xf32>
    %29 = arith.addf %26, %28 : vector<256x8xf32>
    %cst_39 = arith.constant 0.000000e+00 : f32
    %30 = vector.broadcast %cst_39 : f32 to vector<256x8xf32>
    %31 = arith.maximumf %29, %30 : vector<256x8xf32>
    %cst_40 = arith.constant 0.000000e+00 : f32
    %32 = vector.broadcast %cst_40 : f32 to vector<18x18x128xf32>
    %c0_41 = arith.constant 0 : index
    %c0_42 = arith.constant 0 : index
    %c0_43 = arith.constant 0 : index
    %33 = vector.load %arg24[%c0_41, %c0_42, %c0_43] : memref<18x18x128xf32, #tpu.memory_space<vmem>>, vector<18x18x128xf32>
    tpu.vector_store %arg24[%c0_41, %c0_42, %c0_43], %32 {strides = array<i32>} : memref<18x18x128xf32, #tpu.memory_space<vmem>>, vector<18x18x128xf32>,
    %34 = vector.shape_cast %31 : vector<256x8xf32> to vector<16x16x8xf32>
    %c1_44 = arith.constant 1 : index
    %c1_45 = arith.constant 1 : index
    %c0_46 = arith.constant 0 : index
    %35 = vector.load %arg24[%c1_44, %c1_45, %c0_46] : memref<18x18x128xf32, #tpu.memory_space<vmem>>, vector<16x16x8xf32>
    tpu.vector_store %arg24[%c1_44, %c1_45, %c0_46], %34 {strides = array<i32>} : memref<18x18x128xf32, #tpu.memory_space<vmem>>, vector<16x16x8xf32>,
    %c0_47 = arith.constant 0 : index
    %c0_48 = arith.constant 0 : index
    %c0_49 = arith.constant 0 : index
    %36 = vector.load %arg24[%c0_47, %c0_48, %c0_49] : memref<18x18x128xf32, #tpu.memory_space<vmem>>, vector<16x16x128xf32>
    %37 = vector.shape_cast %36 : vector<16x16x128xf32> to vector<256x128xf32>
    %c0_50 = arith.constant 0 : index
    %c1_51 = arith.constant 1 : index
    %c0_52 = arith.constant 0 : index
    %38 = vector.load %arg24[%c0_50, %c1_51, %c0_52] : memref<18x18x128xf32, #tpu.memory_space<vmem>>, vector<16x16x128xf32>
    %39 = vector.shape_cast %38 : vector<16x16x128xf32> to vector<256x128xf32>
    %c0_53 = arith.constant 0 : index
    %c2_54 = arith.constant 2 : index
    %c0_55 = arith.constant 0 : index
    %40 = vector.load %arg24[%c0_53, %c2_54, %c0_55] : memref<18x18x128xf32, #tpu.memory_space<vmem>>, vector<16x16x128xf32>
    %41 = vector.shape_cast %40 : vector<16x16x128xf32> to vector<256x128xf32>
    %c1_56 = arith.constant 1 : index
    %c0_57 = arith.constant 0 : index
    %c0_58 = arith.constant 0 : index
    %42 = vector.load %arg24[%c1_56, %c0_57, %c0_58] : memref<18x18x128xf32, #tpu.memory_space<vmem>>, vector<16x16x128xf32>
    %43 = vector.shape_cast %42 : vector<16x16x128xf32> to vector<256x128xf32>
    %c1_59 = arith.constant 1 : index
    %c1_60 = arith.constant 1 : index
    %c0_61 = arith.constant 0 : index
    %44 = vector.load %arg24[%c1_59, %c1_60, %c0_61] : memref<18x18x128xf32, #tpu.memory_space<vmem>>, vector<16x16x128xf32>
    %45 = vector.shape_cast %44 : vector<16x16x128xf32> to vector<256x128xf32>
    %c1_62 = arith.constant 1 : index
    %c2_63 = arith.constant 2 : index
    %c0_64 = arith.constant 0 : index
    %46 = vector.load %arg24[%c1_62, %c2_63, %c0_64] : memref<18x18x128xf32, #tpu.memory_space<vmem>>, vector<16x16x128xf32>
    %47 = vector.shape_cast %46 : vector<16x16x128xf32> to vector<256x128xf32>
    %c2_65 = arith.constant 2 : index
    %c0_66 = arith.constant 0 : index
    %c0_67 = arith.constant 0 : index
    %48 = vector.load %arg24[%c2_65, %c0_66, %c0_67] : memref<18x18x128xf32, #tpu.memory_space<vmem>>, vector<16x16x128xf32>
    %49 = vector.shape_cast %48 : vector<16x16x128xf32> to vector<256x128xf32>
    %c2_68 = arith.constant 2 : index
    %c1_69 = arith.constant 1 : index
    %c0_70 = arith.constant 0 : index
    %50 = vector.load %arg24[%c2_68, %c1_69, %c0_70] : memref<18x18x128xf32, #tpu.memory_space<vmem>>, vector<16x16x128xf32>
    %51 = vector.shape_cast %50 : vector<16x16x128xf32> to vector<256x128xf32>
    %c2_71 = arith.constant 2 : index
    %c2_72 = arith.constant 2 : index
    %c0_73 = arith.constant 0 : index
    %52 = vector.load %arg24[%c2_71, %c2_72, %c0_73] : memref<18x18x128xf32, #tpu.memory_space<vmem>>, vector<16x16x128xf32>
    %53 = vector.shape_cast %52 : vector<16x16x128xf32> to vector<256x128xf32>
    %54 = tpu.concatenate %37, %39, %41, %43, %45, %47, %49, %51, %53 in 1 : vector<256x128xf32>, vector<256x128xf32>, vector<256x128xf32>, vector<256x128xf32>, vector<256x128xf32>, vector<256x128xf32>, vector<256x128xf32>, vector<256x128xf32>, vector<256x128xf32> -> vector<256x1152xf32>
    %55 = arith.truncf %54 : vector<256x1152xf32> to vector<256x1152xbf16>
    %c0_74 = arith.constant 0 : index
    %c0_75 = arith.constant 0 : index
    %56 = vector.load %arg4[%c0_74, %c0_75] : memref<1152x16xbf16, #tpu.memory_space<vmem>>, vector<1152x16xbf16>
    %cst_76 = arith.constant dense<0.000000e+00> : vector<256x16xf32>
    %57 = tpu.matmul %55, %56, %cst_76 {dimension_numbers = #tpu.dot_dimension_numbers<[1], [0], [0], [1], [0, 0, 1, 1], [], []>} : vector<256x1152xbf16>, vector<1152x16xbf16>, vector<256x16xf32> -> vector<256x16xf32>
    %c0_77 = arith.constant 0 : index
    %c0_78 = arith.constant 0 : index
    %58 = vector.load %arg5[%c0_77, %c0_78] : memref<1x16xf32, #tpu.memory_space<vmem>>, vector<1x16xf32>
    %59 = vector.broadcast %58 : vector<1x16xf32> to vector<256x16xf32>
    %60 = arith.addf %57, %59 : vector<256x16xf32>
    %cst_79 = arith.constant 0.000000e+00 : f32
    %61 = vector.broadcast %cst_79 : f32 to vector<256x16xf32>
    %62 = arith.maximumf %60, %61 : vector<256x16xf32>
    %c0_80 = arith.constant 0 : index
    %c0_81 = arith.constant 0 : index
    %63 = vector.load %arg20[%c0_80, %c0_81] : memref<64x256xf32, #tpu.memory_space<vmem>>, vector<64x256xf32>
    %cst_82 = arith.constant dense<0.000000e+00> : vector<64x16xf32>
    %64 = tpu.matmul %63, %62, %cst_82 {dimension_numbers = #tpu.dot_dimension_numbers<[1], [0], [0], [1], [0, 0, 1, 1], [], []>} : vector<64x256xf32>, vector<256x16xf32>, vector<64x16xf32> -> vector<64x16xf32>
    %cst_83 = arith.constant 0.000000e+00 : f32
    %65 = vector.broadcast %cst_83 : f32 to vector<10x10x128xf32>
    %c0_84 = arith.constant 0 : index
    %c0_85 = arith.constant 0 : index
    %c0_86 = arith.constant 0 : index
    %66 = vector.load %arg24[%c0_84, %c0_85, %c0_86] : memref<18x18x128xf32, #tpu.memory_space<vmem>>, vector<10x10x128xf32>
    tpu.vector_store %arg24[%c0_84, %c0_85, %c0_86], %65 {strides = array<i32>} : memref<18x18x128xf32, #tpu.memory_space<vmem>>, vector<10x10x128xf32>,
    %67 = vector.shape_cast %64 : vector<64x16xf32> to vector<8x8x16xf32>
    %c1_87 = arith.constant 1 : index
    %c1_88 = arith.constant 1 : index
    %c0_89 = arith.constant 0 : index
    %68 = vector.load %arg24[%c1_87, %c1_88, %c0_89] : memref<18x18x128xf32, #tpu.memory_space<vmem>>, vector<8x8x16xf32>
    tpu.vector_store %arg24[%c1_87, %c1_88, %c0_89], %67 {strides = array<i32>} : memref<18x18x128xf32, #tpu.memory_space<vmem>>, vector<8x8x16xf32>,
    %c0_90 = arith.constant 0 : index
    %c0_91 = arith.constant 0 : index
    %c0_92 = arith.constant 0 : index
    %69 = vector.load %arg24[%c0_90, %c0_91, %c0_92] : memref<18x18x128xf32, #tpu.memory_space<vmem>>, vector<8x8x128xf32>
    %70 = vector.shape_cast %69 : vector<8x8x128xf32> to vector<64x128xf32>
    %c0_93 = arith.constant 0 : index
    %c1_94 = arith.constant 1 : index
    %c0_95 = arith.constant 0 : index
    %71 = vector.load %arg24[%c0_93, %c1_94, %c0_95] : memref<18x18x128xf32, #tpu.memory_space<vmem>>, vector<8x8x128xf32>
    %72 = vector.shape_cast %71 : vector<8x8x128xf32> to vector<64x128xf32>
    %c0_96 = arith.constant 0 : index
    %c2_97 = arith.constant 2 : index
    %c0_98 = arith.constant 0 : index
    %73 = vector.load %arg24[%c0_96, %c2_97, %c0_98] : memref<18x18x128xf32, #tpu.memory_space<vmem>>, vector<8x8x128xf32>
    %74 = vector.shape_cast %73 : vector<8x8x128xf32> to vector<64x128xf32>
    %c1_99 = arith.constant 1 : index
    %c0_100 = arith.constant 0 : index
    %c0_101 = arith.constant 0 : index
    %75 = vector.load %arg24[%c1_99, %c0_100, %c0_101] : memref<18x18x128xf32, #tpu.memory_space<vmem>>, vector<8x8x128xf32>
    %76 = vector.shape_cast %75 : vector<8x8x128xf32> to vector<64x128xf32>
    %c1_102 = arith.constant 1 : index
    %c1_103 = arith.constant 1 : index
    %c0_104 = arith.constant 0 : index
    %77 = vector.load %arg24[%c1_102, %c1_103, %c0_104] : memref<18x18x128xf32, #tpu.memory_space<vmem>>, vector<8x8x128xf32>
    %78 = vector.shape_cast %77 : vector<8x8x128xf32> to vector<64x128xf32>
    %c1_105 = arith.constant 1 : index
    %c2_106 = arith.constant 2 : index
    %c0_107 = arith.constant 0 : index
    %79 = vector.load %arg24[%c1_105, %c2_106, %c0_107] : memref<18x18x128xf32, #tpu.memory_space<vmem>>, vector<8x8x128xf32>
    %80 = vector.shape_cast %79 : vector<8x8x128xf32> to vector<64x128xf32>
    %c2_108 = arith.constant 2 : index
    %c0_109 = arith.constant 0 : index
    %c0_110 = arith.constant 0 : index
    %81 = vector.load %arg24[%c2_108, %c0_109, %c0_110] : memref<18x18x128xf32, #tpu.memory_space<vmem>>, vector<8x8x128xf32>
    %82 = vector.shape_cast %81 : vector<8x8x128xf32> to vector<64x128xf32>
    %c2_111 = arith.constant 2 : index
    %c1_112 = arith.constant 1 : index
    %c0_113 = arith.constant 0 : index
    %83 = vector.load %arg24[%c2_111, %c1_112, %c0_113] : memref<18x18x128xf32, #tpu.memory_space<vmem>>, vector<8x8x128xf32>
    %84 = vector.shape_cast %83 : vector<8x8x128xf32> to vector<64x128xf32>
    %c2_114 = arith.constant 2 : index
    %c2_115 = arith.constant 2 : index
    %c0_116 = arith.constant 0 : index
    %85 = vector.load %arg24[%c2_114, %c2_115, %c0_116] : memref<18x18x128xf32, #tpu.memory_space<vmem>>, vector<8x8x128xf32>
    %86 = vector.shape_cast %85 : vector<8x8x128xf32> to vector<64x128xf32>
    %87 = tpu.concatenate %70, %72, %74, %76, %78, %80, %82, %84, %86 in 1 : vector<64x128xf32>, vector<64x128xf32>, vector<64x128xf32>, vector<64x128xf32>, vector<64x128xf32>, vector<64x128xf32>, vector<64x128xf32>, vector<64x128xf32>, vector<64x128xf32> -> vector<64x1152xf32>
    %88 = arith.truncf %87 : vector<64x1152xf32> to vector<64x1152xbf16>
    %c0_117 = arith.constant 0 : index
    %c0_118 = arith.constant 0 : index
    %89 = vector.load %arg6[%c0_117, %c0_118] : memref<1152x16xbf16, #tpu.memory_space<vmem>>, vector<1152x16xbf16>
    %cst_119 = arith.constant dense<0.000000e+00> : vector<64x16xf32>
    %90 = tpu.matmul %88, %89, %cst_119 {dimension_numbers = #tpu.dot_dimension_numbers<[1], [0], [0], [1], [0, 0, 1, 1], [], []>} : vector<64x1152xbf16>, vector<1152x16xbf16>, vector<64x16xf32> -> vector<64x16xf32>
    %c0_120 = arith.constant 0 : index
    %c0_121 = arith.constant 0 : index
    %91 = vector.load %arg7[%c0_120, %c0_121] : memref<1x16xf32, #tpu.memory_space<vmem>>, vector<1x16xf32>
    %92 = vector.broadcast %91 : vector<1x16xf32> to vector<64x16xf32>
    %93 = arith.addf %90, %92 : vector<64x16xf32>
    %cst_122 = arith.constant 0.000000e+00 : f32
    %94 = vector.broadcast %cst_122 : f32 to vector<64x16xf32>
    %95 = arith.maximumf %93, %94 : vector<64x16xf32>
    %cst_123 = arith.constant 0.000000e+00 : f32
    %96 = vector.broadcast %cst_123 : f32 to vector<10x10x128xf32>
    %c0_124 = arith.constant 0 : index
    %c0_125 = arith.constant 0 : index
    %c0_126 = arith.constant 0 : index
    %97 = vector.load %arg24[%c0_124, %c0_125, %c0_126] : memref<18x18x128xf32, #tpu.memory_space<vmem>>, vector<10x10x128xf32>
    tpu.vector_store %arg24[%c0_124, %c0_125, %c0_126], %96 {strides = array<i32>} : memref<18x18x128xf32, #tpu.memory_space<vmem>>, vector<10x10x128xf32>,
    %98 = vector.shape_cast %95 : vector<64x16xf32> to vector<8x8x16xf32>
    %c1_127 = arith.constant 1 : index
    %c1_128 = arith.constant 1 : index
    %c0_129 = arith.constant 0 : index
    %99 = vector.load %arg24[%c1_127, %c1_128, %c0_129] : memref<18x18x128xf32, #tpu.memory_space<vmem>>, vector<8x8x16xf32>
    tpu.vector_store %arg24[%c1_127, %c1_128, %c0_129], %98 {strides = array<i32>} : memref<18x18x128xf32, #tpu.memory_space<vmem>>, vector<8x8x16xf32>,
    %c0_130 = arith.constant 0 : index
    %c0_131 = arith.constant 0 : index
    %c0_132 = arith.constant 0 : index
    %100 = vector.load %arg24[%c0_130, %c0_131, %c0_132] : memref<18x18x128xf32, #tpu.memory_space<vmem>>, vector<8x8x128xf32>
    %101 = vector.shape_cast %100 : vector<8x8x128xf32> to vector<64x128xf32>
    %c0_133 = arith.constant 0 : index
    %c1_134 = arith.constant 1 : index
    %c0_135 = arith.constant 0 : index
    %102 = vector.load %arg24[%c0_133, %c1_134, %c0_135] : memref<18x18x128xf32, #tpu.memory_space<vmem>>, vector<8x8x128xf32>
    %103 = vector.shape_cast %102 : vector<8x8x128xf32> to vector<64x128xf32>
    %c0_136 = arith.constant 0 : index
    %c2_137 = arith.constant 2 : index
    %c0_138 = arith.constant 0 : index
    %104 = vector.load %arg24[%c0_136, %c2_137, %c0_138] : memref<18x18x128xf32, #tpu.memory_space<vmem>>, vector<8x8x128xf32>
    %105 = vector.shape_cast %104 : vector<8x8x128xf32> to vector<64x128xf32>
    %c1_139 = arith.constant 1 : index
    %c0_140 = arith.constant 0 : index
    %c0_141 = arith.constant 0 : index
    %106 = vector.load %arg24[%c1_139, %c0_140, %c0_141] : memref<18x18x128xf32, #tpu.memory_space<vmem>>, vector<8x8x128xf32>
    %107 = vector.shape_cast %106 : vector<8x8x128xf32> to vector<64x128xf32>
    %c1_142 = arith.constant 1 : index
    %c1_143 = arith.constant 1 : index
    %c0_144 = arith.constant 0 : index
    %108 = vector.load %arg24[%c1_142, %c1_143, %c0_144] : memref<18x18x128xf32, #tpu.memory_space<vmem>>, vector<8x8x128xf32>
    %109 = vector.shape_cast %108 : vector<8x8x128xf32> to vector<64x128xf32>
    %c1_145 = arith.constant 1 : index
    %c2_146 = arith.constant 2 : index
    %c0_147 = arith.constant 0 : index
    %110 = vector.load %arg24[%c1_145, %c2_146, %c0_147] : memref<18x18x128xf32, #tpu.memory_space<vmem>>, vector<8x8x128xf32>
    %111 = vector.shape_cast %110 : vector<8x8x128xf32> to vector<64x128xf32>
    %c2_148 = arith.constant 2 : index
    %c0_149 = arith.constant 0 : index
    %c0_150 = arith.constant 0 : index
    %112 = vector.load %arg24[%c2_148, %c0_149, %c0_150] : memref<18x18x128xf32, #tpu.memory_space<vmem>>, vector<8x8x128xf32>
    %113 = vector.shape_cast %112 : vector<8x8x128xf32> to vector<64x128xf32>
    %c2_151 = arith.constant 2 : index
    %c1_152 = arith.constant 1 : index
    %c0_153 = arith.constant 0 : index
    %114 = vector.load %arg24[%c2_151, %c1_152, %c0_153] : memref<18x18x128xf32, #tpu.memory_space<vmem>>, vector<8x8x128xf32>
    %115 = vector.shape_cast %114 : vector<8x8x128xf32> to vector<64x128xf32>
    %c2_154 = arith.constant 2 : index
    %c2_155 = arith.constant 2 : index
    %c0_156 = arith.constant 0 : index
    %116 = vector.load %arg24[%c2_154, %c2_155, %c0_156] : memref<18x18x128xf32, #tpu.memory_space<vmem>>, vector<8x8x128xf32>
    %117 = vector.shape_cast %116 : vector<8x8x128xf32> to vector<64x128xf32>
    %118 = tpu.concatenate %101, %103, %105, %107, %109, %111, %113, %115, %117 in 1 : vector<64x128xf32>, vector<64x128xf32>, vector<64x128xf32>, vector<64x128xf32>, vector<64x128xf32>, vector<64x128xf32>, vector<64x128xf32>, vector<64x128xf32>, vector<64x128xf32> -> vector<64x1152xf32>
    %119 = arith.truncf %118 : vector<64x1152xf32> to vector<64x1152xbf16>
    %c0_157 = arith.constant 0 : index
    %c0_158 = arith.constant 0 : index
    %120 = vector.load %arg8[%c0_157, %c0_158] : memref<1152x16xbf16, #tpu.memory_space<vmem>>, vector<1152x16xbf16>
    %cst_159 = arith.constant dense<0.000000e+00> : vector<64x16xf32>
    %121 = tpu.matmul %119, %120, %cst_159 {dimension_numbers = #tpu.dot_dimension_numbers<[1], [0], [0], [1], [0, 0, 1, 1], [], []>} : vector<64x1152xbf16>, vector<1152x16xbf16>, vector<64x16xf32> -> vector<64x16xf32>
    %c0_160 = arith.constant 0 : index
    %c0_161 = arith.constant 0 : index
    %122 = vector.load %arg9[%c0_160, %c0_161] : memref<1x16xf32, #tpu.memory_space<vmem>>, vector<1x16xf32>
    %123 = vector.broadcast %122 : vector<1x16xf32> to vector<64x16xf32>
    %124 = arith.addf %121, %123 : vector<64x16xf32>
    %125 = arith.addf %64, %124 : vector<64x16xf32>
    %cst_162 = arith.constant 0.000000e+00 : f32
    %126 = vector.broadcast %cst_162 : f32 to vector<64x16xf32>
    %127 = arith.maximumf %125, %126 : vector<64x16xf32>
    %cst_163 = arith.constant 0.000000e+00 : f32
    %128 = vector.broadcast %cst_163 : f32 to vector<10x10x128xf32>
    %c0_164 = arith.constant 0 : index
    %c0_165 = arith.constant 0 : index
    %c0_166 = arith.constant 0 : index
    %129 = vector.load %arg24[%c0_164, %c0_165, %c0_166] : memref<18x18x128xf32, #tpu.memory_space<vmem>>, vector<10x10x128xf32>
    tpu.vector_store %arg24[%c0_164, %c0_165, %c0_166], %128 {strides = array<i32>} : memref<18x18x128xf32, #tpu.memory_space<vmem>>, vector<10x10x128xf32>,
    %130 = vector.shape_cast %127 : vector<64x16xf32> to vector<8x8x16xf32>
    %c1_167 = arith.constant 1 : index
    %c1_168 = arith.constant 1 : index
    %c0_169 = arith.constant 0 : index
    %131 = vector.load %arg24[%c1_167, %c1_168, %c0_169] : memref<18x18x128xf32, #tpu.memory_space<vmem>>, vector<8x8x16xf32>
    tpu.vector_store %arg24[%c1_167, %c1_168, %c0_169], %130 {strides = array<i32>} : memref<18x18x128xf32, #tpu.memory_space<vmem>>, vector<8x8x16xf32>,
    %c0_170 = arith.constant 0 : index
    %c0_171 = arith.constant 0 : index
    %c0_172 = arith.constant 0 : index
    %132 = vector.load %arg24[%c0_170, %c0_171, %c0_172] : memref<18x18x128xf32, #tpu.memory_space<vmem>>, vector<8x8x128xf32>
    %133 = vector.shape_cast %132 : vector<8x8x128xf32> to vector<64x128xf32>
    %c0_173 = arith.constant 0 : index
    %c1_174 = arith.constant 1 : index
    %c0_175 = arith.constant 0 : index
    %134 = vector.load %arg24[%c0_173, %c1_174, %c0_175] : memref<18x18x128xf32, #tpu.memory_space<vmem>>, vector<8x8x128xf32>
    %135 = vector.shape_cast %134 : vector<8x8x128xf32> to vector<64x128xf32>
    %c0_176 = arith.constant 0 : index
    %c2_177 = arith.constant 2 : index
    %c0_178 = arith.constant 0 : index
    %136 = vector.load %arg24[%c0_176, %c2_177, %c0_178] : memref<18x18x128xf32, #tpu.memory_space<vmem>>, vector<8x8x128xf32>
    %137 = vector.shape_cast %136 : vector<8x8x128xf32> to vector<64x128xf32>
    %c1_179 = arith.constant 1 : index
    %c0_180 = arith.constant 0 : index
    %c0_181 = arith.constant 0 : index
    %138 = vector.load %arg24[%c1_179, %c0_180, %c0_181] : memref<18x18x128xf32, #tpu.memory_space<vmem>>, vector<8x8x128xf32>
    %139 = vector.shape_cast %138 : vector<8x8x128xf32> to vector<64x128xf32>
    %c1_182 = arith.constant 1 : index
    %c1_183 = arith.constant 1 : index
    %c0_184 = arith.constant 0 : index
    %140 = vector.load %arg24[%c1_182, %c1_183, %c0_184] : memref<18x18x128xf32, #tpu.memory_space<vmem>>, vector<8x8x128xf32>
    %141 = vector.shape_cast %140 : vector<8x8x128xf32> to vector<64x128xf32>
    %c1_185 = arith.constant 1 : index
    %c2_186 = arith.constant 2 : index
    %c0_187 = arith.constant 0 : index
    %142 = vector.load %arg24[%c1_185, %c2_186, %c0_187] : memref<18x18x128xf32, #tpu.memory_space<vmem>>, vector<8x8x128xf32>
    %143 = vector.shape_cast %142 : vector<8x8x128xf32> to vector<64x128xf32>
    %c2_188 = arith.constant 2 : index
    %c0_189 = arith.constant 0 : index
    %c0_190 = arith.constant 0 : index
    %144 = vector.load %arg24[%c2_188, %c0_189, %c0_190] : memref<18x18x128xf32, #tpu.memory_space<vmem>>, vector<8x8x128xf32>
    %145 = vector.shape_cast %144 : vector<8x8x128xf32> to vector<64x128xf32>
    %c2_191 = arith.constant 2 : index
    %c1_192 = arith.constant 1 : index
    %c0_193 = arith.constant 0 : index
    %146 = vector.load %arg24[%c2_191, %c1_192, %c0_193] : memref<18x18x128xf32, #tpu.memory_space<vmem>>, vector<8x8x128xf32>
    %147 = vector.shape_cast %146 : vector<8x8x128xf32> to vector<64x128xf32>
    %c2_194 = arith.constant 2 : index
    %c2_195 = arith.constant 2 : index
    %c0_196 = arith.constant 0 : index
    %148 = vector.load %arg24[%c2_194, %c2_195, %c0_196] : memref<18x18x128xf32, #tpu.memory_space<vmem>>, vector<8x8x128xf32>
    %149 = vector.shape_cast %148 : vector<8x8x128xf32> to vector<64x128xf32>
    %150 = tpu.concatenate %133, %135, %137, %139, %141, %143, %145, %147, %149 in 1 : vector<64x128xf32>, vector<64x128xf32>, vector<64x128xf32>, vector<64x128xf32>, vector<64x128xf32>, vector<64x128xf32>, vector<64x128xf32>, vector<64x128xf32>, vector<64x128xf32> -> vector<64x1152xf32>
    %151 = arith.truncf %150 : vector<64x1152xf32> to vector<64x1152xbf16>
    %c0_197 = arith.constant 0 : index
    %c0_198 = arith.constant 0 : index
    %152 = vector.load %arg10[%c0_197, %c0_198] : memref<1152x32xbf16, #tpu.memory_space<vmem>>, vector<1152x32xbf16>
    %cst_199 = arith.constant dense<0.000000e+00> : vector<64x32xf32>
    %153 = tpu.matmul %151, %152, %cst_199 {dimension_numbers = #tpu.dot_dimension_numbers<[1], [0], [0], [1], [0, 0, 1, 1], [], []>} : vector<64x1152xbf16>, vector<1152x32xbf16>, vector<64x32xf32> -> vector<64x32xf32>
    %c0_200 = arith.constant 0 : index
    %c0_201 = arith.constant 0 : index
    %154 = vector.load %arg11[%c0_200, %c0_201] : memref<1x32xf32, #tpu.memory_space<vmem>>, vector<1x32xf32>
    %155 = vector.broadcast %154 : vector<1x32xf32> to vector<64x32xf32>
    %156 = arith.addf %153, %155 : vector<64x32xf32>
    %cst_202 = arith.constant 0.000000e+00 : f32
    %157 = vector.broadcast %cst_202 : f32 to vector<64x32xf32>
    %158 = arith.maximumf %156, %157 : vector<64x32xf32>
    %c0_203 = arith.constant 0 : index
    %c0_204 = arith.constant 0 : index
    %159 = vector.load %arg21[%c0_203, %c0_204] : memref<16x64xf32, #tpu.memory_space<vmem>>, vector<16x64xf32>
    %cst_205 = arith.constant dense<0.000000e+00> : vector<16x32xf32>
    %160 = tpu.matmul %159, %158, %cst_205 {dimension_numbers = #tpu.dot_dimension_numbers<[1], [0], [0], [1], [0, 0, 1, 1], [], []>} : vector<16x64xf32>, vector<64x32xf32>, vector<16x32xf32> -> vector<16x32xf32>
    %cst_206 = arith.constant 0.000000e+00 : f32
    %161 = vector.broadcast %cst_206 : f32 to vector<6x6x128xf32>
    %c0_207 = arith.constant 0 : index
    %c0_208 = arith.constant 0 : index
    %c0_209 = arith.constant 0 : index
    %162 = vector.load %arg24[%c0_207, %c0_208, %c0_209] : memref<18x18x128xf32, #tpu.memory_space<vmem>>, vector<6x6x128xf32>
    tpu.vector_store %arg24[%c0_207, %c0_208, %c0_209], %161 {strides = array<i32>} : memref<18x18x128xf32, #tpu.memory_space<vmem>>, vector<6x6x128xf32>,
    %163 = vector.shape_cast %160 : vector<16x32xf32> to vector<4x4x32xf32>
    %c1_210 = arith.constant 1 : index
    %c1_211 = arith.constant 1 : index
    %c0_212 = arith.constant 0 : index
    %164 = vector.load %arg24[%c1_210, %c1_211, %c0_212] : memref<18x18x128xf32, #tpu.memory_space<vmem>>, vector<4x4x32xf32>
    tpu.vector_store %arg24[%c1_210, %c1_211, %c0_212], %163 {strides = array<i32>} : memref<18x18x128xf32, #tpu.memory_space<vmem>>, vector<4x4x32xf32>,
    %c0_213 = arith.constant 0 : index
    %c0_214 = arith.constant 0 : index
    %c0_215 = arith.constant 0 : index
    %165 = vector.load %arg24[%c0_213, %c0_214, %c0_215] : memref<18x18x128xf32, #tpu.memory_space<vmem>>, vector<4x4x128xf32>
    %166 = vector.shape_cast %165 : vector<4x4x128xf32> to vector<16x128xf32>
    %c0_216 = arith.constant 0 : index
    %c1_217 = arith.constant 1 : index
    %c0_218 = arith.constant 0 : index
    %167 = vector.load %arg24[%c0_216, %c1_217, %c0_218] : memref<18x18x128xf32, #tpu.memory_space<vmem>>, vector<4x4x128xf32>
    %168 = vector.shape_cast %167 : vector<4x4x128xf32> to vector<16x128xf32>
    %c0_219 = arith.constant 0 : index
    %c2_220 = arith.constant 2 : index
    %c0_221 = arith.constant 0 : index
    %169 = vector.load %arg24[%c0_219, %c2_220, %c0_221] : memref<18x18x128xf32, #tpu.memory_space<vmem>>, vector<4x4x128xf32>
    %170 = vector.shape_cast %169 : vector<4x4x128xf32> to vector<16x128xf32>
    %c1_222 = arith.constant 1 : index
    %c0_223 = arith.constant 0 : index
    %c0_224 = arith.constant 0 : index
    %171 = vector.load %arg24[%c1_222, %c0_223, %c0_224] : memref<18x18x128xf32, #tpu.memory_space<vmem>>, vector<4x4x128xf32>
    %172 = vector.shape_cast %171 : vector<4x4x128xf32> to vector<16x128xf32>
    %c1_225 = arith.constant 1 : index
    %c1_226 = arith.constant 1 : index
    %c0_227 = arith.constant 0 : index
    %173 = vector.load %arg24[%c1_225, %c1_226, %c0_227] : memref<18x18x128xf32, #tpu.memory_space<vmem>>, vector<4x4x128xf32>
    %174 = vector.shape_cast %173 : vector<4x4x128xf32> to vector<16x128xf32>
    %c1_228 = arith.constant 1 : index
    %c2_229 = arith.constant 2 : index
    %c0_230 = arith.constant 0 : index
    %175 = vector.load %arg24[%c1_228, %c2_229, %c0_230] : memref<18x18x128xf32, #tpu.memory_space<vmem>>, vector<4x4x128xf32>
    %176 = vector.shape_cast %175 : vector<4x4x128xf32> to vector<16x128xf32>
    %c2_231 = arith.constant 2 : index
    %c0_232 = arith.constant 0 : index
    %c0_233 = arith.constant 0 : index
    %177 = vector.load %arg24[%c2_231, %c0_232, %c0_233] : memref<18x18x128xf32, #tpu.memory_space<vmem>>, vector<4x4x128xf32>
    %178 = vector.shape_cast %177 : vector<4x4x128xf32> to vector<16x128xf32>
    %c2_234 = arith.constant 2 : index
    %c1_235 = arith.constant 1 : index
    %c0_236 = arith.constant 0 : index
    %179 = vector.load %arg24[%c2_234, %c1_235, %c0_236] : memref<18x18x128xf32, #tpu.memory_space<vmem>>, vector<4x4x128xf32>
    %180 = vector.shape_cast %179 : vector<4x4x128xf32> to vector<16x128xf32>
    %c2_237 = arith.constant 2 : index
    %c2_238 = arith.constant 2 : index
    %c0_239 = arith.constant 0 : index
    %181 = vector.load %arg24[%c2_237, %c2_238, %c0_239] : memref<18x18x128xf32, #tpu.memory_space<vmem>>, vector<4x4x128xf32>
    %182 = vector.shape_cast %181 : vector<4x4x128xf32> to vector<16x128xf32>
    %183 = tpu.concatenate %166, %168, %170, %172, %174, %176, %178, %180, %182 in 1 : vector<16x128xf32>, vector<16x128xf32>, vector<16x128xf32>, vector<16x128xf32>, vector<16x128xf32>, vector<16x128xf32>, vector<16x128xf32>, vector<16x128xf32>, vector<16x128xf32> -> vector<16x1152xf32>
    %184 = arith.truncf %183 : vector<16x1152xf32> to vector<16x1152xbf16>
    %c0_240 = arith.constant 0 : index
    %c0_241 = arith.constant 0 : index
    %185 = vector.load %arg12[%c0_240, %c0_241] : memref<1152x32xbf16, #tpu.memory_space<vmem>>, vector<1152x32xbf16>
    %cst_242 = arith.constant dense<0.000000e+00> : vector<16x32xf32>
    %186 = tpu.matmul %184, %185, %cst_242 {dimension_numbers = #tpu.dot_dimension_numbers<[1], [0], [0], [1], [0, 0, 1, 1], [], []>} : vector<16x1152xbf16>, vector<1152x32xbf16>, vector<16x32xf32> -> vector<16x32xf32>
    %c0_243 = arith.constant 0 : index
    %c0_244 = arith.constant 0 : index
    %187 = vector.load %arg13[%c0_243, %c0_244] : memref<1x32xf32, #tpu.memory_space<vmem>>, vector<1x32xf32>
    %188 = vector.broadcast %187 : vector<1x32xf32> to vector<16x32xf32>
    %189 = arith.addf %186, %188 : vector<16x32xf32>
    %cst_245 = arith.constant 0.000000e+00 : f32
    %190 = vector.broadcast %cst_245 : f32 to vector<16x32xf32>
    %191 = arith.maximumf %189, %190 : vector<16x32xf32>
    %cst_246 = arith.constant 0.000000e+00 : f32
    %192 = vector.broadcast %cst_246 : f32 to vector<6x6x128xf32>
    %c0_247 = arith.constant 0 : index
    %c0_248 = arith.constant 0 : index
    %c0_249 = arith.constant 0 : index
    %193 = vector.load %arg24[%c0_247, %c0_248, %c0_249] : memref<18x18x128xf32, #tpu.memory_space<vmem>>, vector<6x6x128xf32>
    tpu.vector_store %arg24[%c0_247, %c0_248, %c0_249], %192 {strides = array<i32>} : memref<18x18x128xf32, #tpu.memory_space<vmem>>, vector<6x6x128xf32>,
    %194 = vector.shape_cast %191 : vector<16x32xf32> to vector<4x4x32xf32>
    %c1_250 = arith.constant 1 : index
    %c1_251 = arith.constant 1 : index
    %c0_252 = arith.constant 0 : index
    %195 = vector.load %arg24[%c1_250, %c1_251, %c0_252] : memref<18x18x128xf32, #tpu.memory_space<vmem>>, vector<4x4x32xf32>
    tpu.vector_store %arg24[%c1_250, %c1_251, %c0_252], %194 {strides = array<i32>} : memref<18x18x128xf32, #tpu.memory_space<vmem>>, vector<4x4x32xf32>,
    %c0_253 = arith.constant 0 : index
    %c0_254 = arith.constant 0 : index
    %c0_255 = arith.constant 0 : index
    %196 = vector.load %arg24[%c0_253, %c0_254, %c0_255] : memref<18x18x128xf32, #tpu.memory_space<vmem>>, vector<4x4x128xf32>
    %197 = vector.shape_cast %196 : vector<4x4x128xf32> to vector<16x128xf32>
    %c0_256 = arith.constant 0 : index
    %c1_257 = arith.constant 1 : index
    %c0_258 = arith.constant 0 : index
    %198 = vector.load %arg24[%c0_256, %c1_257, %c0_258] : memref<18x18x128xf32, #tpu.memory_space<vmem>>, vector<4x4x128xf32>
    %199 = vector.shape_cast %198 : vector<4x4x128xf32> to vector<16x128xf32>
    %c0_259 = arith.constant 0 : index
    %c2_260 = arith.constant 2 : index
    %c0_261 = arith.constant 0 : index
    %200 = vector.load %arg24[%c0_259, %c2_260, %c0_261] : memref<18x18x128xf32, #tpu.memory_space<vmem>>, vector<4x4x128xf32>
    %201 = vector.shape_cast %200 : vector<4x4x128xf32> to vector<16x128xf32>
    %c1_262 = arith.constant 1 : index
    %c0_263 = arith.constant 0 : index
    %c0_264 = arith.constant 0 : index
    %202 = vector.load %arg24[%c1_262, %c0_263, %c0_264] : memref<18x18x128xf32, #tpu.memory_space<vmem>>, vector<4x4x128xf32>
    %203 = vector.shape_cast %202 : vector<4x4x128xf32> to vector<16x128xf32>
    %c1_265 = arith.constant 1 : index
    %c1_266 = arith.constant 1 : index
    %c0_267 = arith.constant 0 : index
    %204 = vector.load %arg24[%c1_265, %c1_266, %c0_267] : memref<18x18x128xf32, #tpu.memory_space<vmem>>, vector<4x4x128xf32>
    %205 = vector.shape_cast %204 : vector<4x4x128xf32> to vector<16x128xf32>
    %c1_268 = arith.constant 1 : index
    %c2_269 = arith.constant 2 : index
    %c0_270 = arith.constant 0 : index
    %206 = vector.load %arg24[%c1_268, %c2_269, %c0_270] : memref<18x18x128xf32, #tpu.memory_space<vmem>>, vector<4x4x128xf32>
    %207 = vector.shape_cast %206 : vector<4x4x128xf32> to vector<16x128xf32>
    %c2_271 = arith.constant 2 : index
    %c0_272 = arith.constant 0 : index
    %c0_273 = arith.constant 0 : index
    %208 = vector.load %arg24[%c2_271, %c0_272, %c0_273] : memref<18x18x128xf32, #tpu.memory_space<vmem>>, vector<4x4x128xf32>
    %209 = vector.shape_cast %208 : vector<4x4x128xf32> to vector<16x128xf32>
    %c2_274 = arith.constant 2 : index
    %c1_275 = arith.constant 1 : index
    %c0_276 = arith.constant 0 : index
    %210 = vector.load %arg24[%c2_274, %c1_275, %c0_276] : memref<18x18x128xf32, #tpu.memory_space<vmem>>, vector<4x4x128xf32>
    %211 = vector.shape_cast %210 : vector<4x4x128xf32> to vector<16x128xf32>
    %c2_277 = arith.constant 2 : index
    %c2_278 = arith.constant 2 : index
    %c0_279 = arith.constant 0 : index
    %212 = vector.load %arg24[%c2_277, %c2_278, %c0_279] : memref<18x18x128xf32, #tpu.memory_space<vmem>>, vector<4x4x128xf32>
    %213 = vector.shape_cast %212 : vector<4x4x128xf32> to vector<16x128xf32>
    %214 = tpu.concatenate %197, %199, %201, %203, %205, %207, %209, %211, %213 in 1 : vector<16x128xf32>, vector<16x128xf32>, vector<16x128xf32>, vector<16x128xf32>, vector<16x128xf32>, vector<16x128xf32>, vector<16x128xf32>, vector<16x128xf32>, vector<16x128xf32> -> vector<16x1152xf32>
    %215 = arith.truncf %214 : vector<16x1152xf32> to vector<16x1152xbf16>
    %c0_280 = arith.constant 0 : index
    %c0_281 = arith.constant 0 : index
    %216 = vector.load %arg14[%c0_280, %c0_281] : memref<1152x32xbf16, #tpu.memory_space<vmem>>, vector<1152x32xbf16>
    %cst_282 = arith.constant dense<0.000000e+00> : vector<16x32xf32>
    %217 = tpu.matmul %215, %216, %cst_282 {dimension_numbers = #tpu.dot_dimension_numbers<[1], [0], [0], [1], [0, 0, 1, 1], [], []>} : vector<16x1152xbf16>, vector<1152x32xbf16>, vector<16x32xf32> -> vector<16x32xf32>
    %c0_283 = arith.constant 0 : index
    %c0_284 = arith.constant 0 : index
    %218 = vector.load %arg15[%c0_283, %c0_284] : memref<1x32xf32, #tpu.memory_space<vmem>>, vector<1x32xf32>
    %219 = vector.broadcast %218 : vector<1x32xf32> to vector<16x32xf32>
    %220 = arith.addf %217, %219 : vector<16x32xf32>
    %221 = arith.addf %160, %220 : vector<16x32xf32>
    %cst_285 = arith.constant 0.000000e+00 : f32
    %222 = vector.broadcast %cst_285 : f32 to vector<16x32xf32>
    %223 = arith.maximumf %221, %222 : vector<16x32xf32>
    %cst_286 = arith.constant 0.000000e+00 : f32
    %224 = vector.broadcast %cst_286 : f32 to vector<6x6x128xf32>
    %c0_287 = arith.constant 0 : index
    %c0_288 = arith.constant 0 : index
    %c0_289 = arith.constant 0 : index
    %225 = vector.load %arg24[%c0_287, %c0_288, %c0_289] : memref<18x18x128xf32, #tpu.memory_space<vmem>>, vector<6x6x128xf32>
    tpu.vector_store %arg24[%c0_287, %c0_288, %c0_289], %224 {strides = array<i32>} : memref<18x18x128xf32, #tpu.memory_space<vmem>>, vector<6x6x128xf32>,
    %226 = vector.shape_cast %223 : vector<16x32xf32> to vector<4x4x32xf32>
    %c1_290 = arith.constant 1 : index
    %c1_291 = arith.constant 1 : index
    %c0_292 = arith.constant 0 : index
    %227 = vector.load %arg24[%c1_290, %c1_291, %c0_292] : memref<18x18x128xf32, #tpu.memory_space<vmem>>, vector<4x4x32xf32>
    tpu.vector_store %arg24[%c1_290, %c1_291, %c0_292], %226 {strides = array<i32>} : memref<18x18x128xf32, #tpu.memory_space<vmem>>, vector<4x4x32xf32>,
    %c0_293 = arith.constant 0 : index
    %c0_294 = arith.constant 0 : index
    %c0_295 = arith.constant 0 : index
    %228 = vector.load %arg24[%c0_293, %c0_294, %c0_295] : memref<18x18x128xf32, #tpu.memory_space<vmem>>, vector<4x4x128xf32>
    %229 = vector.shape_cast %228 : vector<4x4x128xf32> to vector<16x128xf32>
    %c0_296 = arith.constant 0 : index
    %c1_297 = arith.constant 1 : index
    %c0_298 = arith.constant 0 : index
    %230 = vector.load %arg24[%c0_296, %c1_297, %c0_298] : memref<18x18x128xf32, #tpu.memory_space<vmem>>, vector<4x4x128xf32>
    %231 = vector.shape_cast %230 : vector<4x4x128xf32> to vector<16x128xf32>
    %c0_299 = arith.constant 0 : index
    %c2_300 = arith.constant 2 : index
    %c0_301 = arith.constant 0 : index
    %232 = vector.load %arg24[%c0_299, %c2_300, %c0_301] : memref<18x18x128xf32, #tpu.memory_space<vmem>>, vector<4x4x128xf32>
    %233 = vector.shape_cast %232 : vector<4x4x128xf32> to vector<16x128xf32>
    %c1_302 = arith.constant 1 : index
    %c0_303 = arith.constant 0 : index
    %c0_304 = arith.constant 0 : index
    %234 = vector.load %arg24[%c1_302, %c0_303, %c0_304] : memref<18x18x128xf32, #tpu.memory_space<vmem>>, vector<4x4x128xf32>
    %235 = vector.shape_cast %234 : vector<4x4x128xf32> to vector<16x128xf32>
    %c1_305 = arith.constant 1 : index
    %c1_306 = arith.constant 1 : index
    %c0_307 = arith.constant 0 : index
    %236 = vector.load %arg24[%c1_305, %c1_306, %c0_307] : memref<18x18x128xf32, #tpu.memory_space<vmem>>, vector<4x4x128xf32>
    %237 = vector.shape_cast %236 : vector<4x4x128xf32> to vector<16x128xf32>
    %c1_308 = arith.constant 1 : index
    %c2_309 = arith.constant 2 : index
    %c0_310 = arith.constant 0 : index
    %238 = vector.load %arg24[%c1_308, %c2_309, %c0_310] : memref<18x18x128xf32, #tpu.memory_space<vmem>>, vector<4x4x128xf32>
    %239 = vector.shape_cast %238 : vector<4x4x128xf32> to vector<16x128xf32>
    %c2_311 = arith.constant 2 : index
    %c0_312 = arith.constant 0 : index
    %c0_313 = arith.constant 0 : index
    %240 = vector.load %arg24[%c2_311, %c0_312, %c0_313] : memref<18x18x128xf32, #tpu.memory_space<vmem>>, vector<4x4x128xf32>
    %241 = vector.shape_cast %240 : vector<4x4x128xf32> to vector<16x128xf32>
    %c2_314 = arith.constant 2 : index
    %c1_315 = arith.constant 1 : index
    %c0_316 = arith.constant 0 : index
    %242 = vector.load %arg24[%c2_314, %c1_315, %c0_316] : memref<18x18x128xf32, #tpu.memory_space<vmem>>, vector<4x4x128xf32>
    %243 = vector.shape_cast %242 : vector<4x4x128xf32> to vector<16x128xf32>
    %c2_317 = arith.constant 2 : index
    %c2_318 = arith.constant 2 : index
    %c0_319 = arith.constant 0 : index
    %244 = vector.load %arg24[%c2_317, %c2_318, %c0_319] : memref<18x18x128xf32, #tpu.memory_space<vmem>>, vector<4x4x128xf32>
    %245 = vector.shape_cast %244 : vector<4x4x128xf32> to vector<16x128xf32>
    %246 = tpu.concatenate %229, %231, %233, %235, %237, %239, %241, %243, %245 in 1 : vector<16x128xf32>, vector<16x128xf32>, vector<16x128xf32>, vector<16x128xf32>, vector<16x128xf32>, vector<16x128xf32>, vector<16x128xf32>, vector<16x128xf32>, vector<16x128xf32> -> vector<16x1152xf32>
    %247 = arith.truncf %246 : vector<16x1152xf32> to vector<16x1152xbf16>
    %c0_320 = arith.constant 0 : index
    %c0_321 = arith.constant 0 : index
    %248 = vector.load %arg16[%c0_320, %c0_321] : memref<1152x4xbf16, #tpu.memory_space<vmem>>, vector<1152x4xbf16>
    %cst_322 = arith.constant dense<0.000000e+00> : vector<16x4xf32>
    %249 = tpu.matmul %247, %248, %cst_322 {dimension_numbers = #tpu.dot_dimension_numbers<[1], [0], [0], [1], [0, 0, 1, 1], [], []>} : vector<16x1152xbf16>, vector<1152x4xbf16>, vector<16x4xf32> -> vector<16x4xf32>
    %c0_323 = arith.constant 0 : index
    %c0_324 = arith.constant 0 : index
    %250 = vector.load %arg17[%c0_323, %c0_324] : memref<1x4xf32, #tpu.memory_space<vmem>>, vector<1x4xf32>
    %251 = vector.broadcast %250 : vector<1x4xf32> to vector<16x4xf32>
    %252 = arith.addf %249, %251 : vector<16x4xf32>
    %c0_325 = arith.constant 0 : index
    %c0_326 = arith.constant 0 : index
    %253 = vector.load %arg18[%c0_325, %c0_326] : memref<1152x4xbf16, #tpu.memory_space<vmem>>, vector<1152x4xbf16>
    %cst_327 = arith.constant dense<0.000000e+00> : vector<16x4xf32>
    %254 = tpu.matmul %247, %253, %cst_327 {dimension_numbers = #tpu.dot_dimension_numbers<[1], [0], [0], [1], [0, 0, 1, 1], [], []>} : vector<16x1152xbf16>, vector<1152x4xbf16>, vector<16x4xf32> -> vector<16x4xf32>
    %c0_328 = arith.constant 0 : index
    %c0_329 = arith.constant 0 : index
    %255 = vector.load %arg19[%c0_328, %c0_329] : memref<1x4xf32, #tpu.memory_space<vmem>>, vector<1x4xf32>
    %256 = vector.broadcast %255 : vector<1x4xf32> to vector<16x4xf32>
    %257 = arith.addf %254, %256 : vector<16x4xf32>
    %258 = vector.shape_cast %252 : vector<16x4xf32> to vector<4x4x4xf32>
    %c0_330 = arith.constant 0 : index
    %c0_331 = arith.constant 0 : index
    %c0_332 = arith.constant 0 : index
    %c0_333 = arith.constant 0 : index
    %259 = vector.load %arg22[%c0_330, %c0_331, %c0_332, %c0_333] : memref<1x4x4x4xf32, #tpu.memory_space<vmem>>, vector<1x4x4x4xf32>
    %260 = vector.shape_cast %259 : vector<1x4x4x4xf32> to vector<4x4x4xf32>
    %261 = vector.shape_cast %258 : vector<4x4x4xf32> to vector<1x4x4x4xf32>
    tpu.vector_store %arg22[%c0_330, %c0_331, %c0_332, %c0_333], %261 {strides = array<i32>} : memref<1x4x4x4xf32, #tpu.memory_space<vmem>>, vector<1x4x4x4xf32>,
    %cst_334 = arith.constant 0.000000e+00 : f32
    %262 = vector.broadcast %cst_334 : f32 to vector<16x4xf32>
    %263 = arith.maximumf %257, %262 : vector<16x4xf32>
    %264 = vector.broadcast %cst_334 : f32 to vector<16x4xf32>
    %265 = arith.subf %257, %264 : vector<16x4xf32>
    %266 = arith.cmpf one, %265, %265 : vector<16x4xf32>
    %267 = vector.broadcast %cst_334 : f32 to vector<16x4xf32>
    %268 = arith.addf %257, %267 : vector<16x4xf32>
    %269 = math.absf %265 : vector<16x4xf32>
    %cst_335 = arith.constant 0.000000e+00 : f32
    %270 = vector.broadcast %cst_335 : f32 to vector<16x4xf32>
    %271 = arith.subf %270, %269 : vector<16x4xf32>
    %272 = math.exp %271 : vector<16x4xf32>
    %273 = math.log1p %272 : vector<16x4xf32>
    %274 = arith.addf %263, %273 : vector<16x4xf32>
    %275 = arith.select %266, %268, %274 : vector<16x4xi1>, vector<16x4xf32>
    %cst_336 = arith.constant 0.00999999977 : f32
    %276 = vector.broadcast %cst_336 : f32 to vector<16x4xf32>
    %277 = arith.addf %275, %276 : vector<16x4xf32>
    %278 = vector.shape_cast %277 : vector<16x4xf32> to vector<4x4x4xf32>
    %c0_337 = arith.constant 0 : index
    %c0_338 = arith.constant 0 : index
    %c0_339 = arith.constant 0 : index
    %c0_340 = arith.constant 0 : index
    %279 = vector.load %arg23[%c0_337, %c0_338, %c0_339, %c0_340] : memref<1x4x4x4xf32, #tpu.memory_space<vmem>>, vector<1x4x4x4xf32>
    %280 = vector.shape_cast %279 : vector<1x4x4x4xf32> to vector<4x4x4xf32>
    %281 = vector.shape_cast %278 : vector<4x4x4xf32> to vector<1x4x4x4xf32>
    tpu.vector_store %arg23[%c0_337, %c0_338, %c0_339, %c0_340], %281 {strides = array<i32>} : memref<1x4x4x4xf32, #tpu.memory_space<vmem>>, vector<1x4x4x4xf32>,
    return
  }
  func.func @transform_0(%arg0: i32) -> (i32, i32, i32, i32) {
    %c0_i32 = arith.constant 0 : i32
    %c0_i32_0 = arith.constant 0 : i32
    %c0_i32_1 = arith.constant 0 : i32
    %c0_i32_2 = arith.constant 0 : i32
    return %arg0, %c0_i32, %c0_i32_0, %c0_i32_1 : i32, i32, i32, i32
  }
  func.func @transform_1(%arg0: i32) -> (i32, i32) {
    %c0_i32 = arith.constant 0 : i32
    %c0_i32_0 = arith.constant 0 : i32
    %c0_i32_1 = arith.constant 0 : i32
    return %c0_i32, %c0_i32_0 : i32, i32
  }
  func.func @transform_2(%arg0: i32) -> (i32, i32) {
    %c0_i32 = arith.constant 0 : i32
    %c0_i32_0 = arith.constant 0 : i32
    %c0_i32_1 = arith.constant 0 : i32
    return %c0_i32, %c0_i32_0 : i32, i32
  }
  func.func @transform_3(%arg0: i32) -> (i32, i32) {
    %c0_i32 = arith.constant 0 : i32
    %c0_i32_0 = arith.constant 0 : i32
    %c0_i32_1 = arith.constant 0 : i32
    return %c0_i32, %c0_i32_0 : i32, i32
  }
  func.func @transform_4(%arg0: i32) -> (i32, i32) {
    %c0_i32 = arith.constant 0 : i32
    %c0_i32_0 = arith.constant 0 : i32
    %c0_i32_1 = arith.constant 0 : i32
    return %c0_i32, %c0_i32_0 : i32, i32
  }
  func.func @transform_5(%arg0: i32) -> (i32, i32) {
    %c0_i32 = arith.constant 0 : i32
    %c0_i32_0 = arith.constant 0 : i32
    %c0_i32_1 = arith.constant 0 : i32
    return %c0_i32, %c0_i32_0 : i32, i32
  }
  func.func @transform_6(%arg0: i32) -> (i32, i32) {
    %c0_i32 = arith.constant 0 : i32
    %c0_i32_0 = arith.constant 0 : i32
    %c0_i32_1 = arith.constant 0 : i32
    return %c0_i32, %c0_i32_0 : i32, i32
  }
  func.func @transform_7(%arg0: i32) -> (i32, i32) {
    %c0_i32 = arith.constant 0 : i32
    %c0_i32_0 = arith.constant 0 : i32
    %c0_i32_1 = arith.constant 0 : i32
    return %c0_i32, %c0_i32_0 : i32, i32
  }
  func.func @transform_8(%arg0: i32) -> (i32, i32) {
    %c0_i32 = arith.constant 0 : i32
    %c0_i32_0 = arith.constant 0 : i32
    %c0_i32_1 = arith.constant 0 : i32
    return %c0_i32, %c0_i32_0 : i32, i32
  }
  func.func @transform_9(%arg0: i32) -> (i32, i32) {
    %c0_i32 = arith.constant 0 : i32
    %c0_i32_0 = arith.constant 0 : i32
    %c0_i32_1 = arith.constant 0 : i32
    return %c0_i32, %c0_i32_0 : i32, i32
  }
  func.func @transform_10(%arg0: i32) -> (i32, i32) {
    %c0_i32 = arith.constant 0 : i32
    %c0_i32_0 = arith.constant 0 : i32
    %c0_i32_1 = arith.constant 0 : i32
    return %c0_i32, %c0_i32_0 : i32, i32
  }
  func.func @transform_11(%arg0: i32) -> (i32, i32) {
    %c0_i32 = arith.constant 0 : i32
    %c0_i32_0 = arith.constant 0 : i32
    %c0_i32_1 = arith.constant 0 : i32
    return %c0_i32, %c0_i32_0 : i32, i32
  }
  func.func @transform_12(%arg0: i32) -> (i32, i32) {
    %c0_i32 = arith.constant 0 : i32
    %c0_i32_0 = arith.constant 0 : i32
    %c0_i32_1 = arith.constant 0 : i32
    return %c0_i32, %c0_i32_0 : i32, i32
  }
  func.func @transform_13(%arg0: i32) -> (i32, i32) {
    %c0_i32 = arith.constant 0 : i32
    %c0_i32_0 = arith.constant 0 : i32
    %c0_i32_1 = arith.constant 0 : i32
    return %c0_i32, %c0_i32_0 : i32, i32
  }
  func.func @transform_14(%arg0: i32) -> (i32, i32) {
    %c0_i32 = arith.constant 0 : i32
    %c0_i32_0 = arith.constant 0 : i32
    %c0_i32_1 = arith.constant 0 : i32
    return %c0_i32, %c0_i32_0 : i32, i32
  }
  func.func @transform_15(%arg0: i32) -> (i32, i32) {
    %c0_i32 = arith.constant 0 : i32
    %c0_i32_0 = arith.constant 0 : i32
    %c0_i32_1 = arith.constant 0 : i32
    return %c0_i32, %c0_i32_0 : i32, i32
  }
  func.func @transform_16(%arg0: i32) -> (i32, i32) {
    %c0_i32 = arith.constant 0 : i32
    %c0_i32_0 = arith.constant 0 : i32
    %c0_i32_1 = arith.constant 0 : i32
    return %c0_i32, %c0_i32_0 : i32, i32
  }
  func.func @transform_17(%arg0: i32) -> (i32, i32) {
    %c0_i32 = arith.constant 0 : i32
    %c0_i32_0 = arith.constant 0 : i32
    %c0_i32_1 = arith.constant 0 : i32
    return %c0_i32, %c0_i32_0 : i32, i32
  }
  func.func @transform_18(%arg0: i32) -> (i32, i32) {
    %c0_i32 = arith.constant 0 : i32
    %c0_i32_0 = arith.constant 0 : i32
    %c0_i32_1 = arith.constant 0 : i32
    return %c0_i32, %c0_i32_0 : i32, i32
  }
  func.func @transform_19(%arg0: i32) -> (i32, i32) {
    %c0_i32 = arith.constant 0 : i32
    %c0_i32_0 = arith.constant 0 : i32
    %c0_i32_1 = arith.constant 0 : i32
    return %c0_i32, %c0_i32_0 : i32, i32
  }
  func.func @transform_20(%arg0: i32) -> (i32, i32) {
    %c0_i32 = arith.constant 0 : i32
    %c0_i32_0 = arith.constant 0 : i32
    %c0_i32_1 = arith.constant 0 : i32
    return %c0_i32, %c0_i32_0 : i32, i32
  }
  func.func @transform_21(%arg0: i32) -> (i32, i32, i32, i32) {
    %c0_i32 = arith.constant 0 : i32
    %c0_i32_0 = arith.constant 0 : i32
    %c0_i32_1 = arith.constant 0 : i32
    %c0_i32_2 = arith.constant 0 : i32
    return %arg0, %c0_i32, %c0_i32_0, %c0_i32_1 : i32, i32, i32, i32
  }
  func.func @transform_22(%arg0: i32) -> (i32, i32, i32, i32) {
    %c0_i32 = arith.constant 0 : i32
    %c0_i32_0 = arith.constant 0 : i32
    %c0_i32_1 = arith.constant 0 : i32
    %c0_i32_2 = arith.constant 0 : i32
    return %arg0, %c0_i32, %c0_i32_0, %c0_i32_1 : i32, i32, i32, i32
  }
}

</mosaic_0001>

<llo_original>
// kernel: tpu_custom_call.1
$region0: #{tpu_custom_call.1}
  #allocation0 [shape = 'u32[]', space=smem, size = 0x4, offset = 0x4, fixed_abs, tag = 'smem constant byte address 0x4 - core index']
  #allocation1 [shape = 'u32[72,128]{1,0:T(1,128)}', space=vmem, size = 0x9000, scoped, tag = 'internal scratch']
  #allocation2 [shape = 'f32[18,18,128]{2,1,0:T(8,128)}', space=vmem, size = 0x36000, scoped, tag = 'scratch operand']
  %s0 = inlined_call_operand.vmem [shape: f32[2,16,16,4], index: 0, kind: input, shape index: {}]
  %s1 = inlined_call_operand.vmem [shape: bf16[1152,8], index: 1, kind: input, shape index: {}]
  %s2 = inlined_call_operand.vmem [shape: f32[1,8], index: 2, kind: input, shape index: {}]
  %s3 = inlined_call_operand.vmem [shape: bf16[1152,16], index: 3, kind: input, shape index: {}]
  %s4 = inlined_call_operand.vmem [shape: f32[1,16], index: 4, kind: input, shape index: {}]
  %s5 = inlined_call_operand.vmem [shape: bf16[1152,16], index: 5, kind: input, shape index: {}]
  %s6 = inlined_call_operand.vmem [shape: f32[1,16], index: 6, kind: input, shape index: {}]
  %s7 = inlined_call_operand.vmem [shape: bf16[1152,16], index: 7, kind: input, shape index: {}]
  %s8 = inlined_call_operand.vmem [shape: f32[1,16], index: 8, kind: input, shape index: {}]
  %s9 = inlined_call_operand.vmem [shape: bf16[1152,32], index: 9, kind: input, shape index: {}]
  %s10 = inlined_call_operand.vmem [shape: f32[1,32], index: 10, kind: input, shape index: {}]
  %s11 = inlined_call_operand.vmem [shape: bf16[1152,32], index: 11, kind: input, shape index: {}]
  %s12 = inlined_call_operand.vmem [shape: f32[1,32], index: 12, kind: input, shape index: {}]
  %s13 = inlined_call_operand.vmem [shape: bf16[1152,32], index: 13, kind: input, shape index: {}]
  %s14 = inlined_call_operand.vmem [shape: f32[1,32], index: 14, kind: input, shape index: {}]
  %s15 = inlined_call_operand.vmem [shape: bf16[1152,4], index: 15, kind: input, shape index: {}]
  %s16 = inlined_call_operand.vmem [shape: f32[1,4], index: 16, kind: input, shape index: {}]
  %s17 = inlined_call_operand.vmem [shape: bf16[1152,4], index: 17, kind: input, shape index: {}]
  %s18 = inlined_call_operand.vmem [shape: f32[1,4], index: 18, kind: input, shape index: {}]
  %s19 = inlined_call_operand.vmem [shape: f32[64,256], index: 19, kind: input, shape index: {}]
  %s20 = inlined_call_operand.vmem [shape: f32[16,64], index: 20, kind: input, shape index: {}]
  %s21 = inlined_call_operand.hbm [shape: f32[2,4,4,4], index: 21, kind: output, shape index: {0}]
  %s22 = inlined_call_operand.hbm [shape: f32[2,4,4,4], index: 22, kind: output, shape index: {1}]
  %23 = xla_tuple %s21, %s22
  %s24 = sld [smem:[#allocation0]]
  $region125: #{tpu_custom_call.1} parent=0
    _
  %s26 = ssub.s32 1, %s24
  %s27 = scalar_select 0, %s26, %s24
  $region1: #{tpu_custom_call.1} parent=0
    #allocation3 [shape = 'u8[16384]{0}', space=vmem, size = 0x4000, scoped, tag = 'output window, operand 0']
    #allocation4 [shape = 's32[2]{0}', space=sflag, size = 0x8, scoped, tag = 'scoped memory for tpu_custom_call.1']
    #allocation5 [shape = 'u8[16384]{0}', space=vmem, size = 0x4000, scoped, tag = 'output window, operand 1']
    #allocation6 [shape = 's32[2]{0}', space=sflag, size = 0x8, scoped, tag = 'scoped memory for tpu_custom_call.1']
    %28 = vsyncpa [#allocation4], 0
    %s29 = scalar_lea.sflag [#allocation4], 1
    %30 = vsyncpa %s29, 0
    %31 = vsyncpa [#allocation6], 0
    %s32 = scalar_lea.sflag [#allocation6], 1
    %33 = vsyncpa %s32, 0
    loop: start=0, step=1, limit=4
    $region2: #{tpu_custom_call.1} parent=1 // loop_pre_header
      _
    $region3: #{tpu_custom_call.1} parent=1 // loop_header
      %s35 = sphi 0, %s39
      %p36 = scmp.ge.s32.totalorder %s35, 4
      %s45 = sphi 0, %s47
      %s48 = sphi 0, %s45
      %s49 = sphi 0, %s48
      %s65 = sphi 0, %s49
      %s69 = sphi 0, %s69
      %s71 = sphi 0, %s69
      %s72 = sphi 0, %s71
      %s86 = sphi 0, %s72
      %s90 = sphi 0, %s90
      %s92 = sphi 0, %s90
      %s93 = sphi 0, %s92
      %s107 = sphi 0, %s93
      %s111 = sphi 0, %s111
      %s113 = sphi 0, %s111
      %s114 = sphi 0, %s113
      %s128 = sphi 0, %s114
      %s132 = sphi 0, %s132
      %s134 = sphi 0, %s132
      %s135 = sphi 0, %s134
      %s149 = sphi 0, %s135
      %s153 = sphi 0, %s153
      %s155 = sphi 0, %s153
      %s156 = sphi 0, %s155
      %s170 = sphi 0, %s156
      %s174 = sphi 0, %s174
      %s176 = sphi 0, %s174
      %s177 = sphi 0, %s176
      %s191 = sphi 0, %s177
      %s195 = sphi 0, %s195
      %s197 = sphi 0, %s195
      %s198 = sphi 0, %s197
      %s212 = sphi 0, %s198
      %s216 = sphi 0, %s216
      %s218 = sphi 0, %s216
      %s219 = sphi 0, %s218
      %s233 = sphi 0, %s219
      %s237 = sphi 0, %s237
      %s239 = sphi 0, %s237
      %s240 = sphi 0, %s239
      %s254 = sphi 0, %s240
      %s258 = sphi 0, %s258
      %s260 = sphi 0, %s258
      %s261 = sphi 0, %s260
      %s275 = sphi 0, %s261
      %s279 = sphi 0, %s279
      %s281 = sphi 0, %s279
      %s282 = sphi 0, %s281
      %s296 = sphi 0, %s282
      %s300 = sphi 0, %s300
      %s302 = sphi 0, %s300
      %s303 = sphi 0, %s302
      %s317 = sphi 0, %s303
      %s321 = sphi 0, %s321
      %s323 = sphi 0, %s321
      %s324 = sphi 0, %s323
      %s338 = sphi 0, %s324
      %s342 = sphi 0, %s342
      %s344 = sphi 0, %s342
      %s345 = sphi 0, %s344
      %s359 = sphi 0, %s345
      %s363 = sphi 0, %s363
      %s365 = sphi 0, %s363
      %s366 = sphi 0, %s365
      %s380 = sphi 0, %s366
      %s384 = sphi 0, %s384
      %s386 = sphi 0, %s384
      %s387 = sphi 0, %s386
      %s401 = sphi 0, %s387
      %s405 = sphi 0, %s405
      %s407 = sphi 0, %s405
      %s408 = sphi 0, %s407
      %s422 = sphi 0, %s408
      %s426 = sphi 0, %s426
      %s428 = sphi 0, %s426
      %s429 = sphi 0, %s428
      %s443 = sphi 0, %s429
      %s447 = sphi 0, %s447
      %s449 = sphi 0, %s447
      %s450 = sphi 0, %s449
      %s464 = sphi 0, %s450
      %s468 = sphi 0, %s468
      %s470 = sphi 0, %s468
      %s471 = sphi 0, %s470
      %s485 = sphi 0, %s471
      %s491 = sphi 0, %s493
      %s494 = sphi 0, %s491
      %s495 = sphi 0, %s494
      %s511 = sphi 0, %s495
      %s517 = sphi 0, %s519
      %s520 = sphi 0, %s517
      %s521 = sphi 0, %s520
      %s537 = sphi 0, %s521
    $region4: #{tpu_custom_call.1} parent=1 // loop_header_branch
      %38 = sbr.rel (%p36) target = $region8
    $region5: #{tpu_custom_call.1} parent=1 // loop_body
      %s40 = ssub.s32 %s35, 1
      %s41 = ssub.s32 %s35, 2
      %s42 = sadd.s32 %s35, 1
      %s43 = ssub.s32 %s35, %s42
      %p44 = scmp.eq.s32.totalorder %s43, 0
      %s46 = sadd.s32 %s45, 1
      %s47 = scalar_select %p44, %s45, %s46
      %p50 = pneg %p44
      %p51 = scmp.eq.s32.totalorder %s35, 1
      %p52 = por %p50, %p51
      %p53 = scmp.ne.s32.totalorder %s45, %s48
      %p54 = scmp.eq.s32.totalorder %s35, 0
      %p55 = por %p53, %p54
      %p56 = scmp.ne.s32.totalorder %s45, %s48
      %p57 = scmp.eq.s32.totalorder %s40, 1
      %p58 = por %p56, %p57
      %p59 = scmp.ne.s32.totalorder %s48, %s49
      %p60 = scmp.eq.s32.totalorder %s40, 0
      %p61 = por %p59, %p60
      %p62 = scmp.ne.s32.totalorder %s48, %s49
      %p63 = scmp.eq.s32.totalorder %s41, 1
      %p64 = por %p62, %p63
      %p66 = scmp.ne.s32.totalorder %s49, %s65
      %p67 = scmp.eq.s32.totalorder %s41, 0
      %p68 = por %p66, %p67
      %s70 = sadd.s32 %s69, 1
      %p73 = scmp.eq.s32.totalorder %s35, 1
      %p74 = scmp.ne.s32.totalorder %s69, %s71
      %p75 = scmp.eq.s32.totalorder %s35, 0
      %p76 = por %p74, %p75
      %p77 = scmp.ne.s32.totalorder %s69, %s71
      %p78 = scmp.eq.s32.totalorder %s40, 1
      %p79 = por %p77, %p78
      %p80 = scmp.ne.s32.totalorder %s71, %s72
      %p81 = scmp.eq.s32.totalorder %s40, 0
      %p82 = por %p80, %p81
      %p83 = scmp.ne.s32.totalorder %s71, %s72
      %p84 = scmp.eq.s32.totalorder %s41, 1
      %p85 = por %p83, %p84
      %p87 = scmp.ne.s32.totalorder %s72, %s86
      %p88 = scmp.eq.s32.totalorder %s41, 0
      %p89 = por %p87, %p88
      %s91 = sadd.s32 %s90, 1
      %p94 = scmp.eq.s32.totalorder %s35, 1
      %p95 = scmp.ne.s32.totalorder %s90, %s92
      %p96 = scmp.eq.s32.totalorder %s35, 0
      %p97 = por %p95, %p96
      %p98 = scmp.ne.s32.totalorder %s90, %s92
      %p99 = scmp.eq.s32.totalorder %s40, 1
      %p100 = por %p98, %p99
      %p101 = scmp.ne.s32.totalorder %s92, %s93
      %p102 = scmp.eq.s32.totalorder %s40, 0
      %p103 = por %p101, %p102
      %p104 = scmp.ne.s32.totalorder %s92, %s93
      %p105 = scmp.eq.s32.totalorder %s41, 1
      %p106 = por %p104, %p105
      %p108 = scmp.ne.s32.totalorder %s93, %s107
      %p109 = scmp.eq.s32.totalorder %s41, 0
      %p110 = por %p108, %p109
      %s112 = sadd.s32 %s111, 1
      %p115 = scmp.eq.s32.totalorder %s35, 1
      %p116 = scmp.ne.s32.totalorder %s111, %s113
      %p117 = scmp.eq.s32.totalorder %s35, 0
      %p118 = por %p116, %p117
      %p119 = scmp.ne.s32.totalorder %s111, %s113
      %p120 = scmp.eq.s32.totalorder %s40, 1
      %p121 = por %p119, %p120
      %p122 = scmp.ne.s32.totalorder %s113, %s114
      %p123 = scmp.eq.s32.totalorder %s40, 0
      %p124 = por %p122, %p123
      %p125 = scmp.ne.s32.totalorder %s113, %s114
      %p126 = scmp.eq.s32.totalorder %s41, 1
      %p127 = por %p125, %p126
      %p129 = scmp.ne.s32.totalorder %s114, %s128
      %p130 = scmp.eq.s32.totalorder %s41, 0
      %p131 = por %p129, %p130
      %s133 = sadd.s32 %s132, 1
      %p136 = scmp.eq.s32.totalorder %s35, 1
      %p137 = scmp.ne.s32.totalorder %s132, %s134
      %p138 = scmp.eq.s32.totalorder %s35, 0
      %p139 = por %p137, %p138
      %p140 = scmp.ne.s32.totalorder %s132, %s134
      %p141 = scmp.eq.s32.totalorder %s40, 1
      %p142 = por %p140, %p141
      %p143 = scmp.ne.s32.totalorder %s134, %s135
      %p144 = scmp.eq.s32.totalorder %s40, 0
      %p145 = por %p143, %p144
      %p146 = scmp.ne.s32.totalorder %s134, %s135
      %p147 = scmp.eq.s32.totalorder %s41, 1
      %p148 = por %p146, %p147
      %p150 = scmp.ne.s32.totalorder %s135, %s149
      %p151 = scmp.eq.s32.totalorder %s41, 0
      %p152 = por %p150, %p151
      %s154 = sadd.s32 %s153, 1
      %p157 = scmp.eq.s32.totalorder %s35, 1
      %p158 = scmp.ne.s32.totalorder %s153, %s155
      %p159 = scmp.eq.s32.totalorder %s35, 0
      %p160 = por %p158, %p159
      %p161 = scmp.ne.s32.totalorder %s153, %s155
      %p162 = scmp.eq.s32.totalorder %s40, 1
      %p163 = por %p161, %p162
      %p164 = scmp.ne.s32.totalorder %s155, %s156
      %p165 = scmp.eq.s32.totalorder %s40, 0
      %p166 = por %p164, %p165
      %p167 = scmp.ne.s32.totalorder %s155, %s156
      %p168 = scmp.eq.s32.totalorder %s41, 1
      %p169 = por %p167, %p168
      %p171 = scmp.ne.s32.totalorder %s156, %s170
      %p172 = scmp.eq.s32.totalorder %s41, 0
      %p173 = por %p171, %p172
      %s175 = sadd.s32 %s174, 1
      %p178 = scmp.eq.s32.totalorder %s35, 1
      %p179 = scmp.ne.s32.totalorder %s174, %s176
      %p180 = scmp.eq.s32.totalorder %s35, 0
      %p181 = por %p179, %p180
      %p182 = scmp.ne.s32.totalorder %s174, %s176
      %p183 = scmp.eq.s32.totalorder %s40, 1
      %p184 = por %p182, %p183
      %p185 = scmp.ne.s32.totalorder %s176, %s177
      %p186 = scmp.eq.s32.totalorder %s40, 0
      %p187 = por %p185, %p186
      %p188 = scmp.ne.s32.totalorder %s176, %s177
      %p189 = scmp.eq.s32.totalorder %s41, 1
      %p190 = por %p188, %p189
      %p192 = scmp.ne.s32.totalorder %s177, %s191
      %p193 = scmp.eq.s32.totalorder %s41, 0
      %p194 = por %p192, %p193
      %s196 = sadd.s32 %s195, 1
      %p199 = scmp.eq.s32.totalorder %s35, 1
      %p200 = scmp.ne.s32.totalorder %s195, %s197
      %p201 = scmp.eq.s32.totalorder %s35, 0
      %p202 = por %p200, %p201
      %p203 = scmp.ne.s32.totalorder %s195, %s197
      %p204 = scmp.eq.s32.totalorder %s40, 1
      %p205 = por %p203, %p204
      %p206 = scmp.ne.s32.totalorder %s197, %s198
      %p207 = scmp.eq.s32.totalorder %s40, 0
      %p208 = por %p206, %p207
      %p209 = scmp.ne.s32.totalorder %s197, %s198
      %p210 = scmp.eq.s32.totalorder %s41, 1
      %p211 = por %p209, %p210
      %p213 = scmp.ne.s32.totalorder %s198, %s212
      %p214 = scmp.eq.s32.totalorder %s41, 0
      %p215 = por %p213, %p214
      %s217 = sadd.s32 %s216, 1
      %p220 = scmp.eq.s32.totalorder %s35, 1
      %p221 = scmp.ne.s32.totalorder %s216, %s218
      %p222 = scmp.eq.s32.totalorder %s35, 0
      %p223 = por %p221, %p222
      %p224 = scmp.ne.s32.totalorder %s216, %s218
      %p225 = scmp.eq.s32.totalorder %s40, 1
      %p226 = por %p224, %p225
      %p227 = scmp.ne.s32.totalorder %s218, %s219
      %p228 = scmp.eq.s32.totalorder %s40, 0
      %p229 = por %p227, %p228
      %p230 = scmp.ne.s32.totalorder %s218, %s219
      %p231 = scmp.eq.s32.totalorder %s41, 1
      %p232 = por %p230, %p231
      %p234 = scmp.ne.s32.totalorder %s219, %s233
      %p235 = scmp.eq.s32.totalorder %s41, 0
      %p236 = por %p234, %p235
      %s238 = sadd.s32 %s237, 1
      %p241 = scmp.eq.s32.totalorder %s35, 1
      %p242 = scmp.ne.s32.totalorder %s237, %s239
      %p243 = scmp.eq.s32.totalorder %s35, 0
      %p244 = por %p242, %p243
      %p245 = scmp.ne.s32.totalorder %s237, %s239
      %p246 = scmp.eq.s32.totalorder %s40, 1
      %p247 = por %p245, %p246
      %p248 = scmp.ne.s32.totalorder %s239, %s240
      %p249 = scmp.eq.s32.totalorder %s40, 0
      %p250 = por %p248, %p249
      %p251 = scmp.ne.s32.totalorder %s239, %s240
      %p252 = scmp.eq.s32.totalorder %s41, 1
      %p253 = por %p251, %p252
      %p255 = scmp.ne.s32.totalorder %s240, %s254
      %p256 = scmp.eq.s32.totalorder %s41, 0
      %p257 = por %p255, %p256
      %s259 = sadd.s32 %s258, 1
      %p262 = scmp.eq.s32.totalorder %s35, 1
      %p263 = scmp.ne.s32.totalorder %s258, %s260
      %p264 = scmp.eq.s32.totalorder %s35, 0
      %p265 = por %p263, %p264
      %p266 = scmp.ne.s32.totalorder %s258, %s260
      %p267 = scmp.eq.s32.totalorder %s40, 1
      %p268 = por %p266, %p267
      %p269 = scmp.ne.s32.totalorder %s260, %s261
      %p270 = scmp.eq.s32.totalorder %s40, 0
      %p271 = por %p269, %p270
      %p272 = scmp.ne.s32.totalorder %s260, %s261
      %p273 = scmp.eq.s32.totalorder %s41, 1
      %p274 = por %p272, %p273
      %p276 = scmp.ne.s32.totalorder %s261, %s275
      %p277 = scmp.eq.s32.totalorder %s41, 0
      %p278 = por %p276, %p277
      %s280 = sadd.s32 %s279, 1
      %p283 = scmp.eq.s32.totalorder %s35, 1
      %p284 = scmp.ne.s32.totalorder %s279, %s281
      %p285 = scmp.eq.s32.totalorder %s35, 0
      %p286 = por %p284, %p285
      %p287 = scmp.ne.s32.totalorder %s279, %s281
      %p288 = scmp.eq.s32.totalorder %s40, 1
      %p289 = por %p287, %p288
      %p290 = scmp.ne.s32.totalorder %s281, %s282
      %p291 = scmp.eq.s32.totalorder %s40, 0
      %p292 = por %p290, %p291
      %p293 = scmp.ne.s32.totalorder %s281, %s282
      %p294 = scmp.eq.s32.totalorder %s41, 1
      %p295 = por %p293, %p294
      %p297 = scmp.ne.s32.totalorder %s282, %s296
      %p298 = scmp.eq.s32.totalorder %s41, 0
      %p299 = por %p297, %p298
      %s301 = sadd.s32 %s300, 1
      %p304 = scmp.eq.s32.totalorder %s35, 1
      %p305 = scmp.ne.s32.totalorder %s300, %s302
      %p306 = scmp.eq.s32.totalorder %s35, 0
      %p307 = por %p305, %p306
      %p308 = scmp.ne.s32.totalorder %s300, %s302
      %p309 = scmp.eq.s32.totalorder %s40, 1
      %p310 = por %p308, %p309
      %p311 = scmp.ne.s32.totalorder %s302, %s303
      %p312 = scmp.eq.s32.totalorder %s40, 0
      %p313 = por %p311, %p312
      %p314 = scmp.ne.s32.totalorder %s302, %s303
      %p315 = scmp.eq.s32.totalorder %s41, 1
      %p316 = por %p314, %p315
      %p318 = scmp.ne.s32.totalorder %s303, %s317
      %p319 = scmp.eq.s32.totalorder %s41, 0
      %p320 = por %p318, %p319
      %s322 = sadd.s32 %s321, 1
      %p325 = scmp.eq.s32.totalorder %s35, 1
      %p326 = scmp.ne.s32.totalorder %s321, %s323
      %p327 = scmp.eq.s32.totalorder %s35, 0
      %p328 = por %p326, %p327
      %p329 = scmp.ne.s32.totalorder %s321, %s323
      %p330 = scmp.eq.s32.totalorder %s40, 1
      %p331 = por %p329, %p330
      %p332 = scmp.ne.s32.totalorder %s323, %s324
      %p333 = scmp.eq.s32.totalorder %s40, 0
      %p334 = por %p332, %p333
      %p335 = scmp.ne.s32.totalorder %s323, %s324
      %p336 = scmp.eq.s32.totalorder %s41, 1
      %p337 = por %p335, %p336
      %p339 = scmp.ne.s32.totalorder %s324, %s338
      %p340 = scmp.eq.s32.totalorder %s41, 0
      %p341 = por %p339, %p340
      %s343 = sadd.s32 %s342, 1
      %p346 = scmp.eq.s32.totalorder %s35, 1
      %p347 = scmp.ne.s32.totalorder %s342, %s344
      %p348 = scmp.eq.s32.totalorder %s35, 0
      %p349 = por %p347, %p348
      %p350 = scmp.ne.s32.totalorder %s342, %s344
      %p351 = scmp.eq.s32.totalorder %s40, 1
      %p352 = por %p350, %p351
      %p353 = scmp.ne.s32.totalorder %s344, %s345
      %p354 = scmp.eq.s32.totalorder %s40, 0
      %p355 = por %p353, %p354
      %p356 = scmp.ne.s32.totalorder %s344, %s345
      %p357 = scmp.eq.s32.totalorder %s41, 1
      %p358 = por %p356, %p357
      %p360 = scmp.ne.s32.totalorder %s345, %s359
      %p361 = scmp.eq.s32.totalorder %s41, 0
      %p362 = por %p360, %p361
      %s364 = sadd.s32 %s363, 1
      %p367 = scmp.eq.s32.totalorder %s35, 1
      %p368 = scmp.ne.s32.totalorder %s363, %s365
      %p369 = scmp.eq.s32.totalorder %s35, 0
      %p370 = por %p368, %p369
      %p371 = scmp.ne.s32.totalorder %s363, %s365
      %p372 = scmp.eq.s32.totalorder %s40, 1
      %p373 = por %p371, %p372
      %p374 = scmp.ne.s32.totalorder %s365, %s366
      %p375 = scmp.eq.s32.totalorder %s40, 0
      %p376 = por %p374, %p375
      %p377 = scmp.ne.s32.totalorder %s365, %s366
      %p378 = scmp.eq.s32.totalorder %s41, 1
      %p379 = por %p377, %p378
      %p381 = scmp.ne.s32.totalorder %s366, %s380
      %p382 = scmp.eq.s32.totalorder %s41, 0
      %p383 = por %p381, %p382
      %s385 = sadd.s32 %s384, 1
      %p388 = scmp.eq.s32.totalorder %s35, 1
      %p389 = scmp.ne.s32.totalorder %s384, %s386
      %p390 = scmp.eq.s32.totalorder %s35, 0
      %p391 = por %p389, %p390
      %p392 = scmp.ne.s32.totalorder %s384, %s386
      %p393 = scmp.eq.s32.totalorder %s40, 1
      %p394 = por %p392, %p393
      %p395 = scmp.ne.s32.totalorder %s386, %s387
      %p396 = scmp.eq.s32.totalorder %s40, 0
      %p397 = por %p395, %p396
      %p398 = scmp.ne.s32.totalorder %s386, %s387
      %p399 = scmp.eq.s32.totalorder %s41, 1
      %p400 = por %p398, %p399
      %p402 = scmp.ne.s32.totalorder %s387, %s401
      %p403 = scmp.eq.s32.totalorder %s41, 0
      %p404 = por %p402, %p403
      %s406 = sadd.s32 %s405, 1
      %p409 = scmp.eq.s32.totalorder %s35, 1
      %p410 = scmp.ne.s32.totalorder %s405, %s407
      %p411 = scmp.eq.s32.totalorder %s35, 0
      %p412 = por %p410, %p411
      %p413 = scmp.ne.s32.totalorder %s405, %s407
      %p414 = scmp.eq.s32.totalorder %s40, 1
      %p415 = por %p413, %p414
      %p416 = scmp.ne.s32.totalorder %s407, %s408
      %p417 = scmp.eq.s32.totalorder %s40, 0
      %p418 = por %p416, %p417
      %p419 = scmp.ne.s32.totalorder %s407, %s408
      %p420 = scmp.eq.s32.totalorder %s41, 1
      %p421 = por %p419, %p420
      %p423 = scmp.ne.s32.totalorder %s408, %s422
      %p424 = scmp.eq.s32.totalorder %s41, 0
      %p425 = por %p423, %p424
      %s427 = sadd.s32 %s426, 1
      %p430 = scmp.eq.s32.totalorder %s35, 1
      %p431 = scmp.ne.s32.totalorder %s426, %s428
      %p432 = scmp.eq.s32.totalorder %s35, 0
      %p433 = por %p431, %p432
      %p434 = scmp.ne.s32.totalorder %s426, %s428
      %p435 = scmp.eq.s32.totalorder %s40, 1
      %p436 = por %p434, %p435
      %p437 = scmp.ne.s32.totalorder %s428, %s429
      %p438 = scmp.eq.s32.totalorder %s40, 0
      %p439 = por %p437, %p438
      %p440 = scmp.ne.s32.totalorder %s428, %s429
      %p441 = scmp.eq.s32.totalorder %s41, 1
      %p442 = por %p440, %p441
      %p444 = scmp.ne.s32.totalorder %s429, %s443
      %p445 = scmp.eq.s32.totalorder %s41, 0
      %p446 = por %p444, %p445
      %s448 = sadd.s32 %s447, 1
      %p451 = scmp.eq.s32.totalorder %s35, 1
      %p452 = scmp.ne.s32.totalorder %s447, %s449
      %p453 = scmp.eq.s32.totalorder %s35, 0
      %p454 = por %p452, %p453
      %p455 = scmp.ne.s32.totalorder %s447, %s449
      %p456 = scmp.eq.s32.totalorder %s40, 1
      %p457 = por %p455, %p456
      %p458 = scmp.ne.s32.totalorder %s449, %s450
      %p459 = scmp.eq.s32.totalorder %s40, 0
      %p460 = por %p458, %p459
      %p461 = scmp.ne.s32.totalorder %s449, %s450
      %p462 = scmp.eq.s32.totalorder %s41, 1
      %p463 = por %p461, %p462
      %p465 = scmp.ne.s32.totalorder %s450, %s464
      %p466 = scmp.eq.s32.totalorder %s41, 0
      %p467 = por %p465, %p466
      %s469 = sadd.s32 %s468, 1
      %p472 = scmp.eq.s32.totalorder %s35, 1
      %p473 = scmp.ne.s32.totalorder %s468, %s470
      %p474 = scmp.eq.s32.totalorder %s35, 0
      %p475 = por %p473, %p474
      %p476 = scmp.ne.s32.totalorder %s468, %s470
      %p477 = scmp.eq.s32.totalorder %s40, 1
      %p478 = por %p476, %p477
      %p479 = scmp.ne.s32.totalorder %s470, %s471
      %p480 = scmp.eq.s32.totalorder %s40, 0
      %p481 = por %p479, %p480
      %p482 = scmp.ne.s32.totalorder %s470, %s471
      %p483 = scmp.eq.s32.totalorder %s41, 1
      %p484 = por %p482, %p483
      %p486 = scmp.ne.s32.totalorder %s471, %s485
      %p487 = scmp.eq.s32.totalorder %s41, 0
      %p488 = por %p486, %p487
      %s489 = ssub.s32 %s35, %s42
      %p490 = scmp.eq.s32.totalorder %s489, 0
      %s492 = sadd.s32 %s491, 1
      %s493 = scalar_select %p490, %s491, %s492
      %p496 = pneg %p490
      %p497 = scmp.eq.s32.totalorder %s35, 1
      %p498 = por %p496, %p497
      %p499 = scmp.ne.s32.totalorder %s491, %s494
      %p500 = scmp.eq.s32.totalorder %s35, 0
      %p501 = por %p499, %p500
      %p502 = scmp.ne.s32.totalorder %s491, %s494
      %p503 = scmp.eq.s32.totalorder %s40, 1
      %p504 = por %p502, %p503
      %p505 = scmp.ne.s32.totalorder %s494, %s495
      %p506 = scmp.eq.s32.totalorder %s40, 0
      %p507 = por %p505, %p506
      %p508 = scmp.ne.s32.totalorder %s494, %s495
      %p509 = scmp.eq.s32.totalorder %s41, 1
      %p510 = por %p508, %p509
      %p512 = scmp.ne.s32.totalorder %s495, %s511
      %p513 = scmp.eq.s32.totalorder %s41, 0
      %p514 = por %p512, %p513
      %s515 = ssub.s32 %s35, %s42
      %p516 = scmp.eq.s32.totalorder %s515, 0
      %s518 = sadd.s32 %s517, 1
      %s519 = scalar_select %p516, %s517, %s518
      %p522 = pneg %p516
      %p523 = scmp.eq.s32.totalorder %s35, 1
      %p524 = por %p522, %p523
      %p525 = scmp.ne.s32.totalorder %s517, %s520
      %p526 = scmp.eq.s32.totalorder %s35, 0
      %p527 = por %p525, %p526
      %p528 = scmp.ne.s32.totalorder %s517, %s520
      %p529 = scmp.eq.s32.totalorder %s40, 1
      %p530 = por %p528, %p529
      %p531 = scmp.ne.s32.totalorder %s520, %s521
      %p532 = scmp.eq.s32.totalorder %s40, 0
      %p533 = por %p531, %p532
      %p534 = scmp.ne.s32.totalorder %s520, %s521
      %p535 = scmp.eq.s32.totalorder %s41, 1
      %p536 = por %p534, %p535
      %p538 = scmp.ne.s32.totalorder %s521, %s537
      %p539 = scmp.eq.s32.totalorder %s41, 0
      %p540 = por %p538, %p539
      %p541 = scmp.le.s32.totalorder 1, %s35
      %p542 = scmp.lt.s32.totalorder %s35, 3
      %p543 = pnand %p541, %p542
      %p544 = pneg %p543
      // Predicated region
      $region9: #{tpu_custom_call.1} parent=5 // pred_check
        _
      $region10: #{tpu_custom_call.1} parent=5 // pred_check_branch
        %546 = sbr.rel (%p543) target = $region12
      $region11: #{tpu_custom_call.1} parent=5 // pred_region
        %s547 = ssub.s32 %s35, 1
        // Predicated region
        $region13: #{tpu_custom_call.1} parent=11 // pred_check
          %p548 = pneg %p82
        $region14: #{tpu_custom_call.1} parent=11 // pred_check_branch
          %550 = sbr.rel (%p548) target = $region16
        $region15: #{tpu_custom_call.1} parent=11 // pred_region
          _
        $region16: #{tpu_custom_call.1} parent=11 // pred_fallthru
          _
        // Predicated region
        $region17: #{tpu_custom_call.1} parent=11 // pred_check
          %p551 = pneg %p103
        $region18: #{tpu_custom_call.1} parent=11 // pred_check_branch
          %553 = sbr.rel (%p551) target = $region20
        $region19: #{tpu_custom_call.1} parent=11 // pred_region
          _
        $region20: #{tpu_custom_call.1} parent=11 // pred_fallthru
          _
        // Predicated region
        $region21: #{tpu_custom_call.1} parent=11 // pred_check
          %p554 = pneg %p124
        $region22: #{tpu_custom_call.1} parent=11 // pred_check_branch
          %556 = sbr.rel (%p554) target = $region24
        $region23: #{tpu_custom_call.1} parent=11 // pred_region
          _
        $region24: #{tpu_custom_call.1} parent=11 // pred_fallthru
          _
        // Predicated region
        $region25: #{tpu_custom_call.1} parent=11 // pred_check
          %p557 = pneg %p145
        $region26: #{tpu_custom_call.1} parent=11 // pred_check_branch
          %559 = sbr.rel (%p557) target = $region28
        $region27: #{tpu_custom_call.1} parent=11 // pred_region
          _
        $region28: #{tpu_custom_call.1} parent=11 // pred_fallthru
          _
        // Predicated region
        $region29: #{tpu_custom_call.1} parent=11 // pred_check
          %p560 = pneg %p166
        $region30: #{tpu_custom_call.1} parent=11 // pred_check_branch
          %562 = sbr.rel (%p560) target = $region32
        $region31: #{tpu_custom_call.1} parent=11 // pred_region
          _
        $region32: #{tpu_custom_call.1} parent=11 // pred_fallthru
          _
        // Predicated region
        $region33: #{tpu_custom_call.1} parent=11 // pred_check
          %p563 = pneg %p187
        $region34: #{tpu_custom_call.1} parent=11 // pred_check_branch
          %565 = sbr.rel (%p563) target = $region36
        $region35: #{tpu_custom_call.1} parent=11 // pred_region
          _
        $region36: #{tpu_custom_call.1} parent=11 // pred_fallthru
          _
        // Predicated region
        $region37: #{tpu_custom_call.1} parent=11 // pred_check
          %p566 = pneg %p208
        $region38: #{tpu_custom_call.1} parent=11 // pred_check_branch
          %568 = sbr.rel (%p566) target = $region40
        $region39: #{tpu_custom_call.1} parent=11 // pred_region
          _
        $region40: #{tpu_custom_call.1} parent=11 // pred_fallthru
          _
        // Predicated region
        $region41: #{tpu_custom_call.1} parent=11 // pred_check
          %p569 = pneg %p229
        $region42: #{tpu_custom_call.1} parent=11 // pred_check_branch
          %571 = sbr.rel (%p569) target = $region44
        $region43: #{tpu_custom_call.1} parent=11 // pred_region
          _
        $region44: #{tpu_custom_call.1} parent=11 // pred_fallthru
          _
        // Predicated region
        $region45: #{tpu_custom_call.1} parent=11 // pred_check
          %p572 = pneg %p250
        $region46: #{tpu_custom_call.1} parent=11 // pred_check_branch
          %574 = sbr.rel (%p572) target = $region48
        $region47: #{tpu_custom_call.1} parent=11 // pred_region
          _
        $region48: #{tpu_custom_call.1} parent=11 // pred_fallthru
          _
        // Predicated region
        $region49: #{tpu_custom_call.1} parent=11 // pred_check
          %p575 = pneg %p271
        $region50: #{tpu_custom_call.1} parent=11 // pred_check_branch
          %577 = sbr.rel (%p575) target = $region52
        $region51: #{tpu_custom_call.1} parent=11 // pred_region
          _
        $region52: #{tpu_custom_call.1} parent=11 // pred_fallthru
          _
        // Predicated region
        $region53: #{tpu_custom_call.1} parent=11 // pred_check
          %p578 = pneg %p292
        $region54: #{tpu_custom_call.1} parent=11 // pred_check_branch
          %580 = sbr.rel (%p578) target = $region56
        $region55: #{tpu_custom_call.1} parent=11 // pred_region
          _
        $region56: #{tpu_custom_call.1} parent=11 // pred_fallthru
          _
        // Predicated region
        $region57: #{tpu_custom_call.1} parent=11 // pred_check
          %p581 = pneg %p313
        $region58: #{tpu_custom_call.1} parent=11 // pred_check_branch
          %583 = sbr.rel (%p581) target = $region60
        $region59: #{tpu_custom_call.1} parent=11 // pred_region
          _
        $region60: #{tpu_custom_call.1} parent=11 // pred_fallthru
          _
        // Predicated region
        $region61: #{tpu_custom_call.1} parent=11 // pred_check
          %p584 = pneg %p334
        $region62: #{tpu_custom_call.1} parent=11 // pred_check_branch
          %586 = sbr.rel (%p584) target = $region64
        $region63: #{tpu_custom_call.1} parent=11 // pred_region
          _
        $region64: #{tpu_custom_call.1} parent=11 // pred_fallthru
          _
        // Predicated region
        $region65: #{tpu_custom_call.1} parent=11 // pred_check
          %p587 = pneg %p355
        $region66: #{tpu_custom_call.1} parent=11 // pred_check_branch
          %589 = sbr.rel (%p587) target = $region68
        $region67: #{tpu_custom_call.1} parent=11 // pred_region
          _
        $region68: #{tpu_custom_call.1} parent=11 // pred_fallthru
          _
        // Predicated region
        $region69: #{tpu_custom_call.1} parent=11 // pred_check
          %p590 = pneg %p376
        $region70: #{tpu_custom_call.1} parent=11 // pred_check_branch
          %592 = sbr.rel (%p590) target = $region72
        $region71: #{tpu_custom_call.1} parent=11 // pred_region
          _
        $region72: #{tpu_custom_call.1} parent=11 // pred_fallthru
          _
        // Predicated region
        $region73: #{tpu_custom_call.1} parent=11 // pred_check
          %p593 = pneg %p397
        $region74: #{tpu_custom_call.1} parent=11 // pred_check_branch
          %595 = sbr.rel (%p593) target = $region76
        $region75: #{tpu_custom_call.1} parent=11 // pred_region
          _
        $region76: #{tpu_custom_call.1} parent=11 // pred_fallthru
          _
        // Predicated region
        $region77: #{tpu_custom_call.1} parent=11 // pred_check
          %p596 = pneg %p418
        $region78: #{tpu_custom_call.1} parent=11 // pred_check_branch
          %598 = sbr.rel (%p596) target = $region80
        $region79: #{tpu_custom_call.1} parent=11 // pred_region
          _
        $region80: #{tpu_custom_call.1} parent=11 // pred_fallthru
          _
        // Predicated region
        $region81: #{tpu_custom_call.1} parent=11 // pred_check
          %p599 = pneg %p439
        $region82: #{tpu_custom_call.1} parent=11 // pred_check_branch
          %601 = sbr.rel (%p599) target = $region84
        $region83: #{tpu_custom_call.1} parent=11 // pred_region
          _
        $region84: #{tpu_custom_call.1} parent=11 // pred_fallthru
          _
        // Predicated region
        $region85: #{tpu_custom_call.1} parent=11 // pred_check
          %p602 = pneg %p460
        $region86: #{tpu_custom_call.1} parent=11 // pred_check_branch
          %604 = sbr.rel (%p602) target = $region88
        $region87: #{tpu_custom_call.1} parent=11 // pred_region
          _
        $region88: #{tpu_custom_call.1} parent=11 // pred_fallthru
          _
        // Predicated region
        $region89: #{tpu_custom_call.1} parent=11 // pred_check
          %p605 = pneg %p481
        $region90: #{tpu_custom_call.1} parent=11 // pred_check_branch
          %607 = sbr.rel (%p605) target = $region92
        $region91: #{tpu_custom_call.1} parent=11 // pred_region
          _
        $region92: #{tpu_custom_call.1} parent=11 // pred_fallthru
          _
      $region12: #{tpu_custom_call.1} parent=5 // pred_fallthru
        _
      %p608 = scmp.lt.s32.totalorder %s35, 2
      // Predicated region
      $region93: #{tpu_custom_call.1} parent=5 // pred_check
        %p609 = pneg %p608
      $region94: #{tpu_custom_call.1} parent=5 // pred_check_branch
        %611 = sbr.rel (%p609) target = $region96
      $region95: #{tpu_custom_call.1} parent=5 // pred_region
        // Predicated region
        $region97: #{tpu_custom_call.1} parent=95 // pred_check
          %p612 = pneg %p55
        $region98: #{tpu_custom_call.1} parent=95 // pred_check_branch
          %614 = sbr.rel (%p612) target = $region100
        $region99: #{tpu_custom_call.1} parent=95 // pred_region
          %p615 = scmp.lt.s32.totalorder %s35, 1
          %s616 = scalar_select %p615, %s35, 1
          %s617 = smul.addr %s616, 32
          %s618 = smul.addr %s617, 8
          %s619 = scalar_lea.vmem %s0, %s618
        $region100: #{tpu_custom_call.1} parent=95 // pred_fallthru
          _
      $region96: #{tpu_custom_call.1} parent=5 // pred_fallthru
        _
      %p620 = scmp.le.s32.totalorder 1, %s35
      %p621 = scmp.lt.s32.totalorder %s35, 3
      %p622 = pnand %p620, %p621
      %p623 = pneg %p622
      // Predicated region
      $region101: #{tpu_custom_call.1} parent=5 // pred_check
        _
      $region102: #{tpu_custom_call.1} parent=5 // pred_check_branch
        %625 = sbr.rel (%p622) target = $region104
      $region103: #{tpu_custom_call.1} parent=5 // pred_region
        %s626 = ssub.s32 %s35, 1
        %p627 = scmp.lt.s32.totalorder %s40, 1
        %s628 = scalar_select %p627, %s40, 1
        %s629 = smul.addr %s628, 32
        %s630 = smul.addr %s629, 8
        %s631 = scalar_lea.vmem %s0, %s630
        %p632 = pneg %p61
        %p633 = pneg %p58
        %p634 = pneg %p82
        %p635 = pneg %p79
        %p636 = pneg %p103
        %p637 = pneg %p100
        %p638 = pneg %p124
        %p639 = pneg %p121
        %p640 = pneg %p145
        %p641 = pneg %p142
        %p642 = pneg %p166
        %p643 = pneg %p163
        %p644 = pneg %p187
        %p645 = pneg %p184
        %p646 = pneg %p208
        %p647 = pneg %p205
        %p648 = pneg %p229
        %p649 = pneg %p226
        %p650 = pneg %p250
        %p651 = pneg %p247
        %p652 = pneg %p271
        %p653 = pneg %p268
        %p654 = pneg %p292
        %p655 = pneg %p289
        %p656 = pneg %p313
        %p657 = pneg %p310
        %p658 = pneg %p334
        %p659 = pneg %p331
        %p660 = pneg %p355
        %p661 = pneg %p352
        %p662 = pneg %p376
        %p663 = pneg %p373
        %p664 = pneg %p397
        %p665 = pneg %p394
        %p666 = pneg %p418
        %p667 = pneg %p415
        %p668 = pneg %p439
        %p669 = pneg %p436
        %p670 = pneg %p460
        %p671 = pneg %p457
        %p672 = pneg %p481
        %p673 = pneg %p478
        %p674 = pneg %p507
        %p675 = pneg %p504
        %s676 = sand.u32 %s494, 1
        %s677 = scalar_lea.sflag [#allocation4], %s676
        %s678 = sand.u32 %s494, 1
        %s679 = smul.addr %s678, 16
        %s680 = scalar_lea.vmem [#allocation3], %s679
        %p681 = pneg %p533
        %p682 = pneg %p530
        %s683 = sand.u32 %s520, 1
        %s684 = scalar_lea.sflag [#allocation6], %s683
        %s685 = sand.u32 %s520, 1
        %s686 = smul.addr %s685, 16
        %s687 = scalar_lea.vmem [#allocation5], %s686
        %p688 = scmp.lt.s32.totalorder %s40, 1
        %s689 = scalar_select %p688, %s40, 1
        %s690 = smul.addr %s689, 32
        %s691 = smul.addr %s690, 8
        %s692 = scalar_lea.vmem %s0, %s691
        %v693 = vld [vmem:[%s692] sm:$0xff]
        %v694 = vld [vmem:[%s692 + $0x8] sm:$0xff]
        %v695 = vld [vmem:[%s692 + $0x10] sm:$0xff]
        %v696 = vld [vmem:[%s692 + $0x18] sm:$0xff]
        %v697 = vld [vmem:[%s692 + $0x20] sm:$0xff]
        %v698 = vld [vmem:[%s692 + $0x28] sm:$0xff]
        %v699 = vld [vmem:[%s692 + $0x30] sm:$0xff]
        %v700 = vld [vmem:[%s692 + $0x38] sm:$0xff]
        %v701 = vld [vmem:[%s692 + $0x40] sm:$0xff]
        %v702 = vld [vmem:[%s692 + $0x48] sm:$0xff]
        %v703 = vld [vmem:[%s692 + $0x50] sm:$0xff]
        %v704 = vld [vmem:[%s692 + $0x58] sm:$0xff]
        %v705 = vld [vmem:[%s692 + $0x60] sm:$0xff]
        %v706 = vld [vmem:[%s692 + $0x68] sm:$0xff]
        %v707 = vld [vmem:[%s692 + $0x70] sm:$0xff]
        %v708 = vld [vmem:[%s692 + $0x78] sm:$0xff]
        %v709 = vld [vmem:[%s692 + $0x80] sm:$0xff]
        %v710 = vld [vmem:[%s692 + $0x88] sm:$0xff]
        %v711 = vld [vmem:[%s692 + $0x90] sm:$0xff]
        %v712 = vld [vmem:[%s692 + $0x98] sm:$0xff]
        %v713 = vld [vmem:[%s692 + $0xa0] sm:$0xff]
        %v714 = vld [vmem:[%s692 + $0xa8] sm:$0xff]
        %v715 = vld [vmem:[%s692 + $0xb0] sm:$0xff]
        %v716 = vld [vmem:[%s692 + $0xb8] sm:$0xff]
        %v717 = vld [vmem:[%s692 + $0xc0] sm:$0xff]
        %v718 = vld [vmem:[%s692 + $0xc8] sm:$0xff]
        %v719 = vld [vmem:[%s692 + $0xd0] sm:$0xff]
        %v720 = vld [vmem:[%s692 + $0xd8] sm:$0xff]
        %v721 = vld [vmem:[%s692 + $0xe0] sm:$0xff]
        %v722 = vld [vmem:[%s692 + $0xe8] sm:$0xff]
        %v723 = vld [vmem:[%s692 + $0xf0] sm:$0xff]
        %v724 = vld [vmem:[%s692 + $0xf8] sm:$0xff]
        %725 = vst [vmem:[#allocation2] sm:$0xff] 0.0
        %726 = vst [vmem:[#allocation2 + $0x8] sm:$0xff] 0.0
        %727 = vst [vmem:[#allocation2 + $0x10] sm:$0x3] 0.0
        %728 = vst [vmem:[#allocation2 + $0x18] sm:$0xff] 0.0
        %729 = vst [vmem:[#allocation2 + $0x20] sm:$0xff] 0.0
        %730 = vst [vmem:[#allocation2 + $0x28] sm:$0x3] 0.0
        %731 = vst [vmem:[#allocation2 + $0x30] sm:$0xff] 0.0
        %732 = vst [vmem:[#allocation2 + $0x38] sm:$0xff] 0.0
        %733 = vst [vmem:[#allocation2 + $0x40] sm:$0x3] 0.0
        %734 = vst [vmem:[#allocation2 + $0x48] sm:$0xff] 0.0
        %735 = vst [vmem:[#allocation2 + $0x50] sm:$0xff] 0.0
        %736 = vst [vmem:[#allocation2 + $0x58] sm:$0x3] 0.0
        %737 = vst [vmem:[#allocation2 + $0x60] sm:$0xff] 0.0
        %738 = vst [vmem:[#allocation2 + $0x68] sm:$0xff] 0.0
        %739 = vst [vmem:[#allocation2 + $0x70] sm:$0x3] 0.0
        %740 = vst [vmem:[#allocation2 + $0x78] sm:$0xff] 0.0
        %741 = vst [vmem:[#allocation2 + $0x80] sm:$0xff] 0.0
        %742 = vst [vmem:[#allocation2 + $0x88] sm:$0x3] 0.0
        %743 = vst [vmem:[#allocation2 + $0x90] sm:$0xff] 0.0
        %744 = vst [vmem:[#allocation2 + $0x98] sm:$0xff] 0.0
        %745 = vst [vmem:[#allocation2 + $0xa0] sm:$0x3] 0.0
        %746 = vst [vmem:[#allocation2 + $0xa8] sm:$0xff] 0.0
        %747 = vst [vmem:[#allocation2 + $0xb0] sm:$0xff] 0.0
        %748 = vst [vmem:[#allocation2 + $0xb8] sm:$0x3] 0.0
        %749 = vst [vmem:[#allocation2 + $0xc0] sm:$0xff] 0.0
        %750 = vst [vmem:[#allocation2 + $0xc8] sm:$0xff] 0.0
        %751 = vst [vmem:[#allocation2 + $0xd0] sm:$0x3] 0.0
        %752 = vst [vmem:[#allocation2 + $0xd8] sm:$0xff] 0.0
        %753 = vst [vmem:[#allocation2 + $0xe0] sm:$0xff] 0.0
        %754 = vst [vmem:[#allocation2 + $0xe8] sm:$0x3] 0.0
        %755 = vst [vmem:[#allocation2 + $0xf0] sm:$0xff] 0.0
        %756 = vst [vmem:[#allocation2 + $0xf8] sm:$0xff] 0.0
        %757 = vst [vmem:[#allocation2 + $0x100] sm:$0x3] 0.0
        %758 = vst [vmem:[#allocation2 + $0x108] sm:$0xff] 0.0
        %759 = vst [vmem:[#allocation2 + $0x110] sm:$0xff] 0.0
        %760 = vst [vmem:[#allocation2 + $0x118] sm:$0x3] 0.0
        %761 = vst [vmem:[#allocation2 + $0x120] sm:$0xff] 0.0
        %762 = vst [vmem:[#allocation2 + $0x128] sm:$0xff] 0.0
        %763 = vst [vmem:[#allocation2 + $0x130] sm:$0x3] 0.0
        %764 = vst [vmem:[#allocation2 + $0x138] sm:$0xff] 0.0
        %765 = vst [vmem:[#allocation2 + $0x140] sm:$0xff] 0.0
        %766 = vst [vmem:[#allocation2 + $0x148] sm:$0x3] 0.0
        %767 = vst [vmem:[#allocation2 + $0x150] sm:$0xff] 0.0
        %768 = vst [vmem:[#allocation2 + $0x158] sm:$0xff] 0.0
        %769 = vst [vmem:[#allocation2 + $0x160] sm:$0x3] 0.0
        %770 = vst [vmem:[#allocation2 + $0x168] sm:$0xff] 0.0
        %771 = vst [vmem:[#allocation2 + $0x170] sm:$0xff] 0.0
        %772 = vst [vmem:[#allocation2 + $0x178] sm:$0x3] 0.0
        %773 = vst [vmem:[#allocation2 + $0x180] sm:$0xff] 0.0
        %774 = vst [vmem:[#allocation2 + $0x188] sm:$0xff] 0.0
        %775 = vst [vmem:[#allocation2 + $0x190] sm:$0x3] 0.0
        %776 = vst [vmem:[#allocation2 + $0x198] sm:$0xff] 0.0
        %777 = vst [vmem:[#allocation2 + $0x1a0] sm:$0xff] 0.0
        %778 = vst [vmem:[#allocation2 + $0x1a8] sm:$0x3] 0.0
        %s779 = scalar_lea.vmem [#allocation2], 24
        %vm780 = vcmask 31744
        %781 = vst.msk [vmem:[%s779 + $0x1] sm:$0xff] %vm780, %v693
        %782 = vst.msk [vmem:[%s779 + $0x9] sm:$0xff] %vm780, %v694
        %783 = vst.msk [vmem:[%s779 + $0x19] sm:$0xff] %vm780, %v695
        %784 = vst.msk [vmem:[%s779 + $0x21] sm:$0xff] %vm780, %v696
        %785 = vst.msk [vmem:[%s779 + $0x31] sm:$0xff] %vm780, %v697
        %786 = vst.msk [vmem:[%s779 + $0x39] sm:$0xff] %vm780, %v698
        %787 = vst.msk [vmem:[%s779 + $0x49] sm:$0xff] %vm780, %v699
        %788 = vst.msk [vmem:[%s779 + $0x51] sm:$0xff] %vm780, %v700
        %789 = vst.msk [vmem:[%s779 + $0x61] sm:$0xff] %vm780, %v701
        %790 = vst.msk [vmem:[%s779 + $0x69] sm:$0xff] %vm780, %v702
        %791 = vst.msk [vmem:[%s779 + $0x79] sm:$0xff] %vm780, %v703
        %792 = vst.msk [vmem:[%s779 + $0x81] sm:$0xff] %vm780, %v704
        %793 = vst.msk [vmem:[%s779 + $0x91] sm:$0xff] %vm780, %v705
        %794 = vst.msk [vmem:[%s779 + $0x99] sm:$0xff] %vm780, %v706
        %795 = vst.msk [vmem:[%s779 + $0xa9] sm:$0xff] %vm780, %v707
        %796 = vst.msk [vmem:[%s779 + $0xb1] sm:$0xff] %vm780, %v708
        %797 = vst.msk [vmem:[%s779 + $0xc1] sm:$0xff] %vm780, %v709
        %798 = vst.msk [vmem:[%s779 + $0xc9] sm:$0xff] %vm780, %v710
        %799 = vst.msk [vmem:[%s779 + $0xd9] sm:$0xff] %vm780, %v711
        %800 = vst.msk [vmem:[%s779 + $0xe1] sm:$0xff] %vm780, %v712
        %801 = vst.msk [vmem:[%s779 + $0xf1] sm:$0xff] %vm780, %v713
        %802 = vst.msk [vmem:[%s779 + $0xf9] sm:$0xff] %vm780, %v714
        %803 = vst.msk [vmem:[%s779 + $0x109] sm:$0xff] %vm780, %v715
        %804 = vst.msk [vmem:[%s779 + $0x111] sm:$0xff] %vm780, %v716
        %805 = vst.msk [vmem:[%s779 + $0x121] sm:$0xff] %vm780, %v717
        %806 = vst.msk [vmem:[%s779 + $0x129] sm:$0xff] %vm780, %v718
        %807 = vst.msk [vmem:[%s779 + $0x139] sm:$0xff] %vm780, %v719
        %808 = vst.msk [vmem:[%s779 + $0x141] sm:$0xff] %vm780, %v720
        %809 = vst.msk [vmem:[%s779 + $0x151] sm:$0xff] %vm780, %v721
        %810 = vst.msk [vmem:[%s779 + $0x159] sm:$0xff] %vm780, %v722
        %811 = vst.msk [vmem:[%s779 + $0x169] sm:$0xff] %vm780, %v723
        %812 = vst.msk [vmem:[%s779 + $0x171] sm:$0xff] %vm780, %v724
        %v813 = vld [vmem:[#allocation2] sm:$0xff]
        %v814 = vld [vmem:[#allocation2 + $0x8] sm:$0xff]
        %v815 = vld [vmem:[#allocation2 + $0x18] sm:$0xff]
        %v816 = vld [vmem:[#allocation2 + $0x20] sm:$0xff]
        %v817 = vld [vmem:[#allocation2 + $0x30] sm:$0xff]
        %v818 = vld [vmem:[#allocation2 + $0x38] sm:$0xff]
        %v819 = vld [vmem:[#allocation2 + $0x48] sm:$0xff]
        %v820 = vld [vmem:[#allocation2 + $0x50] sm:$0xff]
        %v821 = vld [vmem:[#allocation2 + $0x60] sm:$0xff]
        %v822 = vld [vmem:[#allocation2 + $0x68] sm:$0xff]
        %v823 = vld [vmem:[#allocation2 + $0x78] sm:$0xff]
        %v824 = vld [vmem:[#allocation2 + $0x80] sm:$0xff]
        %v825 = vld [vmem:[#allocation2 + $0x90] sm:$0xff]
        %v826 = vld [vmem:[#allocation2 + $0x98] sm:$0xff]
        %v827 = vld [vmem:[#allocation2 + $0xa8] sm:$0xff]
        %v828 = vld [vmem:[#allocation2 + $0xb0] sm:$0xff]
        %v829 = vld [vmem:[#allocation2 + $0xc0] sm:$0xff]
        %v830 = vld [vmem:[#allocation2 + $0xc8] sm:$0xff]
        %v831 = vld [vmem:[#allocation2 + $0xd8] sm:$0xff]
        %v832 = vld [vmem:[#allocation2 + $0xe0] sm:$0xff]
        %v833 = vld [vmem:[#allocation2 + $0xf0] sm:$0xff]
        %v834 = vld [vmem:[#allocation2 + $0xf8] sm:$0xff]
        %v835 = vld [vmem:[#allocation2 + $0x108] sm:$0xff]
        %v836 = vld [vmem:[#allocation2 + $0x110] sm:$0xff]
        %v837 = vld [vmem:[#allocation2 + $0x120] sm:$0xff]
        %v838 = vld [vmem:[#allocation2 + $0x128] sm:$0xff]
        %v839 = vld [vmem:[#allocation2 + $0x138] sm:$0xff]
        %v840 = vld [vmem:[#allocation2 + $0x140] sm:$0xff]
        %v841 = vld [vmem:[#allocation2 + $0x150] sm:$0xff]
        %v842 = vld [vmem:[#allocation2 + $0x158] sm:$0xff]
        %v843 = vld [vmem:[#allocation2 + $0x168] sm:$0xff]
        %v844 = vld [vmem:[#allocation2 + $0x170] sm:$0xff]
        %v845 = vld [vmem:[#allocation2 + $0x1] sm:$0xff]
        %v846 = vld [vmem:[#allocation2 + $0x9] sm:$0xff]
        %v847 = vld [vmem:[#allocation2 + $0x19] sm:$0xff]
        %v848 = vld [vmem:[#allocation2 + $0x21] sm:$0xff]
        %v849 = vld [vmem:[#allocation2 + $0x31] sm:$0xff]
        %v850 = vld [vmem:[#allocation2 + $0x39] sm:$0xff]
        %v851 = vld [vmem:[#allocation2 + $0x49] sm:$0xff]
        %v852 = vld [vmem:[#allocation2 + $0x51] sm:$0xff]
        %v853 = vld [vmem:[#allocation2 + $0x61] sm:$0xff]
        %v854 = vld [vmem:[#allocation2 + $0x69] sm:$0xff]
        %v855 = vld [vmem:[#allocation2 + $0x79] sm:$0xff]
        %v856 = vld [vmem:[#allocation2 + $0x81] sm:$0xff]
        %v857 = vld [vmem:[#allocation2 + $0x91] sm:$0xff]
        %v858 = vld [vmem:[#allocation2 + $0x99] sm:$0xff]
        %v859 = vld [vmem:[#allocation2 + $0xa9] sm:$0xff]
        %v860 = vld [vmem:[#allocation2 + $0xb1] sm:$0xff]
        %v861 = vld [vmem:[#allocation2 + $0xc1] sm:$0xff]
        %v862 = vld [vmem:[#allocation2 + $0xc9] sm:$0xff]
        %v863 = vld [vmem:[#allocation2 + $0xd9] sm:$0xff]
        %v864 = vld [vmem:[#allocation2 + $0xe1] sm:$0xff]
        %v865 = vld [vmem:[#allocation2 + $0xf1] sm:$0xff]
        %v866 = vld [vmem:[#allocation2 + $0xf9] sm:$0xff]
        %v867 = vld [vmem:[#allocation2 + $0x109] sm:$0xff]
        %v868 = vld [vmem:[#allocation2 + $0x111] sm:$0xff]
        %v869 = vld [vmem:[#allocation2 + $0x121] sm:$0xff]
        %v870 = vld [vmem:[#allocation2 + $0x129] sm:$0xff]
        %v871 = vld [vmem:[#allocation2 + $0x139] sm:$0xff]
        %v872 = vld [vmem:[#allocation2 + $0x141] sm:$0xff]
        %v873 = vld [vmem:[#allocation2 + $0x151] sm:$0xff]
        %v874 = vld [vmem:[#allocation2 + $0x159] sm:$0xff]
        %v875 = vld [vmem:[#allocation2 + $0x169] sm:$0xff]
        %v876 = vld [vmem:[#allocation2 + $0x171] sm:$0xff]
        %v877 = vld [vmem:[#allocation2 + $0x2] sm:$0xff]
        %v878 = vld [vmem:[#allocation2 + $0xa] sm:$0xff]
        %v879 = vld [vmem:[#allocation2 + $0x1a] sm:$0xff]
        %v880 = vld [vmem:[#allocation2 + $0x22] sm:$0xff]
        %v881 = vld [vmem:[#allocation2 + $0x32] sm:$0xff]
        %v882 = vld [vmem:[#allocation2 + $0x3a] sm:$0xff]
        %v883 = vld [vmem:[#allocation2 + $0x4a] sm:$0xff]
        %v884 = vld [vmem:[#allocation2 + $0x52] sm:$0xff]
        %v885 = vld [vmem:[#allocation2 + $0x62] sm:$0xff]
        %v886 = vld [vmem:[#allocation2 + $0x6a] sm:$0xff]
        %v887 = vld [vmem:[#allocation2 + $0x7a] sm:$0xff]
        %v888 = vld [vmem:[#allocation2 + $0x82] sm:$0xff]
        %v889 = vld [vmem:[#allocation2 + $0x92] sm:$0xff]
        %v890 = vld [vmem:[#allocation2 + $0x9a] sm:$0xff]
        %v891 = vld [vmem:[#allocation2 + $0xaa] sm:$0xff]
        %v892 = vld [vmem:[#allocation2 + $0xb2] sm:$0xff]
        %v893 = vld [vmem:[#allocation2 + $0xc2] sm:$0xff]
        %v894 = vld [vmem:[#allocation2 + $0xca] sm:$0xff]
        %v895 = vld [vmem:[#allocation2 + $0xda] sm:$0xff]
        %v896 = vld [vmem:[#allocation2 + $0xe2] sm:$0xff]
        %v897 = vld [vmem:[#allocation2 + $0xf2] sm:$0xff]
        %v898 = vld [vmem:[#allocation2 + $0xfa] sm:$0xff]
        %v899 = vld [vmem:[#allocation2 + $0x10a] sm:$0xff]
        %v900 = vld [vmem:[#allocation2 + $0x112] sm:$0xff]
        %v901 = vld [vmem:[#allocation2 + $0x122] sm:$0xff]
        %v902 = vld [vmem:[#allocation2 + $0x12a] sm:$0xff]
        %v903 = vld [vmem:[#allocation2 + $0x13a] sm:$0xff]
        %v904 = vld [vmem:[#allocation2 + $0x142] sm:$0xff]
        %v905 = vld [vmem:[#allocation2 + $0x152] sm:$0xff]
        %v906 = vld [vmem:[#allocation2 + $0x15a] sm:$0xff]
        %v907 = vld [vmem:[#allocation2 + $0x16a] sm:$0xff]
        %v908 = vld [vmem:[#allocation2 + $0x172] sm:$0xff]
        %v909 = vld [vmem:[%s779] sm:$0xff]
        %v910 = vld [vmem:[%s779 + $0x8] sm:$0xff]
        %v911 = vld [vmem:[%s779 + $0x18] sm:$0xff]
        %v912 = vld [vmem:[%s779 + $0x20] sm:$0xff]
        %v913 = vld [vmem:[%s779 + $0x30] sm:$0xff]
        %v914 = vld [vmem:[%s779 + $0x38] sm:$0xff]
        %v915 = vld [vmem:[%s779 + $0x48] sm:$0xff]
        %v916 = vld [vmem:[%s779 + $0x50] sm:$0xff]
        %v917 = vld [vmem:[%s779 + $0x60] sm:$0xff]
        %v918 = vld [vmem:[%s779 + $0x68] sm:$0xff]
        %v919 = vld [vmem:[%s779 + $0x78] sm:$0xff]
        %v920 = vld [vmem:[%s779 + $0x80] sm:$0xff]
        %v921 = vld [vmem:[%s779 + $0x90] sm:$0xff]
        %v922 = vld [vmem:[%s779 + $0x98] sm:$0xff]
        %v923 = vld [vmem:[%s779 + $0xa8] sm:$0xff]
        %v924 = vld [vmem:[%s779 + $0xb0] sm:$0xff]
        %v925 = vld [vmem:[%s779 + $0xc0] sm:$0xff]
        %v926 = vld [vmem:[%s779 + $0xc8] sm:$0xff]
        %v927 = vld [vmem:[%s779 + $0xd8] sm:$0xff]
        %v928 = vld [vmem:[%s779 + $0xe0] sm:$0xff]
        %v929 = vld [vmem:[%s779 + $0xf0] sm:$0xff]
        %v930 = vld [vmem:[%s779 + $0xf8] sm:$0xff]
        %v931 = vld [vmem:[%s779 + $0x108] sm:$0xff]
        %v932 = vld [vmem:[%s779 + $0x110] sm:$0xff]
        %v933 = vld [vmem:[%s779 + $0x120] sm:$0xff]
        %v934 = vld [vmem:[%s779 + $0x128] sm:$0xff]
        %v935 = vld [vmem:[%s779 + $0x138] sm:$0xff]
        %v936 = vld [vmem:[%s779 + $0x140] sm:$0xff]
        %v937 = vld [vmem:[%s779 + $0x150] sm:$0xff]
        %v938 = vld [vmem:[%s779 + $0x158] sm:$0xff]
        %v939 = vld [vmem:[%s779 + $0x168] sm:$0xff]
        %v940 = vld [vmem:[%s779 + $0x170] sm:$0xff]
        %v941 = vld [vmem:[%s779 + $0x1] sm:$0xff]
        %v942 = vld [vmem:[%s779 + $0x9] sm:$0xff]
        %v943 = vld [vmem:[%s779 + $0x19] sm:$0xff]
        %v944 = vld [vmem:[%s779 + $0x21] sm:$0xff]
        %v945 = vld [vmem:[%s779 + $0x31] sm:$0xff]
        %v946 = vld [vmem:[%s779 + $0x39] sm:$0xff]
        %v947 = vld [vmem:[%s779 + $0x49] sm:$0xff]
        %v948 = vld [vmem:[%s779 + $0x51] sm:$0xff]
        %v949 = vld [vmem:[%s779 + $0x61] sm:$0xff]
        %v950 = vld [vmem:[%s779 + $0x69] sm:$0xff]
        %v951 = vld [vmem:[%s779 + $0x79] sm:$0xff]
        %v952 = vld [vmem:[%s779 + $0x81] sm:$0xff]
        %v953 = vld [vmem:[%s779 + $0x91] sm:$0xff]
        %v954 = vld [vmem:[%s779 + $0x99] sm:$0xff]
        %v955 = vld [vmem:[%s779 + $0xa9] sm:$0xff]
        %v956 = vld [vmem:[%s779 + $0xb1] sm:$0xff]
        %v957 = vld [vmem:[%s779 + $0xc1] sm:$0xff]
        %v958 = vld [vmem:[%s779 + $0xc9] sm:$0xff]
        %v959 = vld [vmem:[%s779 + $0xd9] sm:$0xff]
        %v960 = vld [vmem:[%s779 + $0xe1] sm:$0xff]
        %v961 = vld [vmem:[%s779 + $0xf1] sm:$0xff]
        %v962 = vld [vmem:[%s779 + $0xf9] sm:$0xff]
        %v963 = vld [vmem:[%s779 + $0x109] sm:$0xff]
        %v964 = vld [vmem:[%s779 + $0x111] sm:$0xff]
        %v965 = vld [vmem:[%s779 + $0x121] sm:$0xff]
        %v966 = vld [vmem:[%s779 + $0x129] sm:$0xff]
        %v967 = vld [vmem:[%s779 + $0x139] sm:$0xff]
        %v968 = vld [vmem:[%s779 + $0x141] sm:$0xff]
        %v969 = vld [vmem:[%s779 + $0x151] sm:$0xff]
        %v970 = vld [vmem:[%s779 + $0x159] sm:$0xff]
        %v971 = vld [vmem:[%s779 + $0x169] sm:$0xff]
        %v972 = vld [vmem:[%s779 + $0x171] sm:$0xff]
        %v973 = vld [vmem:[%s779 + $0x2] sm:$0xff]
        %v974 = vld [vmem:[%s779 + $0xa] sm:$0xff]
        %v975 = vld [vmem:[%s779 + $0x1a] sm:$0xff]
        %v976 = vld [vmem:[%s779 + $0x22] sm:$0xff]
        %v977 = vld [vmem:[%s779 + $0x32] sm:$0xff]
        %v978 = vld [vmem:[%s779 + $0x3a] sm:$0xff]
        %v979 = vld [vmem:[%s779 + $0x4a] sm:$0xff]
        %v980 = vld [vmem:[%s779 + $0x52] sm:$0xff]
        %v981 = vld [vmem:[%s779 + $0x62] sm:$0xff]
        %v982 = vld [vmem:[%s779 + $0x6a] sm:$0xff]
        %v983 = vld [vmem:[%s779 + $0x7a] sm:$0xff]
        %v984 = vld [vmem:[%s779 + $0x82] sm:$0xff]
        %v985 = vld [vmem:[%s779 + $0x92] sm:$0xff]
        %v986 = vld [vmem:[%s779 + $0x9a] sm:$0xff]
        %v987 = vld [vmem:[%s779 + $0xaa] sm:$0xff]
        %v988 = vld [vmem:[%s779 + $0xb2] sm:$0xff]
        %v989 = vld [vmem:[%s779 + $0xc2] sm:$0xff]
        %v990 = vld [vmem:[%s779 + $0xca] sm:$0xff]
        %v991 = vld [vmem:[%s779 + $0xda] sm:$0xff]
        %v992 = vld [vmem:[%s779 + $0xe2] sm:$0xff]
        %v993 = vld [vmem:[%s779 + $0xf2] sm:$0xff]
        %v994 = vld [vmem:[%s779 + $0xfa] sm:$0xff]
        %v995 = vld [vmem:[%s779 + $0x10a] sm:$0xff]
        %v996 = vld [vmem:[%s779 + $0x112] sm:$0xff]
        %v997 = vld [vmem:[%s779 + $0x122] sm:$0xff]
        %v998 = vld [vmem:[%s779 + $0x12a] sm:$0xff]
        %v999 = vld [vmem:[%s779 + $0x13a] sm:$0xff]
        %v1000 = vld [vmem:[%s779 + $0x142] sm:$0xff]
        %v1001 = vld [vmem:[%s779 + $0x152] sm:$0xff]
        %v1002 = vld [vmem:[%s779 + $0x15a] sm:$0xff]
        %v1003 = vld [vmem:[%s779 + $0x16a] sm:$0xff]
        %v1004 = vld [vmem:[%s779 + $0x172] sm:$0xff]
        %s1005 = scalar_lea.vmem [#allocation2], 48
        %v1006 = vld [vmem:[%s1005] sm:$0xff]
        %v1007 = vld [vmem:[%s1005 + $0x8] sm:$0xff]
        %v1008 = vld [vmem:[%s1005 + $0x18] sm:$0xff]
        %v1009 = vld [vmem:[%s1005 + $0x20] sm:$0xff]
        %v1010 = vld [vmem:[%s1005 + $0x30] sm:$0xff]
        %v1011 = vld [vmem:[%s1005 + $0x38] sm:$0xff]
        %v1012 = vld [vmem:[%s1005 + $0x48] sm:$0xff]
        %v1013 = vld [vmem:[%s1005 + $0x50] sm:$0xff]
        %v1014 = vld [vmem:[%s1005 + $0x60] sm:$0xff]
        %v1015 = vld [vmem:[%s1005 + $0x68] sm:$0xff]
        %v1016 = vld [vmem:[%s1005 + $0x78] sm:$0xff]
        %v1017 = vld [vmem:[%s1005 + $0x80] sm:$0xff]
        %v1018 = vld [vmem:[%s1005 + $0x90] sm:$0xff]
        %v1019 = vld [vmem:[%s1005 + $0x98] sm:$0xff]
        %v1020 = vld [vmem:[%s1005 + $0xa8] sm:$0xff]
        %v1021 = vld [vmem:[%s1005 + $0xb0] sm:$0xff]
        %v1022 = vld [vmem:[%s1005 + $0xc0] sm:$0xff]
        %v1023 = vld [vmem:[%s1005 + $0xc8] sm:$0xff]
        %v1024 = vld [vmem:[%s1005 + $0xd8] sm:$0xff]
        %v1025 = vld [vmem:[%s1005 + $0xe0] sm:$0xff]
        %v1026 = vld [vmem:[%s1005 + $0xf0] sm:$0xff]
        %v1027 = vld [vmem:[%s1005 + $0xf8] sm:$0xff]
        %v1028 = vld [vmem:[%s1005 + $0x108] sm:$0xff]
        %v1029 = vld [vmem:[%s1005 + $0x110] sm:$0xff]
        %v1030 = vld [vmem:[%s1005 + $0x120] sm:$0xff]
        %v1031 = vld [vmem:[%s1005 + $0x128] sm:$0xff]
        %v1032 = vld [vmem:[%s1005 + $0x138] sm:$0xff]
        %v1033 = vld [vmem:[%s1005 + $0x140] sm:$0xff]
        %v1034 = vld [vmem:[%s1005 + $0x150] sm:$0xff]
        %v1035 = vld [vmem:[%s1005 + $0x158] sm:$0xff]
        %v1036 = vld [vmem:[%s1005 + $0x168] sm:$0xff]
        %v1037 = vld [vmem:[%s1005 + $0x170] sm:$0xff]
        %v1038 = vld [vmem:[%s1005 + $0x1] sm:$0xff]
        %v1039 = vld [vmem:[%s1005 + $0x9] sm:$0xff]
        %v1040 = vld [vmem:[%s1005 + $0x19] sm:$0xff]
        %v1041 = vld [vmem:[%s1005 + $0x21] sm:$0xff]
        %v1042 = vld [vmem:[%s1005 + $0x31] sm:$0xff]
        %v1043 = vld [vmem:[%s1005 + $0x39] sm:$0xff]
        %v1044 = vld [vmem:[%s1005 + $0x49] sm:$0xff]
        %v1045 = vld [vmem:[%s1005 + $0x51] sm:$0xff]
        %v1046 = vld [vmem:[%s1005 + $0x61] sm:$0xff]
        %v1047 = vld [vmem:[%s1005 + $0x69] sm:$0xff]
        %v1048 = vld [vmem:[%s1005 + $0x79] sm:$0xff]
        %v1049 = vld [vmem:[%s1005 + $0x81] sm:$0xff]
        %v1050 = vld [vmem:[%s1005 + $0x91] sm:$0xff]
        %v1051 = vld [vmem:[%s1005 + $0x99] sm:$0xff]
        %v1052 = vld [vmem:[%s1005 + $0xa9] sm:$0xff]
        %v1053 = vld [vmem:[%s1005 + $0xb1] sm:$0xff]
        %v1054 = vld [vmem:[%s1005 + $0xc1] sm:$0xff]
        %v1055 = vld [vmem:[%s1005 + $0xc9] sm:$0xff]
        %v1056 = vld [vmem:[%s1005 + $0xd9] sm:$0xff]
        %v1057 = vld [vmem:[%s1005 + $0xe1] sm:$0xff]
        %v1058 = vld [vmem:[%s1005 + $0xf1] sm:$0xff]
        %v1059 = vld [vmem:[%s1005 + $0xf9] sm:$0xff]
        %v1060 = vld [vmem:[%s1005 + $0x109] sm:$0xff]
        %v1061 = vld [vmem:[%s1005 + $0x111] sm:$0xff]
        %v1062 = vld [vmem:[%s1005 + $0x121] sm:$0xff]
        %v1063 = vld [vmem:[%s1005 + $0x129] sm:$0xff]
        %v1064 = vld [vmem:[%s1005 + $0x139] sm:$0xff]
        %v1065 = vld [vmem:[%s1005 + $0x141] sm:$0xff]
        %v1066 = vld [vmem:[%s1005 + $0x151] sm:$0xff]
        %v1067 = vld [vmem:[%s1005 + $0x159] sm:$0xff]
        %v1068 = vld [vmem:[%s1005 + $0x169] sm:$0xff]
        %v1069 = vld [vmem:[%s1005 + $0x171] sm:$0xff]
        %v1070 = vld [vmem:[%s1005 + $0x2] sm:$0xff]
        %v1071 = vld [vmem:[%s1005 + $0xa] sm:$0xff]
        %v1072 = vld [vmem:[%s1005 + $0x1a] sm:$0xff]
        %v1073 = vld [vmem:[%s1005 + $0x22] sm:$0xff]
        %v1074 = vld [vmem:[%s1005 + $0x32] sm:$0xff]
        %v1075 = vld [vmem:[%s1005 + $0x3a] sm:$0xff]
        %v1076 = vld [vmem:[%s1005 + $0x4a] sm:$0xff]
        %v1077 = vld [vmem:[%s1005 + $0x52] sm:$0xff]
        %v1078 = vld [vmem:[%s1005 + $0x62] sm:$0xff]
        %v1079 = vld [vmem:[%s1005 + $0x6a] sm:$0xff]
        %v1080 = vld [vmem:[%s1005 + $0x7a] sm:$0xff]
        %v1081 = vld [vmem:[%s1005 + $0x82] sm:$0xff]
        %v1082 = vld [vmem:[%s1005 + $0x92] sm:$0xff]
        %v1083 = vld [vmem:[%s1005 + $0x9a] sm:$0xff]
        %v1084 = vld [vmem:[%s1005 + $0xaa] sm:$0xff]
        %v1085 = vld [vmem:[%s1005 + $0xb2] sm:$0xff]
        %v1086 = vld [vmem:[%s1005 + $0xc2] sm:$0xff]
        %v1087 = vld [vmem:[%s1005 + $0xca] sm:$0xff]
        %v1088 = vld [vmem:[%s1005 + $0xda] sm:$0xff]
        %v1089 = vld [vmem:[%s1005 + $0xe2] sm:$0xff]
        %v1090 = vld [vmem:[%s1005 + $0xf2] sm:$0xff]
        %v1091 = vld [vmem:[%s1005 + $0xfa] sm:$0xff]
        %v1092 = vld [vmem:[%s1005 + $0x10a] sm:$0xff]
        %v1093 = vld [vmem:[%s1005 + $0x112] sm:$0xff]
        %v1094 = vld [vmem:[%s1005 + $0x122] sm:$0xff]
        %v1095 = vld [vmem:[%s1005 + $0x12a] sm:$0xff]
        %v1096 = vld [vmem:[%s1005 + $0x13a] sm:$0xff]
        %v1097 = vld [vmem:[%s1005 + $0x142] sm:$0xff]
        %v1098 = vld [vmem:[%s1005 + $0x152] sm:$0xff]
        %v1099 = vld [vmem:[%s1005 + $0x15a] sm:$0xff]
        %v1100 = vld [vmem:[%s1005 + $0x16a] sm:$0xff]
        %v1101 = vld [vmem:[%s1005 + $0x172] sm:$0xff]
        %v1102 = vpack.c.bf16 %v814, %v813
        %v1103 = vpack.c.bf16 %v846, %v845
        %v1104 = vpack.c.bf16 %v878, %v877
        %v1105 = vpack.c.bf16 %v910, %v909
        %v1106 = vpack.c.bf16 %v942, %v941
        %v1107 = vpack.c.bf16 %v974, %v973
        %v1108 = vpack.c.bf16 %v1007, %v1006
        %v1109 = vpack.c.bf16 %v1039, %v1038
        %v1110 = vpack.c.bf16 %v1071, %v1070
        %v1111 = vpack.c.bf16 %v816, %v815
        %v1112 = vpack.c.bf16 %v848, %v847
        %v1113 = vpack.c.bf16 %v880, %v879
        %v1114 = vpack.c.bf16 %v912, %v911
        %v1115 = vpack.c.bf16 %v944, %v943
        %v1116 = vpack.c.bf16 %v976, %v975
        %v1117 = vpack.c.bf16 %v1009, %v1008
        %v1118 = vpack.c.bf16 %v1041, %v1040
        %v1119 = vpack.c.bf16 %v1073, %v1072
        %v1120 = vpack.c.bf16 %v818, %v817
        %v1121 = vpack.c.bf16 %v850, %v849
        %v1122 = vpack.c.bf16 %v882, %v881
        %v1123 = vpack.c.bf16 %v914, %v913
        %v1124 = vpack.c.bf16 %v946, %v945
        %v1125 = vpack.c.bf16 %v978, %v977
        %v1126 = vpack.c.bf16 %v1011, %v1010
        %v1127 = vpack.c.bf16 %v1043, %v1042
        %v1128 = vpack.c.bf16 %v1075, %v1074
        %v1129 = vpack.c.bf16 %v820, %v819
        %v1130 = vpack.c.bf16 %v852, %v851
        %v1131 = vpack.c.bf16 %v884, %v883
        %v1132 = vpack.c.bf16 %v916, %v915
        %v1133 = vpack.c.bf16 %v948, %v947
        %v1134 = vpack.c.bf16 %v980, %v979
        %v1135 = vpack.c.bf16 %v1013, %v1012
        %v1136 = vpack.c.bf16 %v1045, %v1044
        %v1137 = vpack.c.bf16 %v1077, %v1076
        %v1138 = vpack.c.bf16 %v822, %v821
        %v1139 = vpack.c.bf16 %v854, %v853
        %v1140 = vpack.c.bf16 %v886, %v885
        %v1141 = vpack.c.bf16 %v918, %v917
        %v1142 = vpack.c.bf16 %v950, %v949
        %v1143 = vpack.c.bf16 %v982, %v981
        %v1144 = vpack.c.bf16 %v1015, %v1014
        %v1145 = vpack.c.bf16 %v1047, %v1046
        %v1146 = vpack.c.bf16 %v1079, %v1078
        %v1147 = vpack.c.bf16 %v824, %v823
        %v1148 = vpack.c.bf16 %v856, %v855
        %v1149 = vpack.c.bf16 %v888, %v887
        %v1150 = vpack.c.bf16 %v920, %v919
        %v1151 = vpack.c.bf16 %v952, %v951
        %v1152 = vpack.c.bf16 %v984, %v983
        %v1153 = vpack.c.bf16 %v1017, %v1016
        %v1154 = vpack.c.bf16 %v1049, %v1048
        %v1155 = vpack.c.bf16 %v1081, %v1080
        %v1156 = vpack.c.bf16 %v826, %v825
        %v1157 = vpack.c.bf16 %v858, %v857
        %v1158 = vpack.c.bf16 %v890, %v889
        %v1159 = vpack.c.bf16 %v922, %v921
        %v1160 = vpack.c.bf16 %v954, %v953
        %v1161 = vpack.c.bf16 %v986, %v985
        %v1162 = vpack.c.bf16 %v1019, %v1018
        %v1163 = vpack.c.bf16 %v1051, %v1050
        %v1164 = vpack.c.bf16 %v1083, %v1082
        %v1165 = vpack.c.bf16 %v828, %v827
        %v1166 = vpack.c.bf16 %v860, %v859
        %v1167 = vpack.c.bf16 %v892, %v891
        %v1168 = vpack.c.bf16 %v924, %v923
        %v1169 = vpack.c.bf16 %v956, %v955
        %v1170 = vpack.c.bf16 %v988, %v987
        %v1171 = vpack.c.bf16 %v1021, %v1020
        %v1172 = vpack.c.bf16 %v1053, %v1052
        %v1173 = vpack.c.bf16 %v1085, %v1084
        %v1174 = vpack.c.bf16 %v830, %v829
        %v1175 = vpack.c.bf16 %v862, %v861
        %v1176 = vpack.c.bf16 %v894, %v893
        %v1177 = vpack.c.bf16 %v926, %v925
        %v1178 = vpack.c.bf16 %v958, %v957
        %v1179 = vpack.c.bf16 %v990, %v989
        %v1180 = vpack.c.bf16 %v1023, %v1022
        %v1181 = vpack.c.bf16 %v1055, %v1054
        %v1182 = vpack.c.bf16 %v1087, %v1086
        %v1183 = vpack.c.bf16 %v832, %v831
        %v1184 = vpack.c.bf16 %v864, %v863
        %v1185 = vpack.c.bf16 %v896, %v895
        %v1186 = vpack.c.bf16 %v928, %v927
        %v1187 = vpack.c.bf16 %v960, %v959
        %v1188 = vpack.c.bf16 %v992, %v991
        %v1189 = vpack.c.bf16 %v1025, %v1024
        %v1190 = vpack.c.bf16 %v1057, %v1056
        %v1191 = vpack.c.bf16 %v1089, %v1088
        %v1192 = vpack.c.bf16 %v834, %v833
        %v1193 = vpack.c.bf16 %v866, %v865
        %v1194 = vpack.c.bf16 %v898, %v897
        %v1195 = vpack.c.bf16 %v930, %v929
        %v1196 = vpack.c.bf16 %v962, %v961
        %v1197 = vpack.c.bf16 %v994, %v993
        %v1198 = vpack.c.bf16 %v1027, %v1026
        %v1199 = vpack.c.bf16 %v1059, %v1058
        %v1200 = vpack.c.bf16 %v1091, %v1090
        %v1201 = vpack.c.bf16 %v836, %v835
        %v1202 = vpack.c.bf16 %v868, %v867
        %v1203 = vpack.c.bf16 %v900, %v899
        %v1204 = vpack.c.bf16 %v932, %v931
        %v1205 = vpack.c.bf16 %v964, %v963
        %v1206 = vpack.c.bf16 %v996, %v995
        %v1207 = vpack.c.bf16 %v1029, %v1028
        %v1208 = vpack.c.bf16 %v1061, %v1060
        %v1209 = vpack.c.bf16 %v1093, %v1092
        %v1210 = vpack.c.bf16 %v838, %v837
        %v1211 = vpack.c.bf16 %v870, %v869
        %v1212 = vpack.c.bf16 %v902, %v901
        %v1213 = vpack.c.bf16 %v934, %v933
        %v1214 = vpack.c.bf16 %v966, %v965
        %v1215 = vpack.c.bf16 %v998, %v997
        %v1216 = vpack.c.bf16 %v1031, %v1030
        %v1217 = vpack.c.bf16 %v1063, %v1062
        %v1218 = vpack.c.bf16 %v1095, %v1094
        %v1219 = vpack.c.bf16 %v840, %v839
        %v1220 = vpack.c.bf16 %v872, %v871
        %v1221 = vpack.c.bf16 %v904, %v903
        %v1222 = vpack.c.bf16 %v936, %v935
        %v1223 = vpack.c.bf16 %v968, %v967
        %v1224 = vpack.c.bf16 %v1000, %v999
        %v1225 = vpack.c.bf16 %v1033, %v1032
        %v1226 = vpack.c.bf16 %v1065, %v1064
        %v1227 = vpack.c.bf16 %v1097, %v1096
        %v1228 = vpack.c.bf16 %v842, %v841
        %v1229 = vpack.c.bf16 %v874, %v873
        %v1230 = vpack.c.bf16 %v906, %v905
        %v1231 = vpack.c.bf16 %v938, %v937
        %v1232 = vpack.c.bf16 %v970, %v969
        %v1233 = vpack.c.bf16 %v1002, %v1001
        %v1234 = vpack.c.bf16 %v1035, %v1034
        %v1235 = vpack.c.bf16 %v1067, %v1066
        %v1236 = vpack.c.bf16 %v1099, %v1098
        %v1237 = vpack.c.bf16 %v844, %v843
        %v1238 = vpack.c.bf16 %v876, %v875
        %v1239 = vpack.c.bf16 %v908, %v907
        %v1240 = vpack.c.bf16 %v940, %v939
        %v1241 = vpack.c.bf16 %v972, %v971
        %v1242 = vpack.c.bf16 %v1004, %v1003
        %v1243 = vpack.c.bf16 %v1037, %v1036
        %v1244 = vpack.c.bf16 %v1069, %v1068
        %v1245 = vpack.c.bf16 %v1101, %v1100
        %v1246 = vld [vmem:[%s1] sm:$0xf]
        %v1247 = vld [vmem:[%s1 + $0x4] sm:$0xf]
        %v1248 = vld [vmem:[%s1 + $0x8] sm:$0xf]
        %v1249 = vld [vmem:[%s1 + $0xc] sm:$0xf]
        %v1250 = vld [vmem:[%s1 + $0x10] sm:$0xf]
        %v1251 = vld [vmem:[%s1 + $0x14] sm:$0xf]
        %v1252 = vld [vmem:[%s1 + $0x18] sm:$0xf]
        %v1253 = vld [vmem:[%s1 + $0x1c] sm:$0xf]
        %v1254 = vld [vmem:[%s1 + $0x20] sm:$0xf]
        %v1255 = vld [vmem:[%s1 + $0x24] sm:$0xf]
        %v1256 = vld [vmem:[%s1 + $0x28] sm:$0xf]
        %v1257 = vld [vmem:[%s1 + $0x2c] sm:$0xf]
        %v1258 = vld [vmem:[%s1 + $0x30] sm:$0xf]
        %v1259 = vld [vmem:[%s1 + $0x34] sm:$0xf]
        %v1260 = vld [vmem:[%s1 + $0x38] sm:$0xf]
        %v1261 = vld [vmem:[%s1 + $0x3c] sm:$0xf]
        %v1262 = vld [vmem:[%s1 + $0x40] sm:$0xf]
        %v1263 = vld [vmem:[%s1 + $0x44] sm:$0xf]
        %v1264 = vld [vmem:[%s1 + $0x48] sm:$0xf]
        %v1265 = vld [vmem:[%s1 + $0x4c] sm:$0xf]
        %v1266 = vld [vmem:[%s1 + $0x50] sm:$0xf]
        %v1267 = vld [vmem:[%s1 + $0x54] sm:$0xf]
        %v1268 = vld [vmem:[%s1 + $0x58] sm:$0xf]
        %v1269 = vld [vmem:[%s1 + $0x5c] sm:$0xf]
        %v1270 = vld [vmem:[%s1 + $0x60] sm:$0xf]
        %v1271 = vld [vmem:[%s1 + $0x64] sm:$0xf]
        %v1272 = vld [vmem:[%s1 + $0x68] sm:$0xf]
        %v1273 = vld [vmem:[%s1 + $0x6c] sm:$0xf]
        %v1274 = vld [vmem:[%s1 + $0x70] sm:$0xf]
        %v1275 = vld [vmem:[%s1 + $0x74] sm:$0xf]
        %v1276 = vld [vmem:[%s1 + $0x78] sm:$0xf]
        %v1277 = vld [vmem:[%s1 + $0x7c] sm:$0xf]
        %v1278 = vld [vmem:[%s1 + $0x80] sm:$0xf]
        %v1279 = vld [vmem:[%s1 + $0x84] sm:$0xf]
        %v1280 = vld [vmem:[%s1 + $0x88] sm:$0xf]
        %v1281 = vld [vmem:[%s1 + $0x8c] sm:$0xf]
        %v1282 = vld [vmem:[%s1 + $0x90] sm:$0xf]
        %v1283 = vld [vmem:[%s1 + $0x94] sm:$0xf]
        %v1284 = vld [vmem:[%s1 + $0x98] sm:$0xf]
        %v1285 = vld [vmem:[%s1 + $0x9c] sm:$0xf]
        %v1286 = vld [vmem:[%s1 + $0xa0] sm:$0xf]
        %v1287 = vld [vmem:[%s1 + $0xa4] sm:$0xf]
        %v1288 = vld [vmem:[%s1 + $0xa8] sm:$0xf]
        %v1289 = vld [vmem:[%s1 + $0xac] sm:$0xf]
        %v1290 = vld [vmem:[%s1 + $0xb0] sm:$0xf]
        %v1291 = vld [vmem:[%s1 + $0xb4] sm:$0xf]
        %v1292 = vld [vmem:[%s1 + $0xb8] sm:$0xf]
        %v1293 = vld [vmem:[%s1 + $0xbc] sm:$0xf]
        %v1294 = vld [vmem:[%s1 + $0xc0] sm:$0xf]
        %v1295 = vld [vmem:[%s1 + $0xc4] sm:$0xf]
        %v1296 = vld [vmem:[%s1 + $0xc8] sm:$0xf]
        %v1297 = vld [vmem:[%s1 + $0xcc] sm:$0xf]
        %v1298 = vld [vmem:[%s1 + $0xd0] sm:$0xf]
        %v1299 = vld [vmem:[%s1 + $0xd4] sm:$0xf]
        %v1300 = vld [vmem:[%s1 + $0xd8] sm:$0xf]
        %v1301 = vld [vmem:[%s1 + $0xdc] sm:$0xf]
        %v1302 = vld [vmem:[%s1 + $0xe0] sm:$0xf]
        %v1303 = vld [vmem:[%s1 + $0xe4] sm:$0xf]
        %v1304 = vld [vmem:[%s1 + $0xe8] sm:$0xf]
        %v1305 = vld [vmem:[%s1 + $0xec] sm:$0xf]
        %v1306 = vld [vmem:[%s1 + $0xf0] sm:$0xf]
        %v1307 = vld [vmem:[%s1 + $0xf4] sm:$0xf]
        %v1308 = vld [vmem:[%s1 + $0xf8] sm:$0xf]
        %v1309 = vld [vmem:[%s1 + $0xfc] sm:$0xf]
        %v1310 = vld [vmem:[%s1 + $0x100] sm:$0xf]
        %v1311 = vld [vmem:[%s1 + $0x104] sm:$0xf]
        %v1312 = vld [vmem:[%s1 + $0x108] sm:$0xf]
        %v1313 = vld [vmem:[%s1 + $0x10c] sm:$0xf]
        %v1314 = vld [vmem:[%s1 + $0x110] sm:$0xf]
        %v1315 = vld [vmem:[%s1 + $0x114] sm:$0xf]
        %v1316 = vld [vmem:[%s1 + $0x118] sm:$0xf]
        %v1317 = vld [vmem:[%s1 + $0x11c] sm:$0xf]
        %v1318 = vld [vmem:[%s1 + $0x120] sm:$0xf]
        %v1319 = vld [vmem:[%s1 + $0x124] sm:$0xf]
        %v1320 = vld [vmem:[%s1 + $0x128] sm:$0xf]
        %v1321 = vld [vmem:[%s1 + $0x12c] sm:$0xf]
        %v1322 = vld [vmem:[%s1 + $0x130] sm:$0xf]
        %v1323 = vld [vmem:[%s1 + $0x134] sm:$0xf]
        %v1324 = vld [vmem:[%s1 + $0x138] sm:$0xf]
        %v1325 = vld [vmem:[%s1 + $0x13c] sm:$0xf]
        %v1326 = vld [vmem:[%s1 + $0x140] sm:$0xf]
        %v1327 = vld [vmem:[%s1 + $0x144] sm:$0xf]
        %v1328 = vld [vmem:[%s1 + $0x148] sm:$0xf]
        %v1329 = vld [vmem:[%s1 + $0x14c] sm:$0xf]
        %v1330 = vld [vmem:[%s1 + $0x150] sm:$0xf]
        %v1331 = vld [vmem:[%s1 + $0x154] sm:$0xf]
        %v1332 = vld [vmem:[%s1 + $0x158] sm:$0xf]
        %v1333 = vld [vmem:[%s1 + $0x15c] sm:$0xf]
        %v1334 = vld [vmem:[%s1 + $0x160] sm:$0xf]
        %v1335 = vld [vmem:[%s1 + $0x164] sm:$0xf]
        %v1336 = vld [vmem:[%s1 + $0x168] sm:$0xf]
        %v1337 = vld [vmem:[%s1 + $0x16c] sm:$0xf]
        %v1338 = vld [vmem:[%s1 + $0x170] sm:$0xf]
        %v1339 = vld [vmem:[%s1 + $0x174] sm:$0xf]
        %v1340 = vld [vmem:[%s1 + $0x178] sm:$0xf]
        %v1341 = vld [vmem:[%s1 + $0x17c] sm:$0xf]
        %v1342 = vld [vmem:[%s1 + $0x180] sm:$0xf]
        %v1343 = vld [vmem:[%s1 + $0x184] sm:$0xf]
        %v1344 = vld [vmem:[%s1 + $0x188] sm:$0xf]
        %v1345 = vld [vmem:[%s1 + $0x18c] sm:$0xf]
        %v1346 = vld [vmem:[%s1 + $0x190] sm:$0xf]
        %v1347 = vld [vmem:[%s1 + $0x194] sm:$0xf]
        %v1348 = vld [vmem:[%s1 + $0x198] sm:$0xf]
        %v1349 = vld [vmem:[%s1 + $0x19c] sm:$0xf]
        %v1350 = vld [vmem:[%s1 + $0x1a0] sm:$0xf]
        %v1351 = vld [vmem:[%s1 + $0x1a4] sm:$0xf]
        %v1352 = vld [vmem:[%s1 + $0x1a8] sm:$0xf]
        %v1353 = vld [vmem:[%s1 + $0x1ac] sm:$0xf]
        %v1354 = vld [vmem:[%s1 + $0x1b0] sm:$0xf]
        %v1355 = vld [vmem:[%s1 + $0x1b4] sm:$0xf]
        %v1356 = vld [vmem:[%s1 + $0x1b8] sm:$0xf]
        %v1357 = vld [vmem:[%s1 + $0x1bc] sm:$0xf]
        %v1358 = vld [vmem:[%s1 + $0x1c0] sm:$0xf]
        %v1359 = vld [vmem:[%s1 + $0x1c4] sm:$0xf]
        %v1360 = vld [vmem:[%s1 + $0x1c8] sm:$0xf]
        %v1361 = vld [vmem:[%s1 + $0x1cc] sm:$0xf]
        %v1362 = vld [vmem:[%s1 + $0x1d0] sm:$0xf]
        %v1363 = vld [vmem:[%s1 + $0x1d4] sm:$0xf]
        %v1364 = vld [vmem:[%s1 + $0x1d8] sm:$0xf]
        %v1365 = vld [vmem:[%s1 + $0x1dc] sm:$0xf]
        %v1366 = vld [vmem:[%s1 + $0x1e0] sm:$0xf]
        %v1367 = vld [vmem:[%s1 + $0x1e4] sm:$0xf]
        %v1368 = vld [vmem:[%s1 + $0x1e8] sm:$0xf]
        %v1369 = vld [vmem:[%s1 + $0x1ec] sm:$0xf]
        %v1370 = vld [vmem:[%s1 + $0x1f0] sm:$0xf]
        %v1371 = vld [vmem:[%s1 + $0x1f4] sm:$0xf]
        %v1372 = vld [vmem:[%s1 + $0x1f8] sm:$0xf]
        %v1373 = vld [vmem:[%s1 + $0x1fc] sm:$0xf]
        %v1374 = vld [vmem:[%s1 + $0x200] sm:$0xf]
        %v1375 = vld [vmem:[%s1 + $0x204] sm:$0xf]
        %v1376 = vld [vmem:[%s1 + $0x208] sm:$0xf]
        %v1377 = vld [vmem:[%s1 + $0x20c] sm:$0xf]
        %v1378 = vld [vmem:[%s1 + $0x210] sm:$0xf]
        %v1379 = vld [vmem:[%s1 + $0x214] sm:$0xf]
        %v1380 = vld [vmem:[%s1 + $0x218] sm:$0xf]
        %v1381 = vld [vmem:[%s1 + $0x21c] sm:$0xf]
        %v1382 = vld [vmem:[%s1 + $0x220] sm:$0xf]
        %v1383 = vld [vmem:[%s1 + $0x224] sm:$0xf]
        %v1384 = vld [vmem:[%s1 + $0x228] sm:$0xf]
        %v1385 = vld [vmem:[%s1 + $0x22c] sm:$0xf]
        %v1386 = vld [vmem:[%s1 + $0x230] sm:$0xf]
        %v1387 = vld [vmem:[%s1 + $0x234] sm:$0xf]
        %v1388 = vld [vmem:[%s1 + $0x238] sm:$0xf]
        %v1389 = vld [vmem:[%s1 + $0x23c] sm:$0xf]
        %v1390 = vld [vmem:[%s2] sm:$0x1]
        %v1392 = vperm.slane %v1390, 0
        %v1538 = vunpack.c.l.b16 %v1246
        %v1539 = vunpack.c.l.b16 %v1247
        %v1540 = vunpack.c.l.b16 %v1248
        %v1541 = vunpack.c.l.b16 %v1249
        %v1542 = vunpack.c.l.b16 %v1250
        %v1543 = vunpack.c.l.b16 %v1251
        %v1544 = vunpack.c.l.b16 %v1252
        %v1545 = vunpack.c.l.b16 %v1253
        %v1546 = vunpack.c.l.b16 %v1254
        %v1547 = vunpack.c.l.b16 %v1255
        %v1548 = vunpack.c.l.b16 %v1256
        %v1549 = vunpack.c.l.b16 %v1257
        %v1550 = vunpack.c.l.b16 %v1258
        %v1551 = vunpack.c.l.b16 %v1259
        %v1552 = vunpack.c.l.b16 %v1260
        %v1553 = vunpack.c.l.b16 %v1261
        %v1554 = vunpack.c.l.b16 %v1262
        %v1555 = vunpack.c.l.b16 %v1263
        %v1556 = vunpack.c.l.b16 %v1264
        %v1557 = vunpack.c.l.b16 %v1265
        %v1558 = vunpack.c.l.b16 %v1266
        %v1559 = vunpack.c.l.b16 %v1267
        %v1560 = vunpack.c.l.b16 %v1268
        %v1561 = vunpack.c.l.b16 %v1269
        %v1562 = vunpack.c.l.b16 %v1270
        %v1563 = vunpack.c.l.b16 %v1271
        %v1564 = vunpack.c.l.b16 %v1272
        %v1565 = vunpack.c.l.b16 %v1273
        %v1566 = vunpack.c.l.b16 %v1274
        %v1567 = vunpack.c.l.b16 %v1275
        %v1568 = vunpack.c.l.b16 %v1276
        %v1569 = vunpack.c.l.b16 %v1277
        %v1570 = vunpack.c.l.b16 %v1278
        %v1571 = vunpack.c.l.b16 %v1279
        %v1572 = vunpack.c.l.b16 %v1280
        %v1573 = vunpack.c.l.b16 %v1281
        %v1574 = vunpack.c.l.b16 %v1282
        %v1575 = vunpack.c.l.b16 %v1283
        %v1576 = vunpack.c.l.b16 %v1284
        %v1577 = vunpack.c.l.b16 %v1285
        %v1578 = vunpack.c.l.b16 %v1286
        %v1579 = vunpack.c.l.b16 %v1287
        %v1580 = vunpack.c.l.b16 %v1288
        %v1581 = vunpack.c.l.b16 %v1289
        %v1582 = vunpack.c.l.b16 %v1290
        %v1583 = vunpack.c.l.b16 %v1291
        %v1584 = vunpack.c.l.b16 %v1292
        %v1585 = vunpack.c.l.b16 %v1293
        %v1586 = vunpack.c.l.b16 %v1294
        %v1587 = vunpack.c.l.b16 %v1295
        %v1588 = vunpack.c.l.b16 %v1296
        %v1589 = vunpack.c.l.b16 %v1297
        %v1590 = vunpack.c.l.b16 %v1298
        %v1591 = vunpack.c.l.b16 %v1299
        %v1592 = vunpack.c.l.b16 %v1300
        %v1593 = vunpack.c.l.b16 %v1301
        %v1594 = vunpack.c.l.b16 %v1302
        %v1595 = vunpack.c.l.b16 %v1303
        %v1596 = vunpack.c.l.b16 %v1304
        %v1597 = vunpack.c.l.b16 %v1305
        %v1598 = vunpack.c.l.b16 %v1306
        %v1599 = vunpack.c.l.b16 %v1307
        %v1600 = vunpack.c.l.b16 %v1308
        %v1601 = vunpack.c.l.b16 %v1309
        %v1602 = vunpack.c.l.b16 %v1310
        %v1603 = vunpack.c.l.b16 %v1311
        %v1604 = vunpack.c.l.b16 %v1312
        %v1605 = vunpack.c.l.b16 %v1313
        %v1606 = vunpack.c.l.b16 %v1314
        %v1607 = vunpack.c.l.b16 %v1315
        %v1608 = vunpack.c.l.b16 %v1316
        %v1609 = vunpack.c.l.b16 %v1317
        %v1610 = vunpack.c.l.b16 %v1318
        %v1611 = vunpack.c.l.b16 %v1319
        %v1612 = vunpack.c.l.b16 %v1320
        %v1613 = vunpack.c.l.b16 %v1321
        %v1614 = vunpack.c.l.b16 %v1322
        %v1615 = vunpack.c.l.b16 %v1323
        %v1616 = vunpack.c.l.b16 %v1324
        %v1617 = vunpack.c.l.b16 %v1325
        %v1618 = vunpack.c.l.b16 %v1326
        %v1619 = vunpack.c.l.b16 %v1327
        %v1620 = vunpack.c.l.b16 %v1328
        %v1621 = vunpack.c.l.b16 %v1329
        %v1622 = vunpack.c.l.b16 %v1330
        %v1623 = vunpack.c.l.b16 %v1331
        %v1624 = vunpack.c.l.b16 %v1332
        %v1625 = vunpack.c.l.b16 %v1333
        %v1626 = vunpack.c.l.b16 %v1334
        %v1627 = vunpack.c.l.b16 %v1335
        %v1628 = vunpack.c.l.b16 %v1336
        %v1629 = vunpack.c.l.b16 %v1337
        %v1630 = vunpack.c.l.b16 %v1338
        %v1631 = vunpack.c.l.b16 %v1339
        %v1632 = vunpack.c.l.b16 %v1340
        %v1633 = vunpack.c.l.b16 %v1341
        %v1634 = vunpack.c.l.b16 %v1342
        %v1635 = vunpack.c.l.b16 %v1343
        %v1636 = vunpack.c.l.b16 %v1344
        %v1637 = vunpack.c.l.b16 %v1345
        %v1638 = vunpack.c.l.b16 %v1346
        %v1639 = vunpack.c.l.b16 %v1347
        %v1640 = vunpack.c.l.b16 %v1348
        %v1641 = vunpack.c.l.b16 %v1349
        %v1642 = vunpack.c.l.b16 %v1350
        %v1643 = vunpack.c.l.b16 %v1351
        %v1644 = vunpack.c.l.b16 %v1352
        %v1645 = vunpack.c.l.b16 %v1353
        %v1646 = vunpack.c.l.b16 %v1354
        %v1647 = vunpack.c.l.b16 %v1355
        %v1648 = vunpack.c.l.b16 %v1356
        %v1649 = vunpack.c.l.b16 %v1357
        %v1650 = vunpack.c.l.b16 %v1358
        %v1651 = vunpack.c.l.b16 %v1359
        %v1652 = vunpack.c.l.b16 %v1360
        %v1653 = vunpack.c.l.b16 %v1361
        %v1654 = vunpack.c.l.b16 %v1362
        %v1655 = vunpack.c.l.b16 %v1363
        %v1656 = vunpack.c.l.b16 %v1364
        %v1657 = vunpack.c.l.b16 %v1365
        %v1658 = vunpack.c.l.b16 %v1366
        %v1659 = vunpack.c.l.b16 %v1367
        %v1660 = vunpack.c.l.b16 %v1368
        %v1661 = vunpack.c.l.b16 %v1369
        %v1662 = vunpack.c.l.b16 %v1370
        %v1663 = vunpack.c.l.b16 %v1371
        %v1664 = vunpack.c.l.b16 %v1372
        %v1665 = vunpack.c.l.b16 %v1373
        %v1666 = vunpack.c.l.b16 %v1374
        %v1667 = vunpack.c.l.b16 %v1375
        %v1668 = vunpack.c.l.b16 %v1376
        %v1669 = vunpack.c.l.b16 %v1377
        %v1670 = vunpack.c.l.b16 %v1378
        %v1671 = vunpack.c.l.b16 %v1379
        %v1672 = vunpack.c.l.b16 %v1380
        %v1673 = vunpack.c.l.b16 %v1381
        %v1674 = vunpack.c.l.b16 %v1382
        %v1675 = vunpack.c.l.b16 %v1383
        %v1676 = vunpack.c.l.b16 %v1384
        %v1677 = vunpack.c.l.b16 %v1385
        %v1678 = vunpack.c.l.b16 %v1386
        %v1679 = vunpack.c.l.b16 %v1387
        %v1680 = vunpack.c.l.b16 %v1388
        %v1681 = vunpack.c.l.b16 %v1389
        %v1682 = vpack.c.b16 %v1539, %v1538
        %v1683 = vpack.c.b16 %v1541, %v1540
        %v1684 = vpack.c.b16 %v1543, %v1542
        %v1685 = vpack.c.b16 %v1545, %v1544
        %v1686 = vpack.c.b16 %v1547, %v1546
        %v1687 = vpack.c.b16 %v1549, %v1548
        %v1688 = vpack.c.b16 %v1551, %v1550
        %v1689 = vpack.c.b16 %v1553, %v1552
        %v1690 = vpack.c.b16 %v1555, %v1554
        %v1691 = vpack.c.b16 %v1557, %v1556
        %v1692 = vpack.c.b16 %v1559, %v1558
        %v1693 = vpack.c.b16 %v1561, %v1560
        %v1694 = vpack.c.b16 %v1563, %v1562
        %v1695 = vpack.c.b16 %v1565, %v1564
        %v1696 = vpack.c.b16 %v1567, %v1566
        %v1697 = vpack.c.b16 %v1569, %v1568
        %v1698 = vpack.c.b16 %v1571, %v1570
        %v1699 = vpack.c.b16 %v1573, %v1572
        %v1700 = vpack.c.b16 %v1575, %v1574
        %v1701 = vpack.c.b16 %v1577, %v1576
        %v1702 = vpack.c.b16 %v1579, %v1578
        %v1703 = vpack.c.b16 %v1581, %v1580
        %v1704 = vpack.c.b16 %v1583, %v1582
        %v1705 = vpack.c.b16 %v1585, %v1584
        %v1706 = vpack.c.b16 %v1587, %v1586
        %v1707 = vpack.c.b16 %v1589, %v1588
        %v1708 = vpack.c.b16 %v1591, %v1590
        %v1709 = vpack.c.b16 %v1593, %v1592
        %v1710 = vpack.c.b16 %v1595, %v1594
        %v1711 = vpack.c.b16 %v1597, %v1596
        %v1712 = vpack.c.b16 %v1599, %v1598
        %v1713 = vpack.c.b16 %v1601, %v1600
        %v1714 = vpack.c.b16 %v1603, %v1602
        %v1715 = vpack.c.b16 %v1605, %v1604
        %v1716 = vpack.c.b16 %v1607, %v1606
        %v1717 = vpack.c.b16 %v1609, %v1608
        %v1718 = vpack.c.b16 %v1611, %v1610
        %v1719 = vpack.c.b16 %v1613, %v1612
        %v1720 = vpack.c.b16 %v1615, %v1614
        %v1721 = vpack.c.b16 %v1617, %v1616
        %v1722 = vpack.c.b16 %v1619, %v1618
        %v1723 = vpack.c.b16 %v1621, %v1620
        %v1724 = vpack.c.b16 %v1623, %v1622
        %v1725 = vpack.c.b16 %v1625, %v1624
        %v1726 = vpack.c.b16 %v1627, %v1626
        %v1727 = vpack.c.b16 %v1629, %v1628
        %v1728 = vpack.c.b16 %v1631, %v1630
        %v1729 = vpack.c.b16 %v1633, %v1632
        %v1730 = vpack.c.b16 %v1635, %v1634
        %v1731 = vpack.c.b16 %v1637, %v1636
        %v1732 = vpack.c.b16 %v1639, %v1638
        %v1733 = vpack.c.b16 %v1641, %v1640
        %v1734 = vpack.c.b16 %v1643, %v1642
        %v1735 = vpack.c.b16 %v1645, %v1644
        %v1736 = vpack.c.b16 %v1647, %v1646
        %v1737 = vpack.c.b16 %v1649, %v1648
        %v1738 = vpack.c.b16 %v1651, %v1650
        %v1739 = vpack.c.b16 %v1653, %v1652
        %v1740 = vpack.c.b16 %v1655, %v1654
        %v1741 = vpack.c.b16 %v1657, %v1656
        %v1742 = vpack.c.b16 %v1659, %v1658
        %v1743 = vpack.c.b16 %v1661, %v1660
        %v1744 = vpack.c.b16 %v1663, %v1662
        %v1745 = vpack.c.b16 %v1665, %v1664
        %v1746 = vpack.c.b16 %v1667, %v1666
        %v1747 = vpack.c.b16 %v1669, %v1668
        %v1748 = vpack.c.b16 %v1671, %v1670
        %v1749 = vpack.c.b16 %v1673, %v1672
        %v1750 = vpack.c.b16 %v1675, %v1674
        %v1751 = vpack.c.b16 %v1677, %v1676
        %v1752 = vpack.c.b16 %v1679, %v1678
        %v1753 = vpack.c.b16 %v1681, %v1680
        %1826 = vmatpush.bf16.msra.mxu0 %v1689
        %1827 = vmatpush.bf16.msra.mxu0 %v1688
        %1828 = vmatpush.bf16.msra.mxu0 %v1687
        %1829 = vmatpush.bf16.msra.mxu0 %v1686
        %1830 = vmatpush.bf16.msra.mxu0 %v1685
        %1831 = vmatpush.bf16.msra.mxu0 %v1684
        %1832 = vmatpush.bf16.msra.mxu0 %v1683
        %1833 = vmatpush.bf16.msra.mxu0 %v1682
        %1834 = vmatmul.bf16.gmra.mxu0 %v1102
        %v1835 = vpop.f32.mrf.mxu0
        %v1836 = vadd.f32 %v1392, %v1835
        %v1837 = vpop.f32.mrf.mxu0
        %v1838 = vadd.f32 %v1392, %v1837
        %1839 = vmatmul.bf16.gmra.mxu0 %v1111
        %v1840 = vpop.f32.mrf.mxu0
        %v1841 = vadd.f32 %v1392, %v1840
        %v1842 = vpop.f32.mrf.mxu0
        %v1843 = vadd.f32 %v1392, %v1842
        %1844 = vmatmul.bf16.gmra.mxu0 %v1120
        %v1845 = vpop.f32.mrf.mxu0
        %v1846 = vadd.f32 %v1392, %v1845
        %v1847 = vpop.f32.mrf.mxu0
        %v1848 = vadd.f32 %v1392, %v1847
        %1849 = vmatmul.bf16.gmra.mxu0 %v1129
        %v1850 = vpop.f32.mrf.mxu0
        %v1851 = vadd.f32 %v1392, %v1850
        %v1852 = vpop.f32.mrf.mxu0
        %v1853 = vadd.f32 %v1392, %v1852
        %1854 = vmatmul.bf16.gmra.mxu0 %v1138
        %v1855 = vpop.f32.mrf.mxu0
        %v1856 = vadd.f32 %v1392, %v1855
        %v1857 = vpop.f32.mrf.mxu0
        %v1858 = vadd.f32 %v1392, %v1857
        %1859 = vmatmul.bf16.gmra.mxu0 %v1147
        %v1860 = vpop.f32.mrf.mxu0
        %v1861 = vadd.f32 %v1392, %v1860
        %v1862 = vpop.f32.mrf.mxu0
        %v1863 = vadd.f32 %v1392, %v1862
        %1864 = vmatmul.bf16.gmra.mxu0 %v1156
        %v1865 = vpop.f32.mrf.mxu0
        %v1866 = vadd.f32 %v1392, %v1865
        %v1867 = vpop.f32.mrf.mxu0
        %v1868 = vadd.f32 %v1392, %v1867
        %1869 = vmatmul.bf16.gmra.mxu0 %v1165
        %v1870 = vpop.f32.mrf.mxu0
        %v1871 = vadd.f32 %v1392, %v1870
        %v1872 = vpop.f32.mrf.mxu0
        %v1873 = vadd.f32 %v1392, %v1872
        %1874 = vmatmul.bf16.gmra.mxu0 %v1174
        %v1875 = vpop.f32.mrf.mxu0
        %v1876 = vadd.f32 %v1392, %v1875
        %v1877 = vpop.f32.mrf.mxu0
        %v1878 = vadd.f32 %v1392, %v1877
        %1879 = vmatmul.bf16.gmra.mxu0 %v1183
        %v1880 = vpop.f32.mrf.mxu0
        %v1881 = vadd.f32 %v1392, %v1880
        %v1882 = vpop.f32.mrf.mxu0
        %v1883 = vadd.f32 %v1392, %v1882
        %1884 = vmatmul.bf16.gmra.mxu0 %v1192
        %v1885 = vpop.f32.mrf.mxu0
        %v1886 = vadd.f32 %v1392, %v1885
        %v1887 = vpop.f32.mrf.mxu0
        %v1888 = vadd.f32 %v1392, %v1887
        %1889 = vmatmul.bf16.gmra.mxu0 %v1201
        %v1890 = vpop.f32.mrf.mxu0
        %v1891 = vadd.f32 %v1392, %v1890
        %v1892 = vpop.f32.mrf.mxu0
        %v1893 = vadd.f32 %v1392, %v1892
        %1894 = vmatmul.bf16.gmra.mxu0 %v1210
        %v1895 = vpop.f32.mrf.mxu0
        %v1896 = vadd.f32 %v1392, %v1895
        %v1897 = vpop.f32.mrf.mxu0
        %v1898 = vadd.f32 %v1392, %v1897
        %1899 = vmatmul.bf16.gmra.mxu0 %v1219
        %v1900 = vpop.f32.mrf.mxu0
        %v1901 = vadd.f32 %v1392, %v1900
        %v1902 = vpop.f32.mrf.mxu0
        %v1903 = vadd.f32 %v1392, %v1902
        %1904 = vmatmul.bf16.gmra.mxu0 %v1228
        %v1905 = vpop.f32.mrf.mxu0
        %v1906 = vadd.f32 %v1392, %v1905
        %v1907 = vpop.f32.mrf.mxu0
        %v1908 = vadd.f32 %v1392, %v1907
        %1909 = vmatmul.bf16.gmra.mxu0 %v1237
        %v1910 = vpop.f32.mrf.mxu0
        %v1911 = vadd.f32 %v1392, %v1910
        %v1912 = vpop.f32.mrf.mxu0
        %v1913 = vadd.f32 %v1392, %v1912
        %1914 = vdwg.mxu0
        %1915 = vmatpush.bf16.msra.mxu0 %v1697
        %1916 = vmatpush.bf16.msra.mxu0 %v1696
        %1917 = vmatpush.bf16.msra.mxu0 %v1695
        %1918 = vmatpush.bf16.msra.mxu0 %v1694
        %1919 = vmatpush.bf16.msra.mxu0 %v1693
        %1920 = vmatpush.bf16.msra.mxu0 %v1692
        %1921 = vmatpush.bf16.msra.mxu0 %v1691
        %1922 = vmatpush.bf16.msra.mxu0 %v1690
        %1923 = vmatmul.bf16.gmra.mxu0 %v1103
        %v1924 = vpop.f32.mrf.mxu0
        %v1925 = vadd.f32 %v1836, %v1924
        %v1926 = vpop.f32.mrf.mxu0
        %v1927 = vadd.f32 %v1838, %v1926
        %1928 = vmatmul.bf16.gmra.mxu0 %v1112
        %v1929 = vpop.f32.mrf.mxu0
        %v1930 = vadd.f32 %v1841, %v1929
        %v1931 = vpop.f32.mrf.mxu0
        %v1932 = vadd.f32 %v1843, %v1931
        %1933 = vmatmul.bf16.gmra.mxu0 %v1121
        %v1934 = vpop.f32.mrf.mxu0
        %v1935 = vadd.f32 %v1846, %v1934
        %v1936 = vpop.f32.mrf.mxu0
        %v1937 = vadd.f32 %v1848, %v1936
        %1938 = vmatmul.bf16.gmra.mxu0 %v1130
        %v1939 = vpop.f32.mrf.mxu0
        %v1940 = vadd.f32 %v1851, %v1939
        %v1941 = vpop.f32.mrf.mxu0
        %v1942 = vadd.f32 %v1853, %v1941
        %1943 = vmatmul.bf16.gmra.mxu0 %v1139
        %v1944 = vpop.f32.mrf.mxu0
        %v1945 = vadd.f32 %v1856, %v1944
        %v1946 = vpop.f32.mrf.mxu0
        %v1947 = vadd.f32 %v1858, %v1946
        %1948 = vmatmul.bf16.gmra.mxu0 %v1148
        %v1949 = vpop.f32.mrf.mxu0
        %v1950 = vadd.f32 %v1861, %v1949
        %v1951 = vpop.f32.mrf.mxu0
        %v1952 = vadd.f32 %v1863, %v1951
        %1953 = vmatmul.bf16.gmra.mxu0 %v1157
        %v1954 = vpop.f32.mrf.mxu0
        %v1955 = vadd.f32 %v1866, %v1954
        %v1956 = vpop.f32.mrf.mxu0
        %v1957 = vadd.f32 %v1868, %v1956
        %1958 = vmatmul.bf16.gmra.mxu0 %v1166
        %v1959 = vpop.f32.mrf.mxu0
        %v1960 = vadd.f32 %v1871, %v1959
        %v1961 = vpop.f32.mrf.mxu0
        %v1962 = vadd.f32 %v1873, %v1961
        %1963 = vmatmul.bf16.gmra.mxu0 %v1175
        %v1964 = vpop.f32.mrf.mxu0
        %v1965 = vadd.f32 %v1876, %v1964
        %v1966 = vpop.f32.mrf.mxu0
        %v1967 = vadd.f32 %v1878, %v1966
        %1968 = vmatmul.bf16.gmra.mxu0 %v1184
        %v1969 = vpop.f32.mrf.mxu0
        %v1970 = vadd.f32 %v1881, %v1969
        %v1971 = vpop.f32.mrf.mxu0
        %v1972 = vadd.f32 %v1883, %v1971
        %1973 = vmatmul.bf16.gmra.mxu0 %v1193
        %v1974 = vpop.f32.mrf.mxu0
        %v1975 = vadd.f32 %v1886, %v1974
        %v1976 = vpop.f32.mrf.mxu0
        %v1977 = vadd.f32 %v1888, %v1976
        %1978 = vmatmul.bf16.gmra.mxu0 %v1202
        %v1979 = vpop.f32.mrf.mxu0
        %v1980 = vadd.f32 %v1891, %v1979
        %v1981 = vpop.f32.mrf.mxu0
        %v1982 = vadd.f32 %v1893, %v1981
        %1983 = vmatmul.bf16.gmra.mxu0 %v1211
        %v1984 = vpop.f32.mrf.mxu0
        %v1985 = vadd.f32 %v1896, %v1984
        %v1986 = vpop.f32.mrf.mxu0
        %v1987 = vadd.f32 %v1898, %v1986
        %1988 = vmatmul.bf16.gmra.mxu0 %v1220
        %v1989 = vpop.f32.mrf.mxu0
        %v1990 = vadd.f32 %v1901, %v1989
        %v1991 = vpop.f32.mrf.mxu0
        %v1992 = vadd.f32 %v1903, %v1991
        %1993 = vmatmul.bf16.gmra.mxu0 %v1229
        %v1994 = vpop.f32.mrf.mxu0
        %v1995 = vadd.f32 %v1906, %v1994
        %v1996 = vpop.f32.mrf.mxu0
        %v1997 = vadd.f32 %v1908, %v1996
        %1998 = vmatmul.bf16.gmra.mxu0 %v1238
        %v1999 = vpop.f32.mrf.mxu0
        %v2000 = vadd.f32 %v1911, %v1999
        %v2001 = vpop.f32.mrf.mxu0
        %v2002 = vadd.f32 %v1913, %v2001
        %2003 = vdwg.mxu0
        %2004 = vmatpush.bf16.msra.mxu0 %v1705
        %2005 = vmatpush.bf16.msra.mxu0 %v1704
        %2006 = vmatpush.bf16.msra.mxu0 %v1703
        %2007 = vmatpush.bf16.msra.mxu0 %v1702
        %2008 = vmatpush.bf16.msra.mxu0 %v1701
        %2009 = vmatpush.bf16.msra.mxu0 %v1700
        %2010 = vmatpush.bf16.msra.mxu0 %v1699
        %2011 = vmatpush.bf16.msra.mxu0 %v1698
        %2012 = vmatmul.bf16.gmra.mxu0 %v1104
        %v2013 = vpop.f32.mrf.mxu0
        %v2014 = vadd.f32 %v1925, %v2013
        %v2015 = vpop.f32.mrf.mxu0
        %v2016 = vadd.f32 %v1927, %v2015
        %2017 = vmatmul.bf16.gmra.mxu0 %v1113
        %v2018 = vpop.f32.mrf.mxu0
        %v2019 = vadd.f32 %v1930, %v2018
        %v2020 = vpop.f32.mrf.mxu0
        %v2021 = vadd.f32 %v1932, %v2020
        %2022 = vmatmul.bf16.gmra.mxu0 %v1122
        %v2023 = vpop.f32.mrf.mxu0
        %v2024 = vadd.f32 %v1935, %v2023
        %v2025 = vpop.f32.mrf.mxu0
        %v2026 = vadd.f32 %v1937, %v2025
        %2027 = vmatmul.bf16.gmra.mxu0 %v1131
        %v2028 = vpop.f32.mrf.mxu0
        %v2029 = vadd.f32 %v1940, %v2028
        %v2030 = vpop.f32.mrf.mxu0
        %v2031 = vadd.f32 %v1942, %v2030
        %2032 = vmatmul.bf16.gmra.mxu0 %v1140
        %v2033 = vpop.f32.mrf.mxu0
        %v2034 = vadd.f32 %v1945, %v2033
        %v2035 = vpop.f32.mrf.mxu0
        %v2036 = vadd.f32 %v1947, %v2035
        %2037 = vmatmul.bf16.gmra.mxu0 %v1149
        %v2038 = vpop.f32.mrf.mxu0
        %v2039 = vadd.f32 %v1950, %v2038
        %v2040 = vpop.f32.mrf.mxu0
        %v2041 = vadd.f32 %v1952, %v2040
        %2042 = vmatmul.bf16.gmra.mxu0 %v1158
        %v2043 = vpop.f32.mrf.mxu0
        %v2044 = vadd.f32 %v1955, %v2043
        %v2045 = vpop.f32.mrf.mxu0
        %v2046 = vadd.f32 %v1957, %v2045
        %2047 = vmatmul.bf16.gmra.mxu0 %v1167
        %v2048 = vpop.f32.mrf.mxu0
        %v2049 = vadd.f32 %v1960, %v2048
        %v2050 = vpop.f32.mrf.mxu0
        %v2051 = vadd.f32 %v1962, %v2050
        %2052 = vmatmul.bf16.gmra.mxu0 %v1176
        %v2053 = vpop.f32.mrf.mxu0
        %v2054 = vadd.f32 %v1965, %v2053
        %v2055 = vpop.f32.mrf.mxu0
        %v2056 = vadd.f32 %v1967, %v2055
        %2057 = vmatmul.bf16.gmra.mxu0 %v1185
        %v2058 = vpop.f32.mrf.mxu0
        %v2059 = vadd.f32 %v1970, %v2058
        %v2060 = vpop.f32.mrf.mxu0
        %v2061 = vadd.f32 %v1972, %v2060
        %2062 = vmatmul.bf16.gmra.mxu0 %v1194
        %v2063 = vpop.f32.mrf.mxu0
        %v2064 = vadd.f32 %v1975, %v2063
        %v2065 = vpop.f32.mrf.mxu0
        %v2066 = vadd.f32 %v1977, %v2065
        %2067 = vmatmul.bf16.gmra.mxu0 %v1203
        %v2068 = vpop.f32.mrf.mxu0
        %v2069 = vadd.f32 %v1980, %v2068
        %v2070 = vpop.f32.mrf.mxu0
        %v2071 = vadd.f32 %v1982, %v2070
        %2072 = vmatmul.bf16.gmra.mxu0 %v1212
        %v2073 = vpop.f32.mrf.mxu0
        %v2074 = vadd.f32 %v1985, %v2073
        %v2075 = vpop.f32.mrf.mxu0
        %v2076 = vadd.f32 %v1987, %v2075
        %2077 = vmatmul.bf16.gmra.mxu0 %v1221
        %v2078 = vpop.f32.mrf.mxu0
        %v2079 = vadd.f32 %v1990, %v2078
        %v2080 = vpop.f32.mrf.mxu0
        %v2081 = vadd.f32 %v1992, %v2080
        %2082 = vmatmul.bf16.gmra.mxu0 %v1230
        %v2083 = vpop.f32.mrf.mxu0
        %v2084 = vadd.f32 %v1995, %v2083
        %v2085 = vpop.f32.mrf.mxu0
        %v2086 = vadd.f32 %v1997, %v2085
        %2087 = vmatmul.bf16.gmra.mxu0 %v1239
        %v2088 = vpop.f32.mrf.mxu0
        %v2089 = vadd.f32 %v2000, %v2088
        %v2090 = vpop.f32.mrf.mxu0
        %v2091 = vadd.f32 %v2002, %v2090
        %2092 = vdwg.mxu0
        %2093 = vmatpush.bf16.msra.mxu0 %v1713
        %2094 = vmatpush.bf16.msra.mxu0 %v1712
        %2095 = vmatpush.bf16.msra.mxu0 %v1711
        %2096 = vmatpush.bf16.msra.mxu0 %v1710
        %2097 = vmatpush.bf16.msra.mxu0 %v1709
        %2098 = vmatpush.bf16.msra.mxu0 %v1708
        %2099 = vmatpush.bf16.msra.mxu0 %v1707
        %2100 = vmatpush.bf16.msra.mxu0 %v1706
        %2101 = vmatmul.bf16.gmra.mxu0 %v1105
        %v2102 = vpop.f32.mrf.mxu0
        %v2103 = vadd.f32 %v2014, %v2102
        %v2104 = vpop.f32.mrf.mxu0
        %v2105 = vadd.f32 %v2016, %v2104
        %2106 = vmatmul.bf16.gmra.mxu0 %v1114
        %v2107 = vpop.f32.mrf.mxu0
        %v2108 = vadd.f32 %v2019, %v2107
        %v2109 = vpop.f32.mrf.mxu0
        %v2110 = vadd.f32 %v2021, %v2109
        %2111 = vmatmul.bf16.gmra.mxu0 %v1123
        %v2112 = vpop.f32.mrf.mxu0
        %v2113 = vadd.f32 %v2024, %v2112
        %v2114 = vpop.f32.mrf.mxu0
        %v2115 = vadd.f32 %v2026, %v2114
        %2116 = vmatmul.bf16.gmra.mxu0 %v1132
        %v2117 = vpop.f32.mrf.mxu0
        %v2118 = vadd.f32 %v2029, %v2117
        %v2119 = vpop.f32.mrf.mxu0
        %v2120 = vadd.f32 %v2031, %v2119
        %2121 = vmatmul.bf16.gmra.mxu0 %v1141
        %v2122 = vpop.f32.mrf.mxu0
        %v2123 = vadd.f32 %v2034, %v2122
        %v2124 = vpop.f32.mrf.mxu0
        %v2125 = vadd.f32 %v2036, %v2124
        %2126 = vmatmul.bf16.gmra.mxu0 %v1150
        %v2127 = vpop.f32.mrf.mxu0
        %v2128 = vadd.f32 %v2039, %v2127
        %v2129 = vpop.f32.mrf.mxu0
        %v2130 = vadd.f32 %v2041, %v2129
        %2131 = vmatmul.bf16.gmra.mxu0 %v1159
        %v2132 = vpop.f32.mrf.mxu0
        %v2133 = vadd.f32 %v2044, %v2132
        %v2134 = vpop.f32.mrf.mxu0
        %v2135 = vadd.f32 %v2046, %v2134
        %2136 = vmatmul.bf16.gmra.mxu0 %v1168
        %v2137 = vpop.f32.mrf.mxu0
        %v2138 = vadd.f32 %v2049, %v2137
        %v2139 = vpop.f32.mrf.mxu0
        %v2140 = vadd.f32 %v2051, %v2139
        %2141 = vmatmul.bf16.gmra.mxu0 %v1177
        %v2142 = vpop.f32.mrf.mxu0
        %v2143 = vadd.f32 %v2054, %v2142
        %v2144 = vpop.f32.mrf.mxu0
        %v2145 = vadd.f32 %v2056, %v2144
        %2146 = vmatmul.bf16.gmra.mxu0 %v1186
        %v2147 = vpop.f32.mrf.mxu0
        %v2148 = vadd.f32 %v2059, %v2147
        %v2149 = vpop.f32.mrf.mxu0
        %v2150 = vadd.f32 %v2061, %v2149
        %2151 = vmatmul.bf16.gmra.mxu0 %v1195
        %v2152 = vpop.f32.mrf.mxu0
        %v2153 = vadd.f32 %v2064, %v2152
        %v2154 = vpop.f32.mrf.mxu0
        %v2155 = vadd.f32 %v2066, %v2154
        %2156 = vmatmul.bf16.gmra.mxu0 %v1204
        %v2157 = vpop.f32.mrf.mxu0
        %v2158 = vadd.f32 %v2069, %v2157
        %v2159 = vpop.f32.mrf.mxu0
        %v2160 = vadd.f32 %v2071, %v2159
        %2161 = vmatmul.bf16.gmra.mxu0 %v1213
        %v2162 = vpop.f32.mrf.mxu0
        %v2163 = vadd.f32 %v2074, %v2162
        %v2164 = vpop.f32.mrf.mxu0
        %v2165 = vadd.f32 %v2076, %v2164
        %2166 = vmatmul.bf16.gmra.mxu0 %v1222
        %v2167 = vpop.f32.mrf.mxu0
        %v2168 = vadd.f32 %v2079, %v2167
        %v2169 = vpop.f32.mrf.mxu0
        %v2170 = vadd.f32 %v2081, %v2169
        %2171 = vmatmul.bf16.gmra.mxu0 %v1231
        %v2172 = vpop.f32.mrf.mxu0
        %v2173 = vadd.f32 %v2084, %v2172
        %v2174 = vpop.f32.mrf.mxu0
        %v2175 = vadd.f32 %v2086, %v2174
        %2176 = vmatmul.bf16.gmra.mxu0 %v1240
        %v2177 = vpop.f32.mrf.mxu0
        %v2178 = vadd.f32 %v2089, %v2177
        %v2179 = vpop.f32.mrf.mxu0
        %v2180 = vadd.f32 %v2091, %v2179
        %2181 = vdwg.mxu0
        %2182 = vmatpush.bf16.msra.mxu0 %v1721
        %2183 = vmatpush.bf16.msra.mxu0 %v1720
        %2184 = vmatpush.bf16.msra.mxu0 %v1719
        %2185 = vmatpush.bf16.msra.mxu0 %v1718
        %2186 = vmatpush.bf16.msra.mxu0 %v1717
        %2187 = vmatpush.bf16.msra.mxu0 %v1716
        %2188 = vmatpush.bf16.msra.mxu0 %v1715
        %2189 = vmatpush.bf16.msra.mxu0 %v1714
        %2190 = vmatmul.bf16.gmra.mxu0 %v1106
        %v2191 = vpop.f32.mrf.mxu0
        %v2192 = vadd.f32 %v2103, %v2191
        %v2193 = vpop.f32.mrf.mxu0
        %v2194 = vadd.f32 %v2105, %v2193
        %2195 = vmatmul.bf16.gmra.mxu0 %v1115
        %v2196 = vpop.f32.mrf.mxu0
        %v2197 = vadd.f32 %v2108, %v2196
        %v2198 = vpop.f32.mrf.mxu0
        %v2199 = vadd.f32 %v2110, %v2198
        %2200 = vmatmul.bf16.gmra.mxu0 %v1124
        %v2201 = vpop.f32.mrf.mxu0
        %v2202 = vadd.f32 %v2113, %v2201
        %v2203 = vpop.f32.mrf.mxu0
        %v2204 = vadd.f32 %v2115, %v2203
        %2205 = vmatmul.bf16.gmra.mxu0 %v1133
        %v2206 = vpop.f32.mrf.mxu0
        %v2207 = vadd.f32 %v2118, %v2206
        %v2208 = vpop.f32.mrf.mxu0
        %v2209 = vadd.f32 %v2120, %v2208
        %2210 = vmatmul.bf16.gmra.mxu0 %v1142
        %v2211 = vpop.f32.mrf.mxu0
        %v2212 = vadd.f32 %v2123, %v2211
        %v2213 = vpop.f32.mrf.mxu0
        %v2214 = vadd.f32 %v2125, %v2213
        %2215 = vmatmul.bf16.gmra.mxu0 %v1151
        %v2216 = vpop.f32.mrf.mxu0
        %v2217 = vadd.f32 %v2128, %v2216
        %v2218 = vpop.f32.mrf.mxu0
        %v2219 = vadd.f32 %v2130, %v2218
        %2220 = vmatmul.bf16.gmra.mxu0 %v1160
        %v2221 = vpop.f32.mrf.mxu0
        %v2222 = vadd.f32 %v2133, %v2221
        %v2223 = vpop.f32.mrf.mxu0
        %v2224 = vadd.f32 %v2135, %v2223
        %2225 = vmatmul.bf16.gmra.mxu0 %v1169
        %v2226 = vpop.f32.mrf.mxu0
        %v2227 = vadd.f32 %v2138, %v2226
        %v2228 = vpop.f32.mrf.mxu0
        %v2229 = vadd.f32 %v2140, %v2228
        %2230 = vmatmul.bf16.gmra.mxu0 %v1178
        %v2231 = vpop.f32.mrf.mxu0
        %v2232 = vadd.f32 %v2143, %v2231
        %v2233 = vpop.f32.mrf.mxu0
        %v2234 = vadd.f32 %v2145, %v2233
        %2235 = vmatmul.bf16.gmra.mxu0 %v1187
        %v2236 = vpop.f32.mrf.mxu0
        %v2237 = vadd.f32 %v2148, %v2236
        %v2238 = vpop.f32.mrf.mxu0
        %v2239 = vadd.f32 %v2150, %v2238
        %2240 = vmatmul.bf16.gmra.mxu0 %v1196
        %v2241 = vpop.f32.mrf.mxu0
        %v2242 = vadd.f32 %v2153, %v2241
        %v2243 = vpop.f32.mrf.mxu0
        %v2244 = vadd.f32 %v2155, %v2243
        %2245 = vmatmul.bf16.gmra.mxu0 %v1205
        %v2246 = vpop.f32.mrf.mxu0
        %v2247 = vadd.f32 %v2158, %v2246
        %v2248 = vpop.f32.mrf.mxu0
        %v2249 = vadd.f32 %v2160, %v2248
        %2250 = vmatmul.bf16.gmra.mxu0 %v1214
        %v2251 = vpop.f32.mrf.mxu0
        %v2252 = vadd.f32 %v2163, %v2251
        %v2253 = vpop.f32.mrf.mxu0
        %v2254 = vadd.f32 %v2165, %v2253
        %2255 = vmatmul.bf16.gmra.mxu0 %v1223
        %v2256 = vpop.f32.mrf.mxu0
        %v2257 = vadd.f32 %v2168, %v2256
        %v2258 = vpop.f32.mrf.mxu0
        %v2259 = vadd.f32 %v2170, %v2258
        %2260 = vmatmul.bf16.gmra.mxu0 %v1232
        %v2261 = vpop.f32.mrf.mxu0
        %v2262 = vadd.f32 %v2173, %v2261
        %v2263 = vpop.f32.mrf.mxu0
        %v2264 = vadd.f32 %v2175, %v2263
        %2265 = vmatmul.bf16.gmra.mxu0 %v1241
        %v2266 = vpop.f32.mrf.mxu0
        %v2267 = vadd.f32 %v2178, %v2266
        %v2268 = vpop.f32.mrf.mxu0
        %v2269 = vadd.f32 %v2180, %v2268
        %2270 = vdwg.mxu0
        %2271 = vmatpush.bf16.msra.mxu0 %v1729
        %2272 = vmatpush.bf16.msra.mxu0 %v1728
        %2273 = vmatpush.bf16.msra.mxu0 %v1727
        %2274 = vmatpush.bf16.msra.mxu0 %v1726
        %2275 = vmatpush.bf16.msra.mxu0 %v1725
        %2276 = vmatpush.bf16.msra.mxu0 %v1724
        %2277 = vmatpush.bf16.msra.mxu0 %v1723
        %2278 = vmatpush.bf16.msra.mxu0 %v1722
        %2279 = vmatmul.bf16.gmra.mxu0 %v1107
        %v2280 = vpop.f32.mrf.mxu0
        %v2281 = vadd.f32 %v2192, %v2280
        %v2282 = vpop.f32.mrf.mxu0
        %v2283 = vadd.f32 %v2194, %v2282
        %2284 = vmatmul.bf16.gmra.mxu0 %v1116
        %v2285 = vpop.f32.mrf.mxu0
        %v2286 = vadd.f32 %v2197, %v2285
        %v2287 = vpop.f32.mrf.mxu0
        %v2288 = vadd.f32 %v2199, %v2287
        %2289 = vmatmul.bf16.gmra.mxu0 %v1125
        %v2290 = vpop.f32.mrf.mxu0
        %v2291 = vadd.f32 %v2202, %v2290
        %v2292 = vpop.f32.mrf.mxu0
        %v2293 = vadd.f32 %v2204, %v2292
        %2294 = vmatmul.bf16.gmra.mxu0 %v1134
        %v2295 = vpop.f32.mrf.mxu0
        %v2296 = vadd.f32 %v2207, %v2295
        %v2297 = vpop.f32.mrf.mxu0
        %v2298 = vadd.f32 %v2209, %v2297
        %2299 = vmatmul.bf16.gmra.mxu0 %v1143
        %v2300 = vpop.f32.mrf.mxu0
        %v2301 = vadd.f32 %v2212, %v2300
        %v2302 = vpop.f32.mrf.mxu0
        %v2303 = vadd.f32 %v2214, %v2302
        %2304 = vmatmul.bf16.gmra.mxu0 %v1152
        %v2305 = vpop.f32.mrf.mxu0
        %v2306 = vadd.f32 %v2217, %v2305
        %v2307 = vpop.f32.mrf.mxu0
        %v2308 = vadd.f32 %v2219, %v2307
        %2309 = vmatmul.bf16.gmra.mxu0 %v1161
        %v2310 = vpop.f32.mrf.mxu0
        %v2311 = vadd.f32 %v2222, %v2310
        %v2312 = vpop.f32.mrf.mxu0
        %v2313 = vadd.f32 %v2224, %v2312
        %2314 = vmatmul.bf16.gmra.mxu0 %v1170
        %v2315 = vpop.f32.mrf.mxu0
        %v2316 = vadd.f32 %v2227, %v2315
        %v2317 = vpop.f32.mrf.mxu0
        %v2318 = vadd.f32 %v2229, %v2317
        %2319 = vmatmul.bf16.gmra.mxu0 %v1179
        %v2320 = vpop.f32.mrf.mxu0
        %v2321 = vadd.f32 %v2232, %v2320
        %v2322 = vpop.f32.mrf.mxu0
        %v2323 = vadd.f32 %v2234, %v2322
        %2324 = vmatmul.bf16.gmra.mxu0 %v1188
        %v2325 = vpop.f32.mrf.mxu0
        %v2326 = vadd.f32 %v2237, %v2325
        %v2327 = vpop.f32.mrf.mxu0
        %v2328 = vadd.f32 %v2239, %v2327
        %2329 = vmatmul.bf16.gmra.mxu0 %v1197
        %v2330 = vpop.f32.mrf.mxu0
        %v2331 = vadd.f32 %v2242, %v2330
        %v2332 = vpop.f32.mrf.mxu0
        %v2333 = vadd.f32 %v2244, %v2332
        %2334 = vmatmul.bf16.gmra.mxu0 %v1206
        %v2335 = vpop.f32.mrf.mxu0
        %v2336 = vadd.f32 %v2247, %v2335
        %v2337 = vpop.f32.mrf.mxu0
        %v2338 = vadd.f32 %v2249, %v2337
        %2339 = vmatmul.bf16.gmra.mxu0 %v1215
        %v2340 = vpop.f32.mrf.mxu0
        %v2341 = vadd.f32 %v2252, %v2340
        %v2342 = vpop.f32.mrf.mxu0
        %v2343 = vadd.f32 %v2254, %v2342
        %2344 = vmatmul.bf16.gmra.mxu0 %v1224
        %v2345 = vpop.f32.mrf.mxu0
        %v2346 = vadd.f32 %v2257, %v2345
        %v2347 = vpop.f32.mrf.mxu0
        %v2348 = vadd.f32 %v2259, %v2347
        %2349 = vmatmul.bf16.gmra.mxu0 %v1233
        %v2350 = vpop.f32.mrf.mxu0
        %v2351 = vadd.f32 %v2262, %v2350
        %v2352 = vpop.f32.mrf.mxu0
        %v2353 = vadd.f32 %v2264, %v2352
        %2354 = vmatmul.bf16.gmra.mxu0 %v1242
        %v2355 = vpop.f32.mrf.mxu0
        %v2356 = vadd.f32 %v2267, %v2355
        %v2357 = vpop.f32.mrf.mxu0
        %v2358 = vadd.f32 %v2269, %v2357
        %2359 = vdwg.mxu0
        %2360 = vmatpush.bf16.msra.mxu0 %v1737
        %2361 = vmatpush.bf16.msra.mxu0 %v1736
        %2362 = vmatpush.bf16.msra.mxu0 %v1735
        %2363 = vmatpush.bf16.msra.mxu0 %v1734
        %2364 = vmatpush.bf16.msra.mxu0 %v1733
        %2365 = vmatpush.bf16.msra.mxu0 %v1732
        %2366 = vmatpush.bf16.msra.mxu0 %v1731
        %2367 = vmatpush.bf16.msra.mxu0 %v1730
        %2368 = vmatmul.bf16.gmra.mxu0 %v1108
        %v2369 = vpop.f32.mrf.mxu0
        %v2370 = vadd.f32 %v2281, %v2369
        %v2371 = vpop.f32.mrf.mxu0
        %v2372 = vadd.f32 %v2283, %v2371
        %2373 = vmatmul.bf16.gmra.mxu0 %v1117
        %v2374 = vpop.f32.mrf.mxu0
        %v2375 = vadd.f32 %v2286, %v2374
        %v2376 = vpop.f32.mrf.mxu0
        %v2377 = vadd.f32 %v2288, %v2376
        %2378 = vmatmul.bf16.gmra.mxu0 %v1126
        %v2379 = vpop.f32.mrf.mxu0
        %v2380 = vadd.f32 %v2291, %v2379
        %v2381 = vpop.f32.mrf.mxu0
        %v2382 = vadd.f32 %v2293, %v2381
        %2383 = vmatmul.bf16.gmra.mxu0 %v1135
        %v2384 = vpop.f32.mrf.mxu0
        %v2385 = vadd.f32 %v2296, %v2384
        %v2386 = vpop.f32.mrf.mxu0
        %v2387 = vadd.f32 %v2298, %v2386
        %2388 = vmatmul.bf16.gmra.mxu0 %v1144
        %v2389 = vpop.f32.mrf.mxu0
        %v2390 = vadd.f32 %v2301, %v2389
        %v2391 = vpop.f32.mrf.mxu0
        %v2392 = vadd.f32 %v2303, %v2391
        %2393 = vmatmul.bf16.gmra.mxu0 %v1153
        %v2394 = vpop.f32.mrf.mxu0
        %v2395 = vadd.f32 %v2306, %v2394
        %v2396 = vpop.f32.mrf.mxu0
        %v2397 = vadd.f32 %v2308, %v2396
        %2398 = vmatmul.bf16.gmra.mxu0 %v1162
        %v2399 = vpop.f32.mrf.mxu0
        %v2400 = vadd.f32 %v2311, %v2399
        %v2401 = vpop.f32.mrf.mxu0
        %v2402 = vadd.f32 %v2313, %v2401
        %2403 = vmatmul.bf16.gmra.mxu0 %v1171
        %v2404 = vpop.f32.mrf.mxu0
        %v2405 = vadd.f32 %v2316, %v2404
        %v2406 = vpop.f32.mrf.mxu0
        %v2407 = vadd.f32 %v2318, %v2406
        %2408 = vmatmul.bf16.gmra.mxu0 %v1180
        %v2409 = vpop.f32.mrf.mxu0
        %v2410 = vadd.f32 %v2321, %v2409
        %v2411 = vpop.f32.mrf.mxu0
        %v2412 = vadd.f32 %v2323, %v2411
        %2413 = vmatmul.bf16.gmra.mxu0 %v1189
        %v2414 = vpop.f32.mrf.mxu0
        %v2415 = vadd.f32 %v2326, %v2414
        %v2416 = vpop.f32.mrf.mxu0
        %v2417 = vadd.f32 %v2328, %v2416
        %2418 = vmatmul.bf16.gmra.mxu0 %v1198
        %v2419 = vpop.f32.mrf.mxu0
        %v2420 = vadd.f32 %v2331, %v2419
        %v2421 = vpop.f32.mrf.mxu0
        %v2422 = vadd.f32 %v2333, %v2421
        %2423 = vmatmul.bf16.gmra.mxu0 %v1207
        %v2424 = vpop.f32.mrf.mxu0
        %v2425 = vadd.f32 %v2336, %v2424
        %v2426 = vpop.f32.mrf.mxu0
        %v2427 = vadd.f32 %v2338, %v2426
        %2428 = vmatmul.bf16.gmra.mxu0 %v1216
        %v2429 = vpop.f32.mrf.mxu0
        %v2430 = vadd.f32 %v2341, %v2429
        %v2431 = vpop.f32.mrf.mxu0
        %v2432 = vadd.f32 %v2343, %v2431
        %2433 = vmatmul.bf16.gmra.mxu0 %v1225
        %v2434 = vpop.f32.mrf.mxu0
        %v2435 = vadd.f32 %v2346, %v2434
        %v2436 = vpop.f32.mrf.mxu0
        %v2437 = vadd.f32 %v2348, %v2436
        %2438 = vmatmul.bf16.gmra.mxu0 %v1234
        %v2439 = vpop.f32.mrf.mxu0
        %v2440 = vadd.f32 %v2351, %v2439
        %v2441 = vpop.f32.mrf.mxu0
        %v2442 = vadd.f32 %v2353, %v2441
        %2443 = vmatmul.bf16.gmra.mxu0 %v1243
        %v2444 = vpop.f32.mrf.mxu0
        %v2445 = vadd.f32 %v2356, %v2444
        %v2446 = vpop.f32.mrf.mxu0
        %v2447 = vadd.f32 %v2358, %v2446
        %2448 = vdwg.mxu0
        %2449 = vmatpush.bf16.msra.mxu0 %v1745
        %2450 = vmatpush.bf16.msra.mxu0 %v1744
        %2451 = vmatpush.bf16.msra.mxu0 %v1743
        %2452 = vmatpush.bf16.msra.mxu0 %v1742
        %2453 = vmatpush.bf16.msra.mxu0 %v1741
        %2454 = vmatpush.bf16.msra.mxu0 %v1740
        %2455 = vmatpush.bf16.msra.mxu0 %v1739
        %2456 = vmatpush.bf16.msra.mxu0 %v1738
        %2457 = vmatmul.bf16.gmra.mxu0 %v1109
        %v2458 = vpop.f32.mrf.mxu0
        %v2459 = vadd.f32 %v2370, %v2458
        %v2460 = vpop.f32.mrf.mxu0
        %v2461 = vadd.f32 %v2372, %v2460
        %2462 = vmatmul.bf16.gmra.mxu0 %v1118
        %v2463 = vpop.f32.mrf.mxu0
        %v2464 = vadd.f32 %v2375, %v2463
        %v2465 = vpop.f32.mrf.mxu0
        %v2466 = vadd.f32 %v2377, %v2465
        %2467 = vmatmul.bf16.gmra.mxu0 %v1127
        %v2468 = vpop.f32.mrf.mxu0
        %v2469 = vadd.f32 %v2380, %v2468
        %v2470 = vpop.f32.mrf.mxu0
        %v2471 = vadd.f32 %v2382, %v2470
        %2472 = vmatmul.bf16.gmra.mxu0 %v1136
        %v2473 = vpop.f32.mrf.mxu0
        %v2474 = vadd.f32 %v2385, %v2473
        %v2475 = vpop.f32.mrf.mxu0
        %v2476 = vadd.f32 %v2387, %v2475
        %2477 = vmatmul.bf16.gmra.mxu0 %v1145
        %v2478 = vpop.f32.mrf.mxu0
        %v2479 = vadd.f32 %v2390, %v2478
        %v2480 = vpop.f32.mrf.mxu0
        %v2481 = vadd.f32 %v2392, %v2480
        %2482 = vmatmul.bf16.gmra.mxu0 %v1154
        %v2483 = vpop.f32.mrf.mxu0
        %v2484 = vadd.f32 %v2395, %v2483
        %v2485 = vpop.f32.mrf.mxu0
        %v2486 = vadd.f32 %v2397, %v2485
        %2487 = vmatmul.bf16.gmra.mxu0 %v1163
        %v2488 = vpop.f32.mrf.mxu0
        %v2489 = vadd.f32 %v2400, %v2488
        %v2490 = vpop.f32.mrf.mxu0
        %v2491 = vadd.f32 %v2402, %v2490
        %2492 = vmatmul.bf16.gmra.mxu0 %v1172
        %v2493 = vpop.f32.mrf.mxu0
        %v2494 = vadd.f32 %v2405, %v2493
        %v2495 = vpop.f32.mrf.mxu0
        %v2496 = vadd.f32 %v2407, %v2495
        %2497 = vmatmul.bf16.gmra.mxu0 %v1181
        %v2498 = vpop.f32.mrf.mxu0
        %v2499 = vadd.f32 %v2410, %v2498
        %v2500 = vpop.f32.mrf.mxu0
        %v2501 = vadd.f32 %v2412, %v2500
        %2502 = vmatmul.bf16.gmra.mxu0 %v1190
        %v2503 = vpop.f32.mrf.mxu0
        %v2504 = vadd.f32 %v2415, %v2503
        %v2505 = vpop.f32.mrf.mxu0
        %v2506 = vadd.f32 %v2417, %v2505
        %2507 = vmatmul.bf16.gmra.mxu0 %v1199
        %v2508 = vpop.f32.mrf.mxu0
        %v2509 = vadd.f32 %v2420, %v2508
        %v2510 = vpop.f32.mrf.mxu0
        %v2511 = vadd.f32 %v2422, %v2510
        %2512 = vmatmul.bf16.gmra.mxu0 %v1208
        %v2513 = vpop.f32.mrf.mxu0
        %v2514 = vadd.f32 %v2425, %v2513
        %v2515 = vpop.f32.mrf.mxu0
        %v2516 = vadd.f32 %v2427, %v2515
        %2517 = vmatmul.bf16.gmra.mxu0 %v1217
        %v2518 = vpop.f32.mrf.mxu0
        %v2519 = vadd.f32 %v2430, %v2518
        %v2520 = vpop.f32.mrf.mxu0
        %v2521 = vadd.f32 %v2432, %v2520
        %2522 = vmatmul.bf16.gmra.mxu0 %v1226
        %v2523 = vpop.f32.mrf.mxu0
        %v2524 = vadd.f32 %v2435, %v2523
        %v2525 = vpop.f32.mrf.mxu0
        %v2526 = vadd.f32 %v2437, %v2525
        %2527 = vmatmul.bf16.gmra.mxu0 %v1235
        %v2528 = vpop.f32.mrf.mxu0
        %v2529 = vadd.f32 %v2440, %v2528
        %v2530 = vpop.f32.mrf.mxu0
        %v2531 = vadd.f32 %v2442, %v2530
        %2532 = vmatmul.bf16.gmra.mxu0 %v1244
        %v2533 = vpop.f32.mrf.mxu0
        %v2534 = vadd.f32 %v2445, %v2533
        %v2535 = vpop.f32.mrf.mxu0
        %v2536 = vadd.f32 %v2447, %v2535
        %2537 = vdwg.mxu0
        %2538 = vmatpush.bf16.msra.mxu0 %v1753
        %2539 = vmatpush.bf16.msra.mxu0 %v1752
        %2540 = vmatpush.bf16.msra.mxu0 %v1751
        %2541 = vmatpush.bf16.msra.mxu0 %v1750
        %2542 = vmatpush.bf16.msra.mxu0 %v1749
        %2543 = vmatpush.bf16.msra.mxu0 %v1748
        %2544 = vmatpush.bf16.msra.mxu0 %v1747
        %2545 = vmatpush.bf16.msra.mxu0 %v1746
        %2546 = vmatmul.bf16.gmra.mxu0 %v1110
        %v2547 = vpop.f32.mrf.mxu0
        %v2548 = vadd.f32 %v2459, %v2547
        %v2549 = vpop.f32.mrf.mxu0
        %v2550 = vadd.f32 %v2461, %v2549
        %2551 = vmatmul.bf16.gmra.mxu0 %v1119
        %v2552 = vpop.f32.mrf.mxu0
        %v2553 = vadd.f32 %v2464, %v2552
        %v2554 = vpop.f32.mrf.mxu0
        %v2555 = vadd.f32 %v2466, %v2554
        %2556 = vmatmul.bf16.gmra.mxu0 %v1128
        %v2557 = vpop.f32.mrf.mxu0
        %v2558 = vadd.f32 %v2469, %v2557
        %v2559 = vpop.f32.mrf.mxu0
        %v2560 = vadd.f32 %v2471, %v2559
        %2561 = vmatmul.bf16.gmra.mxu0 %v1137
        %v2562 = vpop.f32.mrf.mxu0
        %v2563 = vadd.f32 %v2474, %v2562
        %v2564 = vpop.f32.mrf.mxu0
        %v2565 = vadd.f32 %v2476, %v2564
        %2566 = vmatmul.bf16.gmra.mxu0 %v1146
        %v2567 = vpop.f32.mrf.mxu0
        %v2568 = vadd.f32 %v2479, %v2567
        %v2569 = vpop.f32.mrf.mxu0
        %v2570 = vadd.f32 %v2481, %v2569
        %2571 = vmatmul.bf16.gmra.mxu0 %v1155
        %v2572 = vpop.f32.mrf.mxu0
        %v2573 = vadd.f32 %v2484, %v2572
        %v2574 = vpop.f32.mrf.mxu0
        %v2575 = vadd.f32 %v2486, %v2574
        %2576 = vmatmul.bf16.gmra.mxu0 %v1164
        %v2577 = vpop.f32.mrf.mxu0
        %v2578 = vadd.f32 %v2489, %v2577
        %v2579 = vpop.f32.mrf.mxu0
        %v2580 = vadd.f32 %v2491, %v2579
        %2581 = vmatmul.bf16.gmra.mxu0 %v1173
        %v2582 = vpop.f32.mrf.mxu0
        %v2583 = vadd.f32 %v2494, %v2582
        %v2584 = vpop.f32.mrf.mxu0
        %v2585 = vadd.f32 %v2496, %v2584
        %2586 = vmatmul.bf16.gmra.mxu0 %v1182
        %v2587 = vpop.f32.mrf.mxu0
        %v2588 = vadd.f32 %v2499, %v2587
        %v2589 = vpop.f32.mrf.mxu0
        %v2590 = vadd.f32 %v2501, %v2589
        %2591 = vmatmul.bf16.gmra.mxu0 %v1191
        %v2592 = vpop.f32.mrf.mxu0
        %v2593 = vadd.f32 %v2504, %v2592
        %v2594 = vpop.f32.mrf.mxu0
        %v2595 = vadd.f32 %v2506, %v2594
        %2596 = vmatmul.bf16.gmra.mxu0 %v1200
        %v2597 = vpop.f32.mrf.mxu0
        %v2598 = vadd.f32 %v2509, %v2597
        %v2599 = vpop.f32.mrf.mxu0
        %v2600 = vadd.f32 %v2511, %v2599
        %2601 = vmatmul.bf16.gmra.mxu0 %v1209
        %v2602 = vpop.f32.mrf.mxu0
        %v2603 = vadd.f32 %v2514, %v2602
        %v2604 = vpop.f32.mrf.mxu0
        %v2605 = vadd.f32 %v2516, %v2604
        %2606 = vmatmul.bf16.gmra.mxu0 %v1218
        %v2607 = vpop.f32.mrf.mxu0
        %v2608 = vadd.f32 %v2519, %v2607
        %v2609 = vpop.f32.mrf.mxu0
        %v2610 = vadd.f32 %v2521, %v2609
        %2611 = vmatmul.bf16.gmra.mxu0 %v1227
        %v2612 = vpop.f32.mrf.mxu0
        %v2613 = vadd.f32 %v2524, %v2612
        %v2614 = vpop.f32.mrf.mxu0
        %v2615 = vadd.f32 %v2526, %v2614
        %2616 = vmatmul.bf16.gmra.mxu0 %v1236
        %v2617 = vpop.f32.mrf.mxu0
        %v2618 = vadd.f32 %v2529, %v2617
        %v2619 = vpop.f32.mrf.mxu0
        %v2620 = vadd.f32 %v2531, %v2619
        %2621 = vmatmul.bf16.gmra.mxu0 %v1245
        %v2622 = vpop.f32.mrf.mxu0
        %v2623 = vadd.f32 %v2534, %v2622
        %v2624 = vpop.f32.mrf.mxu0
        %v2625 = vadd.f32 %v2536, %v2624
        %2626 = vdwg.mxu0
        %v2627 = vmax.f32 %v2548, 0.0
        %v2628 = vmax.f32 %v2550, 0.0
        %v2629 = vmax.f32 %v2553, 0.0
        %v2630 = vmax.f32 %v2555, 0.0
        %v2631 = vmax.f32 %v2558, 0.0
        %v2632 = vmax.f32 %v2560, 0.0
        %v2633 = vmax.f32 %v2563, 0.0
        %v2634 = vmax.f32 %v2565, 0.0
        %v2635 = vmax.f32 %v2568, 0.0
        %v2636 = vmax.f32 %v2570, 0.0
        %v2637 = vmax.f32 %v2573, 0.0
        %v2638 = vmax.f32 %v2575, 0.0
        %v2639 = vmax.f32 %v2578, 0.0
        %v2640 = vmax.f32 %v2580, 0.0
        %v2641 = vmax.f32 %v2583, 0.0
        %v2642 = vmax.f32 %v2585, 0.0
        %v2643 = vmax.f32 %v2588, 0.0
        %v2644 = vmax.f32 %v2590, 0.0
        %v2645 = vmax.f32 %v2593, 0.0
        %v2646 = vmax.f32 %v2595, 0.0
        %v2647 = vmax.f32 %v2598, 0.0
        %v2648 = vmax.f32 %v2600, 0.0
        %v2649 = vmax.f32 %v2603, 0.0
        %v2650 = vmax.f32 %v2605, 0.0
        %v2651 = vmax.f32 %v2608, 0.0
        %v2652 = vmax.f32 %v2610, 0.0
        %v2653 = vmax.f32 %v2613, 0.0
        %v2654 = vmax.f32 %v2615, 0.0
        %v2655 = vmax.f32 %v2618, 0.0
        %v2656 = vmax.f32 %v2620, 0.0
        %v2657 = vmax.f32 %v2623, 0.0
        %v2658 = vmax.f32 %v2625, 0.0
        %2659 = vst [vmem:[#allocation2] sm:$0xff] 0.0
        %2660 = vst [vmem:[#allocation2 + $0x8] sm:$0xff] 0.0
        %2661 = vst [vmem:[#allocation2 + $0x10] sm:$0x3] 0.0
        %2662 = vst [vmem:[#allocation2 + $0x18] sm:$0xff] 0.0
        %2663 = vst [vmem:[#allocation2 + $0x20] sm:$0xff] 0.0
        %2664 = vst [vmem:[#allocation2 + $0x28] sm:$0x3] 0.0
        %2665 = vst [vmem:[#allocation2 + $0x30] sm:$0xff] 0.0
        %2666 = vst [vmem:[#allocation2 + $0x38] sm:$0xff] 0.0
        %2667 = vst [vmem:[#allocation2 + $0x40] sm:$0x3] 0.0
        %2668 = vst [vmem:[#allocation2 + $0x48] sm:$0xff] 0.0
        %2669 = vst [vmem:[#allocation2 + $0x50] sm:$0xff] 0.0
        %2670 = vst [vmem:[#allocation2 + $0x58] sm:$0x3] 0.0
        %2671 = vst [vmem:[#allocation2 + $0x60] sm:$0xff] 0.0
        %2672 = vst [vmem:[#allocation2 + $0x68] sm:$0xff] 0.0
        %2673 = vst [vmem:[#allocation2 + $0x70] sm:$0x3] 0.0
        %2674 = vst [vmem:[#allocation2 + $0x78] sm:$0xff] 0.0
        %2675 = vst [vmem:[#allocation2 + $0x80] sm:$0xff] 0.0
        %2676 = vst [vmem:[#allocation2 + $0x88] sm:$0x3] 0.0
        %2677 = vst [vmem:[#allocation2 + $0x90] sm:$0xff] 0.0
        %2678 = vst [vmem:[#allocation2 + $0x98] sm:$0xff] 0.0
        %2679 = vst [vmem:[#allocation2 + $0xa0] sm:$0x3] 0.0
        %2680 = vst [vmem:[#allocation2 + $0xa8] sm:$0xff] 0.0
        %2681 = vst [vmem:[#allocation2 + $0xb0] sm:$0xff] 0.0
        %2682 = vst [vmem:[#allocation2 + $0xb8] sm:$0x3] 0.0
        %2683 = vst [vmem:[#allocation2 + $0xc0] sm:$0xff] 0.0
        %2684 = vst [vmem:[#allocation2 + $0xc8] sm:$0xff] 0.0
        %2685 = vst [vmem:[#allocation2 + $0xd0] sm:$0x3] 0.0
        %2686 = vst [vmem:[#allocation2 + $0xd8] sm:$0xff] 0.0
        %2687 = vst [vmem:[#allocation2 + $0xe0] sm:$0xff] 0.0
        %2688 = vst [vmem:[#allocation2 + $0xe8] sm:$0x3] 0.0
        %2689 = vst [vmem:[#allocation2 + $0xf0] sm:$0xff] 0.0
        %2690 = vst [vmem:[#allocation2 + $0xf8] sm:$0xff] 0.0
        %2691 = vst [vmem:[#allocation2 + $0x100] sm:$0x3] 0.0
        %2692 = vst [vmem:[#allocation2 + $0x108] sm:$0xff] 0.0
        %2693 = vst [vmem:[#allocation2 + $0x110] sm:$0xff] 0.0
        %2694 = vst [vmem:[#allocation2 + $0x118] sm:$0x3] 0.0
        %2695 = vst [vmem:[#allocation2 + $0x120] sm:$0xff] 0.0
        %2696 = vst [vmem:[#allocation2 + $0x128] sm:$0xff] 0.0
        %2697 = vst [vmem:[#allocation2 + $0x130] sm:$0x3] 0.0
        %2698 = vst [vmem:[#allocation2 + $0x138] sm:$0xff] 0.0
        %2699 = vst [vmem:[#allocation2 + $0x140] sm:$0xff] 0.0
        %2700 = vst [vmem:[#allocation2 + $0x148] sm:$0x3] 0.0
        %2701 = vst [vmem:[#allocation2 + $0x150] sm:$0xff] 0.0
        %2702 = vst [vmem:[#allocation2 + $0x158] sm:$0xff] 0.0
        %2703 = vst [vmem:[#allocation2 + $0x160] sm:$0x3] 0.0
        %2704 = vst [vmem:[#allocation2 + $0x168] sm:$0xff] 0.0
        %2705 = vst [vmem:[#allocation2 + $0x170] sm:$0xff] 0.0
        %2706 = vst [vmem:[#allocation2 + $0x178] sm:$0x3] 0.0
        %2707 = vst [vmem:[#allocation2 + $0x180] sm:$0xff] 0.0
        %2708 = vst [vmem:[#allocation2 + $0x188] sm:$0xff] 0.0
        %2709 = vst [vmem:[#allocation2 + $0x190] sm:$0x3] 0.0
        %2710 = vst [vmem:[#allocation2 + $0x198] sm:$0xff] 0.0
        %2711 = vst [vmem:[#allocation2 + $0x1a0] sm:$0xff] 0.0
        %2712 = vst [vmem:[#allocation2 + $0x1a8] sm:$0x3] 0.0
        %vm2713 = vcmask 64512
        %2714 = vst.msk [vmem:[%s779 + $0x1] sm:$0xff] %vm2713, %v2627
        %2715 = vst.msk [vmem:[%s779 + $0x9] sm:$0xff] %vm2713, %v2628
        %2716 = vst.msk [vmem:[%s779 + $0x19] sm:$0xff] %vm2713, %v2629
        %2717 = vst.msk [vmem:[%s779 + $0x21] sm:$0xff] %vm2713, %v2630
        %2718 = vst.msk [vmem:[%s779 + $0x31] sm:$0xff] %vm2713, %v2631
        %2719 = vst.msk [vmem:[%s779 + $0x39] sm:$0xff] %vm2713, %v2632
        %2720 = vst.msk [vmem:[%s779 + $0x49] sm:$0xff] %vm2713, %v2633
        %2721 = vst.msk [vmem:[%s779 + $0x51] sm:$0xff] %vm2713, %v2634
        %2722 = vst.msk [vmem:[%s779 + $0x61] sm:$0xff] %vm2713, %v2635
        %2723 = vst.msk [vmem:[%s779 + $0x69] sm:$0xff] %vm2713, %v2636
        %2724 = vst.msk [vmem:[%s779 + $0x79] sm:$0xff] %vm2713, %v2637
        %2725 = vst.msk [vmem:[%s779 + $0x81] sm:$0xff] %vm2713, %v2638
        %2726 = vst.msk [vmem:[%s779 + $0x91] sm:$0xff] %vm2713, %v2639
        %2727 = vst.msk [vmem:[%s779 + $0x99] sm:$0xff] %vm2713, %v2640
        %2728 = vst.msk [vmem:[%s779 + $0xa9] sm:$0xff] %vm2713, %v2641
        %2729 = vst.msk [vmem:[%s779 + $0xb1] sm:$0xff] %vm2713, %v2642
        %2730 = vst.msk [vmem:[%s779 + $0xc1] sm:$0xff] %vm2713, %v2643
        %2731 = vst.msk [vmem:[%s779 + $0xc9] sm:$0xff] %vm2713, %v2644
        %2732 = vst.msk [vmem:[%s779 + $0xd9] sm:$0xff] %vm2713, %v2645
        %2733 = vst.msk [vmem:[%s779 + $0xe1] sm:$0xff] %vm2713, %v2646
        %2734 = vst.msk [vmem:[%s779 + $0xf1] sm:$0xff] %vm2713, %v2647
        %2735 = vst.msk [vmem:[%s779 + $0xf9] sm:$0xff] %vm2713, %v2648
        %2736 = vst.msk [vmem:[%s779 + $0x109] sm:$0xff] %vm2713, %v2649
        %2737 = vst.msk [vmem:[%s779 + $0x111] sm:$0xff] %vm2713, %v2650
        %2738 = vst.msk [vmem:[%s779 + $0x121] sm:$0xff] %vm2713, %v2651
        %2739 = vst.msk [vmem:[%s779 + $0x129] sm:$0xff] %vm2713, %v2652
        %2740 = vst.msk [vmem:[%s779 + $0x139] sm:$0xff] %vm2713, %v2653
        %2741 = vst.msk [vmem:[%s779 + $0x141] sm:$0xff] %vm2713, %v2654
        %2742 = vst.msk [vmem:[%s779 + $0x151] sm:$0xff] %vm2713, %v2655
        %2743 = vst.msk [vmem:[%s779 + $0x159] sm:$0xff] %vm2713, %v2656
        %2744 = vst.msk [vmem:[%s779 + $0x169] sm:$0xff] %vm2713, %v2657
        %2745 = vst.msk [vmem:[%s779 + $0x171] sm:$0xff] %vm2713, %v2658
        %v2746 = vld [vmem:[#allocation2] sm:$0xff]
        %v2747 = vld [vmem:[#allocation2 + $0x8] sm:$0xff]
        %v2748 = vld [vmem:[#allocation2 + $0x18] sm:$0xff]
        %v2749 = vld [vmem:[#allocation2 + $0x20] sm:$0xff]
        %v2750 = vld [vmem:[#allocation2 + $0x30] sm:$0xff]
        %v2751 = vld [vmem:[#allocation2 + $0x38] sm:$0xff]
        %v2752 = vld [vmem:[#allocation2 + $0x48] sm:$0xff]
        %v2753 = vld [vmem:[#allocation2 + $0x50] sm:$0xff]
        %v2754 = vld [vmem:[#allocation2 + $0x60] sm:$0xff]
        %v2755 = vld [vmem:[#allocation2 + $0x68] sm:$0xff]
        %v2756 = vld [vmem:[#allocation2 + $0x78] sm:$0xff]
        %v2757 = vld [vmem:[#allocation2 + $0x80] sm:$0xff]
        %v2758 = vld [vmem:[#allocation2 + $0x90] sm:$0xff]
        %v2759 = vld [vmem:[#allocation2 + $0x98] sm:$0xff]
        %v2760 = vld [vmem:[#allocation2 + $0xa8] sm:$0xff]
        %v2761 = vld [vmem:[#allocation2 + $0xb0] sm:$0xff]
        %v2762 = vld [vmem:[#allocation2 + $0xc0] sm:$0xff]
        %v2763 = vld [vmem:[#allocation2 + $0xc8] sm:$0xff]
        %v2764 = vld [vmem:[#allocation2 + $0xd8] sm:$0xff]
        %v2765 = vld [vmem:[#allocation2 + $0xe0] sm:$0xff]
        %v2766 = vld [vmem:[#allocation2 + $0xf0] sm:$0xff]
        %v2767 = vld [vmem:[#allocation2 + $0xf8] sm:$0xff]
        %v2768 = vld [vmem:[#allocation2 + $0x108] sm:$0xff]
        %v2769 = vld [vmem:[#allocation2 + $0x110] sm:$0xff]
        %v2770 = vld [vmem:[#allocation2 + $0x120] sm:$0xff]
        %v2771 = vld [vmem:[#allocation2 + $0x128] sm:$0xff]
        %v2772 = vld [vmem:[#allocation2 + $0x138] sm:$0xff]
        %v2773 = vld [vmem:[#allocation2 + $0x140] sm:$0xff]
        %v2774 = vld [vmem:[#allocation2 + $0x150] sm:$0xff]
        %v2775 = vld [vmem:[#allocation2 + $0x158] sm:$0xff]
        %v2776 = vld [vmem:[#allocation2 + $0x168] sm:$0xff]
        %v2777 = vld [vmem:[#allocation2 + $0x170] sm:$0xff]
        %v2778 = vld [vmem:[#allocation2 + $0x1] sm:$0xff]
        %v2779 = vld [vmem:[#allocation2 + $0x9] sm:$0xff]
        %v2780 = vld [vmem:[#allocation2 + $0x19] sm:$0xff]
        %v2781 = vld [vmem:[#allocation2 + $0x21] sm:$0xff]
        %v2782 = vld [vmem:[#allocation2 + $0x31] sm:$0xff]
        %v2783 = vld [vmem:[#allocation2 + $0x39] sm:$0xff]
        %v2784 = vld [vmem:[#allocation2 + $0x49] sm:$0xff]
        %v2785 = vld [vmem:[#allocation2 + $0x51] sm:$0xff]
        %v2786 = vld [vmem:[#allocation2 + $0x61] sm:$0xff]
        %v2787 = vld [vmem:[#allocation2 + $0x69] sm:$0xff]
        %v2788 = vld [vmem:[#allocation2 + $0x79] sm:$0xff]
        %v2789 = vld [vmem:[#allocation2 + $0x81] sm:$0xff]
        %v2790 = vld [vmem:[#allocation2 + $0x91] sm:$0xff]
        %v2791 = vld [vmem:[#allocation2 + $0x99] sm:$0xff]
        %v2792 = vld [vmem:[#allocation2 + $0xa9] sm:$0xff]
        %v2793 = vld [vmem:[#allocation2 + $0xb1] sm:$0xff]
        %v2794 = vld [vmem:[#allocation2 + $0xc1] sm:$0xff]
        %v2795 = vld [vmem:[#allocation2 + $0xc9] sm:$0xff]
        %v2796 = vld [vmem:[#allocation2 + $0xd9] sm:$0xff]
        %v2797 = vld [vmem:[#allocation2 + $0xe1] sm:$0xff]
        %v2798 = vld [vmem:[#allocation2 + $0xf1] sm:$0xff]
        %v2799 = vld [vmem:[#allocation2 + $0xf9] sm:$0xff]
        %v2800 = vld [vmem:[#allocation2 + $0x109] sm:$0xff]
        %v2801 = vld [vmem:[#allocation2 + $0x111] sm:$0xff]
        %v2802 = vld [vmem:[#allocation2 + $0x121] sm:$0xff]
        %v2803 = vld [vmem:[#allocation2 + $0x129] sm:$0xff]
        %v2804 = vld [vmem:[#allocation2 + $0x139] sm:$0xff]
        %v2805 = vld [vmem:[#allocation2 + $0x141] sm:$0xff]
        %v2806 = vld [vmem:[#allocation2 + $0x151] sm:$0xff]
        %v2807 = vld [vmem:[#allocation2 + $0x159] sm:$0xff]
        %v2808 = vld [vmem:[#allocation2 + $0x169] sm:$0xff]
        %v2809 = vld [vmem:[#allocation2 + $0x171] sm:$0xff]
        %v2810 = vld [vmem:[#allocation2 + $0x2] sm:$0xff]
        %v2811 = vld [vmem:[#allocation2 + $0xa] sm:$0xff]
        %v2812 = vld [vmem:[#allocation2 + $0x1a] sm:$0xff]
        %v2813 = vld [vmem:[#allocation2 + $0x22] sm:$0xff]
        %v2814 = vld [vmem:[#allocation2 + $0x32] sm:$0xff]
        %v2815 = vld [vmem:[#allocation2 + $0x3a] sm:$0xff]
        %v2816 = vld [vmem:[#allocation2 + $0x4a] sm:$0xff]
        %v2817 = vld [vmem:[#allocation2 + $0x52] sm:$0xff]
        %v2818 = vld [vmem:[#allocation2 + $0x62] sm:$0xff]
        %v2819 = vld [vmem:[#allocation2 + $0x6a] sm:$0xff]
        %v2820 = vld [vmem:[#allocation2 + $0x7a] sm:$0xff]
        %v2821 = vld [vmem:[#allocation2 + $0x82] sm:$0xff]
        %v2822 = vld [vmem:[#allocation2 + $0x92] sm:$0xff]
        %v2823 = vld [vmem:[#allocation2 + $0x9a] sm:$0xff]
        %v2824 = vld [vmem:[#allocation2 + $0xaa] sm:$0xff]
        %v2825 = vld [vmem:[#allocation2 + $0xb2] sm:$0xff]
        %v2826 = vld [vmem:[#allocation2 + $0xc2] sm:$0xff]
        %v2827 = vld [vmem:[#allocation2 + $0xca] sm:$0xff]
        %v2828 = vld [vmem:[#allocation2 + $0xda] sm:$0xff]
        %v2829 = vld [vmem:[#allocation2 + $0xe2] sm:$0xff]
        %v2830 = vld [vmem:[#allocation2 + $0xf2] sm:$0xff]
        %v2831 = vld [vmem:[#allocation2 + $0xfa] sm:$0xff]
        %v2832 = vld [vmem:[#allocation2 + $0x10a] sm:$0xff]
        %v2833 = vld [vmem:[#allocation2 + $0x112] sm:$0xff]
        %v2834 = vld [vmem:[#allocation2 + $0x122] sm:$0xff]
        %v2835 = vld [vmem:[#allocation2 + $0x12a] sm:$0xff]
        %v2836 = vld [vmem:[#allocation2 + $0x13a] sm:$0xff]
        %v2837 = vld [vmem:[#allocation2 + $0x142] sm:$0xff]
        %v2838 = vld [vmem:[#allocation2 + $0x152] sm:$0xff]
        %v2839 = vld [vmem:[#allocation2 + $0x15a] sm:$0xff]
        %v2840 = vld [vmem:[#allocation2 + $0x16a] sm:$0xff]
        %v2841 = vld [vmem:[#allocation2 + $0x172] sm:$0xff]
        %v2842 = vld [vmem:[%s779] sm:$0xff]
        %v2843 = vld [vmem:[%s779 + $0x8] sm:$0xff]
        %v2844 = vld [vmem:[%s779 + $0x18] sm:$0xff]
        %v2845 = vld [vmem:[%s779 + $0x20] sm:$0xff]
        %v2846 = vld [vmem:[%s779 + $0x30] sm:$0xff]
        %v2847 = vld [vmem:[%s779 + $0x38] sm:$0xff]
        %v2848 = vld [vmem:[%s779 + $0x48] sm:$0xff]
        %v2849 = vld [vmem:[%s779 + $0x50] sm:$0xff]
        %v2850 = vld [vmem:[%s779 + $0x60] sm:$0xff]
        %v2851 = vld [vmem:[%s779 + $0x68] sm:$0xff]
        %v2852 = vld [vmem:[%s779 + $0x78] sm:$0xff]
        %v2853 = vld [vmem:[%s779 + $0x80] sm:$0xff]
        %v2854 = vld [vmem:[%s779 + $0x90] sm:$0xff]
        %v2855 = vld [vmem:[%s779 + $0x98] sm:$0xff]
        %v2856 = vld [vmem:[%s779 + $0xa8] sm:$0xff]
        %v2857 = vld [vmem:[%s779 + $0xb0] sm:$0xff]
        %v2858 = vld [vmem:[%s779 + $0xc0] sm:$0xff]
        %v2859 = vld [vmem:[%s779 + $0xc8] sm:$0xff]
        %v2860 = vld [vmem:[%s779 + $0xd8] sm:$0xff]
        %v2861 = vld [vmem:[%s779 + $0xe0] sm:$0xff]
        %v2862 = vld [vmem:[%s779 + $0xf0] sm:$0xff]
        %v2863 = vld [vmem:[%s779 + $0xf8] sm:$0xff]
        %v2864 = vld [vmem:[%s779 + $0x108] sm:$0xff]
        %v2865 = vld [vmem:[%s779 + $0x110] sm:$0xff]
        %v2866 = vld [vmem:[%s779 + $0x120] sm:$0xff]
        %v2867 = vld [vmem:[%s779 + $0x128] sm:$0xff]
        %v2868 = vld [vmem:[%s779 + $0x138] sm:$0xff]
        %v2869 = vld [vmem:[%s779 + $0x140] sm:$0xff]
        %v2870 = vld [vmem:[%s779 + $0x150] sm:$0xff]
        %v2871 = vld [vmem:[%s779 + $0x158] sm:$0xff]
        %v2872 = vld [vmem:[%s779 + $0x168] sm:$0xff]
        %v2873 = vld [vmem:[%s779 + $0x170] sm:$0xff]
        %v2874 = vld [vmem:[%s779 + $0x1] sm:$0xff]
        %v2875 = vld [vmem:[%s779 + $0x9] sm:$0xff]
        %v2876 = vld [vmem:[%s779 + $0x19] sm:$0xff]
        %v2877 = vld [vmem:[%s779 + $0x21] sm:$0xff]
        %v2878 = vld [vmem:[%s779 + $0x31] sm:$0xff]
        %v2879 = vld [vmem:[%s779 + $0x39] sm:$0xff]
        %v2880 = vld [vmem:[%s779 + $0x49] sm:$0xff]
        %v2881 = vld [vmem:[%s779 + $0x51] sm:$0xff]
        %v2882 = vld [vmem:[%s779 + $0x61] sm:$0xff]
        %v2883 = vld [vmem:[%s779 + $0x69] sm:$0xff]
        %v2884 = vld [vmem:[%s779 + $0x79] sm:$0xff]
        %v2885 = vld [vmem:[%s779 + $0x81] sm:$0xff]
        %v2886 = vld [vmem:[%s779 + $0x91] sm:$0xff]
        %v2887 = vld [vmem:[%s779 + $0x99] sm:$0xff]
        %v2888 = vld [vmem:[%s779 + $0xa9] sm:$0xff]
        %v2889 = vld [vmem:[%s779 + $0xb1] sm:$0xff]
        %v2890 = vld [vmem:[%s779 + $0xc1] sm:$0xff]
        %v2891 = vld [vmem:[%s779 + $0xc9] sm:$0xff]
        %v2892 = vld [vmem:[%s779 + $0xd9] sm:$0xff]
        %v2893 = vld [vmem:[%s779 + $0xe1] sm:$0xff]
        %v2894 = vld [vmem:[%s779 + $0xf1] sm:$0xff]
        %v2895 = vld [vmem:[%s779 + $0xf9] sm:$0xff]
        %v2896 = vld [vmem:[%s779 + $0x109] sm:$0xff]
        %v2897 = vld [vmem:[%s779 + $0x111] sm:$0xff]
        %v2898 = vld [vmem:[%s779 + $0x121] sm:$0xff]
        %v2899 = vld [vmem:[%s779 + $0x129] sm:$0xff]
        %v2900 = vld [vmem:[%s779 + $0x139] sm:$0xff]
        %v2901 = vld [vmem:[%s779 + $0x141] sm:$0xff]
        %v2902 = vld [vmem:[%s779 + $0x151] sm:$0xff]
        %v2903 = vld [vmem:[%s779 + $0x159] sm:$0xff]
        %v2904 = vld [vmem:[%s779 + $0x169] sm:$0xff]
        %v2905 = vld [vmem:[%s779 + $0x171] sm:$0xff]
        %v2906 = vld [vmem:[%s779 + $0x2] sm:$0xff]
        %v2907 = vld [vmem:[%s779 + $0xa] sm:$0xff]
        %v2908 = vld [vmem:[%s779 + $0x1a] sm:$0xff]
        %v2909 = vld [vmem:[%s779 + $0x22] sm:$0xff]
        %v2910 = vld [vmem:[%s779 + $0x32] sm:$0xff]
        %v2911 = vld [vmem:[%s779 + $0x3a] sm:$0xff]
        %v2912 = vld [vmem:[%s779 + $0x4a] sm:$0xff]
        %v2913 = vld [vmem:[%s779 + $0x52] sm:$0xff]
        %v2914 = vld [vmem:[%s779 + $0x62] sm:$0xff]
        %v2915 = vld [vmem:[%s779 + $0x6a] sm:$0xff]
        %v2916 = vld [vmem:[%s779 + $0x7a] sm:$0xff]
        %v2917 = vld [vmem:[%s779 + $0x82] sm:$0xff]
        %v2918 = vld [vmem:[%s779 + $0x92] sm:$0xff]
        %v2919 = vld [vmem:[%s779 + $0x9a] sm:$0xff]
        %v2920 = vld [vmem:[%s779 + $0xaa] sm:$0xff]
        %v2921 = vld [vmem:[%s779 + $0xb2] sm:$0xff]
        %v2922 = vld [vmem:[%s779 + $0xc2] sm:$0xff]
        %v2923 = vld [vmem:[%s779 + $0xca] sm:$0xff]
        %v2924 = vld [vmem:[%s779 + $0xda] sm:$0xff]
        %v2925 = vld [vmem:[%s779 + $0xe2] sm:$0xff]
        %v2926 = vld [vmem:[%s779 + $0xf2] sm:$0xff]
        %v2927 = vld [vmem:[%s779 + $0xfa] sm:$0xff]
        %v2928 = vld [vmem:[%s779 + $0x10a] sm:$0xff]
        %v2929 = vld [vmem:[%s779 + $0x112] sm:$0xff]
        %v2930 = vld [vmem:[%s779 + $0x122] sm:$0xff]
        %v2931 = vld [vmem:[%s779 + $0x12a] sm:$0xff]
        %v2932 = vld [vmem:[%s779 + $0x13a] sm:$0xff]
        %v2933 = vld [vmem:[%s779 + $0x142] sm:$0xff]
        %v2934 = vld [vmem:[%s779 + $0x152] sm:$0xff]
        %v2935 = vld [vmem:[%s779 + $0x15a] sm:$0xff]
        %v2936 = vld [vmem:[%s779 + $0x16a] sm:$0xff]
        %v2937 = vld [vmem:[%s779 + $0x172] sm:$0xff]
        %v2938 = vld [vmem:[%s1005] sm:$0xff]
        %v2939 = vld [vmem:[%s1005 + $0x8] sm:$0xff]
        %v2940 = vld [vmem:[%s1005 + $0x18] sm:$0xff]
        %v2941 = vld [vmem:[%s1005 + $0x20] sm:$0xff]
        %v2942 = vld [vmem:[%s1005 + $0x30] sm:$0xff]
        %v2943 = vld [vmem:[%s1005 + $0x38] sm:$0xff]
        %v2944 = vld [vmem:[%s1005 + $0x48] sm:$0xff]
        %v2945 = vld [vmem:[%s1005 + $0x50] sm:$0xff]
        %v2946 = vld [vmem:[%s1005 + $0x60] sm:$0xff]
        %v2947 = vld [vmem:[%s1005 + $0x68] sm:$0xff]
        %v2948 = vld [vmem:[%s1005 + $0x78] sm:$0xff]
        %v2949 = vld [vmem:[%s1005 + $0x80] sm:$0xff]
        %v2950 = vld [vmem:[%s1005 + $0x90] sm:$0xff]
        %v2951 = vld [vmem:[%s1005 + $0x98] sm:$0xff]
        %v2952 = vld [vmem:[%s1005 + $0xa8] sm:$0xff]
        %v2953 = vld [vmem:[%s1005 + $0xb0] sm:$0xff]
        %v2954 = vld [vmem:[%s1005 + $0xc0] sm:$0xff]
        %v2955 = vld [vmem:[%s1005 + $0xc8] sm:$0xff]
        %v2956 = vld [vmem:[%s1005 + $0xd8] sm:$0xff]
        %v2957 = vld [vmem:[%s1005 + $0xe0] sm:$0xff]
        %v2958 = vld [vmem:[%s1005 + $0xf0] sm:$0xff]
        %v2959 = vld [vmem:[%s1005 + $0xf8] sm:$0xff]
        %v2960 = vld [vmem:[%s1005 + $0x108] sm:$0xff]
        %v2961 = vld [vmem:[%s1005 + $0x110] sm:$0xff]
        %v2962 = vld [vmem:[%s1005 + $0x120] sm:$0xff]
        %v2963 = vld [vmem:[%s1005 + $0x128] sm:$0xff]
        %v2964 = vld [vmem:[%s1005 + $0x138] sm:$0xff]
        %v2965 = vld [vmem:[%s1005 + $0x140] sm:$0xff]
        %v2966 = vld [vmem:[%s1005 + $0x150] sm:$0xff]
        %v2967 = vld [vmem:[%s1005 + $0x158] sm:$0xff]
        %v2968 = vld [vmem:[%s1005 + $0x168] sm:$0xff]
        %v2969 = vld [vmem:[%s1005 + $0x170] sm:$0xff]
        %v2970 = vld [vmem:[%s1005 + $0x1] sm:$0xff]
        %v2971 = vld [vmem:[%s1005 + $0x9] sm:$0xff]
        %v2972 = vld [vmem:[%s1005 + $0x19] sm:$0xff]
        %v2973 = vld [vmem:[%s1005 + $0x21] sm:$0xff]
        %v2974 = vld [vmem:[%s1005 + $0x31] sm:$0xff]
        %v2975 = vld [vmem:[%s1005 + $0x39] sm:$0xff]
        %v2976 = vld [vmem:[%s1005 + $0x49] sm:$0xff]
        %v2977 = vld [vmem:[%s1005 + $0x51] sm:$0xff]
        %v2978 = vld [vmem:[%s1005 + $0x61] sm:$0xff]
        %v2979 = vld [vmem:[%s1005 + $0x69] sm:$0xff]
        %v2980 = vld [vmem:[%s1005 + $0x79] sm:$0xff]
        %v2981 = vld [vmem:[%s1005 + $0x81] sm:$0xff]
        %v2982 = vld [vmem:[%s1005 + $0x91] sm:$0xff]
        %v2983 = vld [vmem:[%s1005 + $0x99] sm:$0xff]
        %v2984 = vld [vmem:[%s1005 + $0xa9] sm:$0xff]
        %v2985 = vld [vmem:[%s1005 + $0xb1] sm:$0xff]
        %v2986 = vld [vmem:[%s1005 + $0xc1] sm:$0xff]
        %v2987 = vld [vmem:[%s1005 + $0xc9] sm:$0xff]
        %v2988 = vld [vmem:[%s1005 + $0xd9] sm:$0xff]
        %v2989 = vld [vmem:[%s1005 + $0xe1] sm:$0xff]
        %v2990 = vld [vmem:[%s1005 + $0xf1] sm:$0xff]
        %v2991 = vld [vmem:[%s1005 + $0xf9] sm:$0xff]
        %v2992 = vld [vmem:[%s1005 + $0x109] sm:$0xff]
        %v2993 = vld [vmem:[%s1005 + $0x111] sm:$0xff]
        %v2994 = vld [vmem:[%s1005 + $0x121] sm:$0xff]
        %v2995 = vld [vmem:[%s1005 + $0x129] sm:$0xff]
        %v2996 = vld [vmem:[%s1005 + $0x139] sm:$0xff]
        %v2997 = vld [vmem:[%s1005 + $0x141] sm:$0xff]
        %v2998 = vld [vmem:[%s1005 + $0x151] sm:$0xff]
        %v2999 = vld [vmem:[%s1005 + $0x159] sm:$0xff]
        %v3000 = vld [vmem:[%s1005 + $0x169] sm:$0xff]
        %v3001 = vld [vmem:[%s1005 + $0x171] sm:$0xff]
        %v3002 = vld [vmem:[%s1005 + $0x2] sm:$0xff]
        %v3003 = vld [vmem:[%s1005 + $0xa] sm:$0xff]
        %v3004 = vld [vmem:[%s1005 + $0x1a] sm:$0xff]
        %v3005 = vld [vmem:[%s1005 + $0x22] sm:$0xff]
        %v3006 = vld [vmem:[%s1005 + $0x32] sm:$0xff]
        %v3007 = vld [vmem:[%s1005 + $0x3a] sm:$0xff]
        %v3008 = vld [vmem:[%s1005 + $0x4a] sm:$0xff]
        %v3009 = vld [vmem:[%s1005 + $0x52] sm:$0xff]
        %v3010 = vld [vmem:[%s1005 + $0x62] sm:$0xff]
        %v3011 = vld [vmem:[%s1005 + $0x6a] sm:$0xff]
        %v3012 = vld [vmem:[%s1005 + $0x7a] sm:$0xff]
        %v3013 = vld [vmem:[%s1005 + $0x82] sm:$0xff]
        %v3014 = vld [vmem:[%s1005 + $0x92] sm:$0xff]
        %v3015 = vld [vmem:[%s1005 + $0x9a] sm:$0xff]
        %v3016 = vld [vmem:[%s1005 + $0xaa] sm:$0xff]
        %v3017 = vld [vmem:[%s1005 + $0xb2] sm:$0xff]
        %v3018 = vld [vmem:[%s1005 + $0xc2] sm:$0xff]
        %v3019 = vld [vmem:[%s1005 + $0xca] sm:$0xff]
        %v3020 = vld [vmem:[%s1005 + $0xda] sm:$0xff]
        %v3021 = vld [vmem:[%s1005 + $0xe2] sm:$0xff]
        %v3022 = vld [vmem:[%s1005 + $0xf2] sm:$0xff]
        %v3023 = vld [vmem:[%s1005 + $0xfa] sm:$0xff]
        %v3024 = vld [vmem:[%s1005 + $0x10a] sm:$0xff]
        %v3025 = vld [vmem:[%s1005 + $0x112] sm:$0xff]
        %v3026 = vld [vmem:[%s1005 + $0x122] sm:$0xff]
        %v3027 = vld [vmem:[%s1005 + $0x12a] sm:$0xff]
        %v3028 = vld [vmem:[%s1005 + $0x13a] sm:$0xff]
        %v3029 = vld [vmem:[%s1005 + $0x142] sm:$0xff]
        %v3030 = vld [vmem:[%s1005 + $0x152] sm:$0xff]
        %v3031 = vld [vmem:[%s1005 + $0x15a] sm:$0xff]
        %v3032 = vld [vmem:[%s1005 + $0x16a] sm:$0xff]
        %v3033 = vld [vmem:[%s1005 + $0x172] sm:$0xff]
        %v3034 = vpack.c.bf16 %v2747, %v2746
        %v3035 = vpack.c.bf16 %v2779, %v2778
        %v3036 = vpack.c.bf16 %v2811, %v2810
        %v3037 = vpack.c.bf16 %v2843, %v2842
        %v3038 = vpack.c.bf16 %v2875, %v2874
        %v3039 = vpack.c.bf16 %v2907, %v2906
        %v3040 = vpack.c.bf16 %v2939, %v2938
        %v3041 = vpack.c.bf16 %v2971, %v2970
        %v3042 = vpack.c.bf16 %v3003, %v3002
        %v3043 = vpack.c.bf16 %v2749, %v2748
        %v3044 = vpack.c.bf16 %v2781, %v2780
        %v3045 = vpack.c.bf16 %v2813, %v2812
        %v3046 = vpack.c.bf16 %v2845, %v2844
        %v3047 = vpack.c.bf16 %v2877, %v2876
        %v3048 = vpack.c.bf16 %v2909, %v2908
        %v3049 = vpack.c.bf16 %v2941, %v2940
        %v3050 = vpack.c.bf16 %v2973, %v2972
        %v3051 = vpack.c.bf16 %v3005, %v3004
        %v3052 = vpack.c.bf16 %v2751, %v2750
        %v3053 = vpack.c.bf16 %v2783, %v2782
        %v3054 = vpack.c.bf16 %v2815, %v2814
        %v3055 = vpack.c.bf16 %v2847, %v2846
        %v3056 = vpack.c.bf16 %v2879, %v2878
        %v3057 = vpack.c.bf16 %v2911, %v2910
        %v3058 = vpack.c.bf16 %v2943, %v2942
        %v3059 = vpack.c.bf16 %v2975, %v2974
        %v3060 = vpack.c.bf16 %v3007, %v3006
        %v3061 = vpack.c.bf16 %v2753, %v2752
        %v3062 = vpack.c.bf16 %v2785, %v2784
        %v3063 = vpack.c.bf16 %v2817, %v2816
        %v3064 = vpack.c.bf16 %v2849, %v2848
        %v3065 = vpack.c.bf16 %v2881, %v2880
        %v3066 = vpack.c.bf16 %v2913, %v2912
        %v3067 = vpack.c.bf16 %v2945, %v2944
        %v3068 = vpack.c.bf16 %v2977, %v2976
        %v3069 = vpack.c.bf16 %v3009, %v3008
        %v3070 = vpack.c.bf16 %v2755, %v2754
        %v3071 = vpack.c.bf16 %v2787, %v2786
        %v3072 = vpack.c.bf16 %v2819, %v2818
        %v3073 = vpack.c.bf16 %v2851, %v2850
        %v3074 = vpack.c.bf16 %v2883, %v2882
        %v3075 = vpack.c.bf16 %v2915, %v2914
        %v3076 = vpack.c.bf16 %v2947, %v2946
        %v3077 = vpack.c.bf16 %v2979, %v2978
        %v3078 = vpack.c.bf16 %v3011, %v3010
        %v3079 = vpack.c.bf16 %v2757, %v2756
        %v3080 = vpack.c.bf16 %v2789, %v2788
        %v3081 = vpack.c.bf16 %v2821, %v2820
        %v3082 = vpack.c.bf16 %v2853, %v2852
        %v3083 = vpack.c.bf16 %v2885, %v2884
        %v3084 = vpack.c.bf16 %v2917, %v2916
        %v3085 = vpack.c.bf16 %v2949, %v2948
        %v3086 = vpack.c.bf16 %v2981, %v2980
        %v3087 = vpack.c.bf16 %v3013, %v3012
        %v3088 = vpack.c.bf16 %v2759, %v2758
        %v3089 = vpack.c.bf16 %v2791, %v2790
        %v3090 = vpack.c.bf16 %v2823, %v2822
        %v3091 = vpack.c.bf16 %v2855, %v2854
        %v3092 = vpack.c.bf16 %v2887, %v2886
        %v3093 = vpack.c.bf16 %v2919, %v2918
        %v3094 = vpack.c.bf16 %v2951, %v2950
        %v3095 = vpack.c.bf16 %v2983, %v2982
        %v3096 = vpack.c.bf16 %v3015, %v3014
        %v3097 = vpack.c.bf16 %v2761, %v2760
        %v3098 = vpack.c.bf16 %v2793, %v2792
        %v3099 = vpack.c.bf16 %v2825, %v2824
        %v3100 = vpack.c.bf16 %v2857, %v2856
        %v3101 = vpack.c.bf16 %v2889, %v2888
        %v3102 = vpack.c.bf16 %v2921, %v2920
        %v3103 = vpack.c.bf16 %v2953, %v2952
        %v3104 = vpack.c.bf16 %v2985, %v2984
        %v3105 = vpack.c.bf16 %v3017, %v3016
        %v3106 = vpack.c.bf16 %v2763, %v2762
        %v3107 = vpack.c.bf16 %v2795, %v2794
        %v3108 = vpack.c.bf16 %v2827, %v2826
        %v3109 = vpack.c.bf16 %v2859, %v2858
        %v3110 = vpack.c.bf16 %v2891, %v2890
        %v3111 = vpack.c.bf16 %v2923, %v2922
        %v3112 = vpack.c.bf16 %v2955, %v2954
        %v3113 = vpack.c.bf16 %v2987, %v2986
        %v3114 = vpack.c.bf16 %v3019, %v3018
        %v3115 = vpack.c.bf16 %v2765, %v2764
        %v3116 = vpack.c.bf16 %v2797, %v2796
        %v3117 = vpack.c.bf16 %v2829, %v2828
        %v3118 = vpack.c.bf16 %v2861, %v2860
        %v3119 = vpack.c.bf16 %v2893, %v2892
        %v3120 = vpack.c.bf16 %v2925, %v2924
        %v3121 = vpack.c.bf16 %v2957, %v2956
        %v3122 = vpack.c.bf16 %v2989, %v2988
        %v3123 = vpack.c.bf16 %v3021, %v3020
        %v3124 = vpack.c.bf16 %v2767, %v2766
        %v3125 = vpack.c.bf16 %v2799, %v2798
        %v3126 = vpack.c.bf16 %v2831, %v2830
        %v3127 = vpack.c.bf16 %v2863, %v2862
        %v3128 = vpack.c.bf16 %v2895, %v2894
        %v3129 = vpack.c.bf16 %v2927, %v2926
        %v3130 = vpack.c.bf16 %v2959, %v2958
        %v3131 = vpack.c.bf16 %v2991, %v2990
        %v3132 = vpack.c.bf16 %v3023, %v3022
        %v3133 = vpack.c.bf16 %v2769, %v2768
        %v3134 = vpack.c.bf16 %v2801, %v2800
        %v3135 = vpack.c.bf16 %v2833, %v2832
        %v3136 = vpack.c.bf16 %v2865, %v2864
        %v3137 = vpack.c.bf16 %v2897, %v2896
        %v3138 = vpack.c.bf16 %v2929, %v2928
        %v3139 = vpack.c.bf16 %v2961, %v2960
        %v3140 = vpack.c.bf16 %v2993, %v2992
        %v3141 = vpack.c.bf16 %v3025, %v3024
        %v3142 = vpack.c.bf16 %v2771, %v2770
        %v3143 = vpack.c.bf16 %v2803, %v2802
        %v3144 = vpack.c.bf16 %v2835, %v2834
        %v3145 = vpack.c.bf16 %v2867, %v2866
        %v3146 = vpack.c.bf16 %v2899, %v2898
        %v3147 = vpack.c.bf16 %v2931, %v2930
        %v3148 = vpack.c.bf16 %v2963, %v2962
        %v3149 = vpack.c.bf16 %v2995, %v2994
        %v3150 = vpack.c.bf16 %v3027, %v3026
        %v3151 = vpack.c.bf16 %v2773, %v2772
        %v3152 = vpack.c.bf16 %v2805, %v2804
        %v3153 = vpack.c.bf16 %v2837, %v2836
        %v3154 = vpack.c.bf16 %v2869, %v2868
        %v3155 = vpack.c.bf16 %v2901, %v2900
        %v3156 = vpack.c.bf16 %v2933, %v2932
        %v3157 = vpack.c.bf16 %v2965, %v2964
        %v3158 = vpack.c.bf16 %v2997, %v2996
        %v3159 = vpack.c.bf16 %v3029, %v3028
        %v3160 = vpack.c.bf16 %v2775, %v2774
        %v3161 = vpack.c.bf16 %v2807, %v2806
        %v3162 = vpack.c.bf16 %v2839, %v2838
        %v3163 = vpack.c.bf16 %v2871, %v2870
        %v3164 = vpack.c.bf16 %v2903, %v2902
        %v3165 = vpack.c.bf16 %v2935, %v2934
        %v3166 = vpack.c.bf16 %v2967, %v2966
        %v3167 = vpack.c.bf16 %v2999, %v2998
        %v3168 = vpack.c.bf16 %v3031, %v3030
        %v3169 = vpack.c.bf16 %v2777, %v2776
        %v3170 = vpack.c.bf16 %v2809, %v2808
        %v3171 = vpack.c.bf16 %v2841, %v2840
        %v3172 = vpack.c.bf16 %v2873, %v2872
        %v3173 = vpack.c.bf16 %v2905, %v2904
        %v3174 = vpack.c.bf16 %v2937, %v2936
        %v3175 = vpack.c.bf16 %v2969, %v2968
        %v3176 = vpack.c.bf16 %v3001, %v3000
        %v3177 = vpack.c.bf16 %v3033, %v3032
        %v3178 = vld [vmem:[%s3] sm:$0xf]
        %v3179 = vld [vmem:[%s3 + $0x4] sm:$0xf]
        %v3180 = vld [vmem:[%s3 + $0x8] sm:$0xf]
        %v3181 = vld [vmem:[%s3 + $0xc] sm:$0xf]
        %v3182 = vld [vmem:[%s3 + $0x10] sm:$0xf]
        %v3183 = vld [vmem:[%s3 + $0x14] sm:$0xf]
        %v3184 = vld [vmem:[%s3 + $0x18] sm:$0xf]
        %v3185 = vld [vmem:[%s3 + $0x1c] sm:$0xf]
        %v3186 = vld [vmem:[%s3 + $0x20] sm:$0xf]
        %v3187 = vld [vmem:[%s3 + $0x24] sm:$0xf]
        %v3188 = vld [vmem:[%s3 + $0x28] sm:$0xf]
        %v3189 = vld [vmem:[%s3 + $0x2c] sm:$0xf]
        %v3190 = vld [vmem:[%s3 + $0x30] sm:$0xf]
        %v3191 = vld [vmem:[%s3 + $0x34] sm:$0xf]
        %v3192 = vld [vmem:[%s3 + $0x38] sm:$0xf]
        %v3193 = vld [vmem:[%s3 + $0x3c] sm:$0xf]
        %v3194 = vld [vmem:[%s3 + $0x40] sm:$0xf]
        %v3195 = vld [vmem:[%s3 + $0x44] sm:$0xf]
        %v3196 = vld [vmem:[%s3 + $0x48] sm:$0xf]
        %v3197 = vld [vmem:[%s3 + $0x4c] sm:$0xf]
        %v3198 = vld [vmem:[%s3 + $0x50] sm:$0xf]
        %v3199 = vld [vmem:[%s3 + $0x54] sm:$0xf]
        %v3200 = vld [vmem:[%s3 + $0x58] sm:$0xf]
        %v3201 = vld [vmem:[%s3 + $0x5c] sm:$0xf]
        %v3202 = vld [vmem:[%s3 + $0x60] sm:$0xf]
        %v3203 = vld [vmem:[%s3 + $0x64] sm:$0xf]
        %v3204 = vld [vmem:[%s3 + $0x68] sm:$0xf]
        %v3205 = vld [vmem:[%s3 + $0x6c] sm:$0xf]
        %v3206 = vld [vmem:[%s3 + $0x70] sm:$0xf]
        %v3207 = vld [vmem:[%s3 + $0x74] sm:$0xf]
        %v3208 = vld [vmem:[%s3 + $0x78] sm:$0xf]
        %v3209 = vld [vmem:[%s3 + $0x7c] sm:$0xf]
        %v3210 = vld [vmem:[%s3 + $0x80] sm:$0xf]
        %v3211 = vld [vmem:[%s3 + $0x84] sm:$0xf]
        %v3212 = vld [vmem:[%s3 + $0x88] sm:$0xf]
        %v3213 = vld [vmem:[%s3 + $0x8c] sm:$0xf]
        %v3214 = vld [vmem:[%s3 + $0x90] sm:$0xf]
        %v3215 = vld [vmem:[%s3 + $0x94] sm:$0xf]
        %v3216 = vld [vmem:[%s3 + $0x98] sm:$0xf]
        %v3217 = vld [vmem:[%s3 + $0x9c] sm:$0xf]
        %v3218 = vld [vmem:[%s3 + $0xa0] sm:$0xf]
        %v3219 = vld [vmem:[%s3 + $0xa4] sm:$0xf]
        %v3220 = vld [vmem:[%s3 + $0xa8] sm:$0xf]
        %v3221 = vld [vmem:[%s3 + $0xac] sm:$0xf]
        %v3222 = vld [vmem:[%s3 + $0xb0] sm:$0xf]
        %v3223 = vld [vmem:[%s3 + $0xb4] sm:$0xf]
        %v3224 = vld [vmem:[%s3 + $0xb8] sm:$0xf]
        %v3225 = vld [vmem:[%s3 + $0xbc] sm:$0xf]
        %v3226 = vld [vmem:[%s3 + $0xc0] sm:$0xf]
        %v3227 = vld [vmem:[%s3 + $0xc4] sm:$0xf]
        %v3228 = vld [vmem:[%s3 + $0xc8] sm:$0xf]
        %v3229 = vld [vmem:[%s3 + $0xcc] sm:$0xf]
        %v3230 = vld [vmem:[%s3 + $0xd0] sm:$0xf]
        %v3231 = vld [vmem:[%s3 + $0xd4] sm:$0xf]
        %v3232 = vld [vmem:[%s3 + $0xd8] sm:$0xf]
        %v3233 = vld [vmem:[%s3 + $0xdc] sm:$0xf]
        %v3234 = vld [vmem:[%s3 + $0xe0] sm:$0xf]
        %v3235 = vld [vmem:[%s3 + $0xe4] sm:$0xf]
        %v3236 = vld [vmem:[%s3 + $0xe8] sm:$0xf]
        %v3237 = vld [vmem:[%s3 + $0xec] sm:$0xf]
        %v3238 = vld [vmem:[%s3 + $0xf0] sm:$0xf]
        %v3239 = vld [vmem:[%s3 + $0xf4] sm:$0xf]
        %v3240 = vld [vmem:[%s3 + $0xf8] sm:$0xf]
        %v3241 = vld [vmem:[%s3 + $0xfc] sm:$0xf]
        %v3242 = vld [vmem:[%s3 + $0x100] sm:$0xf]
        %v3243 = vld [vmem:[%s3 + $0x104] sm:$0xf]
        %v3244 = vld [vmem:[%s3 + $0x108] sm:$0xf]
        %v3245 = vld [vmem:[%s3 + $0x10c] sm:$0xf]
        %v3246 = vld [vmem:[%s3 + $0x110] sm:$0xf]
        %v3247 = vld [vmem:[%s3 + $0x114] sm:$0xf]
        %v3248 = vld [vmem:[%s3 + $0x118] sm:$0xf]
        %v3249 = vld [vmem:[%s3 + $0x11c] sm:$0xf]
        %v3250 = vld [vmem:[%s3 + $0x120] sm:$0xf]
        %v3251 = vld [vmem:[%s3 + $0x124] sm:$0xf]
        %v3252 = vld [vmem:[%s3 + $0x128] sm:$0xf]
        %v3253 = vld [vmem:[%s3 + $0x12c] sm:$0xf]
        %v3254 = vld [vmem:[%s3 + $0x130] sm:$0xf]
        %v3255 = vld [vmem:[%s3 + $0x134] sm:$0xf]
        %v3256 = vld [vmem:[%s3 + $0x138] sm:$0xf]
        %v3257 = vld [vmem:[%s3 + $0x13c] sm:$0xf]
        %v3258 = vld [vmem:[%s3 + $0x140] sm:$0xf]
        %v3259 = vld [vmem:[%s3 + $0x144] sm:$0xf]
        %v3260 = vld [vmem:[%s3 + $0x148] sm:$0xf]
        %v3261 = vld [vmem:[%s3 + $0x14c] sm:$0xf]
        %v3262 = vld [vmem:[%s3 + $0x150] sm:$0xf]
        %v3263 = vld [vmem:[%s3 + $0x154] sm:$0xf]
        %v3264 = vld [vmem:[%s3 + $0x158] sm:$0xf]
        %v3265 = vld [vmem:[%s3 + $0x15c] sm:$0xf]
        %v3266 = vld [vmem:[%s3 + $0x160] sm:$0xf]
        %v3267 = vld [vmem:[%s3 + $0x164] sm:$0xf]
        %v3268 = vld [vmem:[%s3 + $0x168] sm:$0xf]
        %v3269 = vld [vmem:[%s3 + $0x16c] sm:$0xf]
        %v3270 = vld [vmem:[%s3 + $0x170] sm:$0xf]
        %v3271 = vld [vmem:[%s3 + $0x174] sm:$0xf]
        %v3272 = vld [vmem:[%s3 + $0x178] sm:$0xf]
        %v3273 = vld [vmem:[%s3 + $0x17c] sm:$0xf]
        %v3274 = vld [vmem:[%s3 + $0x180] sm:$0xf]
        %v3275 = vld [vmem:[%s3 + $0x184] sm:$0xf]
        %v3276 = vld [vmem:[%s3 + $0x188] sm:$0xf]
        %v3277 = vld [vmem:[%s3 + $0x18c] sm:$0xf]
        %v3278 = vld [vmem:[%s3 + $0x190] sm:$0xf]
        %v3279 = vld [vmem:[%s3 + $0x194] sm:$0xf]
        %v3280 = vld [vmem:[%s3 + $0x198] sm:$0xf]
        %v3281 = vld [vmem:[%s3 + $0x19c] sm:$0xf]
        %v3282 = vld [vmem:[%s3 + $0x1a0] sm:$0xf]
        %v3283 = vld [vmem:[%s3 + $0x1a4] sm:$0xf]
        %v3284 = vld [vmem:[%s3 + $0x1a8] sm:$0xf]
        %v3285 = vld [vmem:[%s3 + $0x1ac] sm:$0xf]
        %v3286 = vld [vmem:[%s3 + $0x1b0] sm:$0xf]
        %v3287 = vld [vmem:[%s3 + $0x1b4] sm:$0xf]
        %v3288 = vld [vmem:[%s3 + $0x1b8] sm:$0xf]
        %v3289 = vld [vmem:[%s3 + $0x1bc] sm:$0xf]
        %v3290 = vld [vmem:[%s3 + $0x1c0] sm:$0xf]
        %v3291 = vld [vmem:[%s3 + $0x1c4] sm:$0xf]
        %v3292 = vld [vmem:[%s3 + $0x1c8] sm:$0xf]
        %v3293 = vld [vmem:[%s3 + $0x1cc] sm:$0xf]
        %v3294 = vld [vmem:[%s3 + $0x1d0] sm:$0xf]
        %v3295 = vld [vmem:[%s3 + $0x1d4] sm:$0xf]
        %v3296 = vld [vmem:[%s3 + $0x1d8] sm:$0xf]
        %v3297 = vld [vmem:[%s3 + $0x1dc] sm:$0xf]
        %v3298 = vld [vmem:[%s3 + $0x1e0] sm:$0xf]
        %v3299 = vld [vmem:[%s3 + $0x1e4] sm:$0xf]
        %v3300 = vld [vmem:[%s3 + $0x1e8] sm:$0xf]
        %v3301 = vld [vmem:[%s3 + $0x1ec] sm:$0xf]
        %v3302 = vld [vmem:[%s3 + $0x1f0] sm:$0xf]
        %v3303 = vld [vmem:[%s3 + $0x1f4] sm:$0xf]
        %v3304 = vld [vmem:[%s3 + $0x1f8] sm:$0xf]
        %v3305 = vld [vmem:[%s3 + $0x1fc] sm:$0xf]
        %v3306 = vld [vmem:[%s3 + $0x200] sm:$0xf]
        %v3307 = vld [vmem:[%s3 + $0x204] sm:$0xf]
        %v3308 = vld [vmem:[%s3 + $0x208] sm:$0xf]
        %v3309 = vld [vmem:[%s3 + $0x20c] sm:$0xf]
        %v3310 = vld [vmem:[%s3 + $0x210] sm:$0xf]
        %v3311 = vld [vmem:[%s3 + $0x214] sm:$0xf]
        %v3312 = vld [vmem:[%s3 + $0x218] sm:$0xf]
        %v3313 = vld [vmem:[%s3 + $0x21c] sm:$0xf]
        %v3314 = vld [vmem:[%s3 + $0x220] sm:$0xf]
        %v3315 = vld [vmem:[%s3 + $0x224] sm:$0xf]
        %v3316 = vld [vmem:[%s3 + $0x228] sm:$0xf]
        %v3317 = vld [vmem:[%s3 + $0x22c] sm:$0xf]
        %v3318 = vld [vmem:[%s3 + $0x230] sm:$0xf]
        %v3319 = vld [vmem:[%s3 + $0x234] sm:$0xf]
        %v3320 = vld [vmem:[%s3 + $0x238] sm:$0xf]
        %v3321 = vld [vmem:[%s3 + $0x23c] sm:$0xf]
        %v3322 = vld [vmem:[%s4] sm:$0x1]
        %v3324 = vperm.slane %v3322, 0
        %v3470 = vunpack.c.l.b16 %v3178
        %v3471 = vunpack.c.l.b16 %v3179
        %v3472 = vunpack.c.l.b16 %v3180
        %v3473 = vunpack.c.l.b16 %v3181
        %v3474 = vunpack.c.l.b16 %v3182
        %v3475 = vunpack.c.l.b16 %v3183
        %v3476 = vunpack.c.l.b16 %v3184
        %v3477 = vunpack.c.l.b16 %v3185
        %v3478 = vunpack.c.l.b16 %v3186
        %v3479 = vunpack.c.l.b16 %v3187
        %v3480 = vunpack.c.l.b16 %v3188
        %v3481 = vunpack.c.l.b16 %v3189
        %v3482 = vunpack.c.l.b16 %v3190
        %v3483 = vunpack.c.l.b16 %v3191
        %v3484 = vunpack.c.l.b16 %v3192
        %v3485 = vunpack.c.l.b16 %v3193
        %v3486 = vunpack.c.l.b16 %v3194
        %v3487 = vunpack.c.l.b16 %v3195
        %v3488 = vunpack.c.l.b16 %v3196
        %v3489 = vunpack.c.l.b16 %v3197
        %v3490 = vunpack.c.l.b16 %v3198
        %v3491 = vunpack.c.l.b16 %v3199
        %v3492 = vunpack.c.l.b16 %v3200
        %v3493 = vunpack.c.l.b16 %v3201
        %v3494 = vunpack.c.l.b16 %v3202
        %v3495 = vunpack.c.l.b16 %v3203
        %v3496 = vunpack.c.l.b16 %v3204
        %v3497 = vunpack.c.l.b16 %v3205
        %v3498 = vunpack.c.l.b16 %v3206
        %v3499 = vunpack.c.l.b16 %v3207
        %v3500 = vunpack.c.l.b16 %v3208
        %v3501 = vunpack.c.l.b16 %v3209
        %v3502 = vunpack.c.l.b16 %v3210
        %v3503 = vunpack.c.l.b16 %v3211
        %v3504 = vunpack.c.l.b16 %v3212
        %v3505 = vunpack.c.l.b16 %v3213
        %v3506 = vunpack.c.l.b16 %v3214
        %v3507 = vunpack.c.l.b16 %v3215
        %v3508 = vunpack.c.l.b16 %v3216
        %v3509 = vunpack.c.l.b16 %v3217
        %v3510 = vunpack.c.l.b16 %v3218
        %v3511 = vunpack.c.l.b16 %v3219
        %v3512 = vunpack.c.l.b16 %v3220
        %v3513 = vunpack.c.l.b16 %v3221
        %v3514 = vunpack.c.l.b16 %v3222
        %v3515 = vunpack.c.l.b16 %v3223
        %v3516 = vunpack.c.l.b16 %v3224
        %v3517 = vunpack.c.l.b16 %v3225
        %v3518 = vunpack.c.l.b16 %v3226
        %v3519 = vunpack.c.l.b16 %v3227
        %v3520 = vunpack.c.l.b16 %v3228
        %v3521 = vunpack.c.l.b16 %v3229
        %v3522 = vunpack.c.l.b16 %v3230
        %v3523 = vunpack.c.l.b16 %v3231
        %v3524 = vunpack.c.l.b16 %v3232
        %v3525 = vunpack.c.l.b16 %v3233
        %v3526 = vunpack.c.l.b16 %v3234
        %v3527 = vunpack.c.l.b16 %v3235
        %v3528 = vunpack.c.l.b16 %v3236
        %v3529 = vunpack.c.l.b16 %v3237
        %v3530 = vunpack.c.l.b16 %v3238
        %v3531 = vunpack.c.l.b16 %v3239
        %v3532 = vunpack.c.l.b16 %v3240
        %v3533 = vunpack.c.l.b16 %v3241
        %v3534 = vunpack.c.l.b16 %v3242
        %v3535 = vunpack.c.l.b16 %v3243
        %v3536 = vunpack.c.l.b16 %v3244
        %v3537 = vunpack.c.l.b16 %v3245
        %v3538 = vunpack.c.l.b16 %v3246
        %v3539 = vunpack.c.l.b16 %v3247
        %v3540 = vunpack.c.l.b16 %v3248
        %v3541 = vunpack.c.l.b16 %v3249
        %v3542 = vunpack.c.l.b16 %v3250
        %v3543 = vunpack.c.l.b16 %v3251
        %v3544 = vunpack.c.l.b16 %v3252
        %v3545 = vunpack.c.l.b16 %v3253
        %v3546 = vunpack.c.l.b16 %v3254
        %v3547 = vunpack.c.l.b16 %v3255
        %v3548 = vunpack.c.l.b16 %v3256
        %v3549 = vunpack.c.l.b16 %v3257
        %v3550 = vunpack.c.l.b16 %v3258
        %v3551 = vunpack.c.l.b16 %v3259
        %v3552 = vunpack.c.l.b16 %v3260
        %v3553 = vunpack.c.l.b16 %v3261
        %v3554 = vunpack.c.l.b16 %v3262
        %v3555 = vunpack.c.l.b16 %v3263
        %v3556 = vunpack.c.l.b16 %v3264
        %v3557 = vunpack.c.l.b16 %v3265
        %v3558 = vunpack.c.l.b16 %v3266
        %v3559 = vunpack.c.l.b16 %v3267
        %v3560 = vunpack.c.l.b16 %v3268
        %v3561 = vunpack.c.l.b16 %v3269
        %v3562 = vunpack.c.l.b16 %v3270
        %v3563 = vunpack.c.l.b16 %v3271
        %v3564 = vunpack.c.l.b16 %v3272
        %v3565 = vunpack.c.l.b16 %v3273
        %v3566 = vunpack.c.l.b16 %v3274
        %v3567 = vunpack.c.l.b16 %v3275
        %v3568 = vunpack.c.l.b16 %v3276
        %v3569 = vunpack.c.l.b16 %v3277
        %v3570 = vunpack.c.l.b16 %v3278
        %v3571 = vunpack.c.l.b16 %v3279
        %v3572 = vunpack.c.l.b16 %v3280
        %v3573 = vunpack.c.l.b16 %v3281
        %v3574 = vunpack.c.l.b16 %v3282
        %v3575 = vunpack.c.l.b16 %v3283
        %v3576 = vunpack.c.l.b16 %v3284
        %v3577 = vunpack.c.l.b16 %v3285
        %v3578 = vunpack.c.l.b16 %v3286
        %v3579 = vunpack.c.l.b16 %v3287
        %v3580 = vunpack.c.l.b16 %v3288
        %v3581 = vunpack.c.l.b16 %v3289
        %v3582 = vunpack.c.l.b16 %v3290
        %v3583 = vunpack.c.l.b16 %v3291
        %v3584 = vunpack.c.l.b16 %v3292
        %v3585 = vunpack.c.l.b16 %v3293
        %v3586 = vunpack.c.l.b16 %v3294
        %v3587 = vunpack.c.l.b16 %v3295
        %v3588 = vunpack.c.l.b16 %v3296
        %v3589 = vunpack.c.l.b16 %v3297
        %v3590 = vunpack.c.l.b16 %v3298
        %v3591 = vunpack.c.l.b16 %v3299
        %v3592 = vunpack.c.l.b16 %v3300
        %v3593 = vunpack.c.l.b16 %v3301
        %v3594 = vunpack.c.l.b16 %v3302
        %v3595 = vunpack.c.l.b16 %v3303
        %v3596 = vunpack.c.l.b16 %v3304
        %v3597 = vunpack.c.l.b16 %v3305
        %v3598 = vunpack.c.l.b16 %v3306
        %v3599 = vunpack.c.l.b16 %v3307
        %v3600 = vunpack.c.l.b16 %v3308
        %v3601 = vunpack.c.l.b16 %v3309
        %v3602 = vunpack.c.l.b16 %v3310
        %v3603 = vunpack.c.l.b16 %v3311
        %v3604 = vunpack.c.l.b16 %v3312
        %v3605 = vunpack.c.l.b16 %v3313
        %v3606 = vunpack.c.l.b16 %v3314
        %v3607 = vunpack.c.l.b16 %v3315
        %v3608 = vunpack.c.l.b16 %v3316
        %v3609 = vunpack.c.l.b16 %v3317
        %v3610 = vunpack.c.l.b16 %v3318
        %v3611 = vunpack.c.l.b16 %v3319
        %v3612 = vunpack.c.l.b16 %v3320
        %v3613 = vunpack.c.l.b16 %v3321
        %v3614 = vpack.c.b16 %v3471, %v3470
        %v3615 = vpack.c.b16 %v3473, %v3472
        %v3616 = vpack.c.b16 %v3475, %v3474
        %v3617 = vpack.c.b16 %v3477, %v3476
        %v3618 = vpack.c.b16 %v3479, %v3478
        %v3619 = vpack.c.b16 %v3481, %v3480
        %v3620 = vpack.c.b16 %v3483, %v3482
        %v3621 = vpack.c.b16 %v3485, %v3484
        %v3622 = vpack.c.b16 %v3487, %v3486
        %v3623 = vpack.c.b16 %v3489, %v3488
        %v3624 = vpack.c.b16 %v3491, %v3490
        %v3625 = vpack.c.b16 %v3493, %v3492
        %v3626 = vpack.c.b16 %v3495, %v3494
        %v3627 = vpack.c.b16 %v3497, %v3496
        %v3628 = vpack.c.b16 %v3499, %v3498
        %v3629 = vpack.c.b16 %v3501, %v3500
        %v3630 = vpack.c.b16 %v3503, %v3502
        %v3631 = vpack.c.b16 %v3505, %v3504
        %v3632 = vpack.c.b16 %v3507, %v3506
        %v3633 = vpack.c.b16 %v3509, %v3508
        %v3634 = vpack.c.b16 %v3511, %v3510
        %v3635 = vpack.c.b16 %v3513, %v3512
        %v3636 = vpack.c.b16 %v3515, %v3514
        %v3637 = vpack.c.b16 %v3517, %v3516
        %v3638 = vpack.c.b16 %v3519, %v3518
        %v3639 = vpack.c.b16 %v3521, %v3520
        %v3640 = vpack.c.b16 %v3523, %v3522
        %v3641 = vpack.c.b16 %v3525, %v3524
        %v3642 = vpack.c.b16 %v3527, %v3526
        %v3643 = vpack.c.b16 %v3529, %v3528
        %v3644 = vpack.c.b16 %v3531, %v3530
        %v3645 = vpack.c.b16 %v3533, %v3532
        %v3646 = vpack.c.b16 %v3535, %v3534
        %v3647 = vpack.c.b16 %v3537, %v3536
        %v3648 = vpack.c.b16 %v3539, %v3538
        %v3649 = vpack.c.b16 %v3541, %v3540
        %v3650 = vpack.c.b16 %v3543, %v3542
        %v3651 = vpack.c.b16 %v3545, %v3544
        %v3652 = vpack.c.b16 %v3547, %v3546
        %v3653 = vpack.c.b16 %v3549, %v3548
        %v3654 = vpack.c.b16 %v3551, %v3550
        %v3655 = vpack.c.b16 %v3553, %v3552
        %v3656 = vpack.c.b16 %v3555, %v3554
        %v3657 = vpack.c.b16 %v3557, %v3556
        %v3658 = vpack.c.b16 %v3559, %v3558
        %v3659 = vpack.c.b16 %v3561, %v3560
        %v3660 = vpack.c.b16 %v3563, %v3562
        %v3661 = vpack.c.b16 %v3565, %v3564
        %v3662 = vpack.c.b16 %v3567, %v3566
        %v3663 = vpack.c.b16 %v3569, %v3568
        %v3664 = vpack.c.b16 %v3571, %v3570
        %v3665 = vpack.c.b16 %v3573, %v3572
        %v3666 = vpack.c.b16 %v3575, %v3574
        %v3667 = vpack.c.b16 %v3577, %v3576
        %v3668 = vpack.c.b16 %v3579, %v3578
        %v3669 = vpack.c.b16 %v3581, %v3580
        %v3670 = vpack.c.b16 %v3583, %v3582
        %v3671 = vpack.c.b16 %v3585, %v3584
        %v3672 = vpack.c.b16 %v3587, %v3586
        %v3673 = vpack.c.b16 %v3589, %v3588
        %v3674 = vpack.c.b16 %v3591, %v3590
        %v3675 = vpack.c.b16 %v3593, %v3592
        %v3676 = vpack.c.b16 %v3595, %v3594
        %v3677 = vpack.c.b16 %v3597, %v3596
        %v3678 = vpack.c.b16 %v3599, %v3598
        %v3679 = vpack.c.b16 %v3601, %v3600
        %v3680 = vpack.c.b16 %v3603, %v3602
        %v3681 = vpack.c.b16 %v3605, %v3604
        %v3682 = vpack.c.b16 %v3607, %v3606
        %v3683 = vpack.c.b16 %v3609, %v3608
        %v3684 = vpack.c.b16 %v3611, %v3610
        %v3685 = vpack.c.b16 %v3613, %v3612
        %3758 = vmatpush.bf16.msra.mxu0 %v3621
        %3759 = vmatpush.bf16.msra.mxu0 %v3620
        %3760 = vmatpush.bf16.msra.mxu0 %v3619
        %3761 = vmatpush.bf16.msra.mxu0 %v3618
        %3762 = vmatpush.bf16.msra.mxu0 %v3617
        %3763 = vmatpush.bf16.msra.mxu0 %v3616
        %3764 = vmatpush.bf16.msra.mxu0 %v3615
        %3765 = vmatpush.bf16.msra.mxu0 %v3614
        %3766 = vmatmul.bf16.gmra.mxu0 %v3034
        %v3767 = vpop.f32.mrf.mxu0
        %v3768 = vadd.f32 %v3324, %v3767
        %v3769 = vpop.f32.mrf.mxu0
        %v3770 = vadd.f32 %v3324, %v3769
        %3771 = vmatmul.bf16.gmra.mxu0 %v3043
        %v3772 = vpop.f32.mrf.mxu0
        %v3773 = vadd.f32 %v3324, %v3772
        %v3774 = vpop.f32.mrf.mxu0
        %v3775 = vadd.f32 %v3324, %v3774
        %3776 = vmatmul.bf16.gmra.mxu0 %v3052
        %v3777 = vpop.f32.mrf.mxu0
        %v3778 = vadd.f32 %v3324, %v3777
        %v3779 = vpop.f32.mrf.mxu0
        %v3780 = vadd.f32 %v3324, %v3779
        %3781 = vmatmul.bf16.gmra.mxu0 %v3061
        %v3782 = vpop.f32.mrf.mxu0
        %v3783 = vadd.f32 %v3324, %v3782
        %v3784 = vpop.f32.mrf.mxu0
        %v3785 = vadd.f32 %v3324, %v3784
        %3786 = vmatmul.bf16.gmra.mxu0 %v3070
        %v3787 = vpop.f32.mrf.mxu0
        %v3788 = vadd.f32 %v3324, %v3787
        %v3789 = vpop.f32.mrf.mxu0
        %v3790 = vadd.f32 %v3324, %v3789
        %3791 = vmatmul.bf16.gmra.mxu0 %v3079
        %v3792 = vpop.f32.mrf.mxu0
        %v3793 = vadd.f32 %v3324, %v3792
        %v3794 = vpop.f32.mrf.mxu0
        %v3795 = vadd.f32 %v3324, %v3794
        %3796 = vmatmul.bf16.gmra.mxu0 %v3088
        %v3797 = vpop.f32.mrf.mxu0
        %v3798 = vadd.f32 %v3324, %v3797
        %v3799 = vpop.f32.mrf.mxu0
        %v3800 = vadd.f32 %v3324, %v3799
        %3801 = vmatmul.bf16.gmra.mxu0 %v3097
        %v3802 = vpop.f32.mrf.mxu0
        %v3803 = vadd.f32 %v3324, %v3802
        %v3804 = vpop.f32.mrf.mxu0
        %v3805 = vadd.f32 %v3324, %v3804
        %3806 = vmatmul.bf16.gmra.mxu0 %v3106
        %v3807 = vpop.f32.mrf.mxu0
        %v3808 = vadd.f32 %v3324, %v3807
        %v3809 = vpop.f32.mrf.mxu0
        %v3810 = vadd.f32 %v3324, %v3809
        %3811 = vmatmul.bf16.gmra.mxu0 %v3115
        %v3812 = vpop.f32.mrf.mxu0
        %v3813 = vadd.f32 %v3324, %v3812
        %v3814 = vpop.f32.mrf.mxu0
        %v3815 = vadd.f32 %v3324, %v3814
        %3816 = vmatmul.bf16.gmra.mxu0 %v3124
        %v3817 = vpop.f32.mrf.mxu0
        %v3818 = vadd.f32 %v3324, %v3817
        %v3819 = vpop.f32.mrf.mxu0
        %v3820 = vadd.f32 %v3324, %v3819
        %3821 = vmatmul.bf16.gmra.mxu0 %v3133
        %v3822 = vpop.f32.mrf.mxu0
        %v3823 = vadd.f32 %v3324, %v3822
        %v3824 = vpop.f32.mrf.mxu0
        %v3825 = vadd.f32 %v3324, %v3824
        %3826 = vmatmul.bf16.gmra.mxu0 %v3142
        %v3827 = vpop.f32.mrf.mxu0
        %v3828 = vadd.f32 %v3324, %v3827
        %v3829 = vpop.f32.mrf.mxu0
        %v3830 = vadd.f32 %v3324, %v3829
        %3831 = vmatmul.bf16.gmra.mxu0 %v3151
        %v3832 = vpop.f32.mrf.mxu0
        %v3833 = vadd.f32 %v3324, %v3832
        %v3834 = vpop.f32.mrf.mxu0
        %v3835 = vadd.f32 %v3324, %v3834
        %3836 = vmatmul.bf16.gmra.mxu0 %v3160
        %v3837 = vpop.f32.mrf.mxu0
        %v3838 = vadd.f32 %v3324, %v3837
        %v3839 = vpop.f32.mrf.mxu0
        %v3840 = vadd.f32 %v3324, %v3839
        %3841 = vmatmul.bf16.gmra.mxu0 %v3169
        %v3842 = vpop.f32.mrf.mxu0
        %v3843 = vadd.f32 %v3324, %v3842
        %v3844 = vpop.f32.mrf.mxu0
        %v3845 = vadd.f32 %v3324, %v3844
        %3846 = vdwg.mxu0
        %3847 = vmatpush.bf16.msra.mxu0 %v3629
        %3848 = vmatpush.bf16.msra.mxu0 %v3628
        %3849 = vmatpush.bf16.msra.mxu0 %v3627
        %3850 = vmatpush.bf16.msra.mxu0 %v3626
        %3851 = vmatpush.bf16.msra.mxu0 %v3625
        %3852 = vmatpush.bf16.msra.mxu0 %v3624
        %3853 = vmatpush.bf16.msra.mxu0 %v3623
        %3854 = vmatpush.bf16.msra.mxu0 %v3622
        %3855 = vmatmul.bf16.gmra.mxu0 %v3035
        %v3856 = vpop.f32.mrf.mxu0
        %v3857 = vadd.f32 %v3768, %v3856
        %v3858 = vpop.f32.mrf.mxu0
        %v3859 = vadd.f32 %v3770, %v3858
        %3860 = vmatmul.bf16.gmra.mxu0 %v3044
        %v3861 = vpop.f32.mrf.mxu0
        %v3862 = vadd.f32 %v3773, %v3861
        %v3863 = vpop.f32.mrf.mxu0
        %v3864 = vadd.f32 %v3775, %v3863
        %3865 = vmatmul.bf16.gmra.mxu0 %v3053
        %v3866 = vpop.f32.mrf.mxu0
        %v3867 = vadd.f32 %v3778, %v3866
        %v3868 = vpop.f32.mrf.mxu0
        %v3869 = vadd.f32 %v3780, %v3868
        %3870 = vmatmul.bf16.gmra.mxu0 %v3062
        %v3871 = vpop.f32.mrf.mxu0
        %v3872 = vadd.f32 %v3783, %v3871
        %v3873 = vpop.f32.mrf.mxu0
        %v3874 = vadd.f32 %v3785, %v3873
        %3875 = vmatmul.bf16.gmra.mxu0 %v3071
        %v3876 = vpop.f32.mrf.mxu0
        %v3877 = vadd.f32 %v3788, %v3876
        %v3878 = vpop.f32.mrf.mxu0
        %v3879 = vadd.f32 %v3790, %v3878
        %3880 = vmatmul.bf16.gmra.mxu0 %v3080
        %v3881 = vpop.f32.mrf.mxu0
        %v3882 = vadd.f32 %v3793, %v3881
        %v3883 = vpop.f32.mrf.mxu0
        %v3884 = vadd.f32 %v3795, %v3883
        %3885 = vmatmul.bf16.gmra.mxu0 %v3089
        %v3886 = vpop.f32.mrf.mxu0
        %v3887 = vadd.f32 %v3798, %v3886
        %v3888 = vpop.f32.mrf.mxu0
        %v3889 = vadd.f32 %v3800, %v3888
        %3890 = vmatmul.bf16.gmra.mxu0 %v3098
        %v3891 = vpop.f32.mrf.mxu0
        %v3892 = vadd.f32 %v3803, %v3891
        %v3893 = vpop.f32.mrf.mxu0
        %v3894 = vadd.f32 %v3805, %v3893
        %3895 = vmatmul.bf16.gmra.mxu0 %v3107
        %v3896 = vpop.f32.mrf.mxu0
        %v3897 = vadd.f32 %v3808, %v3896
        %v3898 = vpop.f32.mrf.mxu0
        %v3899 = vadd.f32 %v3810, %v3898
        %3900 = vmatmul.bf16.gmra.mxu0 %v3116
        %v3901 = vpop.f32.mrf.mxu0
        %v3902 = vadd.f32 %v3813, %v3901
        %v3903 = vpop.f32.mrf.mxu0
        %v3904 = vadd.f32 %v3815, %v3903
        %3905 = vmatmul.bf16.gmra.mxu0 %v3125
        %v3906 = vpop.f32.mrf.mxu0
        %v3907 = vadd.f32 %v3818, %v3906
        %v3908 = vpop.f32.mrf.mxu0
        %v3909 = vadd.f32 %v3820, %v3908
        %3910 = vmatmul.bf16.gmra.mxu0 %v3134
        %v3911 = vpop.f32.mrf.mxu0
        %v3912 = vadd.f32 %v3823, %v3911
        %v3913 = vpop.f32.mrf.mxu0
        %v3914 = vadd.f32 %v3825, %v3913
        %3915 = vmatmul.bf16.gmra.mxu0 %v3143
        %v3916 = vpop.f32.mrf.mxu0
        %v3917 = vadd.f32 %v3828, %v3916
        %v3918 = vpop.f32.mrf.mxu0
        %v3919 = vadd.f32 %v3830, %v3918
        %3920 = vmatmul.bf16.gmra.mxu0 %v3152
        %v3921 = vpop.f32.mrf.mxu0
        %v3922 = vadd.f32 %v3833, %v3921
        %v3923 = vpop.f32.mrf.mxu0
        %v3924 = vadd.f32 %v3835, %v3923
        %3925 = vmatmul.bf16.gmra.mxu0 %v3161
        %v3926 = vpop.f32.mrf.mxu0
        %v3927 = vadd.f32 %v3838, %v3926
        %v3928 = vpop.f32.mrf.mxu0
        %v3929 = vadd.f32 %v3840, %v3928
        %3930 = vmatmul.bf16.gmra.mxu0 %v3170
        %v3931 = vpop.f32.mrf.mxu0
        %v3932 = vadd.f32 %v3843, %v3931
        %v3933 = vpop.f32.mrf.mxu0
        %v3934 = vadd.f32 %v3845, %v3933
        %3935 = vdwg.mxu0
        %3936 = vmatpush.bf16.msra.mxu0 %v3637
        %3937 = vmatpush.bf16.msra.mxu0 %v3636
        %3938 = vmatpush.bf16.msra.mxu0 %v3635
        %3939 = vmatpush.bf16.msra.mxu0 %v3634
        %3940 = vmatpush.bf16.msra.mxu0 %v3633
        %3941 = vmatpush.bf16.msra.mxu0 %v3632
        %3942 = vmatpush.bf16.msra.mxu0 %v3631
        %3943 = vmatpush.bf16.msra.mxu0 %v3630
        %3944 = vmatmul.bf16.gmra.mxu0 %v3036
        %v3945 = vpop.f32.mrf.mxu0
        %v3946 = vadd.f32 %v3857, %v3945
        %v3947 = vpop.f32.mrf.mxu0
        %v3948 = vadd.f32 %v3859, %v3947
        %3949 = vmatmul.bf16.gmra.mxu0 %v3045
        %v3950 = vpop.f32.mrf.mxu0
        %v3951 = vadd.f32 %v3862, %v3950
        %v3952 = vpop.f32.mrf.mxu0
        %v3953 = vadd.f32 %v3864, %v3952
        %3954 = vmatmul.bf16.gmra.mxu0 %v3054
        %v3955 = vpop.f32.mrf.mxu0
        %v3956 = vadd.f32 %v3867, %v3955
        %v3957 = vpop.f32.mrf.mxu0
        %v3958 = vadd.f32 %v3869, %v3957
        %3959 = vmatmul.bf16.gmra.mxu0 %v3063
        %v3960 = vpop.f32.mrf.mxu0
        %v3961 = vadd.f32 %v3872, %v3960
        %v3962 = vpop.f32.mrf.mxu0
        %v3963 = vadd.f32 %v3874, %v3962
        %3964 = vmatmul.bf16.gmra.mxu0 %v3072
        %v3965 = vpop.f32.mrf.mxu0
        %v3966 = vadd.f32 %v3877, %v3965
        %v3967 = vpop.f32.mrf.mxu0
        %v3968 = vadd.f32 %v3879, %v3967
        %3969 = vmatmul.bf16.gmra.mxu0 %v3081
        %v3970 = vpop.f32.mrf.mxu0
        %v3971 = vadd.f32 %v3882, %v3970
        %v3972 = vpop.f32.mrf.mxu0
        %v3973 = vadd.f32 %v3884, %v3972
        %3974 = vmatmul.bf16.gmra.mxu0 %v3090
        %v3975 = vpop.f32.mrf.mxu0
        %v3976 = vadd.f32 %v3887, %v3975
        %v3977 = vpop.f32.mrf.mxu0
        %v3978 = vadd.f32 %v3889, %v3977
        %3979 = vmatmul.bf16.gmra.mxu0 %v3099
        %v3980 = vpop.f32.mrf.mxu0
        %v3981 = vadd.f32 %v3892, %v3980
        %v3982 = vpop.f32.mrf.mxu0
        %v3983 = vadd.f32 %v3894, %v3982
        %3984 = vmatmul.bf16.gmra.mxu0 %v3108
        %v3985 = vpop.f32.mrf.mxu0
        %v3986 = vadd.f32 %v3897, %v3985
        %v3987 = vpop.f32.mrf.mxu0
        %v3988 = vadd.f32 %v3899, %v3987
        %3989 = vmatmul.bf16.gmra.mxu0 %v3117
        %v3990 = vpop.f32.mrf.mxu0
        %v3991 = vadd.f32 %v3902, %v3990
        %v3992 = vpop.f32.mrf.mxu0
        %v3993 = vadd.f32 %v3904, %v3992
        %3994 = vmatmul.bf16.gmra.mxu0 %v3126
        %v3995 = vpop.f32.mrf.mxu0
        %v3996 = vadd.f32 %v3907, %v3995
        %v3997 = vpop.f32.mrf.mxu0
        %v3998 = vadd.f32 %v3909, %v3997
        %3999 = vmatmul.bf16.gmra.mxu0 %v3135
        %v4000 = vpop.f32.mrf.mxu0
        %v4001 = vadd.f32 %v3912, %v4000
        %v4002 = vpop.f32.mrf.mxu0
        %v4003 = vadd.f32 %v3914, %v4002
        %4004 = vmatmul.bf16.gmra.mxu0 %v3144
        %v4005 = vpop.f32.mrf.mxu0
        %v4006 = vadd.f32 %v3917, %v4005
        %v4007 = vpop.f32.mrf.mxu0
        %v4008 = vadd.f32 %v3919, %v4007
        %4009 = vmatmul.bf16.gmra.mxu0 %v3153
        %v4010 = vpop.f32.mrf.mxu0
        %v4011 = vadd.f32 %v3922, %v4010
        %v4012 = vpop.f32.mrf.mxu0
        %v4013 = vadd.f32 %v3924, %v4012
        %4014 = vmatmul.bf16.gmra.mxu0 %v3162
        %v4015 = vpop.f32.mrf.mxu0
        %v4016 = vadd.f32 %v3927, %v4015
        %v4017 = vpop.f32.mrf.mxu0
        %v4018 = vadd.f32 %v3929, %v4017
        %4019 = vmatmul.bf16.gmra.mxu0 %v3171
        %v4020 = vpop.f32.mrf.mxu0
        %v4021 = vadd.f32 %v3932, %v4020
        %v4022 = vpop.f32.mrf.mxu0
        %v4023 = vadd.f32 %v3934, %v4022
        %4024 = vdwg.mxu0
        %4025 = vmatpush.bf16.msra.mxu0 %v3645
        %4026 = vmatpush.bf16.msra.mxu0 %v3644
        %4027 = vmatpush.bf16.msra.mxu0 %v3643
        %4028 = vmatpush.bf16.msra.mxu0 %v3642
        %4029 = vmatpush.bf16.msra.mxu0 %v3641
        %4030 = vmatpush.bf16.msra.mxu0 %v3640
        %4031 = vmatpush.bf16.msra.mxu0 %v3639
        %4032 = vmatpush.bf16.msra.mxu0 %v3638
        %4033 = vmatmul.bf16.gmra.mxu0 %v3037
        %v4034 = vpop.f32.mrf.mxu0
        %v4035 = vadd.f32 %v3946, %v4034
        %v4036 = vpop.f32.mrf.mxu0
        %v4037 = vadd.f32 %v3948, %v4036
        %4038 = vmatmul.bf16.gmra.mxu0 %v3046
        %v4039 = vpop.f32.mrf.mxu0
        %v4040 = vadd.f32 %v3951, %v4039
        %v4041 = vpop.f32.mrf.mxu0
        %v4042 = vadd.f32 %v3953, %v4041
        %4043 = vmatmul.bf16.gmra.mxu0 %v3055
        %v4044 = vpop.f32.mrf.mxu0
        %v4045 = vadd.f32 %v3956, %v4044
        %v4046 = vpop.f32.mrf.mxu0
        %v4047 = vadd.f32 %v3958, %v4046
        %4048 = vmatmul.bf16.gmra.mxu0 %v3064
        %v4049 = vpop.f32.mrf.mxu0
        %v4050 = vadd.f32 %v3961, %v4049
        %v4051 = vpop.f32.mrf.mxu0
        %v4052 = vadd.f32 %v3963, %v4051
        %4053 = vmatmul.bf16.gmra.mxu0 %v3073
        %v4054 = vpop.f32.mrf.mxu0
        %v4055 = vadd.f32 %v3966, %v4054
        %v4056 = vpop.f32.mrf.mxu0
        %v4057 = vadd.f32 %v3968, %v4056
        %4058 = vmatmul.bf16.gmra.mxu0 %v3082
        %v4059 = vpop.f32.mrf.mxu0
        %v4060 = vadd.f32 %v3971, %v4059
        %v4061 = vpop.f32.mrf.mxu0
        %v4062 = vadd.f32 %v3973, %v4061
        %4063 = vmatmul.bf16.gmra.mxu0 %v3091
        %v4064 = vpop.f32.mrf.mxu0
        %v4065 = vadd.f32 %v3976, %v4064
        %v4066 = vpop.f32.mrf.mxu0
        %v4067 = vadd.f32 %v3978, %v4066
        %4068 = vmatmul.bf16.gmra.mxu0 %v3100
        %v4069 = vpop.f32.mrf.mxu0
        %v4070 = vadd.f32 %v3981, %v4069
        %v4071 = vpop.f32.mrf.mxu0
        %v4072 = vadd.f32 %v3983, %v4071
        %4073 = vmatmul.bf16.gmra.mxu0 %v3109
        %v4074 = vpop.f32.mrf.mxu0
        %v4075 = vadd.f32 %v3986, %v4074
        %v4076 = vpop.f32.mrf.mxu0
        %v4077 = vadd.f32 %v3988, %v4076
        %4078 = vmatmul.bf16.gmra.mxu0 %v3118
        %v4079 = vpop.f32.mrf.mxu0
        %v4080 = vadd.f32 %v3991, %v4079
        %v4081 = vpop.f32.mrf.mxu0
        %v4082 = vadd.f32 %v3993, %v4081
        %4083 = vmatmul.bf16.gmra.mxu0 %v3127
        %v4084 = vpop.f32.mrf.mxu0
        %v4085 = vadd.f32 %v3996, %v4084
        %v4086 = vpop.f32.mrf.mxu0
        %v4087 = vadd.f32 %v3998, %v4086
        %4088 = vmatmul.bf16.gmra.mxu0 %v3136
        %v4089 = vpop.f32.mrf.mxu0
        %v4090 = vadd.f32 %v4001, %v4089
        %v4091 = vpop.f32.mrf.mxu0
        %v4092 = vadd.f32 %v4003, %v4091
        %4093 = vmatmul.bf16.gmra.mxu0 %v3145
        %v4094 = vpop.f32.mrf.mxu0
        %v4095 = vadd.f32 %v4006, %v4094
        %v4096 = vpop.f32.mrf.mxu0
        %v4097 = vadd.f32 %v4008, %v4096
        %4098 = vmatmul.bf16.gmra.mxu0 %v3154
        %v4099 = vpop.f32.mrf.mxu0
        %v4100 = vadd.f32 %v4011, %v4099
        %v4101 = vpop.f32.mrf.mxu0
        %v4102 = vadd.f32 %v4013, %v4101
        %4103 = vmatmul.bf16.gmra.mxu0 %v3163
        %v4104 = vpop.f32.mrf.mxu0
        %v4105 = vadd.f32 %v4016, %v4104
        %v4106 = vpop.f32.mrf.mxu0
        %v4107 = vadd.f32 %v4018, %v4106
        %4108 = vmatmul.bf16.gmra.mxu0 %v3172
        %v4109 = vpop.f32.mrf.mxu0
        %v4110 = vadd.f32 %v4021, %v4109
        %v4111 = vpop.f32.mrf.mxu0
        %v4112 = vadd.f32 %v4023, %v4111
        %4113 = vdwg.mxu0
        %4114 = vmatpush.bf16.msra.mxu0 %v3653
        %4115 = vmatpush.bf16.msra.mxu0 %v3652
        %4116 = vmatpush.bf16.msra.mxu0 %v3651
        %4117 = vmatpush.bf16.msra.mxu0 %v3650
        %4118 = vmatpush.bf16.msra.mxu0 %v3649
        %4119 = vmatpush.bf16.msra.mxu0 %v3648
        %4120 = vmatpush.bf16.msra.mxu0 %v3647
        %4121 = vmatpush.bf16.msra.mxu0 %v3646
        %4122 = vmatmul.bf16.gmra.mxu0 %v3038
        %v4123 = vpop.f32.mrf.mxu0
        %v4124 = vadd.f32 %v4035, %v4123
        %v4125 = vpop.f32.mrf.mxu0
        %v4126 = vadd.f32 %v4037, %v4125
        %4127 = vmatmul.bf16.gmra.mxu0 %v3047
        %v4128 = vpop.f32.mrf.mxu0
        %v4129 = vadd.f32 %v4040, %v4128
        %v4130 = vpop.f32.mrf.mxu0
        %v4131 = vadd.f32 %v4042, %v4130
        %4132 = vmatmul.bf16.gmra.mxu0 %v3056
        %v4133 = vpop.f32.mrf.mxu0
        %v4134 = vadd.f32 %v4045, %v4133
        %v4135 = vpop.f32.mrf.mxu0
        %v4136 = vadd.f32 %v4047, %v4135
        %4137 = vmatmul.bf16.gmra.mxu0 %v3065
        %v4138 = vpop.f32.mrf.mxu0
        %v4139 = vadd.f32 %v4050, %v4138
        %v4140 = vpop.f32.mrf.mxu0
        %v4141 = vadd.f32 %v4052, %v4140
        %4142 = vmatmul.bf16.gmra.mxu0 %v3074
        %v4143 = vpop.f32.mrf.mxu0
        %v4144 = vadd.f32 %v4055, %v4143
        %v4145 = vpop.f32.mrf.mxu0
        %v4146 = vadd.f32 %v4057, %v4145
        %4147 = vmatmul.bf16.gmra.mxu0 %v3083
        %v4148 = vpop.f32.mrf.mxu0
        %v4149 = vadd.f32 %v4060, %v4148
        %v4150 = vpop.f32.mrf.mxu0
        %v4151 = vadd.f32 %v4062, %v4150
        %4152 = vmatmul.bf16.gmra.mxu0 %v3092
        %v4153 = vpop.f32.mrf.mxu0
        %v4154 = vadd.f32 %v4065, %v4153
        %v4155 = vpop.f32.mrf.mxu0
        %v4156 = vadd.f32 %v4067, %v4155
        %4157 = vmatmul.bf16.gmra.mxu0 %v3101
        %v4158 = vpop.f32.mrf.mxu0
        %v4159 = vadd.f32 %v4070, %v4158
        %v4160 = vpop.f32.mrf.mxu0
        %v4161 = vadd.f32 %v4072, %v4160
        %4162 = vmatmul.bf16.gmra.mxu0 %v3110
        %v4163 = vpop.f32.mrf.mxu0
        %v4164 = vadd.f32 %v4075, %v4163
        %v4165 = vpop.f32.mrf.mxu0
        %v4166 = vadd.f32 %v4077, %v4165
        %4167 = vmatmul.bf16.gmra.mxu0 %v3119
        %v4168 = vpop.f32.mrf.mxu0
        %v4169 = vadd.f32 %v4080, %v4168
        %v4170 = vpop.f32.mrf.mxu0
        %v4171 = vadd.f32 %v4082, %v4170
        %4172 = vmatmul.bf16.gmra.mxu0 %v3128
        %v4173 = vpop.f32.mrf.mxu0
        %v4174 = vadd.f32 %v4085, %v4173
        %v4175 = vpop.f32.mrf.mxu0
        %v4176 = vadd.f32 %v4087, %v4175
        %4177 = vmatmul.bf16.gmra.mxu0 %v3137
        %v4178 = vpop.f32.mrf.mxu0
        %v4179 = vadd.f32 %v4090, %v4178
        %v4180 = vpop.f32.mrf.mxu0
        %v4181 = vadd.f32 %v4092, %v4180
        %4182 = vmatmul.bf16.gmra.mxu0 %v3146
        %v4183 = vpop.f32.mrf.mxu0
        %v4184 = vadd.f32 %v4095, %v4183
        %v4185 = vpop.f32.mrf.mxu0
        %v4186 = vadd.f32 %v4097, %v4185
        %4187 = vmatmul.bf16.gmra.mxu0 %v3155
        %v4188 = vpop.f32.mrf.mxu0
        %v4189 = vadd.f32 %v4100, %v4188
        %v4190 = vpop.f32.mrf.mxu0
        %v4191 = vadd.f32 %v4102, %v4190
        %4192 = vmatmul.bf16.gmra.mxu0 %v3164
        %v4193 = vpop.f32.mrf.mxu0
        %v4194 = vadd.f32 %v4105, %v4193
        %v4195 = vpop.f32.mrf.mxu0
        %v4196 = vadd.f32 %v4107, %v4195
        %4197 = vmatmul.bf16.gmra.mxu0 %v3173
        %v4198 = vpop.f32.mrf.mxu0
        %v4199 = vadd.f32 %v4110, %v4198
        %v4200 = vpop.f32.mrf.mxu0
        %v4201 = vadd.f32 %v4112, %v4200
        %4202 = vdwg.mxu0
        %4203 = vmatpush.bf16.msra.mxu0 %v3661
        %4204 = vmatpush.bf16.msra.mxu0 %v3660
        %4205 = vmatpush.bf16.msra.mxu0 %v3659
        %4206 = vmatpush.bf16.msra.mxu0 %v3658
        %4207 = vmatpush.bf16.msra.mxu0 %v3657
        %4208 = vmatpush.bf16.msra.mxu0 %v3656
        %4209 = vmatpush.bf16.msra.mxu0 %v3655
        %4210 = vmatpush.bf16.msra.mxu0 %v3654
        %4211 = vmatmul.bf16.gmra.mxu0 %v3039
        %v4212 = vpop.f32.mrf.mxu0
        %v4213 = vadd.f32 %v4124, %v4212
        %v4214 = vpop.f32.mrf.mxu0
        %v4215 = vadd.f32 %v4126, %v4214
        %4216 = vmatmul.bf16.gmra.mxu0 %v3048
        %v4217 = vpop.f32.mrf.mxu0
        %v4218 = vadd.f32 %v4129, %v4217
        %v4219 = vpop.f32.mrf.mxu0
        %v4220 = vadd.f32 %v4131, %v4219
        %4221 = vmatmul.bf16.gmra.mxu0 %v3057
        %v4222 = vpop.f32.mrf.mxu0
        %v4223 = vadd.f32 %v4134, %v4222
        %v4224 = vpop.f32.mrf.mxu0
        %v4225 = vadd.f32 %v4136, %v4224
        %4226 = vmatmul.bf16.gmra.mxu0 %v3066
        %v4227 = vpop.f32.mrf.mxu0
        %v4228 = vadd.f32 %v4139, %v4227
        %v4229 = vpop.f32.mrf.mxu0
        %v4230 = vadd.f32 %v4141, %v4229
        %4231 = vmatmul.bf16.gmra.mxu0 %v3075
        %v4232 = vpop.f32.mrf.mxu0
        %v4233 = vadd.f32 %v4144, %v4232
        %v4234 = vpop.f32.mrf.mxu0
        %v4235 = vadd.f32 %v4146, %v4234
        %4236 = vmatmul.bf16.gmra.mxu0 %v3084
        %v4237 = vpop.f32.mrf.mxu0
        %v4238 = vadd.f32 %v4149, %v4237
        %v4239 = vpop.f32.mrf.mxu0
        %v4240 = vadd.f32 %v4151, %v4239
        %4241 = vmatmul.bf16.gmra.mxu0 %v3093
        %v4242 = vpop.f32.mrf.mxu0
        %v4243 = vadd.f32 %v4154, %v4242
        %v4244 = vpop.f32.mrf.mxu0
        %v4245 = vadd.f32 %v4156, %v4244
        %4246 = vmatmul.bf16.gmra.mxu0 %v3102
        %v4247 = vpop.f32.mrf.mxu0
        %v4248 = vadd.f32 %v4159, %v4247
        %v4249 = vpop.f32.mrf.mxu0
        %v4250 = vadd.f32 %v4161, %v4249
        %4251 = vmatmul.bf16.gmra.mxu0 %v3111
        %v4252 = vpop.f32.mrf.mxu0
        %v4253 = vadd.f32 %v4164, %v4252
        %v4254 = vpop.f32.mrf.mxu0
        %v4255 = vadd.f32 %v4166, %v4254
        %4256 = vmatmul.bf16.gmra.mxu0 %v3120
        %v4257 = vpop.f32.mrf.mxu0
        %v4258 = vadd.f32 %v4169, %v4257
        %v4259 = vpop.f32.mrf.mxu0
        %v4260 = vadd.f32 %v4171, %v4259
        %4261 = vmatmul.bf16.gmra.mxu0 %v3129
        %v4262 = vpop.f32.mrf.mxu0
        %v4263 = vadd.f32 %v4174, %v4262
        %v4264 = vpop.f32.mrf.mxu0
        %v4265 = vadd.f32 %v4176, %v4264
        %4266 = vmatmul.bf16.gmra.mxu0 %v3138
        %v4267 = vpop.f32.mrf.mxu0
        %v4268 = vadd.f32 %v4179, %v4267
        %v4269 = vpop.f32.mrf.mxu0
        %v4270 = vadd.f32 %v4181, %v4269
        %4271 = vmatmul.bf16.gmra.mxu0 %v3147
        %v4272 = vpop.f32.mrf.mxu0
        %v4273 = vadd.f32 %v4184, %v4272
        %v4274 = vpop.f32.mrf.mxu0
        %v4275 = vadd.f32 %v4186, %v4274
        %4276 = vmatmul.bf16.gmra.mxu0 %v3156
        %v4277 = vpop.f32.mrf.mxu0
        %v4278 = vadd.f32 %v4189, %v4277
        %v4279 = vpop.f32.mrf.mxu0
        %v4280 = vadd.f32 %v4191, %v4279
        %4281 = vmatmul.bf16.gmra.mxu0 %v3165
        %v4282 = vpop.f32.mrf.mxu0
        %v4283 = vadd.f32 %v4194, %v4282
        %v4284 = vpop.f32.mrf.mxu0
        %v4285 = vadd.f32 %v4196, %v4284
        %4286 = vmatmul.bf16.gmra.mxu0 %v3174
        %v4287 = vpop.f32.mrf.mxu0
        %v4288 = vadd.f32 %v4199, %v4287
        %v4289 = vpop.f32.mrf.mxu0
        %v4290 = vadd.f32 %v4201, %v4289
        %4291 = vdwg.mxu0
        %4292 = vmatpush.bf16.msra.mxu0 %v3669
        %4293 = vmatpush.bf16.msra.mxu0 %v3668
        %4294 = vmatpush.bf16.msra.mxu0 %v3667
        %4295 = vmatpush.bf16.msra.mxu0 %v3666
        %4296 = vmatpush.bf16.msra.mxu0 %v3665
        %4297 = vmatpush.bf16.msra.mxu0 %v3664
        %4298 = vmatpush.bf16.msra.mxu0 %v3663
        %4299 = vmatpush.bf16.msra.mxu0 %v3662
        %4300 = vmatmul.bf16.gmra.mxu0 %v3040
        %v4301 = vpop.f32.mrf.mxu0
        %v4302 = vadd.f32 %v4213, %v4301
        %v4303 = vpop.f32.mrf.mxu0
        %v4304 = vadd.f32 %v4215, %v4303
        %4305 = vmatmul.bf16.gmra.mxu0 %v3049
        %v4306 = vpop.f32.mrf.mxu0
        %v4307 = vadd.f32 %v4218, %v4306
        %v4308 = vpop.f32.mrf.mxu0
        %v4309 = vadd.f32 %v4220, %v4308
        %4310 = vmatmul.bf16.gmra.mxu0 %v3058
        %v4311 = vpop.f32.mrf.mxu0
        %v4312 = vadd.f32 %v4223, %v4311
        %v4313 = vpop.f32.mrf.mxu0
        %v4314 = vadd.f32 %v4225, %v4313
        %4315 = vmatmul.bf16.gmra.mxu0 %v3067
        %v4316 = vpop.f32.mrf.mxu0
        %v4317 = vadd.f32 %v4228, %v4316
        %v4318 = vpop.f32.mrf.mxu0
        %v4319 = vadd.f32 %v4230, %v4318
        %4320 = vmatmul.bf16.gmra.mxu0 %v3076
        %v4321 = vpop.f32.mrf.mxu0
        %v4322 = vadd.f32 %v4233, %v4321
        %v4323 = vpop.f32.mrf.mxu0
        %v4324 = vadd.f32 %v4235, %v4323
        %4325 = vmatmul.bf16.gmra.mxu0 %v3085
        %v4326 = vpop.f32.mrf.mxu0
        %v4327 = vadd.f32 %v4238, %v4326
        %v4328 = vpop.f32.mrf.mxu0
        %v4329 = vadd.f32 %v4240, %v4328
        %4330 = vmatmul.bf16.gmra.mxu0 %v3094
        %v4331 = vpop.f32.mrf.mxu0
        %v4332 = vadd.f32 %v4243, %v4331
        %v4333 = vpop.f32.mrf.mxu0
        %v4334 = vadd.f32 %v4245, %v4333
        %4335 = vmatmul.bf16.gmra.mxu0 %v3103
        %v4336 = vpop.f32.mrf.mxu0
        %v4337 = vadd.f32 %v4248, %v4336
        %v4338 = vpop.f32.mrf.mxu0
        %v4339 = vadd.f32 %v4250, %v4338
        %4340 = vmatmul.bf16.gmra.mxu0 %v3112
        %v4341 = vpop.f32.mrf.mxu0
        %v4342 = vadd.f32 %v4253, %v4341
        %v4343 = vpop.f32.mrf.mxu0
        %v4344 = vadd.f32 %v4255, %v4343
        %4345 = vmatmul.bf16.gmra.mxu0 %v3121
        %v4346 = vpop.f32.mrf.mxu0
        %v4347 = vadd.f32 %v4258, %v4346
        %v4348 = vpop.f32.mrf.mxu0
        %v4349 = vadd.f32 %v4260, %v4348
        %4350 = vmatmul.bf16.gmra.mxu0 %v3130
        %v4351 = vpop.f32.mrf.mxu0
        %v4352 = vadd.f32 %v4263, %v4351
        %v4353 = vpop.f32.mrf.mxu0
        %v4354 = vadd.f32 %v4265, %v4353
        %4355 = vmatmul.bf16.gmra.mxu0 %v3139
        %v4356 = vpop.f32.mrf.mxu0
        %v4357 = vadd.f32 %v4268, %v4356
        %v4358 = vpop.f32.mrf.mxu0
        %v4359 = vadd.f32 %v4270, %v4358
        %4360 = vmatmul.bf16.gmra.mxu0 %v3148
        %v4361 = vpop.f32.mrf.mxu0
        %v4362 = vadd.f32 %v4273, %v4361
        %v4363 = vpop.f32.mrf.mxu0
        %v4364 = vadd.f32 %v4275, %v4363
        %4365 = vmatmul.bf16.gmra.mxu0 %v3157
        %v4366 = vpop.f32.mrf.mxu0
        %v4367 = vadd.f32 %v4278, %v4366
        %v4368 = vpop.f32.mrf.mxu0
        %v4369 = vadd.f32 %v4280, %v4368
        %4370 = vmatmul.bf16.gmra.mxu0 %v3166
        %v4371 = vpop.f32.mrf.mxu0
        %v4372 = vadd.f32 %v4283, %v4371
        %v4373 = vpop.f32.mrf.mxu0
        %v4374 = vadd.f32 %v4285, %v4373
        %4375 = vmatmul.bf16.gmra.mxu0 %v3175
        %v4376 = vpop.f32.mrf.mxu0
        %v4377 = vadd.f32 %v4288, %v4376
        %v4378 = vpop.f32.mrf.mxu0
        %v4379 = vadd.f32 %v4290, %v4378
        %4380 = vdwg.mxu0
        %4381 = vmatpush.bf16.msra.mxu0 %v3677
        %4382 = vmatpush.bf16.msra.mxu0 %v3676
        %4383 = vmatpush.bf16.msra.mxu0 %v3675
        %4384 = vmatpush.bf16.msra.mxu0 %v3674
        %4385 = vmatpush.bf16.msra.mxu0 %v3673
        %4386 = vmatpush.bf16.msra.mxu0 %v3672
        %4387 = vmatpush.bf16.msra.mxu0 %v3671
        %4388 = vmatpush.bf16.msra.mxu0 %v3670
        %4389 = vmatmul.bf16.gmra.mxu0 %v3041
        %v4390 = vpop.f32.mrf.mxu0
        %v4391 = vadd.f32 %v4302, %v4390
        %v4392 = vpop.f32.mrf.mxu0
        %v4393 = vadd.f32 %v4304, %v4392
        %4394 = vmatmul.bf16.gmra.mxu0 %v3050
        %v4395 = vpop.f32.mrf.mxu0
        %v4396 = vadd.f32 %v4307, %v4395
        %v4397 = vpop.f32.mrf.mxu0
        %v4398 = vadd.f32 %v4309, %v4397
        %4399 = vmatmul.bf16.gmra.mxu0 %v3059
        %v4400 = vpop.f32.mrf.mxu0
        %v4401 = vadd.f32 %v4312, %v4400
        %v4402 = vpop.f32.mrf.mxu0
        %v4403 = vadd.f32 %v4314, %v4402
        %4404 = vmatmul.bf16.gmra.mxu0 %v3068
        %v4405 = vpop.f32.mrf.mxu0
        %v4406 = vadd.f32 %v4317, %v4405
        %v4407 = vpop.f32.mrf.mxu0
        %v4408 = vadd.f32 %v4319, %v4407
        %4409 = vmatmul.bf16.gmra.mxu0 %v3077
        %v4410 = vpop.f32.mrf.mxu0
        %v4411 = vadd.f32 %v4322, %v4410
        %v4412 = vpop.f32.mrf.mxu0
        %v4413 = vadd.f32 %v4324, %v4412
        %4414 = vmatmul.bf16.gmra.mxu0 %v3086
        %v4415 = vpop.f32.mrf.mxu0
        %v4416 = vadd.f32 %v4327, %v4415
        %v4417 = vpop.f32.mrf.mxu0
        %v4418 = vadd.f32 %v4329, %v4417
        %4419 = vmatmul.bf16.gmra.mxu0 %v3095
        %v4420 = vpop.f32.mrf.mxu0
        %v4421 = vadd.f32 %v4332, %v4420
        %v4422 = vpop.f32.mrf.mxu0
        %v4423 = vadd.f32 %v4334, %v4422
        %4424 = vmatmul.bf16.gmra.mxu0 %v3104
        %v4425 = vpop.f32.mrf.mxu0
        %v4426 = vadd.f32 %v4337, %v4425
        %v4427 = vpop.f32.mrf.mxu0
        %v4428 = vadd.f32 %v4339, %v4427
        %4429 = vmatmul.bf16.gmra.mxu0 %v3113
        %v4430 = vpop.f32.mrf.mxu0
        %v4431 = vadd.f32 %v4342, %v4430
        %v4432 = vpop.f32.mrf.mxu0
        %v4433 = vadd.f32 %v4344, %v4432
        %4434 = vmatmul.bf16.gmra.mxu0 %v3122
        %v4435 = vpop.f32.mrf.mxu0
        %v4436 = vadd.f32 %v4347, %v4435
        %v4437 = vpop.f32.mrf.mxu0
        %v4438 = vadd.f32 %v4349, %v4437
        %4439 = vmatmul.bf16.gmra.mxu0 %v3131
        %v4440 = vpop.f32.mrf.mxu0
        %v4441 = vadd.f32 %v4352, %v4440
        %v4442 = vpop.f32.mrf.mxu0
        %v4443 = vadd.f32 %v4354, %v4442
        %4444 = vmatmul.bf16.gmra.mxu0 %v3140
        %v4445 = vpop.f32.mrf.mxu0
        %v4446 = vadd.f32 %v4357, %v4445
        %v4447 = vpop.f32.mrf.mxu0
        %v4448 = vadd.f32 %v4359, %v4447
        %4449 = vmatmul.bf16.gmra.mxu0 %v3149
        %v4450 = vpop.f32.mrf.mxu0
        %v4451 = vadd.f32 %v4362, %v4450
        %v4452 = vpop.f32.mrf.mxu0
        %v4453 = vadd.f32 %v4364, %v4452
        %4454 = vmatmul.bf16.gmra.mxu0 %v3158
        %v4455 = vpop.f32.mrf.mxu0
        %v4456 = vadd.f32 %v4367, %v4455
        %v4457 = vpop.f32.mrf.mxu0
        %v4458 = vadd.f32 %v4369, %v4457
        %4459 = vmatmul.bf16.gmra.mxu0 %v3167
        %v4460 = vpop.f32.mrf.mxu0
        %v4461 = vadd.f32 %v4372, %v4460
        %v4462 = vpop.f32.mrf.mxu0
        %v4463 = vadd.f32 %v4374, %v4462
        %4464 = vmatmul.bf16.gmra.mxu0 %v3176
        %v4465 = vpop.f32.mrf.mxu0
        %v4466 = vadd.f32 %v4377, %v4465
        %v4467 = vpop.f32.mrf.mxu0
        %v4468 = vadd.f32 %v4379, %v4467
        %4469 = vdwg.mxu0
        %4470 = vmatpush.bf16.msra.mxu0 %v3685
        %4471 = vmatpush.bf16.msra.mxu0 %v3684
        %4472 = vmatpush.bf16.msra.mxu0 %v3683
        %4473 = vmatpush.bf16.msra.mxu0 %v3682
        %4474 = vmatpush.bf16.msra.mxu0 %v3681
        %4475 = vmatpush.bf16.msra.mxu0 %v3680
        %4476 = vmatpush.bf16.msra.mxu0 %v3679
        %4477 = vmatpush.bf16.msra.mxu0 %v3678
        %4478 = vmatmul.bf16.gmra.mxu0 %v3042
        %v4479 = vpop.f32.mrf.mxu0
        %v4480 = vadd.f32 %v4391, %v4479
        %v4481 = vpop.f32.mrf.mxu0
        %v4482 = vadd.f32 %v4393, %v4481
        %4483 = vmatmul.bf16.gmra.mxu0 %v3051
        %v4484 = vpop.f32.mrf.mxu0
        %v4485 = vadd.f32 %v4396, %v4484
        %v4486 = vpop.f32.mrf.mxu0
        %v4487 = vadd.f32 %v4398, %v4486
        %4488 = vmatmul.bf16.gmra.mxu0 %v3060
        %v4489 = vpop.f32.mrf.mxu0
        %v4490 = vadd.f32 %v4401, %v4489
        %v4491 = vpop.f32.mrf.mxu0
        %v4492 = vadd.f32 %v4403, %v4491
        %4493 = vmatmul.bf16.gmra.mxu0 %v3069
        %v4494 = vpop.f32.mrf.mxu0
        %v4495 = vadd.f32 %v4406, %v4494
        %v4496 = vpop.f32.mrf.mxu0
        %v4497 = vadd.f32 %v4408, %v4496
        %4498 = vmatmul.bf16.gmra.mxu0 %v3078
        %v4499 = vpop.f32.mrf.mxu0
        %v4500 = vadd.f32 %v4411, %v4499
        %v4501 = vpop.f32.mrf.mxu0
        %v4502 = vadd.f32 %v4413, %v4501
        %4503 = vmatmul.bf16.gmra.mxu0 %v3087
        %v4504 = vpop.f32.mrf.mxu0
        %v4505 = vadd.f32 %v4416, %v4504
        %v4506 = vpop.f32.mrf.mxu0
        %v4507 = vadd.f32 %v4418, %v4506
        %4508 = vmatmul.bf16.gmra.mxu0 %v3096
        %v4509 = vpop.f32.mrf.mxu0
        %v4510 = vadd.f32 %v4421, %v4509
        %v4511 = vpop.f32.mrf.mxu0
        %v4512 = vadd.f32 %v4423, %v4511
        %4513 = vmatmul.bf16.gmra.mxu0 %v3105
        %v4514 = vpop.f32.mrf.mxu0
        %v4515 = vadd.f32 %v4426, %v4514
        %v4516 = vpop.f32.mrf.mxu0
        %v4517 = vadd.f32 %v4428, %v4516
        %4518 = vmatmul.bf16.gmra.mxu0 %v3114
        %v4519 = vpop.f32.mrf.mxu0
        %v4520 = vadd.f32 %v4431, %v4519
        %v4521 = vpop.f32.mrf.mxu0
        %v4522 = vadd.f32 %v4433, %v4521
        %4523 = vmatmul.bf16.gmra.mxu0 %v3123
        %v4524 = vpop.f32.mrf.mxu0
        %v4525 = vadd.f32 %v4436, %v4524
        %v4526 = vpop.f32.mrf.mxu0
        %v4527 = vadd.f32 %v4438, %v4526
        %4528 = vmatmul.bf16.gmra.mxu0 %v3132
        %v4529 = vpop.f32.mrf.mxu0
        %v4530 = vadd.f32 %v4441, %v4529
        %v4531 = vpop.f32.mrf.mxu0
        %v4532 = vadd.f32 %v4443, %v4531
        %4533 = vmatmul.bf16.gmra.mxu0 %v3141
        %v4534 = vpop.f32.mrf.mxu0
        %v4535 = vadd.f32 %v4446, %v4534
        %v4536 = vpop.f32.mrf.mxu0
        %v4537 = vadd.f32 %v4448, %v4536
        %4538 = vmatmul.bf16.gmra.mxu0 %v3150
        %v4539 = vpop.f32.mrf.mxu0
        %v4540 = vadd.f32 %v4451, %v4539
        %v4541 = vpop.f32.mrf.mxu0
        %v4542 = vadd.f32 %v4453, %v4541
        %4543 = vmatmul.bf16.gmra.mxu0 %v3159
        %v4544 = vpop.f32.mrf.mxu0
        %v4545 = vadd.f32 %v4456, %v4544
        %v4546 = vpop.f32.mrf.mxu0
        %v4547 = vadd.f32 %v4458, %v4546
        %4548 = vmatmul.bf16.gmra.mxu0 %v3168
        %v4549 = vpop.f32.mrf.mxu0
        %v4550 = vadd.f32 %v4461, %v4549
        %v4551 = vpop.f32.mrf.mxu0
        %v4552 = vadd.f32 %v4463, %v4551
        %4553 = vmatmul.bf16.gmra.mxu0 %v3177
        %v4554 = vpop.f32.mrf.mxu0
        %v4555 = vadd.f32 %v4466, %v4554
        %v4556 = vpop.f32.mrf.mxu0
        %v4557 = vadd.f32 %v4468, %v4556
        %4558 = vdwg.mxu0
        %v4559 = vmax.f32 %v4480, 0.0
        %v4560 = vmax.f32 %v4482, 0.0
        %v4561 = vmax.f32 %v4485, 0.0
        %v4562 = vmax.f32 %v4487, 0.0
        %v4563 = vmax.f32 %v4490, 0.0
        %v4564 = vmax.f32 %v4492, 0.0
        %v4565 = vmax.f32 %v4495, 0.0
        %v4566 = vmax.f32 %v4497, 0.0
        %v4567 = vmax.f32 %v4500, 0.0
        %v4568 = vmax.f32 %v4502, 0.0
        %v4569 = vmax.f32 %v4505, 0.0
        %v4570 = vmax.f32 %v4507, 0.0
        %v4571 = vmax.f32 %v4510, 0.0
        %v4572 = vmax.f32 %v4512, 0.0
        %v4573 = vmax.f32 %v4515, 0.0
        %v4574 = vmax.f32 %v4517, 0.0
        %v4575 = vmax.f32 %v4520, 0.0
        %v4576 = vmax.f32 %v4522, 0.0
        %v4577 = vmax.f32 %v4525, 0.0
        %v4578 = vmax.f32 %v4527, 0.0
        %v4579 = vmax.f32 %v4530, 0.0
        %v4580 = vmax.f32 %v4532, 0.0
        %v4581 = vmax.f32 %v4535, 0.0
        %v4582 = vmax.f32 %v4537, 0.0
        %v4583 = vmax.f32 %v4540, 0.0
        %v4584 = vmax.f32 %v4542, 0.0
        %v4585 = vmax.f32 %v4545, 0.0
        %v4586 = vmax.f32 %v4547, 0.0
        %v4587 = vmax.f32 %v4550, 0.0
        %v4588 = vmax.f32 %v4552, 0.0
        %v4589 = vmax.f32 %v4555, 0.0
        %v4590 = vmax.f32 %v4557, 0.0
        %v4591 = vld [vmem:[%s19] sm:$0xff]
        %v4592 = vld [vmem:[%s19 + $0x8] sm:$0xff]
        %v4593 = vld [vmem:[%s19 + $0x10] sm:$0xff]
        %v4594 = vld [vmem:[%s19 + $0x18] sm:$0xff]
        %v4595 = vld [vmem:[%s19 + $0x20] sm:$0xff]
        %v4596 = vld [vmem:[%s19 + $0x28] sm:$0xff]
        %v4597 = vld [vmem:[%s19 + $0x30] sm:$0xff]
        %v4598 = vld [vmem:[%s19 + $0x38] sm:$0xff]
        %v4599 = vld [vmem:[%s19 + $0x40] sm:$0xff]
        %v4600 = vld [vmem:[%s19 + $0x48] sm:$0xff]
        %v4601 = vld [vmem:[%s19 + $0x50] sm:$0xff]
        %v4602 = vld [vmem:[%s19 + $0x58] sm:$0xff]
        %v4603 = vld [vmem:[%s19 + $0x60] sm:$0xff]
        %v4604 = vld [vmem:[%s19 + $0x68] sm:$0xff]
        %v4605 = vld [vmem:[%s19 + $0x70] sm:$0xff]
        %v4606 = vld [vmem:[%s19 + $0x78] sm:$0xff]
        %4607 = vmatpush.msra.mxu0 %v4574
        %4608 = vmatpush.msra.mxu0 %v4573
        %4609 = vmatpush.msra.mxu0 %v4572
        %4610 = vmatpush.msra.mxu0 %v4571
        %4611 = vmatpush.msra.mxu0 %v4570
        %4612 = vmatpush.msra.mxu0 %v4569
        %4613 = vmatpush.msra.mxu0 %v4568
        %4614 = vmatpush.msra.mxu0 %v4567
        %4615 = vmatpush.msra.mxu0 %v4566
        %4616 = vmatpush.msra.mxu0 %v4565
        %4617 = vmatpush.msra.mxu0 %v4564
        %4618 = vmatpush.msra.mxu0 %v4563
        %4619 = vmatpush.msra.mxu0 %v4562
        %4620 = vmatpush.msra.mxu0 %v4561
        %4621 = vmatpush.msra.mxu0 %v4560
        %4622 = vmatpush.msra.mxu0 %v4559
        %4623 = vmatmul.f32.gmra.mxu0 %v4591
        %v4624 = vpop.f32.mrf.mxu0
        %v4625 = vadd.f32 0.0, %v4624
        %4626 = vmatmul.f32.gmra.mxu0 %v4593
        %v4627 = vpop.f32.mrf.mxu0
        %v4628 = vadd.f32 0.0, %v4627
        %4629 = vmatmul.f32.gmra.mxu0 %v4595
        %v4630 = vpop.f32.mrf.mxu0
        %v4631 = vadd.f32 0.0, %v4630
        %4632 = vmatmul.f32.gmra.mxu0 %v4597
        %v4633 = vpop.f32.mrf.mxu0
        %v4634 = vadd.f32 0.0, %v4633
        %4635 = vmatmul.f32.gmra.mxu0 %v4599
        %v4636 = vpop.f32.mrf.mxu0
        %v4637 = vadd.f32 0.0, %v4636
        %4638 = vmatmul.f32.gmra.mxu0 %v4601
        %v4639 = vpop.f32.mrf.mxu0
        %v4640 = vadd.f32 0.0, %v4639
        %4641 = vmatmul.f32.gmra.mxu0 %v4603
        %v4642 = vpop.f32.mrf.mxu0
        %v4643 = vadd.f32 0.0, %v4642
        %4644 = vmatmul.f32.gmra.mxu0 %v4605
        %v4645 = vpop.f32.mrf.mxu0
        %v4646 = vadd.f32 0.0, %v4645
        %4647 = vdwg.mxu0
        %4648 = vmatpush.msra.mxu0 %v4590
        %4649 = vmatpush.msra.mxu0 %v4589
        %4650 = vmatpush.msra.mxu0 %v4588
        %4651 = vmatpush.msra.mxu0 %v4587
        %4652 = vmatpush.msra.mxu0 %v4586
        %4653 = vmatpush.msra.mxu0 %v4585
        %4654 = vmatpush.msra.mxu0 %v4584
        %4655 = vmatpush.msra.mxu0 %v4583
        %4656 = vmatpush.msra.mxu0 %v4582
        %4657 = vmatpush.msra.mxu0 %v4581
        %4658 = vmatpush.msra.mxu0 %v4580
        %4659 = vmatpush.msra.mxu0 %v4579
        %4660 = vmatpush.msra.mxu0 %v4578
        %4661 = vmatpush.msra.mxu0 %v4577
        %4662 = vmatpush.msra.mxu0 %v4576
        %4663 = vmatpush.msra.mxu0 %v4575
        %4664 = vmatmul.f32.gmra.mxu0 %v4592
        %v4665 = vpop.f32.mrf.mxu0
        %v4666 = vadd.f32 %v4625, %v4665
        %4667 = vmatmul.f32.gmra.mxu0 %v4594
        %v4668 = vpop.f32.mrf.mxu0
        %v4669 = vadd.f32 %v4628, %v4668
        %4670 = vmatmul.f32.gmra.mxu0 %v4596
        %v4671 = vpop.f32.mrf.mxu0
        %v4672 = vadd.f32 %v4631, %v4671
        %4673 = vmatmul.f32.gmra.mxu0 %v4598
        %v4674 = vpop.f32.mrf.mxu0
        %v4675 = vadd.f32 %v4634, %v4674
        %4676 = vmatmul.f32.gmra.mxu0 %v4600
        %v4677 = vpop.f32.mrf.mxu0
        %v4678 = vadd.f32 %v4637, %v4677
        %4679 = vmatmul.f32.gmra.mxu0 %v4602
        %v4680 = vpop.f32.mrf.mxu0
        %v4681 = vadd.f32 %v4640, %v4680
        %4682 = vmatmul.f32.gmra.mxu0 %v4604
        %v4683 = vpop.f32.mrf.mxu0
        %v4684 = vadd.f32 %v4643, %v4683
        %4685 = vmatmul.f32.gmra.mxu0 %v4606
        %v4686 = vpop.f32.mrf.mxu0
        %v4687 = vadd.f32 %v4646, %v4686
        %4688 = vdwg.mxu0
        %4689 = vst [vmem:[#allocation2] sm:$0xff] 0.0
        %4690 = vst [vmem:[#allocation2 + $0x8] sm:$0x3] 0.0
        %4691 = vst [vmem:[#allocation2 + $0x18] sm:$0xff] 0.0
        %4692 = vst [vmem:[#allocation2 + $0x20] sm:$0x3] 0.0
        %4693 = vst [vmem:[#allocation2 + $0x30] sm:$0xff] 0.0
        %4694 = vst [vmem:[#allocation2 + $0x38] sm:$0x3] 0.0
        %4695 = vst [vmem:[#allocation2 + $0x48] sm:$0xff] 0.0
        %4696 = vst [vmem:[#allocation2 + $0x50] sm:$0x3] 0.0
        %4697 = vst [vmem:[#allocation2 + $0x60] sm:$0xff] 0.0
        %4698 = vst [vmem:[#allocation2 + $0x68] sm:$0x3] 0.0
        %4699 = vst [vmem:[#allocation2 + $0x78] sm:$0xff] 0.0
        %4700 = vst [vmem:[#allocation2 + $0x80] sm:$0x3] 0.0
        %4701 = vst [vmem:[#allocation2 + $0x90] sm:$0xff] 0.0
        %4702 = vst [vmem:[#allocation2 + $0x98] sm:$0x3] 0.0
        %4703 = vst [vmem:[#allocation2 + $0xa8] sm:$0xff] 0.0
        %4704 = vst [vmem:[#allocation2 + $0xb0] sm:$0x3] 0.0
        %4705 = vst [vmem:[#allocation2 + $0xc0] sm:$0xff] 0.0
        %4706 = vst [vmem:[#allocation2 + $0xc8] sm:$0x3] 0.0
        %4707 = vst [vmem:[#allocation2 + $0xd8] sm:$0xff] 0.0
        %4708 = vst [vmem:[#allocation2 + $0xe0] sm:$0x3] 0.0
        %vm4709 = vcmask 130048
        %4710 = vst.msk [vmem:[%s779 + $0x1] sm:$0xff] %vm4709, %v4666
        %4711 = vst.msk [vmem:[%s779 + $0x19] sm:$0xff] %vm4709, %v4669
        %4712 = vst.msk [vmem:[%s779 + $0x31] sm:$0xff] %vm4709, %v4672
        %4713 = vst.msk [vmem:[%s779 + $0x49] sm:$0xff] %vm4709, %v4675
        %4714 = vst.msk [vmem:[%s779 + $0x61] sm:$0xff] %vm4709, %v4678
        %4715 = vst.msk [vmem:[%s779 + $0x79] sm:$0xff] %vm4709, %v4681
        %4716 = vst.msk [vmem:[%s779 + $0x91] sm:$0xff] %vm4709, %v4684
        %4717 = vst.msk [vmem:[%s779 + $0xa9] sm:$0xff] %vm4709, %v4687
        %v4718 = vld [vmem:[#allocation2] sm:$0xff]
        %v4719 = vld [vmem:[#allocation2 + $0x18] sm:$0xff]
        %v4720 = vld [vmem:[#allocation2 + $0x30] sm:$0xff]
        %v4721 = vld [vmem:[#allocation2 + $0x48] sm:$0xff]
        %v4722 = vld [vmem:[#allocation2 + $0x60] sm:$0xff]
        %v4723 = vld [vmem:[#allocation2 + $0x78] sm:$0xff]
        %v4724 = vld [vmem:[#allocation2 + $0x90] sm:$0xff]
        %v4725 = vld [vmem:[#allocation2 + $0xa8] sm:$0xff]
        %v4726 = vld [vmem:[#allocation2 + $0x1] sm:$0xff]
        %v4727 = vld [vmem:[#allocation2 + $0x19] sm:$0xff]
        %v4728 = vld [vmem:[#allocation2 + $0x31] sm:$0xff]
        %v4729 = vld [vmem:[#allocation2 + $0x49] sm:$0xff]
        %v4730 = vld [vmem:[#allocation2 + $0x61] sm:$0xff]
        %v4731 = vld [vmem:[#allocation2 + $0x79] sm:$0xff]
        %v4732 = vld [vmem:[#allocation2 + $0x91] sm:$0xff]
        %v4733 = vld [vmem:[#allocation2 + $0xa9] sm:$0xff]
        %v4734 = vld [vmem:[#allocation2 + $0x2] sm:$0xff]
        %v4735 = vld [vmem:[#allocation2 + $0x1a] sm:$0xff]
        %v4736 = vld [vmem:[#allocation2 + $0x32] sm:$0xff]
        %v4737 = vld [vmem:[#allocation2 + $0x4a] sm:$0xff]
        %v4738 = vld [vmem:[#allocation2 + $0x62] sm:$0xff]
        %v4739 = vld [vmem:[#allocation2 + $0x7a] sm:$0xff]
        %v4740 = vld [vmem:[#allocation2 + $0x92] sm:$0xff]
        %v4741 = vld [vmem:[#allocation2 + $0xaa] sm:$0xff]
        %v4742 = vld [vmem:[%s779] sm:$0xff]
        %v4743 = vld [vmem:[%s779 + $0x18] sm:$0xff]
        %v4744 = vld [vmem:[%s779 + $0x30] sm:$0xff]
        %v4745 = vld [vmem:[%s779 + $0x48] sm:$0xff]
        %v4746 = vld [vmem:[%s779 + $0x60] sm:$0xff]
        %v4747 = vld [vmem:[%s779 + $0x78] sm:$0xff]
        %v4748 = vld [vmem:[%s779 + $0x90] sm:$0xff]
        %v4749 = vld [vmem:[%s779 + $0xa8] sm:$0xff]
        %v4750 = vld [vmem:[%s779 + $0x1] sm:$0xff]
        %v4751 = vld [vmem:[%s779 + $0x19] sm:$0xff]
        %v4752 = vld [vmem:[%s779 + $0x31] sm:$0xff]
        %v4753 = vld [vmem:[%s779 + $0x49] sm:$0xff]
        %v4754 = vld [vmem:[%s779 + $0x61] sm:$0xff]
        %v4755 = vld [vmem:[%s779 + $0x79] sm:$0xff]
        %v4756 = vld [vmem:[%s779 + $0x91] sm:$0xff]
        %v4757 = vld [vmem:[%s779 + $0xa9] sm:$0xff]
        %v4758 = vld [vmem:[%s779 + $0x2] sm:$0xff]
        %v4759 = vld [vmem:[%s779 + $0x1a] sm:$0xff]
        %v4760 = vld [vmem:[%s779 + $0x32] sm:$0xff]
        %v4761 = vld [vmem:[%s779 + $0x4a] sm:$0xff]
        %v4762 = vld [vmem:[%s779 + $0x62] sm:$0xff]
        %v4763 = vld [vmem:[%s779 + $0x7a] sm:$0xff]
        %v4764 = vld [vmem:[%s779 + $0x92] sm:$0xff]
        %v4765 = vld [vmem:[%s779 + $0xaa] sm:$0xff]
        %v4766 = vld [vmem:[%s1005] sm:$0xff]
        %v4767 = vld [vmem:[%s1005 + $0x18] sm:$0xff]
        %v4768 = vld [vmem:[%s1005 + $0x30] sm:$0xff]
        %v4769 = vld [vmem:[%s1005 + $0x48] sm:$0xff]
        %v4770 = vld [vmem:[%s1005 + $0x60] sm:$0xff]
        %v4771 = vld [vmem:[%s1005 + $0x78] sm:$0xff]
        %v4772 = vld [vmem:[%s1005 + $0x90] sm:$0xff]
        %v4773 = vld [vmem:[%s1005 + $0xa8] sm:$0xff]
        %v4774 = vld [vmem:[%s1005 + $0x1] sm:$0xff]
        %v4775 = vld [vmem:[%s1005 + $0x19] sm:$0xff]
        %v4776 = vld [vmem:[%s1005 + $0x31] sm:$0xff]
        %v4777 = vld [vmem:[%s1005 + $0x49] sm:$0xff]
        %v4778 = vld [vmem:[%s1005 + $0x61] sm:$0xff]
        %v4779 = vld [vmem:[%s1005 + $0x79] sm:$0xff]
        %v4780 = vld [vmem:[%s1005 + $0x91] sm:$0xff]
        %v4781 = vld [vmem:[%s1005 + $0xa9] sm:$0xff]
        %v4782 = vld [vmem:[%s1005 + $0x2] sm:$0xff]
        %v4783 = vld [vmem:[%s1005 + $0x1a] sm:$0xff]
        %v4784 = vld [vmem:[%s1005 + $0x32] sm:$0xff]
        %v4785 = vld [vmem:[%s1005 + $0x4a] sm:$0xff]
        %v4786 = vld [vmem:[%s1005 + $0x62] sm:$0xff]
        %v4787 = vld [vmem:[%s1005 + $0x7a] sm:$0xff]
        %v4788 = vld [vmem:[%s1005 + $0x92] sm:$0xff]
        %v4789 = vld [vmem:[%s1005 + $0xaa] sm:$0xff]
        %v4790 = vpack.c.bf16 %v4719, %v4718
        %v4791 = vpack.c.bf16 %v4727, %v4726
        %v4792 = vpack.c.bf16 %v4735, %v4734
        %v4793 = vpack.c.bf16 %v4743, %v4742
        %v4794 = vpack.c.bf16 %v4751, %v4750
        %v4795 = vpack.c.bf16 %v4759, %v4758
        %v4796 = vpack.c.bf16 %v4767, %v4766
        %v4797 = vpack.c.bf16 %v4775, %v4774
        %v4798 = vpack.c.bf16 %v4783, %v4782
        %v4799 = vpack.c.bf16 %v4721, %v4720
        %v4800 = vpack.c.bf16 %v4729, %v4728
        %v4801 = vpack.c.bf16 %v4737, %v4736
        %v4802 = vpack.c.bf16 %v4745, %v4744
        %v4803 = vpack.c.bf16 %v4753, %v4752
        %v4804 = vpack.c.bf16 %v4761, %v4760
        %v4805 = vpack.c.bf16 %v4769, %v4768
        %v4806 = vpack.c.bf16 %v4777, %v4776
        %v4807 = vpack.c.bf16 %v4785, %v4784
        %v4808 = vpack.c.bf16 %v4723, %v4722
        %v4809 = vpack.c.bf16 %v4731, %v4730
        %v4810 = vpack.c.bf16 %v4739, %v4738
        %v4811 = vpack.c.bf16 %v4747, %v4746
        %v4812 = vpack.c.bf16 %v4755, %v4754
        %v4813 = vpack.c.bf16 %v4763, %v4762
        %v4814 = vpack.c.bf16 %v4771, %v4770
        %v4815 = vpack.c.bf16 %v4779, %v4778
        %v4816 = vpack.c.bf16 %v4787, %v4786
        %v4817 = vpack.c.bf16 %v4725, %v4724
        %v4818 = vpack.c.bf16 %v4733, %v4732
        %v4819 = vpack.c.bf16 %v4741, %v4740
        %v4820 = vpack.c.bf16 %v4749, %v4748
        %v4821 = vpack.c.bf16 %v4757, %v4756
        %v4822 = vpack.c.bf16 %v4765, %v4764
        %v4823 = vpack.c.bf16 %v4773, %v4772
        %v4824 = vpack.c.bf16 %v4781, %v4780
        %v4825 = vpack.c.bf16 %v4789, %v4788
        %v4826 = vld [vmem:[%s5] sm:$0xf]
        %v4827 = vld [vmem:[%s5 + $0x4] sm:$0xf]
        %v4828 = vld [vmem:[%s5 + $0x8] sm:$0xf]
        %v4829 = vld [vmem:[%s5 + $0xc] sm:$0xf]
        %v4830 = vld [vmem:[%s5 + $0x10] sm:$0xf]
        %v4831 = vld [vmem:[%s5 + $0x14] sm:$0xf]
        %v4832 = vld [vmem:[%s5 + $0x18] sm:$0xf]
        %v4833 = vld [vmem:[%s5 + $0x1c] sm:$0xf]
        %v4834 = vld [vmem:[%s5 + $0x20] sm:$0xf]
        %v4835 = vld [vmem:[%s5 + $0x24] sm:$0xf]
        %v4836 = vld [vmem:[%s5 + $0x28] sm:$0xf]
        %v4837 = vld [vmem:[%s5 + $0x2c] sm:$0xf]
        %v4838 = vld [vmem:[%s5 + $0x30] sm:$0xf]
        %v4839 = vld [vmem:[%s5 + $0x34] sm:$0xf]
        %v4840 = vld [vmem:[%s5 + $0x38] sm:$0xf]
        %v4841 = vld [vmem:[%s5 + $0x3c] sm:$0xf]
        %v4842 = vld [vmem:[%s5 + $0x40] sm:$0xf]
        %v4843 = vld [vmem:[%s5 + $0x44] sm:$0xf]
        %v4844 = vld [vmem:[%s5 + $0x48] sm:$0xf]
        %v4845 = vld [vmem:[%s5 + $0x4c] sm:$0xf]
        %v4846 = vld [vmem:[%s5 + $0x50] sm:$0xf]
        %v4847 = vld [vmem:[%s5 + $0x54] sm:$0xf]
        %v4848 = vld [vmem:[%s5 + $0x58] sm:$0xf]
        %v4849 = vld [vmem:[%s5 + $0x5c] sm:$0xf]
        %v4850 = vld [vmem:[%s5 + $0x60] sm:$0xf]
        %v4851 = vld [vmem:[%s5 + $0x64] sm:$0xf]
        %v4852 = vld [vmem:[%s5 + $0x68] sm:$0xf]
        %v4853 = vld [vmem:[%s5 + $0x6c] sm:$0xf]
        %v4854 = vld [vmem:[%s5 + $0x70] sm:$0xf]
        %v4855 = vld [vmem:[%s5 + $0x74] sm:$0xf]
        %v4856 = vld [vmem:[%s5 + $0x78] sm:$0xf]
        %v4857 = vld [vmem:[%s5 + $0x7c] sm:$0xf]
        %v4858 = vld [vmem:[%s5 + $0x80] sm:$0xf]
        %v4859 = vld [vmem:[%s5 + $0x84] sm:$0xf]
        %v4860 = vld [vmem:[%s5 + $0x88] sm:$0xf]
        %v4861 = vld [vmem:[%s5 + $0x8c] sm:$0xf]
        %v4862 = vld [vmem:[%s5 + $0x90] sm:$0xf]
        %v4863 = vld [vmem:[%s5 + $0x94] sm:$0xf]
        %v4864 = vld [vmem:[%s5 + $0x98] sm:$0xf]
        %v4865 = vld [vmem:[%s5 + $0x9c] sm:$0xf]
        %v4866 = vld [vmem:[%s5 + $0xa0] sm:$0xf]
        %v4867 = vld [vmem:[%s5 + $0xa4] sm:$0xf]
        %v4868 = vld [vmem:[%s5 + $0xa8] sm:$0xf]
        %v4869 = vld [vmem:[%s5 + $0xac] sm:$0xf]
        %v4870 = vld [vmem:[%s5 + $0xb0] sm:$0xf]
        %v4871 = vld [vmem:[%s5 + $0xb4] sm:$0xf]
        %v4872 = vld [vmem:[%s5 + $0xb8] sm:$0xf]
        %v4873 = vld [vmem:[%s5 + $0xbc] sm:$0xf]
        %v4874 = vld [vmem:[%s5 + $0xc0] sm:$0xf]
        %v4875 = vld [vmem:[%s5 + $0xc4] sm:$0xf]
        %v4876 = vld [vmem:[%s5 + $0xc8] sm:$0xf]
        %v4877 = vld [vmem:[%s5 + $0xcc] sm:$0xf]
        %v4878 = vld [vmem:[%s5 + $0xd0] sm:$0xf]
        %v4879 = vld [vmem:[%s5 + $0xd4] sm:$0xf]
        %v4880 = vld [vmem:[%s5 + $0xd8] sm:$0xf]
        %v4881 = vld [vmem:[%s5 + $0xdc] sm:$0xf]
        %v4882 = vld [vmem:[%s5 + $0xe0] sm:$0xf]
        %v4883 = vld [vmem:[%s5 + $0xe4] sm:$0xf]
        %v4884 = vld [vmem:[%s5 + $0xe8] sm:$0xf]
        %v4885 = vld [vmem:[%s5 + $0xec] sm:$0xf]
        %v4886 = vld [vmem:[%s5 + $0xf0] sm:$0xf]
        %v4887 = vld [vmem:[%s5 + $0xf4] sm:$0xf]
        %v4888 = vld [vmem:[%s5 + $0xf8] sm:$0xf]
        %v4889 = vld [vmem:[%s5 + $0xfc] sm:$0xf]
        %v4890 = vld [vmem:[%s5 + $0x100] sm:$0xf]
        %v4891 = vld [vmem:[%s5 + $0x104] sm:$0xf]
        %v4892 = vld [vmem:[%s5 + $0x108] sm:$0xf]
        %v4893 = vld [vmem:[%s5 + $0x10c] sm:$0xf]
        %v4894 = vld [vmem:[%s5 + $0x110] sm:$0xf]
        %v4895 = vld [vmem:[%s5 + $0x114] sm:$0xf]
        %v4896 = vld [vmem:[%s5 + $0x118] sm:$0xf]
        %v4897 = vld [vmem:[%s5 + $0x11c] sm:$0xf]
        %v4898 = vld [vmem:[%s5 + $0x120] sm:$0xf]
        %v4899 = vld [vmem:[%s5 + $0x124] sm:$0xf]
        %v4900 = vld [vmem:[%s5 + $0x128] sm:$0xf]
        %v4901 = vld [vmem:[%s5 + $0x12c] sm:$0xf]
        %v4902 = vld [vmem:[%s5 + $0x130] sm:$0xf]
        %v4903 = vld [vmem:[%s5 + $0x134] sm:$0xf]
        %v4904 = vld [vmem:[%s5 + $0x138] sm:$0xf]
        %v4905 = vld [vmem:[%s5 + $0x13c] sm:$0xf]
        %v4906 = vld [vmem:[%s5 + $0x140] sm:$0xf]
        %v4907 = vld [vmem:[%s5 + $0x144] sm:$0xf]
        %v4908 = vld [vmem:[%s5 + $0x148] sm:$0xf]
        %v4909 = vld [vmem:[%s5 + $0x14c] sm:$0xf]
        %v4910 = vld [vmem:[%s5 + $0x150] sm:$0xf]
        %v4911 = vld [vmem:[%s5 + $0x154] sm:$0xf]
        %v4912 = vld [vmem:[%s5 + $0x158] sm:$0xf]
        %v4913 = vld [vmem:[%s5 + $0x15c] sm:$0xf]
        %v4914 = vld [vmem:[%s5 + $0x160] sm:$0xf]
        %v4915 = vld [vmem:[%s5 + $0x164] sm:$0xf]
        %v4916 = vld [vmem:[%s5 + $0x168] sm:$0xf]
        %v4917 = vld [vmem:[%s5 + $0x16c] sm:$0xf]
        %v4918 = vld [vmem:[%s5 + $0x170] sm:$0xf]
        %v4919 = vld [vmem:[%s5 + $0x174] sm:$0xf]
        %v4920 = vld [vmem:[%s5 + $0x178] sm:$0xf]
        %v4921 = vld [vmem:[%s5 + $0x17c] sm:$0xf]
        %v4922 = vld [vmem:[%s5 + $0x180] sm:$0xf]
        %v4923 = vld [vmem:[%s5 + $0x184] sm:$0xf]
        %v4924 = vld [vmem:[%s5 + $0x188] sm:$0xf]
        %v4925 = vld [vmem:[%s5 + $0x18c] sm:$0xf]
        %v4926 = vld [vmem:[%s5 + $0x190] sm:$0xf]
        %v4927 = vld [vmem:[%s5 + $0x194] sm:$0xf]
        %v4928 = vld [vmem:[%s5 + $0x198] sm:$0xf]
        %v4929 = vld [vmem:[%s5 + $0x19c] sm:$0xf]
        %v4930 = vld [vmem:[%s5 + $0x1a0] sm:$0xf]
        %v4931 = vld [vmem:[%s5 + $0x1a4] sm:$0xf]
        %v4932 = vld [vmem:[%s5 + $0x1a8] sm:$0xf]
        %v4933 = vld [vmem:[%s5 + $0x1ac] sm:$0xf]
        %v4934 = vld [vmem:[%s5 + $0x1b0] sm:$0xf]
        %v4935 = vld [vmem:[%s5 + $0x1b4] sm:$0xf]
        %v4936 = vld [vmem:[%s5 + $0x1b8] sm:$0xf]
        %v4937 = vld [vmem:[%s5 + $0x1bc] sm:$0xf]
        %v4938 = vld [vmem:[%s5 + $0x1c0] sm:$0xf]
        %v4939 = vld [vmem:[%s5 + $0x1c4] sm:$0xf]
        %v4940 = vld [vmem:[%s5 + $0x1c8] sm:$0xf]
        %v4941 = vld [vmem:[%s5 + $0x1cc] sm:$0xf]
        %v4942 = vld [vmem:[%s5 + $0x1d0] sm:$0xf]
        %v4943 = vld [vmem:[%s5 + $0x1d4] sm:$0xf]
        %v4944 = vld [vmem:[%s5 + $0x1d8] sm:$0xf]
        %v4945 = vld [vmem:[%s5 + $0x1dc] sm:$0xf]
        %v4946 = vld [vmem:[%s5 + $0x1e0] sm:$0xf]
        %v4947 = vld [vmem:[%s5 + $0x1e4] sm:$0xf]
        %v4948 = vld [vmem:[%s5 + $0x1e8] sm:$0xf]
        %v4949 = vld [vmem:[%s5 + $0x1ec] sm:$0xf]
        %v4950 = vld [vmem:[%s5 + $0x1f0] sm:$0xf]
        %v4951 = vld [vmem:[%s5 + $0x1f4] sm:$0xf]
        %v4952 = vld [vmem:[%s5 + $0x1f8] sm:$0xf]
        %v4953 = vld [vmem:[%s5 + $0x1fc] sm:$0xf]
        %v4954 = vld [vmem:[%s5 + $0x200] sm:$0xf]
        %v4955 = vld [vmem:[%s5 + $0x204] sm:$0xf]
        %v4956 = vld [vmem:[%s5 + $0x208] sm:$0xf]
        %v4957 = vld [vmem:[%s5 + $0x20c] sm:$0xf]
        %v4958 = vld [vmem:[%s5 + $0x210] sm:$0xf]
        %v4959 = vld [vmem:[%s5 + $0x214] sm:$0xf]
        %v4960 = vld [vmem:[%s5 + $0x218] sm:$0xf]
        %v4961 = vld [vmem:[%s5 + $0x21c] sm:$0xf]
        %v4962 = vld [vmem:[%s5 + $0x220] sm:$0xf]
        %v4963 = vld [vmem:[%s5 + $0x224] sm:$0xf]
        %v4964 = vld [vmem:[%s5 + $0x228] sm:$0xf]
        %v4965 = vld [vmem:[%s5 + $0x22c] sm:$0xf]
        %v4966 = vld [vmem:[%s5 + $0x230] sm:$0xf]
        %v4967 = vld [vmem:[%s5 + $0x234] sm:$0xf]
        %v4968 = vld [vmem:[%s5 + $0x238] sm:$0xf]
        %v4969 = vld [vmem:[%s5 + $0x23c] sm:$0xf]
        %v4970 = vld [vmem:[%s6] sm:$0x1]
        %v4972 = vperm.slane %v4970, 0
        %v5118 = vunpack.c.l.b16 %v4826
        %v5119 = vunpack.c.l.b16 %v4827
        %v5120 = vunpack.c.l.b16 %v4828
        %v5121 = vunpack.c.l.b16 %v4829
        %v5122 = vunpack.c.l.b16 %v4830
        %v5123 = vunpack.c.l.b16 %v4831
        %v5124 = vunpack.c.l.b16 %v4832
        %v5125 = vunpack.c.l.b16 %v4833
        %v5126 = vunpack.c.l.b16 %v4834
        %v5127 = vunpack.c.l.b16 %v4835
        %v5128 = vunpack.c.l.b16 %v4836
        %v5129 = vunpack.c.l.b16 %v4837
        %v5130 = vunpack.c.l.b16 %v4838
        %v5131 = vunpack.c.l.b16 %v4839
        %v5132 = vunpack.c.l.b16 %v4840
        %v5133 = vunpack.c.l.b16 %v4841
        %v5134 = vunpack.c.l.b16 %v4842
        %v5135 = vunpack.c.l.b16 %v4843
        %v5136 = vunpack.c.l.b16 %v4844
        %v5137 = vunpack.c.l.b16 %v4845
        %v5138 = vunpack.c.l.b16 %v4846
        %v5139 = vunpack.c.l.b16 %v4847
        %v5140 = vunpack.c.l.b16 %v4848
        %v5141 = vunpack.c.l.b16 %v4849
        %v5142 = vunpack.c.l.b16 %v4850
        %v5143 = vunpack.c.l.b16 %v4851
        %v5144 = vunpack.c.l.b16 %v4852
        %v5145 = vunpack.c.l.b16 %v4853
        %v5146 = vunpack.c.l.b16 %v4854
        %v5147 = vunpack.c.l.b16 %v4855
        %v5148 = vunpack.c.l.b16 %v4856
        %v5149 = vunpack.c.l.b16 %v4857
        %v5150 = vunpack.c.l.b16 %v4858
        %v5151 = vunpack.c.l.b16 %v4859
        %v5152 = vunpack.c.l.b16 %v4860
        %v5153 = vunpack.c.l.b16 %v4861
        %v5154 = vunpack.c.l.b16 %v4862
        %v5155 = vunpack.c.l.b16 %v4863
        %v5156 = vunpack.c.l.b16 %v4864
        %v5157 = vunpack.c.l.b16 %v4865
        %v5158 = vunpack.c.l.b16 %v4866
        %v5159 = vunpack.c.l.b16 %v4867
        %v5160 = vunpack.c.l.b16 %v4868
        %v5161 = vunpack.c.l.b16 %v4869
        %v5162 = vunpack.c.l.b16 %v4870
        %v5163 = vunpack.c.l.b16 %v4871
        %v5164 = vunpack.c.l.b16 %v4872
        %v5165 = vunpack.c.l.b16 %v4873
        %v5166 = vunpack.c.l.b16 %v4874
        %v5167 = vunpack.c.l.b16 %v4875
        %v5168 = vunpack.c.l.b16 %v4876
        %v5169 = vunpack.c.l.b16 %v4877
        %v5170 = vunpack.c.l.b16 %v4878
        %v5171 = vunpack.c.l.b16 %v4879
        %v5172 = vunpack.c.l.b16 %v4880
        %v5173 = vunpack.c.l.b16 %v4881
        %v5174 = vunpack.c.l.b16 %v4882
        %v5175 = vunpack.c.l.b16 %v4883
        %v5176 = vunpack.c.l.b16 %v4884
        %v5177 = vunpack.c.l.b16 %v4885
        %v5178 = vunpack.c.l.b16 %v4886
        %v5179 = vunpack.c.l.b16 %v4887
        %v5180 = vunpack.c.l.b16 %v4888
        %v5181 = vunpack.c.l.b16 %v4889
        %v5182 = vunpack.c.l.b16 %v4890
        %v5183 = vunpack.c.l.b16 %v4891
        %v5184 = vunpack.c.l.b16 %v4892
        %v5185 = vunpack.c.l.b16 %v4893
        %v5186 = vunpack.c.l.b16 %v4894
        %v5187 = vunpack.c.l.b16 %v4895
        %v5188 = vunpack.c.l.b16 %v4896
        %v5189 = vunpack.c.l.b16 %v4897
        %v5190 = vunpack.c.l.b16 %v4898
        %v5191 = vunpack.c.l.b16 %v4899
        %v5192 = vunpack.c.l.b16 %v4900
        %v5193 = vunpack.c.l.b16 %v4901
        %v5194 = vunpack.c.l.b16 %v4902
        %v5195 = vunpack.c.l.b16 %v4903
        %v5196 = vunpack.c.l.b16 %v4904
        %v5197 = vunpack.c.l.b16 %v4905
        %v5198 = vunpack.c.l.b16 %v4906
        %v5199 = vunpack.c.l.b16 %v4907
        %v5200 = vunpack.c.l.b16 %v4908
        %v5201 = vunpack.c.l.b16 %v4909
        %v5202 = vunpack.c.l.b16 %v4910
        %v5203 = vunpack.c.l.b16 %v4911
        %v5204 = vunpack.c.l.b16 %v4912
        %v5205 = vunpack.c.l.b16 %v4913
        %v5206 = vunpack.c.l.b16 %v4914
        %v5207 = vunpack.c.l.b16 %v4915
        %v5208 = vunpack.c.l.b16 %v4916
        %v5209 = vunpack.c.l.b16 %v4917
        %v5210 = vunpack.c.l.b16 %v4918
        %v5211 = vunpack.c.l.b16 %v4919
        %v5212 = vunpack.c.l.b16 %v4920
        %v5213 = vunpack.c.l.b16 %v4921
        %v5214 = vunpack.c.l.b16 %v4922
        %v5215 = vunpack.c.l.b16 %v4923
        %v5216 = vunpack.c.l.b16 %v4924
        %v5217 = vunpack.c.l.b16 %v4925
        %v5218 = vunpack.c.l.b16 %v4926
        %v5219 = vunpack.c.l.b16 %v4927
        %v5220 = vunpack.c.l.b16 %v4928
        %v5221 = vunpack.c.l.b16 %v4929
        %v5222 = vunpack.c.l.b16 %v4930
        %v5223 = vunpack.c.l.b16 %v4931
        %v5224 = vunpack.c.l.b16 %v4932
        %v5225 = vunpack.c.l.b16 %v4933
        %v5226 = vunpack.c.l.b16 %v4934
        %v5227 = vunpack.c.l.b16 %v4935
        %v5228 = vunpack.c.l.b16 %v4936
        %v5229 = vunpack.c.l.b16 %v4937
        %v5230 = vunpack.c.l.b16 %v4938
        %v5231 = vunpack.c.l.b16 %v4939
        %v5232 = vunpack.c.l.b16 %v4940
        %v5233 = vunpack.c.l.b16 %v4941
        %v5234 = vunpack.c.l.b16 %v4942
        %v5235 = vunpack.c.l.b16 %v4943
        %v5236 = vunpack.c.l.b16 %v4944
        %v5237 = vunpack.c.l.b16 %v4945
        %v5238 = vunpack.c.l.b16 %v4946
        %v5239 = vunpack.c.l.b16 %v4947
        %v5240 = vunpack.c.l.b16 %v4948
        %v5241 = vunpack.c.l.b16 %v4949
        %v5242 = vunpack.c.l.b16 %v4950
        %v5243 = vunpack.c.l.b16 %v4951
        %v5244 = vunpack.c.l.b16 %v4952
        %v5245 = vunpack.c.l.b16 %v4953
        %v5246 = vunpack.c.l.b16 %v4954
        %v5247 = vunpack.c.l.b16 %v4955
        %v5248 = vunpack.c.l.b16 %v4956
        %v5249 = vunpack.c.l.b16 %v4957
        %v5250 = vunpack.c.l.b16 %v4958
        %v5251 = vunpack.c.l.b16 %v4959
        %v5252 = vunpack.c.l.b16 %v4960
        %v5253 = vunpack.c.l.b16 %v4961
        %v5254 = vunpack.c.l.b16 %v4962
        %v5255 = vunpack.c.l.b16 %v4963
        %v5256 = vunpack.c.l.b16 %v4964
        %v5257 = vunpack.c.l.b16 %v4965
        %v5258 = vunpack.c.l.b16 %v4966
        %v5259 = vunpack.c.l.b16 %v4967
        %v5260 = vunpack.c.l.b16 %v4968
        %v5261 = vunpack.c.l.b16 %v4969
        %v5262 = vpack.c.b16 %v5119, %v5118
        %v5263 = vpack.c.b16 %v5121, %v5120
        %v5264 = vpack.c.b16 %v5123, %v5122
        %v5265 = vpack.c.b16 %v5125, %v5124
        %v5266 = vpack.c.b16 %v5127, %v5126
        %v5267 = vpack.c.b16 %v5129, %v5128
        %v5268 = vpack.c.b16 %v5131, %v5130
        %v5269 = vpack.c.b16 %v5133, %v5132
        %v5270 = vpack.c.b16 %v5135, %v5134
        %v5271 = vpack.c.b16 %v5137, %v5136
        %v5272 = vpack.c.b16 %v5139, %v5138
        %v5273 = vpack.c.b16 %v5141, %v5140
        %v5274 = vpack.c.b16 %v5143, %v5142
        %v5275 = vpack.c.b16 %v5145, %v5144
        %v5276 = vpack.c.b16 %v5147, %v5146
        %v5277 = vpack.c.b16 %v5149, %v5148
        %v5278 = vpack.c.b16 %v5151, %v5150
        %v5279 = vpack.c.b16 %v5153, %v5152
        %v5280 = vpack.c.b16 %v5155, %v5154
        %v5281 = vpack.c.b16 %v5157, %v5156
        %v5282 = vpack.c.b16 %v5159, %v5158
        %v5283 = vpack.c.b16 %v5161, %v5160
        %v5284 = vpack.c.b16 %v5163, %v5162
        %v5285 = vpack.c.b16 %v5165, %v5164
        %v5286 = vpack.c.b16 %v5167, %v5166
        %v5287 = vpack.c.b16 %v5169, %v5168
        %v5288 = vpack.c.b16 %v5171, %v5170
        %v5289 = vpack.c.b16 %v5173, %v5172
        %v5290 = vpack.c.b16 %v5175, %v5174
        %v5291 = vpack.c.b16 %v5177, %v5176
        %v5292 = vpack.c.b16 %v5179, %v5178
        %v5293 = vpack.c.b16 %v5181, %v5180
        %v5294 = vpack.c.b16 %v5183, %v5182
        %v5295 = vpack.c.b16 %v5185, %v5184
        %v5296 = vpack.c.b16 %v5187, %v5186
        %v5297 = vpack.c.b16 %v5189, %v5188
        %v5298 = vpack.c.b16 %v5191, %v5190
        %v5299 = vpack.c.b16 %v5193, %v5192
        %v5300 = vpack.c.b16 %v5195, %v5194
        %v5301 = vpack.c.b16 %v5197, %v5196
        %v5302 = vpack.c.b16 %v5199, %v5198
        %v5303 = vpack.c.b16 %v5201, %v5200
        %v5304 = vpack.c.b16 %v5203, %v5202
        %v5305 = vpack.c.b16 %v5205, %v5204
        %v5306 = vpack.c.b16 %v5207, %v5206
        %v5307 = vpack.c.b16 %v5209, %v5208
        %v5308 = vpack.c.b16 %v5211, %v5210
        %v5309 = vpack.c.b16 %v5213, %v5212
        %v5310 = vpack.c.b16 %v5215, %v5214
        %v5311 = vpack.c.b16 %v5217, %v5216
        %v5312 = vpack.c.b16 %v5219, %v5218
        %v5313 = vpack.c.b16 %v5221, %v5220
        %v5314 = vpack.c.b16 %v5223, %v5222
        %v5315 = vpack.c.b16 %v5225, %v5224
        %v5316 = vpack.c.b16 %v5227, %v5226
        %v5317 = vpack.c.b16 %v5229, %v5228
        %v5318 = vpack.c.b16 %v5231, %v5230
        %v5319 = vpack.c.b16 %v5233, %v5232
        %v5320 = vpack.c.b16 %v5235, %v5234
        %v5321 = vpack.c.b16 %v5237, %v5236
        %v5322 = vpack.c.b16 %v5239, %v5238
        %v5323 = vpack.c.b16 %v5241, %v5240
        %v5324 = vpack.c.b16 %v5243, %v5242
        %v5325 = vpack.c.b16 %v5245, %v5244
        %v5326 = vpack.c.b16 %v5247, %v5246
        %v5327 = vpack.c.b16 %v5249, %v5248
        %v5328 = vpack.c.b16 %v5251, %v5250
        %v5329 = vpack.c.b16 %v5253, %v5252
        %v5330 = vpack.c.b16 %v5255, %v5254
        %v5331 = vpack.c.b16 %v5257, %v5256
        %v5332 = vpack.c.b16 %v5259, %v5258
        %v5333 = vpack.c.b16 %v5261, %v5260
        %5406 = vmatpush.bf16.msra.mxu0 %v5269
        %5407 = vmatpush.bf16.msra.mxu0 %v5268
        %5408 = vmatpush.bf16.msra.mxu0 %v5267
        %5409 = vmatpush.bf16.msra.mxu0 %v5266
        %5410 = vmatpush.bf16.msra.mxu0 %v5265
        %5411 = vmatpush.bf16.msra.mxu0 %v5264
        %5412 = vmatpush.bf16.msra.mxu0 %v5263
        %5413 = vmatpush.bf16.msra.mxu0 %v5262
        %5414 = vmatmul.bf16.gmra.mxu0 %v4790
        %v5415 = vpop.f32.mrf.mxu0
        %v5416 = vadd.f32 %v4972, %v5415
        %v5417 = vpop.f32.mrf.mxu0
        %v5418 = vadd.f32 %v4972, %v5417
        %5419 = vmatmul.bf16.gmra.mxu0 %v4799
        %v5420 = vpop.f32.mrf.mxu0
        %v5421 = vadd.f32 %v4972, %v5420
        %v5422 = vpop.f32.mrf.mxu0
        %v5423 = vadd.f32 %v4972, %v5422
        %5424 = vmatmul.bf16.gmra.mxu0 %v4808
        %v5425 = vpop.f32.mrf.mxu0
        %v5426 = vadd.f32 %v4972, %v5425
        %v5427 = vpop.f32.mrf.mxu0
        %v5428 = vadd.f32 %v4972, %v5427
        %5429 = vmatmul.bf16.gmra.mxu0 %v4817
        %v5430 = vpop.f32.mrf.mxu0
        %v5431 = vadd.f32 %v4972, %v5430
        %v5432 = vpop.f32.mrf.mxu0
        %v5433 = vadd.f32 %v4972, %v5432
        %5434 = vdwg.mxu0
        %5435 = vmatpush.bf16.msra.mxu0 %v5277
        %5436 = vmatpush.bf16.msra.mxu0 %v5276
        %5437 = vmatpush.bf16.msra.mxu0 %v5275
        %5438 = vmatpush.bf16.msra.mxu0 %v5274
        %5439 = vmatpush.bf16.msra.mxu0 %v5273
        %5440 = vmatpush.bf16.msra.mxu0 %v5272
        %5441 = vmatpush.bf16.msra.mxu0 %v5271
        %5442 = vmatpush.bf16.msra.mxu0 %v5270
        %5443 = vmatmul.bf16.gmra.mxu0 %v4791
        %v5444 = vpop.f32.mrf.mxu0
        %v5445 = vadd.f32 %v5416, %v5444
        %v5446 = vpop.f32.mrf.mxu0
        %v5447 = vadd.f32 %v5418, %v5446
        %5448 = vmatmul.bf16.gmra.mxu0 %v4800
        %v5449 = vpop.f32.mrf.mxu0
        %v5450 = vadd.f32 %v5421, %v5449
        %v5451 = vpop.f32.mrf.mxu0
        %v5452 = vadd.f32 %v5423, %v5451
        %5453 = vmatmul.bf16.gmra.mxu0 %v4809
        %v5454 = vpop.f32.mrf.mxu0
        %v5455 = vadd.f32 %v5426, %v5454
        %v5456 = vpop.f32.mrf.mxu0
        %v5457 = vadd.f32 %v5428, %v5456
        %5458 = vmatmul.bf16.gmra.mxu0 %v4818
        %v5459 = vpop.f32.mrf.mxu0
        %v5460 = vadd.f32 %v5431, %v5459
        %v5461 = vpop.f32.mrf.mxu0
        %v5462 = vadd.f32 %v5433, %v5461
        %5463 = vdwg.mxu0
        %5464 = vmatpush.bf16.msra.mxu0 %v5285
        %5465 = vmatpush.bf16.msra.mxu0 %v5284
        %5466 = vmatpush.bf16.msra.mxu0 %v5283
        %5467 = vmatpush.bf16.msra.mxu0 %v5282
        %5468 = vmatpush.bf16.msra.mxu0 %v5281
        %5469 = vmatpush.bf16.msra.mxu0 %v5280
        %5470 = vmatpush.bf16.msra.mxu0 %v5279
        %5471 = vmatpush.bf16.msra.mxu0 %v5278
        %5472 = vmatmul.bf16.gmra.mxu0 %v4792
        %v5473 = vpop.f32.mrf.mxu0
        %v5474 = vadd.f32 %v5445, %v5473
        %v5475 = vpop.f32.mrf.mxu0
        %v5476 = vadd.f32 %v5447, %v5475
        %5477 = vmatmul.bf16.gmra.mxu0 %v4801
        %v5478 = vpop.f32.mrf.mxu0
        %v5479 = vadd.f32 %v5450, %v5478
        %v5480 = vpop.f32.mrf.mxu0
        %v5481 = vadd.f32 %v5452, %v5480
        %5482 = vmatmul.bf16.gmra.mxu0 %v4810
        %v5483 = vpop.f32.mrf.mxu0
        %v5484 = vadd.f32 %v5455, %v5483
        %v5485 = vpop.f32.mrf.mxu0
        %v5486 = vadd.f32 %v5457, %v5485
        %5487 = vmatmul.bf16.gmra.mxu0 %v4819
        %v5488 = vpop.f32.mrf.mxu0
        %v5489 = vadd.f32 %v5460, %v5488
        %v5490 = vpop.f32.mrf.mxu0
        %v5491 = vadd.f32 %v5462, %v5490
        %5492 = vdwg.mxu0
        %5493 = vmatpush.bf16.msra.mxu0 %v5293
        %5494 = vmatpush.bf16.msra.mxu0 %v5292
        %5495 = vmatpush.bf16.msra.mxu0 %v5291
        %5496 = vmatpush.bf16.msra.mxu0 %v5290
        %5497 = vmatpush.bf16.msra.mxu0 %v5289
        %5498 = vmatpush.bf16.msra.mxu0 %v5288
        %5499 = vmatpush.bf16.msra.mxu0 %v5287
        %5500 = vmatpush.bf16.msra.mxu0 %v5286
        %5501 = vmatmul.bf16.gmra.mxu0 %v4793
        %v5502 = vpop.f32.mrf.mxu0
        %v5503 = vadd.f32 %v5474, %v5502
        %v5504 = vpop.f32.mrf.mxu0
        %v5505 = vadd.f32 %v5476, %v5504
        %5506 = vmatmul.bf16.gmra.mxu0 %v4802
        %v5507 = vpop.f32.mrf.mxu0
        %v5508 = vadd.f32 %v5479, %v5507
        %v5509 = vpop.f32.mrf.mxu0
        %v5510 = vadd.f32 %v5481, %v5509
        %5511 = vmatmul.bf16.gmra.mxu0 %v4811
        %v5512 = vpop.f32.mrf.mxu0
        %v5513 = vadd.f32 %v5484, %v5512
        %v5514 = vpop.f32.mrf.mxu0
        %v5515 = vadd.f32 %v5486, %v5514
        %5516 = vmatmul.bf16.gmra.mxu0 %v4820
        %v5517 = vpop.f32.mrf.mxu0
        %v5518 = vadd.f32 %v5489, %v5517
        %v5519 = vpop.f32.mrf.mxu0
        %v5520 = vadd.f32 %v5491, %v5519
        %5521 = vdwg.mxu0
        %5522 = vmatpush.bf16.msra.mxu0 %v5301
        %5523 = vmatpush.bf16.msra.mxu0 %v5300
        %5524 = vmatpush.bf16.msra.mxu0 %v5299
        %5525 = vmatpush.bf16.msra.mxu0 %v5298
        %5526 = vmatpush.bf16.msra.mxu0 %v5297
        %5527 = vmatpush.bf16.msra.mxu0 %v5296
        %5528 = vmatpush.bf16.msra.mxu0 %v5295
        %5529 = vmatpush.bf16.msra.mxu0 %v5294
        %5530 = vmatmul.bf16.gmra.mxu0 %v4794
        %v5531 = vpop.f32.mrf.mxu0
        %v5532 = vadd.f32 %v5503, %v5531
        %v5533 = vpop.f32.mrf.mxu0
        %v5534 = vadd.f32 %v5505, %v5533
        %5535 = vmatmul.bf16.gmra.mxu0 %v4803
        %v5536 = vpop.f32.mrf.mxu0
        %v5537 = vadd.f32 %v5508, %v5536
        %v5538 = vpop.f32.mrf.mxu0
        %v5539 = vadd.f32 %v5510, %v5538
        %5540 = vmatmul.bf16.gmra.mxu0 %v4812
        %v5541 = vpop.f32.mrf.mxu0
        %v5542 = vadd.f32 %v5513, %v5541
        %v5543 = vpop.f32.mrf.mxu0
        %v5544 = vadd.f32 %v5515, %v5543
        %5545 = vmatmul.bf16.gmra.mxu0 %v4821
        %v5546 = vpop.f32.mrf.mxu0
        %v5547 = vadd.f32 %v5518, %v5546
        %v5548 = vpop.f32.mrf.mxu0
        %v5549 = vadd.f32 %v5520, %v5548
        %5550 = vdwg.mxu0
        %5551 = vmatpush.bf16.msra.mxu0 %v5309
        %5552 = vmatpush.bf16.msra.mxu0 %v5308
        %5553 = vmatpush.bf16.msra.mxu0 %v5307
        %5554 = vmatpush.bf16.msra.mxu0 %v5306
        %5555 = vmatpush.bf16.msra.mxu0 %v5305
        %5556 = vmatpush.bf16.msra.mxu0 %v5304
        %5557 = vmatpush.bf16.msra.mxu0 %v5303
        %5558 = vmatpush.bf16.msra.mxu0 %v5302
        %5559 = vmatmul.bf16.gmra.mxu0 %v4795
        %v5560 = vpop.f32.mrf.mxu0
        %v5561 = vadd.f32 %v5532, %v5560
        %v5562 = vpop.f32.mrf.mxu0
        %v5563 = vadd.f32 %v5534, %v5562
        %5564 = vmatmul.bf16.gmra.mxu0 %v4804
        %v5565 = vpop.f32.mrf.mxu0
        %v5566 = vadd.f32 %v5537, %v5565
        %v5567 = vpop.f32.mrf.mxu0
        %v5568 = vadd.f32 %v5539, %v5567
        %5569 = vmatmul.bf16.gmra.mxu0 %v4813
        %v5570 = vpop.f32.mrf.mxu0
        %v5571 = vadd.f32 %v5542, %v5570
        %v5572 = vpop.f32.mrf.mxu0
        %v5573 = vadd.f32 %v5544, %v5572
        %5574 = vmatmul.bf16.gmra.mxu0 %v4822
        %v5575 = vpop.f32.mrf.mxu0
        %v5576 = vadd.f32 %v5547, %v5575
        %v5577 = vpop.f32.mrf.mxu0
        %v5578 = vadd.f32 %v5549, %v5577
        %5579 = vdwg.mxu0
        %5580 = vmatpush.bf16.msra.mxu0 %v5317
        %5581 = vmatpush.bf16.msra.mxu0 %v5316
        %5582 = vmatpush.bf16.msra.mxu0 %v5315
        %5583 = vmatpush.bf16.msra.mxu0 %v5314
        %5584 = vmatpush.bf16.msra.mxu0 %v5313
        %5585 = vmatpush.bf16.msra.mxu0 %v5312
        %5586 = vmatpush.bf16.msra.mxu0 %v5311
        %5587 = vmatpush.bf16.msra.mxu0 %v5310
        %5588 = vmatmul.bf16.gmra.mxu0 %v4796
        %v5589 = vpop.f32.mrf.mxu0
        %v5590 = vadd.f32 %v5561, %v5589
        %v5591 = vpop.f32.mrf.mxu0
        %v5592 = vadd.f32 %v5563, %v5591
        %5593 = vmatmul.bf16.gmra.mxu0 %v4805
        %v5594 = vpop.f32.mrf.mxu0
        %v5595 = vadd.f32 %v5566, %v5594
        %v5596 = vpop.f32.mrf.mxu0
        %v5597 = vadd.f32 %v5568, %v5596
        %5598 = vmatmul.bf16.gmra.mxu0 %v4814
        %v5599 = vpop.f32.mrf.mxu0
        %v5600 = vadd.f32 %v5571, %v5599
        %v5601 = vpop.f32.mrf.mxu0
        %v5602 = vadd.f32 %v5573, %v5601
        %5603 = vmatmul.bf16.gmra.mxu0 %v4823
        %v5604 = vpop.f32.mrf.mxu0
        %v5605 = vadd.f32 %v5576, %v5604
        %v5606 = vpop.f32.mrf.mxu0
        %v5607 = vadd.f32 %v5578, %v5606
        %5608 = vdwg.mxu0
        %5609 = vmatpush.bf16.msra.mxu0 %v5325
        %5610 = vmatpush.bf16.msra.mxu0 %v5324
        %5611 = vmatpush.bf16.msra.mxu0 %v5323
        %5612 = vmatpush.bf16.msra.mxu0 %v5322
        %5613 = vmatpush.bf16.msra.mxu0 %v5321
        %5614 = vmatpush.bf16.msra.mxu0 %v5320
        %5615 = vmatpush.bf16.msra.mxu0 %v5319
        %5616 = vmatpush.bf16.msra.mxu0 %v5318
        %5617 = vmatmul.bf16.gmra.mxu0 %v4797
        %v5618 = vpop.f32.mrf.mxu0
        %v5619 = vadd.f32 %v5590, %v5618
        %v5620 = vpop.f32.mrf.mxu0
        %v5621 = vadd.f32 %v5592, %v5620
        %5622 = vmatmul.bf16.gmra.mxu0 %v4806
        %v5623 = vpop.f32.mrf.mxu0
        %v5624 = vadd.f32 %v5595, %v5623
        %v5625 = vpop.f32.mrf.mxu0
        %v5626 = vadd.f32 %v5597, %v5625
        %5627 = vmatmul.bf16.gmra.mxu0 %v4815
        %v5628 = vpop.f32.mrf.mxu0
        %v5629 = vadd.f32 %v5600, %v5628
        %v5630 = vpop.f32.mrf.mxu0
        %v5631 = vadd.f32 %v5602, %v5630
        %5632 = vmatmul.bf16.gmra.mxu0 %v4824
        %v5633 = vpop.f32.mrf.mxu0
        %v5634 = vadd.f32 %v5605, %v5633
        %v5635 = vpop.f32.mrf.mxu0
        %v5636 = vadd.f32 %v5607, %v5635
        %5637 = vdwg.mxu0
        %5638 = vmatpush.bf16.msra.mxu0 %v5333
        %5639 = vmatpush.bf16.msra.mxu0 %v5332
        %5640 = vmatpush.bf16.msra.mxu0 %v5331
        %5641 = vmatpush.bf16.msra.mxu0 %v5330
        %5642 = vmatpush.bf16.msra.mxu0 %v5329
        %5643 = vmatpush.bf16.msra.mxu0 %v5328
        %5644 = vmatpush.bf16.msra.mxu0 %v5327
        %5645 = vmatpush.bf16.msra.mxu0 %v5326
        %5646 = vmatmul.bf16.gmra.mxu0 %v4798
        %v5647 = vpop.f32.mrf.mxu0
        %v5648 = vadd.f32 %v5619, %v5647
        %v5649 = vpop.f32.mrf.mxu0
        %v5650 = vadd.f32 %v5621, %v5649
        %5651 = vmatmul.bf16.gmra.mxu0 %v4807
        %v5652 = vpop.f32.mrf.mxu0
        %v5653 = vadd.f32 %v5624, %v5652
        %v5654 = vpop.f32.mrf.mxu0
        %v5655 = vadd.f32 %v5626, %v5654
        %5656 = vmatmul.bf16.gmra.mxu0 %v4816
        %v5657 = vpop.f32.mrf.mxu0
        %v5658 = vadd.f32 %v5629, %v5657
        %v5659 = vpop.f32.mrf.mxu0
        %v5660 = vadd.f32 %v5631, %v5659
        %5661 = vmatmul.bf16.gmra.mxu0 %v4825
        %v5662 = vpop.f32.mrf.mxu0
        %v5663 = vadd.f32 %v5634, %v5662
        %v5664 = vpop.f32.mrf.mxu0
        %v5665 = vadd.f32 %v5636, %v5664
        %5666 = vdwg.mxu0
        %v5667 = vmax.f32 %v5648, 0.0
        %v5668 = vmax.f32 %v5650, 0.0
        %v5669 = vmax.f32 %v5653, 0.0
        %v5670 = vmax.f32 %v5655, 0.0
        %v5671 = vmax.f32 %v5658, 0.0
        %v5672 = vmax.f32 %v5660, 0.0
        %v5673 = vmax.f32 %v5663, 0.0
        %v5674 = vmax.f32 %v5665, 0.0
        %5675 = vst [vmem:[#allocation2] sm:$0xff] 0.0
        %5676 = vst [vmem:[#allocation2 + $0x8] sm:$0x3] 0.0
        %5677 = vst [vmem:[#allocation2 + $0x18] sm:$0xff] 0.0
        %5678 = vst [vmem:[#allocation2 + $0x20] sm:$0x3] 0.0
        %5679 = vst [vmem:[#allocation2 + $0x30] sm:$0xff] 0.0
        %5680 = vst [vmem:[#allocation2 + $0x38] sm:$0x3] 0.0
        %5681 = vst [vmem:[#allocation2 + $0x48] sm:$0xff] 0.0
        %5682 = vst [vmem:[#allocation2 + $0x50] sm:$0x3] 0.0
        %5683 = vst [vmem:[#allocation2 + $0x60] sm:$0xff] 0.0
        %5684 = vst [vmem:[#allocation2 + $0x68] sm:$0x3] 0.0
        %5685 = vst [vmem:[#allocation2 + $0x78] sm:$0xff] 0.0
        %5686 = vst [vmem:[#allocation2 + $0x80] sm:$0x3] 0.0
        %5687 = vst [vmem:[#allocation2 + $0x90] sm:$0xff] 0.0
        %5688 = vst [vmem:[#allocation2 + $0x98] sm:$0x3] 0.0
        %5689 = vst [vmem:[#allocation2 + $0xa8] sm:$0xff] 0.0
        %5690 = vst [vmem:[#allocation2 + $0xb0] sm:$0x3] 0.0
        %5691 = vst [vmem:[#allocation2 + $0xc0] sm:$0xff] 0.0
        %5692 = vst [vmem:[#allocation2 + $0xc8] sm:$0x3] 0.0
        %5693 = vst [vmem:[#allocation2 + $0xd8] sm:$0xff] 0.0
        %5694 = vst [vmem:[#allocation2 + $0xe0] sm:$0x3] 0.0
        %5695 = vst.msk [vmem:[%s779 + $0x1] sm:$0xff] %vm4709, %v5667
        %5696 = vst.msk [vmem:[%s779 + $0x19] sm:$0xff] %vm4709, %v5668
        %5697 = vst.msk [vmem:[%s779 + $0x31] sm:$0xff] %vm4709, %v5669
        %5698 = vst.msk [vmem:[%s779 + $0x49] sm:$0xff] %vm4709, %v5670
        %5699 = vst.msk [vmem:[%s779 + $0x61] sm:$0xff] %vm4709, %v5671
        %5700 = vst.msk [vmem:[%s779 + $0x79] sm:$0xff] %vm4709, %v5672
        %5701 = vst.msk [vmem:[%s779 + $0x91] sm:$0xff] %vm4709, %v5673
        %5702 = vst.msk [vmem:[%s779 + $0xa9] sm:$0xff] %vm4709, %v5674
        %v5703 = vld [vmem:[#allocation2] sm:$0xff]
        %v5704 = vld [vmem:[#allocation2 + $0x18] sm:$0xff]
        %v5705 = vld [vmem:[#allocation2 + $0x30] sm:$0xff]
        %v5706 = vld [vmem:[#allocation2 + $0x48] sm:$0xff]
        %v5707 = vld [vmem:[#allocation2 + $0x60] sm:$0xff]
        %v5708 = vld [vmem:[#allocation2 + $0x78] sm:$0xff]
        %v5709 = vld [vmem:[#allocation2 + $0x90] sm:$0xff]
        %v5710 = vld [vmem:[#allocation2 + $0xa8] sm:$0xff]
        %v5711 = vld [vmem:[#allocation2 + $0x1] sm:$0xff]
        %v5712 = vld [vmem:[#allocation2 + $0x19] sm:$0xff]
        %v5713 = vld [vmem:[#allocation2 + $0x31] sm:$0xff]
        %v5714 = vld [vmem:[#allocation2 + $0x49] sm:$0xff]
        %v5715 = vld [vmem:[#allocation2 + $0x61] sm:$0xff]
        %v5716 = vld [vmem:[#allocation2 + $0x79] sm:$0xff]
        %v5717 = vld [vmem:[#allocation2 + $0x91] sm:$0xff]
        %v5718 = vld [vmem:[#allocation2 + $0xa9] sm:$0xff]
        %v5719 = vld [vmem:[#allocation2 + $0x2] sm:$0xff]
        %v5720 = vld [vmem:[#allocation2 + $0x1a] sm:$0xff]
        %v5721 = vld [vmem:[#allocation2 + $0x32] sm:$0xff]
        %v5722 = vld [vmem:[#allocation2 + $0x4a] sm:$0xff]
        %v5723 = vld [vmem:[#allocation2 + $0x62] sm:$0xff]
        %v5724 = vld [vmem:[#allocation2 + $0x7a] sm:$0xff]
        %v5725 = vld [vmem:[#allocation2 + $0x92] sm:$0xff]
        %v5726 = vld [vmem:[#allocation2 + $0xaa] sm:$0xff]
        %v5727 = vld [vmem:[%s779] sm:$0xff]
        %v5728 = vld [vmem:[%s779 + $0x18] sm:$0xff]
        %v5729 = vld [vmem:[%s779 + $0x30] sm:$0xff]
        %v5730 = vld [vmem:[%s779 + $0x48] sm:$0xff]
        %v5731 = vld [vmem:[%s779 + $0x60] sm:$0xff]
        %v5732 = vld [vmem:[%s779 + $0x78] sm:$0xff]
        %v5733 = vld [vmem:[%s779 + $0x90] sm:$0xff]
        %v5734 = vld [vmem:[%s779 + $0xa8] sm:$0xff]
        %v5735 = vld [vmem:[%s779 + $0x1] sm:$0xff]
        %v5736 = vld [vmem:[%s779 + $0x19] sm:$0xff]
        %v5737 = vld [vmem:[%s779 + $0x31] sm:$0xff]
        %v5738 = vld [vmem:[%s779 + $0x49] sm:$0xff]
        %v5739 = vld [vmem:[%s779 + $0x61] sm:$0xff]
        %v5740 = vld [vmem:[%s779 + $0x79] sm:$0xff]
        %v5741 = vld [vmem:[%s779 + $0x91] sm:$0xff]
        %v5742 = vld [vmem:[%s779 + $0xa9] sm:$0xff]
        %v5743 = vld [vmem:[%s779 + $0x2] sm:$0xff]
        %v5744 = vld [vmem:[%s779 + $0x1a] sm:$0xff]
        %v5745 = vld [vmem:[%s779 + $0x32] sm:$0xff]
        %v5746 = vld [vmem:[%s779 + $0x4a] sm:$0xff]
        %v5747 = vld [vmem:[%s779 + $0x62] sm:$0xff]
        %v5748 = vld [vmem:[%s779 + $0x7a] sm:$0xff]
        %v5749 = vld [vmem:[%s779 + $0x92] sm:$0xff]
        %v5750 = vld [vmem:[%s779 + $0xaa] sm:$0xff]
        %v5751 = vld [vmem:[%s1005] sm:$0xff]
        %v5752 = vld [vmem:[%s1005 + $0x18] sm:$0xff]
        %v5753 = vld [vmem:[%s1005 + $0x30] sm:$0xff]
        %v5754 = vld [vmem:[%s1005 + $0x48] sm:$0xff]
        %v5755 = vld [vmem:[%s1005 + $0x60] sm:$0xff]
        %v5756 = vld [vmem:[%s1005 + $0x78] sm:$0xff]
        %v5757 = vld [vmem:[%s1005 + $0x90] sm:$0xff]
        %v5758 = vld [vmem:[%s1005 + $0xa8] sm:$0xff]
        %v5759 = vld [vmem:[%s1005 + $0x1] sm:$0xff]
        %v5760 = vld [vmem:[%s1005 + $0x19] sm:$0xff]
        %v5761 = vld [vmem:[%s1005 + $0x31] sm:$0xff]
        %v5762 = vld [vmem:[%s1005 + $0x49] sm:$0xff]
        %v5763 = vld [vmem:[%s1005 + $0x61] sm:$0xff]
        %v5764 = vld [vmem:[%s1005 + $0x79] sm:$0xff]
        %v5765 = vld [vmem:[%s1005 + $0x91] sm:$0xff]
        %v5766 = vld [vmem:[%s1005 + $0xa9] sm:$0xff]
        %v5767 = vld [vmem:[%s1005 + $0x2] sm:$0xff]
        %v5768 = vld [vmem:[%s1005 + $0x1a] sm:$0xff]
        %v5769 = vld [vmem:[%s1005 + $0x32] sm:$0xff]
        %v5770 = vld [vmem:[%s1005 + $0x4a] sm:$0xff]
        %v5771 = vld [vmem:[%s1005 + $0x62] sm:$0xff]
        %v5772 = vld [vmem:[%s1005 + $0x7a] sm:$0xff]
        %v5773 = vld [vmem:[%s1005 + $0x92] sm:$0xff]
        %v5774 = vld [vmem:[%s1005 + $0xaa] sm:$0xff]
        %v5775 = vpack.c.bf16 %v5704, %v5703
        %v5776 = vpack.c.bf16 %v5712, %v5711
        %v5777 = vpack.c.bf16 %v5720, %v5719
        %v5778 = vpack.c.bf16 %v5728, %v5727
        %v5779 = vpack.c.bf16 %v5736, %v5735
        %v5780 = vpack.c.bf16 %v5744, %v5743
        %v5781 = vpack.c.bf16 %v5752, %v5751
        %v5782 = vpack.c.bf16 %v5760, %v5759
        %v5783 = vpack.c.bf16 %v5768, %v5767
        %v5784 = vpack.c.bf16 %v5706, %v5705
        %v5785 = vpack.c.bf16 %v5714, %v5713
        %v5786 = vpack.c.bf16 %v5722, %v5721
        %v5787 = vpack.c.bf16 %v5730, %v5729
        %v5788 = vpack.c.bf16 %v5738, %v5737
        %v5789 = vpack.c.bf16 %v5746, %v5745
        %v5790 = vpack.c.bf16 %v5754, %v5753
        %v5791 = vpack.c.bf16 %v5762, %v5761
        %v5792 = vpack.c.bf16 %v5770, %v5769
        %v5793 = vpack.c.bf16 %v5708, %v5707
        %v5794 = vpack.c.bf16 %v5716, %v5715
        %v5795 = vpack.c.bf16 %v5724, %v5723
        %v5796 = vpack.c.bf16 %v5732, %v5731
        %v5797 = vpack.c.bf16 %v5740, %v5739
        %v5798 = vpack.c.bf16 %v5748, %v5747
        %v5799 = vpack.c.bf16 %v5756, %v5755
        %v5800 = vpack.c.bf16 %v5764, %v5763
        %v5801 = vpack.c.bf16 %v5772, %v5771
        %v5802 = vpack.c.bf16 %v5710, %v5709
        %v5803 = vpack.c.bf16 %v5718, %v5717
        %v5804 = vpack.c.bf16 %v5726, %v5725
        %v5805 = vpack.c.bf16 %v5734, %v5733
        %v5806 = vpack.c.bf16 %v5742, %v5741
        %v5807 = vpack.c.bf16 %v5750, %v5749
        %v5808 = vpack.c.bf16 %v5758, %v5757
        %v5809 = vpack.c.bf16 %v5766, %v5765
        %v5810 = vpack.c.bf16 %v5774, %v5773
        %v5811 = vld [vmem:[%s7] sm:$0xf]
        %v5812 = vld [vmem:[%s7 + $0x4] sm:$0xf]
        %v5813 = vld [vmem:[%s7 + $0x8] sm:$0xf]
        %v5814 = vld [vmem:[%s7 + $0xc] sm:$0xf]
        %v5815 = vld [vmem:[%s7 + $0x10] sm:$0xf]
        %v5816 = vld [vmem:[%s7 + $0x14] sm:$0xf]
        %v5817 = vld [vmem:[%s7 + $0x18] sm:$0xf]
        %v5818 = vld [vmem:[%s7 + $0x1c] sm:$0xf]
        %v5819 = vld [vmem:[%s7 + $0x20] sm:$0xf]
        %v5820 = vld [vmem:[%s7 + $0x24] sm:$0xf]
        %v5821 = vld [vmem:[%s7 + $0x28] sm:$0xf]
        %v5822 = vld [vmem:[%s7 + $0x2c] sm:$0xf]
        %v5823 = vld [vmem:[%s7 + $0x30] sm:$0xf]
        %v5824 = vld [vmem:[%s7 + $0x34] sm:$0xf]
        %v5825 = vld [vmem:[%s7 + $0x38] sm:$0xf]
        %v5826 = vld [vmem:[%s7 + $0x3c] sm:$0xf]
        %v5827 = vld [vmem:[%s7 + $0x40] sm:$0xf]
        %v5828 = vld [vmem:[%s7 + $0x44] sm:$0xf]
        %v5829 = vld [vmem:[%s7 + $0x48] sm:$0xf]
        %v5830 = vld [vmem:[%s7 + $0x4c] sm:$0xf]
        %v5831 = vld [vmem:[%s7 + $0x50] sm:$0xf]
        %v5832 = vld [vmem:[%s7 + $0x54] sm:$0xf]
        %v5833 = vld [vmem:[%s7 + $0x58] sm:$0xf]
        %v5834 = vld [vmem:[%s7 + $0x5c] sm:$0xf]
        %v5835 = vld [vmem:[%s7 + $0x60] sm:$0xf]
        %v5836 = vld [vmem:[%s7 + $0x64] sm:$0xf]
        %v5837 = vld [vmem:[%s7 + $0x68] sm:$0xf]
        %v5838 = vld [vmem:[%s7 + $0x6c] sm:$0xf]
        %v5839 = vld [vmem:[%s7 + $0x70] sm:$0xf]
        %v5840 = vld [vmem:[%s7 + $0x74] sm:$0xf]
        %v5841 = vld [vmem:[%s7 + $0x78] sm:$0xf]
        %v5842 = vld [vmem:[%s7 + $0x7c] sm:$0xf]
        %v5843 = vld [vmem:[%s7 + $0x80] sm:$0xf]
        %v5844 = vld [vmem:[%s7 + $0x84] sm:$0xf]
        %v5845 = vld [vmem:[%s7 + $0x88] sm:$0xf]
        %v5846 = vld [vmem:[%s7 + $0x8c] sm:$0xf]
        %v5847 = vld [vmem:[%s7 + $0x90] sm:$0xf]
        %v5848 = vld [vmem:[%s7 + $0x94] sm:$0xf]
        %v5849 = vld [vmem:[%s7 + $0x98] sm:$0xf]
        %v5850 = vld [vmem:[%s7 + $0x9c] sm:$0xf]
        %v5851 = vld [vmem:[%s7 + $0xa0] sm:$0xf]
        %v5852 = vld [vmem:[%s7 + $0xa4] sm:$0xf]
        %v5853 = vld [vmem:[%s7 + $0xa8] sm:$0xf]
        %v5854 = vld [vmem:[%s7 + $0xac] sm:$0xf]
        %v5855 = vld [vmem:[%s7 + $0xb0] sm:$0xf]
        %v5856 = vld [vmem:[%s7 + $0xb4] sm:$0xf]
        %v5857 = vld [vmem:[%s7 + $0xb8] sm:$0xf]
        %v5858 = vld [vmem:[%s7 + $0xbc] sm:$0xf]
        %v5859 = vld [vmem:[%s7 + $0xc0] sm:$0xf]
        %v5860 = vld [vmem:[%s7 + $0xc4] sm:$0xf]
        %v5861 = vld [vmem:[%s7 + $0xc8] sm:$0xf]
        %v5862 = vld [vmem:[%s7 + $0xcc] sm:$0xf]
        %v5863 = vld [vmem:[%s7 + $0xd0] sm:$0xf]
        %v5864 = vld [vmem:[%s7 + $0xd4] sm:$0xf]
        %v5865 = vld [vmem:[%s7 + $0xd8] sm:$0xf]
        %v5866 = vld [vmem:[%s7 + $0xdc] sm:$0xf]
        %v5867 = vld [vmem:[%s7 + $0xe0] sm:$0xf]
        %v5868 = vld [vmem:[%s7 + $0xe4] sm:$0xf]
        %v5869 = vld [vmem:[%s7 + $0xe8] sm:$0xf]
        %v5870 = vld [vmem:[%s7 + $0xec] sm:$0xf]
        %v5871 = vld [vmem:[%s7 + $0xf0] sm:$0xf]
        %v5872 = vld [vmem:[%s7 + $0xf4] sm:$0xf]
        %v5873 = vld [vmem:[%s7 + $0xf8] sm:$0xf]
        %v5874 = vld [vmem:[%s7 + $0xfc] sm:$0xf]
        %v5875 = vld [vmem:[%s7 + $0x100] sm:$0xf]
        %v5876 = vld [vmem:[%s7 + $0x104] sm:$0xf]
        %v5877 = vld [vmem:[%s7 + $0x108] sm:$0xf]
        %v5878 = vld [vmem:[%s7 + $0x10c] sm:$0xf]
        %v5879 = vld [vmem:[%s7 + $0x110] sm:$0xf]
        %v5880 = vld [vmem:[%s7 + $0x114] sm:$0xf]
        %v5881 = vld [vmem:[%s7 + $0x118] sm:$0xf]
        %v5882 = vld [vmem:[%s7 + $0x11c] sm:$0xf]
        %v5883 = vld [vmem:[%s7 + $0x120] sm:$0xf]
        %v5884 = vld [vmem:[%s7 + $0x124] sm:$0xf]
        %v5885 = vld [vmem:[%s7 + $0x128] sm:$0xf]
        %v5886 = vld [vmem:[%s7 + $0x12c] sm:$0xf]
        %v5887 = vld [vmem:[%s7 + $0x130] sm:$0xf]
        %v5888 = vld [vmem:[%s7 + $0x134] sm:$0xf]
        %v5889 = vld [vmem:[%s7 + $0x138] sm:$0xf]
        %v5890 = vld [vmem:[%s7 + $0x13c] sm:$0xf]
        %v5891 = vld [vmem:[%s7 + $0x140] sm:$0xf]
        %v5892 = vld [vmem:[%s7 + $0x144] sm:$0xf]
        %v5893 = vld [vmem:[%s7 + $0x148] sm:$0xf]
        %v5894 = vld [vmem:[%s7 + $0x14c] sm:$0xf]
        %v5895 = vld [vmem:[%s7 + $0x150] sm:$0xf]
        %v5896 = vld [vmem:[%s7 + $0x154] sm:$0xf]
        %v5897 = vld [vmem:[%s7 + $0x158] sm:$0xf]
        %v5898 = vld [vmem:[%s7 + $0x15c] sm:$0xf]
        %v5899 = vld [vmem:[%s7 + $0x160] sm:$0xf]
        %v5900 = vld [vmem:[%s7 + $0x164] sm:$0xf]
        %v5901 = vld [vmem:[%s7 + $0x168] sm:$0xf]
        %v5902 = vld [vmem:[%s7 + $0x16c] sm:$0xf]
        %v5903 = vld [vmem:[%s7 + $0x170] sm:$0xf]
        %v5904 = vld [vmem:[%s7 + $0x174] sm:$0xf]
        %v5905 = vld [vmem:[%s7 + $0x178] sm:$0xf]
        %v5906 = vld [vmem:[%s7 + $0x17c] sm:$0xf]
        %v5907 = vld [vmem:[%s7 + $0x180] sm:$0xf]
        %v5908 = vld [vmem:[%s7 + $0x184] sm:$0xf]
        %v5909 = vld [vmem:[%s7 + $0x188] sm:$0xf]
        %v5910 = vld [vmem:[%s7 + $0x18c] sm:$0xf]
        %v5911 = vld [vmem:[%s7 + $0x190] sm:$0xf]
        %v5912 = vld [vmem:[%s7 + $0x194] sm:$0xf]
        %v5913 = vld [vmem:[%s7 + $0x198] sm:$0xf]
        %v5914 = vld [vmem:[%s7 + $0x19c] sm:$0xf]
        %v5915 = vld [vmem:[%s7 + $0x1a0] sm:$0xf]
        %v5916 = vld [vmem:[%s7 + $0x1a4] sm:$0xf]
        %v5917 = vld [vmem:[%s7 + $0x1a8] sm:$0xf]
        %v5918 = vld [vmem:[%s7 + $0x1ac] sm:$0xf]
        %v5919 = vld [vmem:[%s7 + $0x1b0] sm:$0xf]
        %v5920 = vld [vmem:[%s7 + $0x1b4] sm:$0xf]
        %v5921 = vld [vmem:[%s7 + $0x1b8] sm:$0xf]
        %v5922 = vld [vmem:[%s7 + $0x1bc] sm:$0xf]
        %v5923 = vld [vmem:[%s7 + $0x1c0] sm:$0xf]
        %v5924 = vld [vmem:[%s7 + $0x1c4] sm:$0xf]
        %v5925 = vld [vmem:[%s7 + $0x1c8] sm:$0xf]
        %v5926 = vld [vmem:[%s7 + $0x1cc] sm:$0xf]
        %v5927 = vld [vmem:[%s7 + $0x1d0] sm:$0xf]
        %v5928 = vld [vmem:[%s7 + $0x1d4] sm:$0xf]
        %v5929 = vld [vmem:[%s7 + $0x1d8] sm:$0xf]
        %v5930 = vld [vmem:[%s7 + $0x1dc] sm:$0xf]
        %v5931 = vld [vmem:[%s7 + $0x1e0] sm:$0xf]
        %v5932 = vld [vmem:[%s7 + $0x1e4] sm:$0xf]
        %v5933 = vld [vmem:[%s7 + $0x1e8] sm:$0xf]
        %v5934 = vld [vmem:[%s7 + $0x1ec] sm:$0xf]
        %v5935 = vld [vmem:[%s7 + $0x1f0] sm:$0xf]
        %v5936 = vld [vmem:[%s7 + $0x1f4] sm:$0xf]
        %v5937 = vld [vmem:[%s7 + $0x1f8] sm:$0xf]
        %v5938 = vld [vmem:[%s7 + $0x1fc] sm:$0xf]
        %v5939 = vld [vmem:[%s7 + $0x200] sm:$0xf]
        %v5940 = vld [vmem:[%s7 + $0x204] sm:$0xf]
        %v5941 = vld [vmem:[%s7 + $0x208] sm:$0xf]
        %v5942 = vld [vmem:[%s7 + $0x20c] sm:$0xf]
        %v5943 = vld [vmem:[%s7 + $0x210] sm:$0xf]
        %v5944 = vld [vmem:[%s7 + $0x214] sm:$0xf]
        %v5945 = vld [vmem:[%s7 + $0x218] sm:$0xf]
        %v5946 = vld [vmem:[%s7 + $0x21c] sm:$0xf]
        %v5947 = vld [vmem:[%s7 + $0x220] sm:$0xf]
        %v5948 = vld [vmem:[%s7 + $0x224] sm:$0xf]
        %v5949 = vld [vmem:[%s7 + $0x228] sm:$0xf]
        %v5950 = vld [vmem:[%s7 + $0x22c] sm:$0xf]
        %v5951 = vld [vmem:[%s7 + $0x230] sm:$0xf]
        %v5952 = vld [vmem:[%s7 + $0x234] sm:$0xf]
        %v5953 = vld [vmem:[%s7 + $0x238] sm:$0xf]
        %v5954 = vld [vmem:[%s7 + $0x23c] sm:$0xf]
        %v5955 = vld [vmem:[%s8] sm:$0x1]
        %v5957 = vperm.slane %v5955, 0
        %v6103 = vunpack.c.l.b16 %v5811
        %v6104 = vunpack.c.l.b16 %v5812
        %v6105 = vunpack.c.l.b16 %v5813
        %v6106 = vunpack.c.l.b16 %v5814
        %v6107 = vunpack.c.l.b16 %v5815
        %v6108 = vunpack.c.l.b16 %v5816
        %v6109 = vunpack.c.l.b16 %v5817
        %v6110 = vunpack.c.l.b16 %v5818
        %v6111 = vunpack.c.l.b16 %v5819
        %v6112 = vunpack.c.l.b16 %v5820
        %v6113 = vunpack.c.l.b16 %v5821
        %v6114 = vunpack.c.l.b16 %v5822
        %v6115 = vunpack.c.l.b16 %v5823
        %v6116 = vunpack.c.l.b16 %v5824
        %v6117 = vunpack.c.l.b16 %v5825
        %v6118 = vunpack.c.l.b16 %v5826
        %v6119 = vunpack.c.l.b16 %v5827
        %v6120 = vunpack.c.l.b16 %v5828
        %v6121 = vunpack.c.l.b16 %v5829
        %v6122 = vunpack.c.l.b16 %v5830
        %v6123 = vunpack.c.l.b16 %v5831
        %v6124 = vunpack.c.l.b16 %v5832
        %v6125 = vunpack.c.l.b16 %v5833
        %v6126 = vunpack.c.l.b16 %v5834
        %v6127 = vunpack.c.l.b16 %v5835
        %v6128 = vunpack.c.l.b16 %v5836
        %v6129 = vunpack.c.l.b16 %v5837
        %v6130 = vunpack.c.l.b16 %v5838
        %v6131 = vunpack.c.l.b16 %v5839
        %v6132 = vunpack.c.l.b16 %v5840
        %v6133 = vunpack.c.l.b16 %v5841
        %v6134 = vunpack.c.l.b16 %v5842
        %v6135 = vunpack.c.l.b16 %v5843
        %v6136 = vunpack.c.l.b16 %v5844
        %v6137 = vunpack.c.l.b16 %v5845
        %v6138 = vunpack.c.l.b16 %v5846
        %v6139 = vunpack.c.l.b16 %v5847
        %v6140 = vunpack.c.l.b16 %v5848
        %v6141 = vunpack.c.l.b16 %v5849
        %v6142 = vunpack.c.l.b16 %v5850
        %v6143 = vunpack.c.l.b16 %v5851
        %v6144 = vunpack.c.l.b16 %v5852
        %v6145 = vunpack.c.l.b16 %v5853
        %v6146 = vunpack.c.l.b16 %v5854
        %v6147 = vunpack.c.l.b16 %v5855
        %v6148 = vunpack.c.l.b16 %v5856
        %v6149 = vunpack.c.l.b16 %v5857
        %v6150 = vunpack.c.l.b16 %v5858
        %v6151 = vunpack.c.l.b16 %v5859
        %v6152 = vunpack.c.l.b16 %v5860
        %v6153 = vunpack.c.l.b16 %v5861
        %v6154 = vunpack.c.l.b16 %v5862
        %v6155 = vunpack.c.l.b16 %v5863
        %v6156 = vunpack.c.l.b16 %v5864
        %v6157 = vunpack.c.l.b16 %v5865
        %v6158 = vunpack.c.l.b16 %v5866
        %v6159 = vunpack.c.l.b16 %v5867
        %v6160 = vunpack.c.l.b16 %v5868
        %v6161 = vunpack.c.l.b16 %v5869
        %v6162 = vunpack.c.l.b16 %v5870
        %v6163 = vunpack.c.l.b16 %v5871
        %v6164 = vunpack.c.l.b16 %v5872
        %v6165 = vunpack.c.l.b16 %v5873
        %v6166 = vunpack.c.l.b16 %v5874
        %v6167 = vunpack.c.l.b16 %v5875
        %v6168 = vunpack.c.l.b16 %v5876
        %v6169 = vunpack.c.l.b16 %v5877
        %v6170 = vunpack.c.l.b16 %v5878
        %v6171 = vunpack.c.l.b16 %v5879
        %v6172 = vunpack.c.l.b16 %v5880
        %v6173 = vunpack.c.l.b16 %v5881
        %v6174 = vunpack.c.l.b16 %v5882
        %v6175 = vunpack.c.l.b16 %v5883
        %v6176 = vunpack.c.l.b16 %v5884
        %v6177 = vunpack.c.l.b16 %v5885
        %v6178 = vunpack.c.l.b16 %v5886
        %v6179 = vunpack.c.l.b16 %v5887
        %v6180 = vunpack.c.l.b16 %v5888
        %v6181 = vunpack.c.l.b16 %v5889
        %v6182 = vunpack.c.l.b16 %v5890
        %v6183 = vunpack.c.l.b16 %v5891
        %v6184 = vunpack.c.l.b16 %v5892
        %v6185 = vunpack.c.l.b16 %v5893
        %v6186 = vunpack.c.l.b16 %v5894
        %v6187 = vunpack.c.l.b16 %v5895
        %v6188 = vunpack.c.l.b16 %v5896
        %v6189 = vunpack.c.l.b16 %v5897
        %v6190 = vunpack.c.l.b16 %v5898
        %v6191 = vunpack.c.l.b16 %v5899
        %v6192 = vunpack.c.l.b16 %v5900
        %v6193 = vunpack.c.l.b16 %v5901
        %v6194 = vunpack.c.l.b16 %v5902
        %v6195 = vunpack.c.l.b16 %v5903
        %v6196 = vunpack.c.l.b16 %v5904
        %v6197 = vunpack.c.l.b16 %v5905
        %v6198 = vunpack.c.l.b16 %v5906
        %v6199 = vunpack.c.l.b16 %v5907
        %v6200 = vunpack.c.l.b16 %v5908
        %v6201 = vunpack.c.l.b16 %v5909
        %v6202 = vunpack.c.l.b16 %v5910
        %v6203 = vunpack.c.l.b16 %v5911
        %v6204 = vunpack.c.l.b16 %v5912
        %v6205 = vunpack.c.l.b16 %v5913
        %v6206 = vunpack.c.l.b16 %v5914
        %v6207 = vunpack.c.l.b16 %v5915
        %v6208 = vunpack.c.l.b16 %v5916
        %v6209 = vunpack.c.l.b16 %v5917
        %v6210 = vunpack.c.l.b16 %v5918
        %v6211 = vunpack.c.l.b16 %v5919
        %v6212 = vunpack.c.l.b16 %v5920
        %v6213 = vunpack.c.l.b16 %v5921
        %v6214 = vunpack.c.l.b16 %v5922
        %v6215 = vunpack.c.l.b16 %v5923
        %v6216 = vunpack.c.l.b16 %v5924
        %v6217 = vunpack.c.l.b16 %v5925
        %v6218 = vunpack.c.l.b16 %v5926
        %v6219 = vunpack.c.l.b16 %v5927
        %v6220 = vunpack.c.l.b16 %v5928
        %v6221 = vunpack.c.l.b16 %v5929
        %v6222 = vunpack.c.l.b16 %v5930
        %v6223 = vunpack.c.l.b16 %v5931
        %v6224 = vunpack.c.l.b16 %v5932
        %v6225 = vunpack.c.l.b16 %v5933
        %v6226 = vunpack.c.l.b16 %v5934
        %v6227 = vunpack.c.l.b16 %v5935
        %v6228 = vunpack.c.l.b16 %v5936
        %v6229 = vunpack.c.l.b16 %v5937
        %v6230 = vunpack.c.l.b16 %v5938
        %v6231 = vunpack.c.l.b16 %v5939
        %v6232 = vunpack.c.l.b16 %v5940
        %v6233 = vunpack.c.l.b16 %v5941
        %v6234 = vunpack.c.l.b16 %v5942
        %v6235 = vunpack.c.l.b16 %v5943
        %v6236 = vunpack.c.l.b16 %v5944
        %v6237 = vunpack.c.l.b16 %v5945
        %v6238 = vunpack.c.l.b16 %v5946
        %v6239 = vunpack.c.l.b16 %v5947
        %v6240 = vunpack.c.l.b16 %v5948
        %v6241 = vunpack.c.l.b16 %v5949
        %v6242 = vunpack.c.l.b16 %v5950
        %v6243 = vunpack.c.l.b16 %v5951
        %v6244 = vunpack.c.l.b16 %v5952
        %v6245 = vunpack.c.l.b16 %v5953
        %v6246 = vunpack.c.l.b16 %v5954
        %v6247 = vpack.c.b16 %v6104, %v6103
        %v6248 = vpack.c.b16 %v6106, %v6105
        %v6249 = vpack.c.b16 %v6108, %v6107
        %v6250 = vpack.c.b16 %v6110, %v6109
        %v6251 = vpack.c.b16 %v6112, %v6111
        %v6252 = vpack.c.b16 %v6114, %v6113
        %v6253 = vpack.c.b16 %v6116, %v6115
        %v6254 = vpack.c.b16 %v6118, %v6117
        %v6255 = vpack.c.b16 %v6120, %v6119
        %v6256 = vpack.c.b16 %v6122, %v6121
        %v6257 = vpack.c.b16 %v6124, %v6123
        %v6258 = vpack.c.b16 %v6126, %v6125
        %v6259 = vpack.c.b16 %v6128, %v6127
        %v6260 = vpack.c.b16 %v6130, %v6129
        %v6261 = vpack.c.b16 %v6132, %v6131
        %v6262 = vpack.c.b16 %v6134, %v6133
        %v6263 = vpack.c.b16 %v6136, %v6135
        %v6264 = vpack.c.b16 %v6138, %v6137
        %v6265 = vpack.c.b16 %v6140, %v6139
        %v6266 = vpack.c.b16 %v6142, %v6141
        %v6267 = vpack.c.b16 %v6144, %v6143
        %v6268 = vpack.c.b16 %v6146, %v6145
        %v6269 = vpack.c.b16 %v6148, %v6147
        %v6270 = vpack.c.b16 %v6150, %v6149
        %v6271 = vpack.c.b16 %v6152, %v6151
        %v6272 = vpack.c.b16 %v6154, %v6153
        %v6273 = vpack.c.b16 %v6156, %v6155
        %v6274 = vpack.c.b16 %v6158, %v6157
        %v6275 = vpack.c.b16 %v6160, %v6159
        %v6276 = vpack.c.b16 %v6162, %v6161
        %v6277 = vpack.c.b16 %v6164, %v6163
        %v6278 = vpack.c.b16 %v6166, %v6165
        %v6279 = vpack.c.b16 %v6168, %v6167
        %v6280 = vpack.c.b16 %v6170, %v6169
        %v6281 = vpack.c.b16 %v6172, %v6171
        %v6282 = vpack.c.b16 %v6174, %v6173
        %v6283 = vpack.c.b16 %v6176, %v6175
        %v6284 = vpack.c.b16 %v6178, %v6177
        %v6285 = vpack.c.b16 %v6180, %v6179
        %v6286 = vpack.c.b16 %v6182, %v6181
        %v6287 = vpack.c.b16 %v6184, %v6183
        %v6288 = vpack.c.b16 %v6186, %v6185
        %v6289 = vpack.c.b16 %v6188, %v6187
        %v6290 = vpack.c.b16 %v6190, %v6189
        %v6291 = vpack.c.b16 %v6192, %v6191
        %v6292 = vpack.c.b16 %v6194, %v6193
        %v6293 = vpack.c.b16 %v6196, %v6195
        %v6294 = vpack.c.b16 %v6198, %v6197
        %v6295 = vpack.c.b16 %v6200, %v6199
        %v6296 = vpack.c.b16 %v6202, %v6201
        %v6297 = vpack.c.b16 %v6204, %v6203
        %v6298 = vpack.c.b16 %v6206, %v6205
        %v6299 = vpack.c.b16 %v6208, %v6207
        %v6300 = vpack.c.b16 %v6210, %v6209
        %v6301 = vpack.c.b16 %v6212, %v6211
        %v6302 = vpack.c.b16 %v6214, %v6213
        %v6303 = vpack.c.b16 %v6216, %v6215
        %v6304 = vpack.c.b16 %v6218, %v6217
        %v6305 = vpack.c.b16 %v6220, %v6219
        %v6306 = vpack.c.b16 %v6222, %v6221
        %v6307 = vpack.c.b16 %v6224, %v6223
        %v6308 = vpack.c.b16 %v6226, %v6225
        %v6309 = vpack.c.b16 %v6228, %v6227
        %v6310 = vpack.c.b16 %v6230, %v6229
        %v6311 = vpack.c.b16 %v6232, %v6231
        %v6312 = vpack.c.b16 %v6234, %v6233
        %v6313 = vpack.c.b16 %v6236, %v6235
        %v6314 = vpack.c.b16 %v6238, %v6237
        %v6315 = vpack.c.b16 %v6240, %v6239
        %v6316 = vpack.c.b16 %v6242, %v6241
        %v6317 = vpack.c.b16 %v6244, %v6243
        %v6318 = vpack.c.b16 %v6246, %v6245
        %6391 = vmatpush.bf16.msra.mxu0 %v6254
        %6392 = vmatpush.bf16.msra.mxu0 %v6253
        %6393 = vmatpush.bf16.msra.mxu0 %v6252
        %6394 = vmatpush.bf16.msra.mxu0 %v6251
        %6395 = vmatpush.bf16.msra.mxu0 %v6250
        %6396 = vmatpush.bf16.msra.mxu0 %v6249
        %6397 = vmatpush.bf16.msra.mxu0 %v6248
        %6398 = vmatpush.bf16.msra.mxu0 %v6247
        %6399 = vmatmul.bf16.gmra.mxu0 %v5775
        %v6400 = vpop.f32.mrf.mxu0
        %v6401 = vadd.f32 %v5957, %v6400
        %v6402 = vpop.f32.mrf.mxu0
        %v6403 = vadd.f32 %v5957, %v6402
        %6404 = vmatmul.bf16.gmra.mxu0 %v5784
        %v6405 = vpop.f32.mrf.mxu0
        %v6406 = vadd.f32 %v5957, %v6405
        %v6407 = vpop.f32.mrf.mxu0
        %v6408 = vadd.f32 %v5957, %v6407
        %6409 = vmatmul.bf16.gmra.mxu0 %v5793
        %v6410 = vpop.f32.mrf.mxu0
        %v6411 = vadd.f32 %v5957, %v6410
        %v6412 = vpop.f32.mrf.mxu0
        %v6413 = vadd.f32 %v5957, %v6412
        %6414 = vmatmul.bf16.gmra.mxu0 %v5802
        %v6415 = vpop.f32.mrf.mxu0
        %v6416 = vadd.f32 %v5957, %v6415
        %v6417 = vpop.f32.mrf.mxu0
        %v6418 = vadd.f32 %v5957, %v6417
        %6419 = vdwg.mxu0
        %6420 = vmatpush.bf16.msra.mxu0 %v6262
        %6421 = vmatpush.bf16.msra.mxu0 %v6261
        %6422 = vmatpush.bf16.msra.mxu0 %v6260
        %6423 = vmatpush.bf16.msra.mxu0 %v6259
        %6424 = vmatpush.bf16.msra.mxu0 %v6258
        %6425 = vmatpush.bf16.msra.mxu0 %v6257
        %6426 = vmatpush.bf16.msra.mxu0 %v6256
        %6427 = vmatpush.bf16.msra.mxu0 %v6255
        %6428 = vmatmul.bf16.gmra.mxu0 %v5776
        %v6429 = vpop.f32.mrf.mxu0
        %v6430 = vadd.f32 %v6401, %v6429
        %v6431 = vpop.f32.mrf.mxu0
        %v6432 = vadd.f32 %v6403, %v6431
        %6433 = vmatmul.bf16.gmra.mxu0 %v5785
        %v6434 = vpop.f32.mrf.mxu0
        %v6435 = vadd.f32 %v6406, %v6434
        %v6436 = vpop.f32.mrf.mxu0
        %v6437 = vadd.f32 %v6408, %v6436
        %6438 = vmatmul.bf16.gmra.mxu0 %v5794
        %v6439 = vpop.f32.mrf.mxu0
        %v6440 = vadd.f32 %v6411, %v6439
        %v6441 = vpop.f32.mrf.mxu0
        %v6442 = vadd.f32 %v6413, %v6441
        %6443 = vmatmul.bf16.gmra.mxu0 %v5803
        %v6444 = vpop.f32.mrf.mxu0
        %v6445 = vadd.f32 %v6416, %v6444
        %v6446 = vpop.f32.mrf.mxu0
        %v6447 = vadd.f32 %v6418, %v6446
        %6448 = vdwg.mxu0
        %6449 = vmatpush.bf16.msra.mxu0 %v6270
        %6450 = vmatpush.bf16.msra.mxu0 %v6269
        %6451 = vmatpush.bf16.msra.mxu0 %v6268
        %6452 = vmatpush.bf16.msra.mxu0 %v6267
        %6453 = vmatpush.bf16.msra.mxu0 %v6266
        %6454 = vmatpush.bf16.msra.mxu0 %v6265
        %6455 = vmatpush.bf16.msra.mxu0 %v6264
        %6456 = vmatpush.bf16.msra.mxu0 %v6263
        %6457 = vmatmul.bf16.gmra.mxu0 %v5777
        %v6458 = vpop.f32.mrf.mxu0
        %v6459 = vadd.f32 %v6430, %v6458
        %v6460 = vpop.f32.mrf.mxu0
        %v6461 = vadd.f32 %v6432, %v6460
        %6462 = vmatmul.bf16.gmra.mxu0 %v5786
        %v6463 = vpop.f32.mrf.mxu0
        %v6464 = vadd.f32 %v6435, %v6463
        %v6465 = vpop.f32.mrf.mxu0
        %v6466 = vadd.f32 %v6437, %v6465
        %6467 = vmatmul.bf16.gmra.mxu0 %v5795
        %v6468 = vpop.f32.mrf.mxu0
        %v6469 = vadd.f32 %v6440, %v6468
        %v6470 = vpop.f32.mrf.mxu0
        %v6471 = vadd.f32 %v6442, %v6470
        %6472 = vmatmul.bf16.gmra.mxu0 %v5804
        %v6473 = vpop.f32.mrf.mxu0
        %v6474 = vadd.f32 %v6445, %v6473
        %v6475 = vpop.f32.mrf.mxu0
        %v6476 = vadd.f32 %v6447, %v6475
        %6477 = vdwg.mxu0
        %6478 = vmatpush.bf16.msra.mxu0 %v6278
        %6479 = vmatpush.bf16.msra.mxu0 %v6277
        %6480 = vmatpush.bf16.msra.mxu0 %v6276
        %6481 = vmatpush.bf16.msra.mxu0 %v6275
        %6482 = vmatpush.bf16.msra.mxu0 %v6274
        %6483 = vmatpush.bf16.msra.mxu0 %v6273
        %6484 = vmatpush.bf16.msra.mxu0 %v6272
        %6485 = vmatpush.bf16.msra.mxu0 %v6271
        %6486 = vmatmul.bf16.gmra.mxu0 %v5778
        %v6487 = vpop.f32.mrf.mxu0
        %v6488 = vadd.f32 %v6459, %v6487
        %v6489 = vpop.f32.mrf.mxu0
        %v6490 = vadd.f32 %v6461, %v6489
        %6491 = vmatmul.bf16.gmra.mxu0 %v5787
        %v6492 = vpop.f32.mrf.mxu0
        %v6493 = vadd.f32 %v6464, %v6492
        %v6494 = vpop.f32.mrf.mxu0
        %v6495 = vadd.f32 %v6466, %v6494
        %6496 = vmatmul.bf16.gmra.mxu0 %v5796
        %v6497 = vpop.f32.mrf.mxu0
        %v6498 = vadd.f32 %v6469, %v6497
        %v6499 = vpop.f32.mrf.mxu0
        %v6500 = vadd.f32 %v6471, %v6499
        %6501 = vmatmul.bf16.gmra.mxu0 %v5805
        %v6502 = vpop.f32.mrf.mxu0
        %v6503 = vadd.f32 %v6474, %v6502
        %v6504 = vpop.f32.mrf.mxu0
        %v6505 = vadd.f32 %v6476, %v6504
        %6506 = vdwg.mxu0
        %6507 = vmatpush.bf16.msra.mxu0 %v6286
        %6508 = vmatpush.bf16.msra.mxu0 %v6285
        %6509 = vmatpush.bf16.msra.mxu0 %v6284
        %6510 = vmatpush.bf16.msra.mxu0 %v6283
        %6511 = vmatpush.bf16.msra.mxu0 %v6282
        %6512 = vmatpush.bf16.msra.mxu0 %v6281
        %6513 = vmatpush.bf16.msra.mxu0 %v6280
        %6514 = vmatpush.bf16.msra.mxu0 %v6279
        %6515 = vmatmul.bf16.gmra.mxu0 %v5779
        %v6516 = vpop.f32.mrf.mxu0
        %v6517 = vadd.f32 %v6488, %v6516
        %v6518 = vpop.f32.mrf.mxu0
        %v6519 = vadd.f32 %v6490, %v6518
        %6520 = vmatmul.bf16.gmra.mxu0 %v5788
        %v6521 = vpop.f32.mrf.mxu0
        %v6522 = vadd.f32 %v6493, %v6521
        %v6523 = vpop.f32.mrf.mxu0
        %v6524 = vadd.f32 %v6495, %v6523
        %6525 = vmatmul.bf16.gmra.mxu0 %v5797
        %v6526 = vpop.f32.mrf.mxu0
        %v6527 = vadd.f32 %v6498, %v6526
        %v6528 = vpop.f32.mrf.mxu0
        %v6529 = vadd.f32 %v6500, %v6528
        %6530 = vmatmul.bf16.gmra.mxu0 %v5806
        %v6531 = vpop.f32.mrf.mxu0
        %v6532 = vadd.f32 %v6503, %v6531
        %v6533 = vpop.f32.mrf.mxu0
        %v6534 = vadd.f32 %v6505, %v6533
        %6535 = vdwg.mxu0
        %6536 = vmatpush.bf16.msra.mxu0 %v6294
        %6537 = vmatpush.bf16.msra.mxu0 %v6293
        %6538 = vmatpush.bf16.msra.mxu0 %v6292
        %6539 = vmatpush.bf16.msra.mxu0 %v6291
        %6540 = vmatpush.bf16.msra.mxu0 %v6290
        %6541 = vmatpush.bf16.msra.mxu0 %v6289
        %6542 = vmatpush.bf16.msra.mxu0 %v6288
        %6543 = vmatpush.bf16.msra.mxu0 %v6287
        %6544 = vmatmul.bf16.gmra.mxu0 %v5780
        %v6545 = vpop.f32.mrf.mxu0
        %v6546 = vadd.f32 %v6517, %v6545
        %v6547 = vpop.f32.mrf.mxu0
        %v6548 = vadd.f32 %v6519, %v6547
        %6549 = vmatmul.bf16.gmra.mxu0 %v5789
        %v6550 = vpop.f32.mrf.mxu0
        %v6551 = vadd.f32 %v6522, %v6550
        %v6552 = vpop.f32.mrf.mxu0
        %v6553 = vadd.f32 %v6524, %v6552
        %6554 = vmatmul.bf16.gmra.mxu0 %v5798
        %v6555 = vpop.f32.mrf.mxu0
        %v6556 = vadd.f32 %v6527, %v6555
        %v6557 = vpop.f32.mrf.mxu0
        %v6558 = vadd.f32 %v6529, %v6557
        %6559 = vmatmul.bf16.gmra.mxu0 %v5807
        %v6560 = vpop.f32.mrf.mxu0
        %v6561 = vadd.f32 %v6532, %v6560
        %v6562 = vpop.f32.mrf.mxu0
        %v6563 = vadd.f32 %v6534, %v6562
        %6564 = vdwg.mxu0
        %6565 = vmatpush.bf16.msra.mxu0 %v6302
        %6566 = vmatpush.bf16.msra.mxu0 %v6301
        %6567 = vmatpush.bf16.msra.mxu0 %v6300
        %6568 = vmatpush.bf16.msra.mxu0 %v6299
        %6569 = vmatpush.bf16.msra.mxu0 %v6298
        %6570 = vmatpush.bf16.msra.mxu0 %v6297
        %6571 = vmatpush.bf16.msra.mxu0 %v6296
        %6572 = vmatpush.bf16.msra.mxu0 %v6295
        %6573 = vmatmul.bf16.gmra.mxu0 %v5781
        %v6574 = vpop.f32.mrf.mxu0
        %v6575 = vadd.f32 %v6546, %v6574
        %v6576 = vpop.f32.mrf.mxu0
        %v6577 = vadd.f32 %v6548, %v6576
        %6578 = vmatmul.bf16.gmra.mxu0 %v5790
        %v6579 = vpop.f32.mrf.mxu0
        %v6580 = vadd.f32 %v6551, %v6579
        %v6581 = vpop.f32.mrf.mxu0
        %v6582 = vadd.f32 %v6553, %v6581
        %6583 = vmatmul.bf16.gmra.mxu0 %v5799
        %v6584 = vpop.f32.mrf.mxu0
        %v6585 = vadd.f32 %v6556, %v6584
        %v6586 = vpop.f32.mrf.mxu0
        %v6587 = vadd.f32 %v6558, %v6586
        %6588 = vmatmul.bf16.gmra.mxu0 %v5808
        %v6589 = vpop.f32.mrf.mxu0
        %v6590 = vadd.f32 %v6561, %v6589
        %v6591 = vpop.f32.mrf.mxu0
        %v6592 = vadd.f32 %v6563, %v6591
        %6593 = vdwg.mxu0
        %6594 = vmatpush.bf16.msra.mxu0 %v6310
        %6595 = vmatpush.bf16.msra.mxu0 %v6309
        %6596 = vmatpush.bf16.msra.mxu0 %v6308
        %6597 = vmatpush.bf16.msra.mxu0 %v6307
        %6598 = vmatpush.bf16.msra.mxu0 %v6306
        %6599 = vmatpush.bf16.msra.mxu0 %v6305
        %6600 = vmatpush.bf16.msra.mxu0 %v6304
        %6601 = vmatpush.bf16.msra.mxu0 %v6303
        %6602 = vmatmul.bf16.gmra.mxu0 %v5782
        %v6603 = vpop.f32.mrf.mxu0
        %v6604 = vadd.f32 %v6575, %v6603
        %v6605 = vpop.f32.mrf.mxu0
        %v6606 = vadd.f32 %v6577, %v6605
        %6607 = vmatmul.bf16.gmra.mxu0 %v5791
        %v6608 = vpop.f32.mrf.mxu0
        %v6609 = vadd.f32 %v6580, %v6608
        %v6610 = vpop.f32.mrf.mxu0
        %v6611 = vadd.f32 %v6582, %v6610
        %6612 = vmatmul.bf16.gmra.mxu0 %v5800
        %v6613 = vpop.f32.mrf.mxu0
        %v6614 = vadd.f32 %v6585, %v6613
        %v6615 = vpop.f32.mrf.mxu0
        %v6616 = vadd.f32 %v6587, %v6615
        %6617 = vmatmul.bf16.gmra.mxu0 %v5809
        %v6618 = vpop.f32.mrf.mxu0
        %v6619 = vadd.f32 %v6590, %v6618
        %v6620 = vpop.f32.mrf.mxu0
        %v6621 = vadd.f32 %v6592, %v6620
        %6622 = vdwg.mxu0
        %6623 = vmatpush.bf16.msra.mxu0 %v6318
        %6624 = vmatpush.bf16.msra.mxu0 %v6317
        %6625 = vmatpush.bf16.msra.mxu0 %v6316
        %6626 = vmatpush.bf16.msra.mxu0 %v6315
        %6627 = vmatpush.bf16.msra.mxu0 %v6314
        %6628 = vmatpush.bf16.msra.mxu0 %v6313
        %6629 = vmatpush.bf16.msra.mxu0 %v6312
        %6630 = vmatpush.bf16.msra.mxu0 %v6311
        %6631 = vmatmul.bf16.gmra.mxu0 %v5783
        %v6632 = vpop.f32.mrf.mxu0
        %v6633 = vadd.f32 %v6604, %v6632
        %v6634 = vpop.f32.mrf.mxu0
        %v6635 = vadd.f32 %v6606, %v6634
        %6636 = vmatmul.bf16.gmra.mxu0 %v5792
        %v6637 = vpop.f32.mrf.mxu0
        %v6638 = vadd.f32 %v6609, %v6637
        %v6639 = vpop.f32.mrf.mxu0
        %v6640 = vadd.f32 %v6611, %v6639
        %6641 = vmatmul.bf16.gmra.mxu0 %v5801
        %v6642 = vpop.f32.mrf.mxu0
        %v6643 = vadd.f32 %v6614, %v6642
        %v6644 = vpop.f32.mrf.mxu0
        %v6645 = vadd.f32 %v6616, %v6644
        %6646 = vmatmul.bf16.gmra.mxu0 %v5810
        %v6647 = vpop.f32.mrf.mxu0
        %v6648 = vadd.f32 %v6619, %v6647
        %v6649 = vpop.f32.mrf.mxu0
        %v6650 = vadd.f32 %v6621, %v6649
        %6651 = vdwg.mxu0
        %v6652 = vadd.f32 %v4666, %v6633
        %v6653 = vadd.f32 %v4669, %v6635
        %v6654 = vadd.f32 %v4672, %v6638
        %v6655 = vadd.f32 %v4675, %v6640
        %v6656 = vadd.f32 %v4678, %v6643
        %v6657 = vadd.f32 %v4681, %v6645
        %v6658 = vadd.f32 %v4684, %v6648
        %v6659 = vadd.f32 %v4687, %v6650
        %v6660 = vmax.f32 %v6652, 0.0
        %v6661 = vmax.f32 %v6653, 0.0
        %v6662 = vmax.f32 %v6654, 0.0
        %v6663 = vmax.f32 %v6655, 0.0
        %v6664 = vmax.f32 %v6656, 0.0
        %v6665 = vmax.f32 %v6657, 0.0
        %v6666 = vmax.f32 %v6658, 0.0
        %v6667 = vmax.f32 %v6659, 0.0
        %6668 = vst [vmem:[#allocation2] sm:$0xff] 0.0
        %6669 = vst [vmem:[#allocation2 + $0x8] sm:$0x3] 0.0
        %6670 = vst [vmem:[#allocation2 + $0x18] sm:$0xff] 0.0
        %6671 = vst [vmem:[#allocation2 + $0x20] sm:$0x3] 0.0
        %6672 = vst [vmem:[#allocation2 + $0x30] sm:$0xff] 0.0
        %6673 = vst [vmem:[#allocation2 + $0x38] sm:$0x3] 0.0
        %6674 = vst [vmem:[#allocation2 + $0x48] sm:$0xff] 0.0
        %6675 = vst [vmem:[#allocation2 + $0x50] sm:$0x3] 0.0
        %6676 = vst [vmem:[#allocation2 + $0x60] sm:$0xff] 0.0
        %6677 = vst [vmem:[#allocation2 + $0x68] sm:$0x3] 0.0
        %6678 = vst [vmem:[#allocation2 + $0x78] sm:$0xff] 0.0
        %6679 = vst [vmem:[#allocation2 + $0x80] sm:$0x3] 0.0
        %6680 = vst [vmem:[#allocation2 + $0x90] sm:$0xff] 0.0
        %6681 = vst [vmem:[#allocation2 + $0x98] sm:$0x3] 0.0
        %6682 = vst [vmem:[#allocation2 + $0xa8] sm:$0xff] 0.0
        %6683 = vst [vmem:[#allocation2 + $0xb0] sm:$0x3] 0.0
        %6684 = vst [vmem:[#allocation2 + $0xc0] sm:$0xff] 0.0
        %6685 = vst [vmem:[#allocation2 + $0xc8] sm:$0x3] 0.0
        %6686 = vst [vmem:[#allocation2 + $0xd8] sm:$0xff] 0.0
        %6687 = vst [vmem:[#allocation2 + $0xe0] sm:$0x3] 0.0
        %6688 = vst.msk [vmem:[%s779 + $0x1] sm:$0xff] %vm4709, %v6660
        %6689 = vst.msk [vmem:[%s779 + $0x19] sm:$0xff] %vm4709, %v6661
        %6690 = vst.msk [vmem:[%s779 + $0x31] sm:$0xff] %vm4709, %v6662
        %6691 = vst.msk [vmem:[%s779 + $0x49] sm:$0xff] %vm4709, %v6663
        %6692 = vst.msk [vmem:[%s779 + $0x61] sm:$0xff] %vm4709, %v6664
        %6693 = vst.msk [vmem:[%s779 + $0x79] sm:$0xff] %vm4709, %v6665
        %6694 = vst.msk [vmem:[%s779 + $0x91] sm:$0xff] %vm4709, %v6666
        %6695 = vst.msk [vmem:[%s779 + $0xa9] sm:$0xff] %vm4709, %v6667
        %v6696 = vld [vmem:[#allocation2] sm:$0xff]
        %v6697 = vld [vmem:[#allocation2 + $0x18] sm:$0xff]
        %v6698 = vld [vmem:[#allocation2 + $0x30] sm:$0xff]
        %v6699 = vld [vmem:[#allocation2 + $0x48] sm:$0xff]
        %v6700 = vld [vmem:[#allocation2 + $0x60] sm:$0xff]
        %v6701 = vld [vmem:[#allocation2 + $0x78] sm:$0xff]
        %v6702 = vld [vmem:[#allocation2 + $0x90] sm:$0xff]
        %v6703 = vld [vmem:[#allocation2 + $0xa8] sm:$0xff]
        %v6704 = vld [vmem:[#allocation2 + $0x1] sm:$0xff]
        %v6705 = vld [vmem:[#allocation2 + $0x19] sm:$0xff]
        %v6706 = vld [vmem:[#allocation2 + $0x31] sm:$0xff]
        %v6707 = vld [vmem:[#allocation2 + $0x49] sm:$0xff]
        %v6708 = vld [vmem:[#allocation2 + $0x61] sm:$0xff]
        %v6709 = vld [vmem:[#allocation2 + $0x79] sm:$0xff]
        %v6710 = vld [vmem:[#allocation2 + $0x91] sm:$0xff]
        %v6711 = vld [vmem:[#allocation2 + $0xa9] sm:$0xff]
        %v6712 = vld [vmem:[#allocation2 + $0x2] sm:$0xff]
        %v6713 = vld [vmem:[#allocation2 + $0x1a] sm:$0xff]
        %v6714 = vld [vmem:[#allocation2 + $0x32] sm:$0xff]
        %v6715 = vld [vmem:[#allocation2 + $0x4a] sm:$0xff]
        %v6716 = vld [vmem:[#allocation2 + $0x62] sm:$0xff]
        %v6717 = vld [vmem:[#allocation2 + $0x7a] sm:$0xff]
        %v6718 = vld [vmem:[#allocation2 + $0x92] sm:$0xff]
        %v6719 = vld [vmem:[#allocation2 + $0xaa] sm:$0xff]
        %v6720 = vld [vmem:[%s779] sm:$0xff]
        %v6721 = vld [vmem:[%s779 + $0x18] sm:$0xff]
        %v6722 = vld [vmem:[%s779 + $0x30] sm:$0xff]
        %v6723 = vld [vmem:[%s779 + $0x48] sm:$0xff]
        %v6724 = vld [vmem:[%s779 + $0x60] sm:$0xff]
        %v6725 = vld [vmem:[%s779 + $0x78] sm:$0xff]
        %v6726 = vld [vmem:[%s779 + $0x90] sm:$0xff]
        %v6727 = vld [vmem:[%s779 + $0xa8] sm:$0xff]
        %v6728 = vld [vmem:[%s779 + $0x1] sm:$0xff]
        %v6729 = vld [vmem:[%s779 + $0x19] sm:$0xff]
        %v6730 = vld [vmem:[%s779 + $0x31] sm:$0xff]
        %v6731 = vld [vmem:[%s779 + $0x49] sm:$0xff]
        %v6732 = vld [vmem:[%s779 + $0x61] sm:$0xff]
        %v6733 = vld [vmem:[%s779 + $0x79] sm:$0xff]
        %v6734 = vld [vmem:[%s779 + $0x91] sm:$0xff]
        %v6735 = vld [vmem:[%s779 + $0xa9] sm:$0xff]
        %v6736 = vld [vmem:[%s779 + $0x2] sm:$0xff]
        %v6737 = vld [vmem:[%s779 + $0x1a] sm:$0xff]
        %v6738 = vld [vmem:[%s779 + $0x32] sm:$0xff]
        %v6739 = vld [vmem:[%s779 + $0x4a] sm:$0xff]
        %v6740 = vld [vmem:[%s779 + $0x62] sm:$0xff]
        %v6741 = vld [vmem:[%s779 + $0x7a] sm:$0xff]
        %v6742 = vld [vmem:[%s779 + $0x92] sm:$0xff]
        %v6743 = vld [vmem:[%s779 + $0xaa] sm:$0xff]
        %v6744 = vld [vmem:[%s1005] sm:$0xff]
        %v6745 = vld [vmem:[%s1005 + $0x18] sm:$0xff]
        %v6746 = vld [vmem:[%s1005 + $0x30] sm:$0xff]
        %v6747 = vld [vmem:[%s1005 + $0x48] sm:$0xff]
        %v6748 = vld [vmem:[%s1005 + $0x60] sm:$0xff]
        %v6749 = vld [vmem:[%s1005 + $0x78] sm:$0xff]
        %v6750 = vld [vmem:[%s1005 + $0x90] sm:$0xff]
        %v6751 = vld [vmem:[%s1005 + $0xa8] sm:$0xff]
        %v6752 = vld [vmem:[%s1005 + $0x1] sm:$0xff]
        %v6753 = vld [vmem:[%s1005 + $0x19] sm:$0xff]
        %v6754 = vld [vmem:[%s1005 + $0x31] sm:$0xff]
        %v6755 = vld [vmem:[%s1005 + $0x49] sm:$0xff]
        %v6756 = vld [vmem:[%s1005 + $0x61] sm:$0xff]
        %v6757 = vld [vmem:[%s1005 + $0x79] sm:$0xff]
        %v6758 = vld [vmem:[%s1005 + $0x91] sm:$0xff]
        %v6759 = vld [vmem:[%s1005 + $0xa9] sm:$0xff]
        %v6760 = vld [vmem:[%s1005 + $0x2] sm:$0xff]
        %v6761 = vld [vmem:[%s1005 + $0x1a] sm:$0xff]
        %v6762 = vld [vmem:[%s1005 + $0x32] sm:$0xff]
        %v6763 = vld [vmem:[%s1005 + $0x4a] sm:$0xff]
        %v6764 = vld [vmem:[%s1005 + $0x62] sm:$0xff]
        %v6765 = vld [vmem:[%s1005 + $0x7a] sm:$0xff]
        %v6766 = vld [vmem:[%s1005 + $0x92] sm:$0xff]
        %v6767 = vld [vmem:[%s1005 + $0xaa] sm:$0xff]
        %v6768 = vpack.c.bf16 %v6697, %v6696
        %v6769 = vpack.c.bf16 %v6705, %v6704
        %v6770 = vpack.c.bf16 %v6713, %v6712
        %v6771 = vpack.c.bf16 %v6721, %v6720
        %v6772 = vpack.c.bf16 %v6729, %v6728
        %v6773 = vpack.c.bf16 %v6737, %v6736
        %v6774 = vpack.c.bf16 %v6745, %v6744
        %v6775 = vpack.c.bf16 %v6753, %v6752
        %v6776 = vpack.c.bf16 %v6761, %v6760
        %v6777 = vpack.c.bf16 %v6699, %v6698
        %v6778 = vpack.c.bf16 %v6707, %v6706
        %v6779 = vpack.c.bf16 %v6715, %v6714
        %v6780 = vpack.c.bf16 %v6723, %v6722
        %v6781 = vpack.c.bf16 %v6731, %v6730
        %v6782 = vpack.c.bf16 %v6739, %v6738
        %v6783 = vpack.c.bf16 %v6747, %v6746
        %v6784 = vpack.c.bf16 %v6755, %v6754
        %v6785 = vpack.c.bf16 %v6763, %v6762
        %v6786 = vpack.c.bf16 %v6701, %v6700
        %v6787 = vpack.c.bf16 %v6709, %v6708
        %v6788 = vpack.c.bf16 %v6717, %v6716
        %v6789 = vpack.c.bf16 %v6725, %v6724
        %v6790 = vpack.c.bf16 %v6733, %v6732
        %v6791 = vpack.c.bf16 %v6741, %v6740
        %v6792 = vpack.c.bf16 %v6749, %v6748
        %v6793 = vpack.c.bf16 %v6757, %v6756
        %v6794 = vpack.c.bf16 %v6765, %v6764
        %v6795 = vpack.c.bf16 %v6703, %v6702
        %v6796 = vpack.c.bf16 %v6711, %v6710
        %v6797 = vpack.c.bf16 %v6719, %v6718
        %v6798 = vpack.c.bf16 %v6727, %v6726
        %v6799 = vpack.c.bf16 %v6735, %v6734
        %v6800 = vpack.c.bf16 %v6743, %v6742
        %v6801 = vpack.c.bf16 %v6751, %v6750
        %v6802 = vpack.c.bf16 %v6759, %v6758
        %v6803 = vpack.c.bf16 %v6767, %v6766
        %v6804 = vld [vmem:[%s9] sm:$0xf]
        %v6805 = vld [vmem:[%s9 + $0x4] sm:$0xf]
        %v6806 = vld [vmem:[%s9 + $0x8] sm:$0xf]
        %v6807 = vld [vmem:[%s9 + $0xc] sm:$0xf]
        %v6808 = vld [vmem:[%s9 + $0x10] sm:$0xf]
        %v6809 = vld [vmem:[%s9 + $0x14] sm:$0xf]
        %v6810 = vld [vmem:[%s9 + $0x18] sm:$0xf]
        %v6811 = vld [vmem:[%s9 + $0x1c] sm:$0xf]
        %v6812 = vld [vmem:[%s9 + $0x20] sm:$0xf]
        %v6813 = vld [vmem:[%s9 + $0x24] sm:$0xf]
        %v6814 = vld [vmem:[%s9 + $0x28] sm:$0xf]
        %v6815 = vld [vmem:[%s9 + $0x2c] sm:$0xf]
        %v6816 = vld [vmem:[%s9 + $0x30] sm:$0xf]
        %v6817 = vld [vmem:[%s9 + $0x34] sm:$0xf]
        %v6818 = vld [vmem:[%s9 + $0x38] sm:$0xf]
        %v6819 = vld [vmem:[%s9 + $0x3c] sm:$0xf]
        %v6820 = vld [vmem:[%s9 + $0x40] sm:$0xf]
        %v6821 = vld [vmem:[%s9 + $0x44] sm:$0xf]
        %v6822 = vld [vmem:[%s9 + $0x48] sm:$0xf]
        %v6823 = vld [vmem:[%s9 + $0x4c] sm:$0xf]
        %v6824 = vld [vmem:[%s9 + $0x50] sm:$0xf]
        %v6825 = vld [vmem:[%s9 + $0x54] sm:$0xf]
        %v6826 = vld [vmem:[%s9 + $0x58] sm:$0xf]
        %v6827 = vld [vmem:[%s9 + $0x5c] sm:$0xf]
        %v6828 = vld [vmem:[%s9 + $0x60] sm:$0xf]
        %v6829 = vld [vmem:[%s9 + $0x64] sm:$0xf]
        %v6830 = vld [vmem:[%s9 + $0x68] sm:$0xf]
        %v6831 = vld [vmem:[%s9 + $0x6c] sm:$0xf]
        %v6832 = vld [vmem:[%s9 + $0x70] sm:$0xf]
        %v6833 = vld [vmem:[%s9 + $0x74] sm:$0xf]
        %v6834 = vld [vmem:[%s9 + $0x78] sm:$0xf]
        %v6835 = vld [vmem:[%s9 + $0x7c] sm:$0xf]
        %v6836 = vld [vmem:[%s9 + $0x80] sm:$0xf]
        %v6837 = vld [vmem:[%s9 + $0x84] sm:$0xf]
        %v6838 = vld [vmem:[%s9 + $0x88] sm:$0xf]
        %v6839 = vld [vmem:[%s9 + $0x8c] sm:$0xf]
        %v6840 = vld [vmem:[%s9 + $0x90] sm:$0xf]
        %v6841 = vld [vmem:[%s9 + $0x94] sm:$0xf]
        %v6842 = vld [vmem:[%s9 + $0x98] sm:$0xf]
        %v6843 = vld [vmem:[%s9 + $0x9c] sm:$0xf]
        %v6844 = vld [vmem:[%s9 + $0xa0] sm:$0xf]
        %v6845 = vld [vmem:[%s9 + $0xa4] sm:$0xf]
        %v6846 = vld [vmem:[%s9 + $0xa8] sm:$0xf]
        %v6847 = vld [vmem:[%s9 + $0xac] sm:$0xf]
        %v6848 = vld [vmem:[%s9 + $0xb0] sm:$0xf]
        %v6849 = vld [vmem:[%s9 + $0xb4] sm:$0xf]
        %v6850 = vld [vmem:[%s9 + $0xb8] sm:$0xf]
        %v6851 = vld [vmem:[%s9 + $0xbc] sm:$0xf]
        %v6852 = vld [vmem:[%s9 + $0xc0] sm:$0xf]
        %v6853 = vld [vmem:[%s9 + $0xc4] sm:$0xf]
        %v6854 = vld [vmem:[%s9 + $0xc8] sm:$0xf]
        %v6855 = vld [vmem:[%s9 + $0xcc] sm:$0xf]
        %v6856 = vld [vmem:[%s9 + $0xd0] sm:$0xf]
        %v6857 = vld [vmem:[%s9 + $0xd4] sm:$0xf]
        %v6858 = vld [vmem:[%s9 + $0xd8] sm:$0xf]
        %v6859 = vld [vmem:[%s9 + $0xdc] sm:$0xf]
        %v6860 = vld [vmem:[%s9 + $0xe0] sm:$0xf]
        %v6861 = vld [vmem:[%s9 + $0xe4] sm:$0xf]
        %v6862 = vld [vmem:[%s9 + $0xe8] sm:$0xf]
        %v6863 = vld [vmem:[%s9 + $0xec] sm:$0xf]
        %v6864 = vld [vmem:[%s9 + $0xf0] sm:$0xf]
        %v6865 = vld [vmem:[%s9 + $0xf4] sm:$0xf]
        %v6866 = vld [vmem:[%s9 + $0xf8] sm:$0xf]
        %v6867 = vld [vmem:[%s9 + $0xfc] sm:$0xf]
        %v6868 = vld [vmem:[%s9 + $0x100] sm:$0xf]
        %v6869 = vld [vmem:[%s9 + $0x104] sm:$0xf]
        %v6870 = vld [vmem:[%s9 + $0x108] sm:$0xf]
        %v6871 = vld [vmem:[%s9 + $0x10c] sm:$0xf]
        %v6872 = vld [vmem:[%s9 + $0x110] sm:$0xf]
        %v6873 = vld [vmem:[%s9 + $0x114] sm:$0xf]
        %v6874 = vld [vmem:[%s9 + $0x118] sm:$0xf]
        %v6875 = vld [vmem:[%s9 + $0x11c] sm:$0xf]
        %v6876 = vld [vmem:[%s9 + $0x120] sm:$0xf]
        %v6877 = vld [vmem:[%s9 + $0x124] sm:$0xf]
        %v6878 = vld [vmem:[%s9 + $0x128] sm:$0xf]
        %v6879 = vld [vmem:[%s9 + $0x12c] sm:$0xf]
        %v6880 = vld [vmem:[%s9 + $0x130] sm:$0xf]
        %v6881 = vld [vmem:[%s9 + $0x134] sm:$0xf]
        %v6882 = vld [vmem:[%s9 + $0x138] sm:$0xf]
        %v6883 = vld [vmem:[%s9 + $0x13c] sm:$0xf]
        %v6884 = vld [vmem:[%s9 + $0x140] sm:$0xf]
        %v6885 = vld [vmem:[%s9 + $0x144] sm:$0xf]
        %v6886 = vld [vmem:[%s9 + $0x148] sm:$0xf]
        %v6887 = vld [vmem:[%s9 + $0x14c] sm:$0xf]
        %v6888 = vld [vmem:[%s9 + $0x150] sm:$0xf]
        %v6889 = vld [vmem:[%s9 + $0x154] sm:$0xf]
        %v6890 = vld [vmem:[%s9 + $0x158] sm:$0xf]
        %v6891 = vld [vmem:[%s9 + $0x15c] sm:$0xf]
        %v6892 = vld [vmem:[%s9 + $0x160] sm:$0xf]
        %v6893 = vld [vmem:[%s9 + $0x164] sm:$0xf]
        %v6894 = vld [vmem:[%s9 + $0x168] sm:$0xf]
        %v6895 = vld [vmem:[%s9 + $0x16c] sm:$0xf]
        %v6896 = vld [vmem:[%s9 + $0x170] sm:$0xf]
        %v6897 = vld [vmem:[%s9 + $0x174] sm:$0xf]
        %v6898 = vld [vmem:[%s9 + $0x178] sm:$0xf]
        %v6899 = vld [vmem:[%s9 + $0x17c] sm:$0xf]
        %v6900 = vld [vmem:[%s9 + $0x180] sm:$0xf]
        %v6901 = vld [vmem:[%s9 + $0x184] sm:$0xf]
        %v6902 = vld [vmem:[%s9 + $0x188] sm:$0xf]
        %v6903 = vld [vmem:[%s9 + $0x18c] sm:$0xf]
        %v6904 = vld [vmem:[%s9 + $0x190] sm:$0xf]
        %v6905 = vld [vmem:[%s9 + $0x194] sm:$0xf]
        %v6906 = vld [vmem:[%s9 + $0x198] sm:$0xf]
        %v6907 = vld [vmem:[%s9 + $0x19c] sm:$0xf]
        %v6908 = vld [vmem:[%s9 + $0x1a0] sm:$0xf]
        %v6909 = vld [vmem:[%s9 + $0x1a4] sm:$0xf]
        %v6910 = vld [vmem:[%s9 + $0x1a8] sm:$0xf]
        %v6911 = vld [vmem:[%s9 + $0x1ac] sm:$0xf]
        %v6912 = vld [vmem:[%s9 + $0x1b0] sm:$0xf]
        %v6913 = vld [vmem:[%s9 + $0x1b4] sm:$0xf]
        %v6914 = vld [vmem:[%s9 + $0x1b8] sm:$0xf]
        %v6915 = vld [vmem:[%s9 + $0x1bc] sm:$0xf]
        %v6916 = vld [vmem:[%s9 + $0x1c0] sm:$0xf]
        %v6917 = vld [vmem:[%s9 + $0x1c4] sm:$0xf]
        %v6918 = vld [vmem:[%s9 + $0x1c8] sm:$0xf]
        %v6919 = vld [vmem:[%s9 + $0x1cc] sm:$0xf]
        %v6920 = vld [vmem:[%s9 + $0x1d0] sm:$0xf]
        %v6921 = vld [vmem:[%s9 + $0x1d4] sm:$0xf]
        %v6922 = vld [vmem:[%s9 + $0x1d8] sm:$0xf]
        %v6923 = vld [vmem:[%s9 + $0x1dc] sm:$0xf]
        %v6924 = vld [vmem:[%s9 + $0x1e0] sm:$0xf]
        %v6925 = vld [vmem:[%s9 + $0x1e4] sm:$0xf]
        %v6926 = vld [vmem:[%s9 + $0x1e8] sm:$0xf]
        %v6927 = vld [vmem:[%s9 + $0x1ec] sm:$0xf]
        %v6928 = vld [vmem:[%s9 + $0x1f0] sm:$0xf]
        %v6929 = vld [vmem:[%s9 + $0x1f4] sm:$0xf]
        %v6930 = vld [vmem:[%s9 + $0x1f8] sm:$0xf]
        %v6931 = vld [vmem:[%s9 + $0x1fc] sm:$0xf]
        %v6932 = vld [vmem:[%s9 + $0x200] sm:$0xf]
        %v6933 = vld [vmem:[%s9 + $0x204] sm:$0xf]
        %v6934 = vld [vmem:[%s9 + $0x208] sm:$0xf]
        %v6935 = vld [vmem:[%s9 + $0x20c] sm:$0xf]
        %v6936 = vld [vmem:[%s9 + $0x210] sm:$0xf]
        %v6937 = vld [vmem:[%s9 + $0x214] sm:$0xf]
        %v6938 = vld [vmem:[%s9 + $0x218] sm:$0xf]
        %v6939 = vld [vmem:[%s9 + $0x21c] sm:$0xf]
        %v6940 = vld [vmem:[%s9 + $0x220] sm:$0xf]
        %v6941 = vld [vmem:[%s9 + $0x224] sm:$0xf]
        %v6942 = vld [vmem:[%s9 + $0x228] sm:$0xf]
        %v6943 = vld [vmem:[%s9 + $0x22c] sm:$0xf]
        %v6944 = vld [vmem:[%s9 + $0x230] sm:$0xf]
        %v6945 = vld [vmem:[%s9 + $0x234] sm:$0xf]
        %v6946 = vld [vmem:[%s9 + $0x238] sm:$0xf]
        %v6947 = vld [vmem:[%s9 + $0x23c] sm:$0xf]
        %v6948 = vld [vmem:[%s10] sm:$0x1]
        %v6950 = vperm.slane %v6948, 0
        %v7096 = vunpack.c.l.b16 %v6804
        %v7097 = vunpack.c.l.b16 %v6805
        %v7098 = vunpack.c.l.b16 %v6806
        %v7099 = vunpack.c.l.b16 %v6807
        %v7100 = vunpack.c.l.b16 %v6808
        %v7101 = vunpack.c.l.b16 %v6809
        %v7102 = vunpack.c.l.b16 %v6810
        %v7103 = vunpack.c.l.b16 %v6811
        %v7104 = vunpack.c.l.b16 %v6812
        %v7105 = vunpack.c.l.b16 %v6813
        %v7106 = vunpack.c.l.b16 %v6814
        %v7107 = vunpack.c.l.b16 %v6815
        %v7108 = vunpack.c.l.b16 %v6816
        %v7109 = vunpack.c.l.b16 %v6817
        %v7110 = vunpack.c.l.b16 %v6818
        %v7111 = vunpack.c.l.b16 %v6819
        %v7112 = vunpack.c.l.b16 %v6820
        %v7113 = vunpack.c.l.b16 %v6821
        %v7114 = vunpack.c.l.b16 %v6822
        %v7115 = vunpack.c.l.b16 %v6823
        %v7116 = vunpack.c.l.b16 %v6824
        %v7117 = vunpack.c.l.b16 %v6825
        %v7118 = vunpack.c.l.b16 %v6826
        %v7119 = vunpack.c.l.b16 %v6827
        %v7120 = vunpack.c.l.b16 %v6828
        %v7121 = vunpack.c.l.b16 %v6829
        %v7122 = vunpack.c.l.b16 %v6830
        %v7123 = vunpack.c.l.b16 %v6831
        %v7124 = vunpack.c.l.b16 %v6832
        %v7125 = vunpack.c.l.b16 %v6833
        %v7126 = vunpack.c.l.b16 %v6834
        %v7127 = vunpack.c.l.b16 %v6835
        %v7128 = vunpack.c.l.b16 %v6836
        %v7129 = vunpack.c.l.b16 %v6837
        %v7130 = vunpack.c.l.b16 %v6838
        %v7131 = vunpack.c.l.b16 %v6839
        %v7132 = vunpack.c.l.b16 %v6840
        %v7133 = vunpack.c.l.b16 %v6841
        %v7134 = vunpack.c.l.b16 %v6842
        %v7135 = vunpack.c.l.b16 %v6843
        %v7136 = vunpack.c.l.b16 %v6844
        %v7137 = vunpack.c.l.b16 %v6845
        %v7138 = vunpack.c.l.b16 %v6846
        %v7139 = vunpack.c.l.b16 %v6847
        %v7140 = vunpack.c.l.b16 %v6848
        %v7141 = vunpack.c.l.b16 %v6849
        %v7142 = vunpack.c.l.b16 %v6850
        %v7143 = vunpack.c.l.b16 %v6851
        %v7144 = vunpack.c.l.b16 %v6852
        %v7145 = vunpack.c.l.b16 %v6853
        %v7146 = vunpack.c.l.b16 %v6854
        %v7147 = vunpack.c.l.b16 %v6855
        %v7148 = vunpack.c.l.b16 %v6856
        %v7149 = vunpack.c.l.b16 %v6857
        %v7150 = vunpack.c.l.b16 %v6858
        %v7151 = vunpack.c.l.b16 %v6859
        %v7152 = vunpack.c.l.b16 %v6860
        %v7153 = vunpack.c.l.b16 %v6861
        %v7154 = vunpack.c.l.b16 %v6862
        %v7155 = vunpack.c.l.b16 %v6863
        %v7156 = vunpack.c.l.b16 %v6864
        %v7157 = vunpack.c.l.b16 %v6865
        %v7158 = vunpack.c.l.b16 %v6866
        %v7159 = vunpack.c.l.b16 %v6867
        %v7160 = vunpack.c.l.b16 %v6868
        %v7161 = vunpack.c.l.b16 %v6869
        %v7162 = vunpack.c.l.b16 %v6870
        %v7163 = vunpack.c.l.b16 %v6871
        %v7164 = vunpack.c.l.b16 %v6872
        %v7165 = vunpack.c.l.b16 %v6873
        %v7166 = vunpack.c.l.b16 %v6874
        %v7167 = vunpack.c.l.b16 %v6875
        %v7168 = vunpack.c.l.b16 %v6876
        %v7169 = vunpack.c.l.b16 %v6877
        %v7170 = vunpack.c.l.b16 %v6878
        %v7171 = vunpack.c.l.b16 %v6879
        %v7172 = vunpack.c.l.b16 %v6880
        %v7173 = vunpack.c.l.b16 %v6881
        %v7174 = vunpack.c.l.b16 %v6882
        %v7175 = vunpack.c.l.b16 %v6883
        %v7176 = vunpack.c.l.b16 %v6884
        %v7177 = vunpack.c.l.b16 %v6885
        %v7178 = vunpack.c.l.b16 %v6886
        %v7179 = vunpack.c.l.b16 %v6887
        %v7180 = vunpack.c.l.b16 %v6888
        %v7181 = vunpack.c.l.b16 %v6889
        %v7182 = vunpack.c.l.b16 %v6890
        %v7183 = vunpack.c.l.b16 %v6891
        %v7184 = vunpack.c.l.b16 %v6892
        %v7185 = vunpack.c.l.b16 %v6893
        %v7186 = vunpack.c.l.b16 %v6894
        %v7187 = vunpack.c.l.b16 %v6895
        %v7188 = vunpack.c.l.b16 %v6896
        %v7189 = vunpack.c.l.b16 %v6897
        %v7190 = vunpack.c.l.b16 %v6898
        %v7191 = vunpack.c.l.b16 %v6899
        %v7192 = vunpack.c.l.b16 %v6900
        %v7193 = vunpack.c.l.b16 %v6901
        %v7194 = vunpack.c.l.b16 %v6902
        %v7195 = vunpack.c.l.b16 %v6903
        %v7196 = vunpack.c.l.b16 %v6904
        %v7197 = vunpack.c.l.b16 %v6905
        %v7198 = vunpack.c.l.b16 %v6906
        %v7199 = vunpack.c.l.b16 %v6907
        %v7200 = vunpack.c.l.b16 %v6908
        %v7201 = vunpack.c.l.b16 %v6909
        %v7202 = vunpack.c.l.b16 %v6910
        %v7203 = vunpack.c.l.b16 %v6911
        %v7204 = vunpack.c.l.b16 %v6912
        %v7205 = vunpack.c.l.b16 %v6913
        %v7206 = vunpack.c.l.b16 %v6914
        %v7207 = vunpack.c.l.b16 %v6915
        %v7208 = vunpack.c.l.b16 %v6916
        %v7209 = vunpack.c.l.b16 %v6917
        %v7210 = vunpack.c.l.b16 %v6918
        %v7211 = vunpack.c.l.b16 %v6919
        %v7212 = vunpack.c.l.b16 %v6920
        %v7213 = vunpack.c.l.b16 %v6921
        %v7214 = vunpack.c.l.b16 %v6922
        %v7215 = vunpack.c.l.b16 %v6923
        %v7216 = vunpack.c.l.b16 %v6924
        %v7217 = vunpack.c.l.b16 %v6925
        %v7218 = vunpack.c.l.b16 %v6926
        %v7219 = vunpack.c.l.b16 %v6927
        %v7220 = vunpack.c.l.b16 %v6928
        %v7221 = vunpack.c.l.b16 %v6929
        %v7222 = vunpack.c.l.b16 %v6930
        %v7223 = vunpack.c.l.b16 %v6931
        %v7224 = vunpack.c.l.b16 %v6932
        %v7225 = vunpack.c.l.b16 %v6933
        %v7226 = vunpack.c.l.b16 %v6934
        %v7227 = vunpack.c.l.b16 %v6935
        %v7228 = vunpack.c.l.b16 %v6936
        %v7229 = vunpack.c.l.b16 %v6937
        %v7230 = vunpack.c.l.b16 %v6938
        %v7231 = vunpack.c.l.b16 %v6939
        %v7232 = vunpack.c.l.b16 %v6940
        %v7233 = vunpack.c.l.b16 %v6941
        %v7234 = vunpack.c.l.b16 %v6942
        %v7235 = vunpack.c.l.b16 %v6943
        %v7236 = vunpack.c.l.b16 %v6944
        %v7237 = vunpack.c.l.b16 %v6945
        %v7238 = vunpack.c.l.b16 %v6946
        %v7239 = vunpack.c.l.b16 %v6947
        %v7240 = vpack.c.b16 %v7097, %v7096
        %v7241 = vpack.c.b16 %v7099, %v7098
        %v7242 = vpack.c.b16 %v7101, %v7100
        %v7243 = vpack.c.b16 %v7103, %v7102
        %v7244 = vpack.c.b16 %v7105, %v7104
        %v7245 = vpack.c.b16 %v7107, %v7106
        %v7246 = vpack.c.b16 %v7109, %v7108
        %v7247 = vpack.c.b16 %v7111, %v7110
        %v7248 = vpack.c.b16 %v7113, %v7112
        %v7249 = vpack.c.b16 %v7115, %v7114
        %v7250 = vpack.c.b16 %v7117, %v7116
        %v7251 = vpack.c.b16 %v7119, %v7118
        %v7252 = vpack.c.b16 %v7121, %v7120
        %v7253 = vpack.c.b16 %v7123, %v7122
        %v7254 = vpack.c.b16 %v7125, %v7124
        %v7255 = vpack.c.b16 %v7127, %v7126
        %v7256 = vpack.c.b16 %v7129, %v7128
        %v7257 = vpack.c.b16 %v7131, %v7130
        %v7258 = vpack.c.b16 %v7133, %v7132
        %v7259 = vpack.c.b16 %v7135, %v7134
        %v7260 = vpack.c.b16 %v7137, %v7136
        %v7261 = vpack.c.b16 %v7139, %v7138
        %v7262 = vpack.c.b16 %v7141, %v7140
        %v7263 = vpack.c.b16 %v7143, %v7142
        %v7264 = vpack.c.b16 %v7145, %v7144
        %v7265 = vpack.c.b16 %v7147, %v7146
        %v7266 = vpack.c.b16 %v7149, %v7148
        %v7267 = vpack.c.b16 %v7151, %v7150
        %v7268 = vpack.c.b16 %v7153, %v7152
        %v7269 = vpack.c.b16 %v7155, %v7154
        %v7270 = vpack.c.b16 %v7157, %v7156
        %v7271 = vpack.c.b16 %v7159, %v7158
        %v7272 = vpack.c.b16 %v7161, %v7160
        %v7273 = vpack.c.b16 %v7163, %v7162
        %v7274 = vpack.c.b16 %v7165, %v7164
        %v7275 = vpack.c.b16 %v7167, %v7166
        %v7276 = vpack.c.b16 %v7169, %v7168
        %v7277 = vpack.c.b16 %v7171, %v7170
        %v7278 = vpack.c.b16 %v7173, %v7172
        %v7279 = vpack.c.b16 %v7175, %v7174
        %v7280 = vpack.c.b16 %v7177, %v7176
        %v7281 = vpack.c.b16 %v7179, %v7178
        %v7282 = vpack.c.b16 %v7181, %v7180
        %v7283 = vpack.c.b16 %v7183, %v7182
        %v7284 = vpack.c.b16 %v7185, %v7184
        %v7285 = vpack.c.b16 %v7187, %v7186
        %v7286 = vpack.c.b16 %v7189, %v7188
        %v7287 = vpack.c.b16 %v7191, %v7190
        %v7288 = vpack.c.b16 %v7193, %v7192
        %v7289 = vpack.c.b16 %v7195, %v7194
        %v7290 = vpack.c.b16 %v7197, %v7196
        %v7291 = vpack.c.b16 %v7199, %v7198
        %v7292 = vpack.c.b16 %v7201, %v7200
        %v7293 = vpack.c.b16 %v7203, %v7202
        %v7294 = vpack.c.b16 %v7205, %v7204
        %v7295 = vpack.c.b16 %v7207, %v7206
        %v7296 = vpack.c.b16 %v7209, %v7208
        %v7297 = vpack.c.b16 %v7211, %v7210
        %v7298 = vpack.c.b16 %v7213, %v7212
        %v7299 = vpack.c.b16 %v7215, %v7214
        %v7300 = vpack.c.b16 %v7217, %v7216
        %v7301 = vpack.c.b16 %v7219, %v7218
        %v7302 = vpack.c.b16 %v7221, %v7220
        %v7303 = vpack.c.b16 %v7223, %v7222
        %v7304 = vpack.c.b16 %v7225, %v7224
        %v7305 = vpack.c.b16 %v7227, %v7226
        %v7306 = vpack.c.b16 %v7229, %v7228
        %v7307 = vpack.c.b16 %v7231, %v7230
        %v7308 = vpack.c.b16 %v7233, %v7232
        %v7309 = vpack.c.b16 %v7235, %v7234
        %v7310 = vpack.c.b16 %v7237, %v7236
        %v7311 = vpack.c.b16 %v7239, %v7238
        %7384 = vmatpush.bf16.msra.mxu0 %v7247
        %7385 = vmatpush.bf16.msra.mxu0 %v7246
        %7386 = vmatpush.bf16.msra.mxu0 %v7245
        %7387 = vmatpush.bf16.msra.mxu0 %v7244
        %7388 = vmatpush.bf16.msra.mxu0 %v7243
        %7389 = vmatpush.bf16.msra.mxu0 %v7242
        %7390 = vmatpush.bf16.msra.mxu0 %v7241
        %7391 = vmatpush.bf16.msra.mxu0 %v7240
        %7392 = vmatmul.bf16.gmra.mxu0 %v6768
        %v7393 = vpop.f32.mrf.mxu0
        %v7394 = vadd.f32 %v6950, %v7393
        %v7395 = vpop.f32.mrf.mxu0
        %v7396 = vadd.f32 %v6950, %v7395
        %7397 = vmatmul.bf16.gmra.mxu0 %v6777
        %v7398 = vpop.f32.mrf.mxu0
        %v7399 = vadd.f32 %v6950, %v7398
        %v7400 = vpop.f32.mrf.mxu0
        %v7401 = vadd.f32 %v6950, %v7400
        %7402 = vmatmul.bf16.gmra.mxu0 %v6786
        %v7403 = vpop.f32.mrf.mxu0
        %v7404 = vadd.f32 %v6950, %v7403
        %v7405 = vpop.f32.mrf.mxu0
        %v7406 = vadd.f32 %v6950, %v7405
        %7407 = vmatmul.bf16.gmra.mxu0 %v6795
        %v7408 = vpop.f32.mrf.mxu0
        %v7409 = vadd.f32 %v6950, %v7408
        %v7410 = vpop.f32.mrf.mxu0
        %v7411 = vadd.f32 %v6950, %v7410
        %7412 = vdwg.mxu0
        %7413 = vmatpush.bf16.msra.mxu0 %v7255
        %7414 = vmatpush.bf16.msra.mxu0 %v7254
        %7415 = vmatpush.bf16.msra.mxu0 %v7253
        %7416 = vmatpush.bf16.msra.mxu0 %v7252
        %7417 = vmatpush.bf16.msra.mxu0 %v7251
        %7418 = vmatpush.bf16.msra.mxu0 %v7250
        %7419 = vmatpush.bf16.msra.mxu0 %v7249
        %7420 = vmatpush.bf16.msra.mxu0 %v7248
        %7421 = vmatmul.bf16.gmra.mxu0 %v6769
        %v7422 = vpop.f32.mrf.mxu0
        %v7423 = vadd.f32 %v7394, %v7422
        %v7424 = vpop.f32.mrf.mxu0
        %v7425 = vadd.f32 %v7396, %v7424
        %7426 = vmatmul.bf16.gmra.mxu0 %v6778
        %v7427 = vpop.f32.mrf.mxu0
        %v7428 = vadd.f32 %v7399, %v7427
        %v7429 = vpop.f32.mrf.mxu0
        %v7430 = vadd.f32 %v7401, %v7429
        %7431 = vmatmul.bf16.gmra.mxu0 %v6787
        %v7432 = vpop.f32.mrf.mxu0
        %v7433 = vadd.f32 %v7404, %v7432
        %v7434 = vpop.f32.mrf.mxu0
        %v7435 = vadd.f32 %v7406, %v7434
        %7436 = vmatmul.bf16.gmra.mxu0 %v6796
        %v7437 = vpop.f32.mrf.mxu0
        %v7438 = vadd.f32 %v7409, %v7437
        %v7439 = vpop.f32.mrf.mxu0
        %v7440 = vadd.f32 %v7411, %v7439
        %7441 = vdwg.mxu0
        %7442 = vmatpush.bf16.msra.mxu0 %v7263
        %7443 = vmatpush.bf16.msra.mxu0 %v7262
        %7444 = vmatpush.bf16.msra.mxu0 %v7261
        %7445 = vmatpush.bf16.msra.mxu0 %v7260
        %7446 = vmatpush.bf16.msra.mxu0 %v7259
        %7447 = vmatpush.bf16.msra.mxu0 %v7258
        %7448 = vmatpush.bf16.msra.mxu0 %v7257
        %7449 = vmatpush.bf16.msra.mxu0 %v7256
        %7450 = vmatmul.bf16.gmra.mxu0 %v6770
        %v7451 = vpop.f32.mrf.mxu0
        %v7452 = vadd.f32 %v7423, %v7451
        %v7453 = vpop.f32.mrf.mxu0
        %v7454 = vadd.f32 %v7425, %v7453
        %7455 = vmatmul.bf16.gmra.mxu0 %v6779
        %v7456 = vpop.f32.mrf.mxu0
        %v7457 = vadd.f32 %v7428, %v7456
        %v7458 = vpop.f32.mrf.mxu0
        %v7459 = vadd.f32 %v7430, %v7458
        %7460 = vmatmul.bf16.gmra.mxu0 %v6788
        %v7461 = vpop.f32.mrf.mxu0
        %v7462 = vadd.f32 %v7433, %v7461
        %v7463 = vpop.f32.mrf.mxu0
        %v7464 = vadd.f32 %v7435, %v7463
        %7465 = vmatmul.bf16.gmra.mxu0 %v6797
        %v7466 = vpop.f32.mrf.mxu0
        %v7467 = vadd.f32 %v7438, %v7466
        %v7468 = vpop.f32.mrf.mxu0
        %v7469 = vadd.f32 %v7440, %v7468
        %7470 = vdwg.mxu0
        %7471 = vmatpush.bf16.msra.mxu0 %v7271
        %7472 = vmatpush.bf16.msra.mxu0 %v7270
        %7473 = vmatpush.bf16.msra.mxu0 %v7269
        %7474 = vmatpush.bf16.msra.mxu0 %v7268
        %7475 = vmatpush.bf16.msra.mxu0 %v7267
        %7476 = vmatpush.bf16.msra.mxu0 %v7266
        %7477 = vmatpush.bf16.msra.mxu0 %v7265
        %7478 = vmatpush.bf16.msra.mxu0 %v7264
        %7479 = vmatmul.bf16.gmra.mxu0 %v6771
        %v7480 = vpop.f32.mrf.mxu0
        %v7481 = vadd.f32 %v7452, %v7480
        %v7482 = vpop.f32.mrf.mxu0
        %v7483 = vadd.f32 %v7454, %v7482
        %7484 = vmatmul.bf16.gmra.mxu0 %v6780
        %v7485 = vpop.f32.mrf.mxu0
        %v7486 = vadd.f32 %v7457, %v7485
        %v7487 = vpop.f32.mrf.mxu0
        %v7488 = vadd.f32 %v7459, %v7487
        %7489 = vmatmul.bf16.gmra.mxu0 %v6789
        %v7490 = vpop.f32.mrf.mxu0
        %v7491 = vadd.f32 %v7462, %v7490
        %v7492 = vpop.f32.mrf.mxu0
        %v7493 = vadd.f32 %v7464, %v7492
        %7494 = vmatmul.bf16.gmra.mxu0 %v6798
        %v7495 = vpop.f32.mrf.mxu0
        %v7496 = vadd.f32 %v7467, %v7495
        %v7497 = vpop.f32.mrf.mxu0
        %v7498 = vadd.f32 %v7469, %v7497
        %7499 = vdwg.mxu0
        %7500 = vmatpush.bf16.msra.mxu0 %v7279
        %7501 = vmatpush.bf16.msra.mxu0 %v7278
        %7502 = vmatpush.bf16.msra.mxu0 %v7277
        %7503 = vmatpush.bf16.msra.mxu0 %v7276
        %7504 = vmatpush.bf16.msra.mxu0 %v7275
        %7505 = vmatpush.bf16.msra.mxu0 %v7274
        %7506 = vmatpush.bf16.msra.mxu0 %v7273
        %7507 = vmatpush.bf16.msra.mxu0 %v7272
        %7508 = vmatmul.bf16.gmra.mxu0 %v6772
        %v7509 = vpop.f32.mrf.mxu0
        %v7510 = vadd.f32 %v7481, %v7509
        %v7511 = vpop.f32.mrf.mxu0
        %v7512 = vadd.f32 %v7483, %v7511
        %7513 = vmatmul.bf16.gmra.mxu0 %v6781
        %v7514 = vpop.f32.mrf.mxu0
        %v7515 = vadd.f32 %v7486, %v7514
        %v7516 = vpop.f32.mrf.mxu0
        %v7517 = vadd.f32 %v7488, %v7516
        %7518 = vmatmul.bf16.gmra.mxu0 %v6790
        %v7519 = vpop.f32.mrf.mxu0
        %v7520 = vadd.f32 %v7491, %v7519
        %v7521 = vpop.f32.mrf.mxu0
        %v7522 = vadd.f32 %v7493, %v7521
        %7523 = vmatmul.bf16.gmra.mxu0 %v6799
        %v7524 = vpop.f32.mrf.mxu0
        %v7525 = vadd.f32 %v7496, %v7524
        %v7526 = vpop.f32.mrf.mxu0
        %v7527 = vadd.f32 %v7498, %v7526
        %7528 = vdwg.mxu0
        %7529 = vmatpush.bf16.msra.mxu0 %v7287
        %7530 = vmatpush.bf16.msra.mxu0 %v7286
        %7531 = vmatpush.bf16.msra.mxu0 %v7285
        %7532 = vmatpush.bf16.msra.mxu0 %v7284
        %7533 = vmatpush.bf16.msra.mxu0 %v7283
        %7534 = vmatpush.bf16.msra.mxu0 %v7282
        %7535 = vmatpush.bf16.msra.mxu0 %v7281
        %7536 = vmatpush.bf16.msra.mxu0 %v7280
        %7537 = vmatmul.bf16.gmra.mxu0 %v6773
        %v7538 = vpop.f32.mrf.mxu0
        %v7539 = vadd.f32 %v7510, %v7538
        %v7540 = vpop.f32.mrf.mxu0
        %v7541 = vadd.f32 %v7512, %v7540
        %7542 = vmatmul.bf16.gmra.mxu0 %v6782
        %v7543 = vpop.f32.mrf.mxu0
        %v7544 = vadd.f32 %v7515, %v7543
        %v7545 = vpop.f32.mrf.mxu0
        %v7546 = vadd.f32 %v7517, %v7545
        %7547 = vmatmul.bf16.gmra.mxu0 %v6791
        %v7548 = vpop.f32.mrf.mxu0
        %v7549 = vadd.f32 %v7520, %v7548
        %v7550 = vpop.f32.mrf.mxu0
        %v7551 = vadd.f32 %v7522, %v7550
        %7552 = vmatmul.bf16.gmra.mxu0 %v6800
        %v7553 = vpop.f32.mrf.mxu0
        %v7554 = vadd.f32 %v7525, %v7553
        %v7555 = vpop.f32.mrf.mxu0
        %v7556 = vadd.f32 %v7527, %v7555
        %7557 = vdwg.mxu0
        %7558 = vmatpush.bf16.msra.mxu0 %v7295
        %7559 = vmatpush.bf16.msra.mxu0 %v7294
        %7560 = vmatpush.bf16.msra.mxu0 %v7293
        %7561 = vmatpush.bf16.msra.mxu0 %v7292
        %7562 = vmatpush.bf16.msra.mxu0 %v7291
        %7563 = vmatpush.bf16.msra.mxu0 %v7290
        %7564 = vmatpush.bf16.msra.mxu0 %v7289
        %7565 = vmatpush.bf16.msra.mxu0 %v7288
        %7566 = vmatmul.bf16.gmra.mxu0 %v6774
        %v7567 = vpop.f32.mrf.mxu0
        %v7568 = vadd.f32 %v7539, %v7567
        %v7569 = vpop.f32.mrf.mxu0
        %v7570 = vadd.f32 %v7541, %v7569
        %7571 = vmatmul.bf16.gmra.mxu0 %v6783
        %v7572 = vpop.f32.mrf.mxu0
        %v7573 = vadd.f32 %v7544, %v7572
        %v7574 = vpop.f32.mrf.mxu0
        %v7575 = vadd.f32 %v7546, %v7574
        %7576 = vmatmul.bf16.gmra.mxu0 %v6792
        %v7577 = vpop.f32.mrf.mxu0
        %v7578 = vadd.f32 %v7549, %v7577
        %v7579 = vpop.f32.mrf.mxu0
        %v7580 = vadd.f32 %v7551, %v7579
        %7581 = vmatmul.bf16.gmra.mxu0 %v6801
        %v7582 = vpop.f32.mrf.mxu0
        %v7583 = vadd.f32 %v7554, %v7582
        %v7584 = vpop.f32.mrf.mxu0
        %v7585 = vadd.f32 %v7556, %v7584
        %7586 = vdwg.mxu0
        %7587 = vmatpush.bf16.msra.mxu0 %v7303
        %7588 = vmatpush.bf16.msra.mxu0 %v7302
        %7589 = vmatpush.bf16.msra.mxu0 %v7301
        %7590 = vmatpush.bf16.msra.mxu0 %v7300
        %7591 = vmatpush.bf16.msra.mxu0 %v7299
        %7592 = vmatpush.bf16.msra.mxu0 %v7298
        %7593 = vmatpush.bf16.msra.mxu0 %v7297
        %7594 = vmatpush.bf16.msra.mxu0 %v7296
        %7595 = vmatmul.bf16.gmra.mxu0 %v6775
        %v7596 = vpop.f32.mrf.mxu0
        %v7597 = vadd.f32 %v7568, %v7596
        %v7598 = vpop.f32.mrf.mxu0
        %v7599 = vadd.f32 %v7570, %v7598
        %7600 = vmatmul.bf16.gmra.mxu0 %v6784
        %v7601 = vpop.f32.mrf.mxu0
        %v7602 = vadd.f32 %v7573, %v7601
        %v7603 = vpop.f32.mrf.mxu0
        %v7604 = vadd.f32 %v7575, %v7603
        %7605 = vmatmul.bf16.gmra.mxu0 %v6793
        %v7606 = vpop.f32.mrf.mxu0
        %v7607 = vadd.f32 %v7578, %v7606
        %v7608 = vpop.f32.mrf.mxu0
        %v7609 = vadd.f32 %v7580, %v7608
        %7610 = vmatmul.bf16.gmra.mxu0 %v6802
        %v7611 = vpop.f32.mrf.mxu0
        %v7612 = vadd.f32 %v7583, %v7611
        %v7613 = vpop.f32.mrf.mxu0
        %v7614 = vadd.f32 %v7585, %v7613
        %7615 = vdwg.mxu0
        %7616 = vmatpush.bf16.msra.mxu0 %v7311
        %7617 = vmatpush.bf16.msra.mxu0 %v7310
        %7618 = vmatpush.bf16.msra.mxu0 %v7309
        %7619 = vmatpush.bf16.msra.mxu0 %v7308
        %7620 = vmatpush.bf16.msra.mxu0 %v7307
        %7621 = vmatpush.bf16.msra.mxu0 %v7306
        %7622 = vmatpush.bf16.msra.mxu0 %v7305
        %7623 = vmatpush.bf16.msra.mxu0 %v7304
        %7624 = vmatmul.bf16.gmra.mxu0 %v6776
        %v7625 = vpop.f32.mrf.mxu0
        %v7626 = vadd.f32 %v7597, %v7625
        %v7627 = vpop.f32.mrf.mxu0
        %v7628 = vadd.f32 %v7599, %v7627
        %7629 = vmatmul.bf16.gmra.mxu0 %v6785
        %v7630 = vpop.f32.mrf.mxu0
        %v7631 = vadd.f32 %v7602, %v7630
        %v7632 = vpop.f32.mrf.mxu0
        %v7633 = vadd.f32 %v7604, %v7632
        %7634 = vmatmul.bf16.gmra.mxu0 %v6794
        %v7635 = vpop.f32.mrf.mxu0
        %v7636 = vadd.f32 %v7607, %v7635
        %v7637 = vpop.f32.mrf.mxu0
        %v7638 = vadd.f32 %v7609, %v7637
        %7639 = vmatmul.bf16.gmra.mxu0 %v6803
        %v7640 = vpop.f32.mrf.mxu0
        %v7641 = vadd.f32 %v7612, %v7640
        %v7642 = vpop.f32.mrf.mxu0
        %v7643 = vadd.f32 %v7614, %v7642
        %7644 = vdwg.mxu0
        %v7645 = vmax.f32 %v7626, 0.0
        %v7646 = vmax.f32 %v7628, 0.0
        %v7647 = vmax.f32 %v7631, 0.0
        %v7648 = vmax.f32 %v7633, 0.0
        %v7649 = vmax.f32 %v7636, 0.0
        %v7650 = vmax.f32 %v7638, 0.0
        %v7651 = vmax.f32 %v7641, 0.0
        %v7652 = vmax.f32 %v7643, 0.0
        %v7653 = vld [vmem:[%s20] sm:$0xff]
        %v7654 = vld [vmem:[%s20 + $0x8] sm:$0xff]
        %vm7655 = vcmask 523264
        %v7657 = vsel %vm7655, %v7653, 0
        %v7660 = vsel %vm7655, %v7654, 0
        %7662 = vmatpush.msra.mxu0 0.0
        %7663 = vmatpush.msra.mxu0 0.0
        %7664 = vmatpush.msra.mxu0 0.0
        %7665 = vmatpush.msra.mxu0 0.0
        %7666 = vmatpush.msra.mxu0 0.0
        %7667 = vmatpush.msra.mxu0 0.0
        %7668 = vmatpush.msra.mxu0 0.0
        %7669 = vmatpush.msra.mxu0 0.0
        %7670 = vmatpush.msra.mxu0 %v7652
        %7671 = vmatpush.msra.mxu0 %v7651
        %7672 = vmatpush.msra.mxu0 %v7650
        %7673 = vmatpush.msra.mxu0 %v7649
        %7674 = vmatpush.msra.mxu0 %v7648
        %7675 = vmatpush.msra.mxu0 %v7647
        %7676 = vmatpush.msra.mxu0 %v7646
        %7677 = vmatpush.msra.mxu0 %v7645
        %7678 = vmatmul.f32.gmra.mxu0 %v7657
        %v7679 = vpop.f32.mrf.mxu0
        %v7680 = vadd.f32 0.0, %v7679
        %7681 = vmatmul.f32.gmra.mxu0 %v7660
        %v7682 = vpop.f32.mrf.mxu0
        %v7683 = vadd.f32 0.0, %v7682
        %7684 = vdwg.mxu0
        %7685 = vst [vmem:[#allocation2] sm:$0x3f] 0.0
        %7686 = vst [vmem:[#allocation2 + $0x18] sm:$0x3f] 0.0
        %7687 = vst [vmem:[#allocation2 + $0x30] sm:$0x3f] 0.0
        %7688 = vst [vmem:[#allocation2 + $0x48] sm:$0x3f] 0.0
        %7689 = vst [vmem:[#allocation2 + $0x60] sm:$0x3f] 0.0
        %7690 = vst [vmem:[#allocation2 + $0x78] sm:$0x3f] 0.0
        %v7693 = vrot.slane %v7680, 4
        %v7694 = vrot.slane %v7683, 4
        %vm7697 = vcmask 257024
        %7698 = vst.msk [vmem:[%s779 + $0x1] sm:$0xf] %vm7697, %v7680
        %7699 = vst.msk [vmem:[%s779 + $0x19] sm:$0xf] %vm7697, %v7693
        %7700 = vst.msk [vmem:[%s779 + $0x31] sm:$0xf] %vm7697, %v7683
        %7701 = vst.msk [vmem:[%s779 + $0x49] sm:$0xf] %vm7697, %v7694
        %v7702 = vld [vmem:[#allocation2] sm:$0xf]
        %v7703 = vld [vmem:[#allocation2 + $0x18] sm:$0xf]
        %v7704 = vld [vmem:[#allocation2 + $0x30] sm:$0xf]
        %v7705 = vld [vmem:[#allocation2 + $0x48] sm:$0xf]
        %v7706 = vld [vmem:[#allocation2 + $0x1] sm:$0xf]
        %v7707 = vld [vmem:[#allocation2 + $0x19] sm:$0xf]
        %v7708 = vld [vmem:[#allocation2 + $0x31] sm:$0xf]
        %v7709 = vld [vmem:[#allocation2 + $0x49] sm:$0xf]
        %v7710 = vld [vmem:[#allocation2 + $0x2] sm:$0xf]
        %v7711 = vld [vmem:[#allocation2 + $0x1a] sm:$0xf]
        %v7712 = vld [vmem:[#allocation2 + $0x32] sm:$0xf]
        %v7713 = vld [vmem:[#allocation2 + $0x4a] sm:$0xf]
        %v7714 = vld [vmem:[%s779] sm:$0xf]
        %v7715 = vld [vmem:[%s779 + $0x18] sm:$0xf]
        %v7716 = vld [vmem:[%s779 + $0x30] sm:$0xf]
        %v7717 = vld [vmem:[%s779 + $0x48] sm:$0xf]
        %v7718 = vld [vmem:[%s779 + $0x1] sm:$0xf]
        %v7719 = vld [vmem:[%s779 + $0x19] sm:$0xf]
        %v7720 = vld [vmem:[%s779 + $0x31] sm:$0xf]
        %v7721 = vld [vmem:[%s779 + $0x49] sm:$0xf]
        %v7722 = vld [vmem:[%s779 + $0x2] sm:$0xf]
        %v7723 = vld [vmem:[%s779 + $0x1a] sm:$0xf]
        %v7724 = vld [vmem:[%s779 + $0x32] sm:$0xf]
        %v7725 = vld [vmem:[%s779 + $0x4a] sm:$0xf]
        %v7726 = vld [vmem:[%s1005] sm:$0xf]
        %v7727 = vld [vmem:[%s1005 + $0x18] sm:$0xf]
        %v7728 = vld [vmem:[%s1005 + $0x30] sm:$0xf]
        %v7729 = vld [vmem:[%s1005 + $0x48] sm:$0xf]
        %v7730 = vld [vmem:[%s1005 + $0x1] sm:$0xf]
        %v7731 = vld [vmem:[%s1005 + $0x19] sm:$0xf]
        %v7732 = vld [vmem:[%s1005 + $0x31] sm:$0xf]
        %v7733 = vld [vmem:[%s1005 + $0x49] sm:$0xf]
        %v7734 = vld [vmem:[%s1005 + $0x2] sm:$0xf]
        %v7735 = vld [vmem:[%s1005 + $0x1a] sm:$0xf]
        %v7736 = vld [vmem:[%s1005 + $0x32] sm:$0xf]
        %v7737 = vld [vmem:[%s1005 + $0x4a] sm:$0xf]
        %7742 = vst [vmem:[#allocation1] ss:$2 sm:$0xff] %v7702
        %s7743 = scalar_lea.vmem [#allocation1], 1
        %7744 = vst [vmem:[%s7743] ss:$2 sm:$0xff] %v7703
        %s7745 = scalar_lea.vmem [#allocation1], 16
        %7746 = vst [vmem:[%s7745] ss:$2 sm:$0xff] %v7704
        %s7747 = scalar_lea.vmem [#allocation1], 17
        %7748 = vst [vmem:[%s7747] ss:$2 sm:$0xff] %v7705
        %v7749 = vld.sshfl [vmem:[#allocation1] sm:$0xff pattern:$0x75316420]
        %v7750 = vld.sshfl [vmem:[#allocation1 + $0x10] sm:$0xff pattern:$0x75316420]
        %7757 = vst [vmem:[#allocation1] ss:$2 sm:$0xff] %v7706
        %s7758 = scalar_lea.vmem [#allocation1], 1
        %7759 = vst [vmem:[%s7758] ss:$2 sm:$0xff] %v7707
        %s7760 = scalar_lea.vmem [#allocation1], 16
        %7761 = vst [vmem:[%s7760] ss:$2 sm:$0xff] %v7708
        %s7762 = scalar_lea.vmem [#allocation1], 17
        %7763 = vst [vmem:[%s7762] ss:$2 sm:$0xff] %v7709
        %v7764 = vld.sshfl [vmem:[#allocation1] sm:$0xff pattern:$0x75316420]
        %v7765 = vld.sshfl [vmem:[#allocation1 + $0x10] sm:$0xff pattern:$0x75316420]
        %7772 = vst [vmem:[#allocation1] ss:$2 sm:$0xff] %v7710
        %s7773 = scalar_lea.vmem [#allocation1], 1
        %7774 = vst [vmem:[%s7773] ss:$2 sm:$0xff] %v7711
        %s7775 = scalar_lea.vmem [#allocation1], 16
        %7776 = vst [vmem:[%s7775] ss:$2 sm:$0xff] %v7712
        %s7777 = scalar_lea.vmem [#allocation1], 17
        %7778 = vst [vmem:[%s7777] ss:$2 sm:$0xff] %v7713
        %v7779 = vld.sshfl [vmem:[#allocation1] sm:$0xff pattern:$0x75316420]
        %v7780 = vld.sshfl [vmem:[#allocation1 + $0x10] sm:$0xff pattern:$0x75316420]
        %7787 = vst [vmem:[#allocation1] ss:$2 sm:$0xff] %v7714
        %s7788 = scalar_lea.vmem [#allocation1], 1
        %7789 = vst [vmem:[%s7788] ss:$2 sm:$0xff] %v7715
        %s7790 = scalar_lea.vmem [#allocation1], 16
        %7791 = vst [vmem:[%s7790] ss:$2 sm:$0xff] %v7716
        %s7792 = scalar_lea.vmem [#allocation1], 17
        %7793 = vst [vmem:[%s7792] ss:$2 sm:$0xff] %v7717
        %v7794 = vld.sshfl [vmem:[#allocation1] sm:$0xff pattern:$0x75316420]
        %v7795 = vld.sshfl [vmem:[#allocation1 + $0x10] sm:$0xff pattern:$0x75316420]
        %7802 = vst [vmem:[#allocation1] ss:$2 sm:$0xff] %v7718
        %s7803 = scalar_lea.vmem [#allocation1], 1
        %7804 = vst [vmem:[%s7803] ss:$2 sm:$0xff] %v7719
        %s7805 = scalar_lea.vmem [#allocation1], 16
        %7806 = vst [vmem:[%s7805] ss:$2 sm:$0xff] %v7720
        %s7807 = scalar_lea.vmem [#allocation1], 17
        %7808 = vst [vmem:[%s7807] ss:$2 sm:$0xff] %v7721
        %v7809 = vld.sshfl [vmem:[#allocation1] sm:$0xff pattern:$0x75316420]
        %v7810 = vld.sshfl [vmem:[#allocation1 + $0x10] sm:$0xff pattern:$0x75316420]
        %7817 = vst [vmem:[#allocation1] ss:$2 sm:$0xff] %v7722
        %s7818 = scalar_lea.vmem [#allocation1], 1
        %7819 = vst [vmem:[%s7818] ss:$2 sm:$0xff] %v7723
        %s7820 = scalar_lea.vmem [#allocation1], 16
        %7821 = vst [vmem:[%s7820] ss:$2 sm:$0xff] %v7724
        %s7822 = scalar_lea.vmem [#allocation1], 17
        %7823 = vst [vmem:[%s7822] ss:$2 sm:$0xff] %v7725
        %v7824 = vld.sshfl [vmem:[#allocation1] sm:$0xff pattern:$0x75316420]
        %v7825 = vld.sshfl [vmem:[#allocation1 + $0x10] sm:$0xff pattern:$0x75316420]
        %7832 = vst [vmem:[#allocation1] ss:$2 sm:$0xff] %v7726
        %s7833 = scalar_lea.vmem [#allocation1], 1
        %7834 = vst [vmem:[%s7833] ss:$2 sm:$0xff] %v7727
        %s7835 = scalar_lea.vmem [#allocation1], 16
        %7836 = vst [vmem:[%s7835] ss:$2 sm:$0xff] %v7728
        %s7837 = scalar_lea.vmem [#allocation1], 17
        %7838 = vst [vmem:[%s7837] ss:$2 sm:$0xff] %v7729
        %v7839 = vld.sshfl [vmem:[#allocation1] sm:$0xff pattern:$0x75316420]
        %v7840 = vld.sshfl [vmem:[#allocation1 + $0x10] sm:$0xff pattern:$0x75316420]
        %7847 = vst [vmem:[#allocation1] ss:$2 sm:$0xff] %v7730
        %s7848 = scalar_lea.vmem [#allocation1], 1
        %7849 = vst [vmem:[%s7848] ss:$2 sm:$0xff] %v7731
        %s7850 = scalar_lea.vmem [#allocation1], 16
        %7851 = vst [vmem:[%s7850] ss:$2 sm:$0xff] %v7732
        %s7852 = scalar_lea.vmem [#allocation1], 17
        %7853 = vst [vmem:[%s7852] ss:$2 sm:$0xff] %v7733
        %v7854 = vld.sshfl [vmem:[#allocation1] sm:$0xff pattern:$0x75316420]
        %v7855 = vld.sshfl [vmem:[#allocation1 + $0x10] sm:$0xff pattern:$0x75316420]
        %7862 = vst [vmem:[#allocation1] ss:$2 sm:$0xff] %v7734
        %s7863 = scalar_lea.vmem [#allocation1], 1
        %7864 = vst [vmem:[%s7863] ss:$2 sm:$0xff] %v7735
        %s7865 = scalar_lea.vmem [#allocation1], 16
        %7866 = vst [vmem:[%s7865] ss:$2 sm:$0xff] %v7736
        %s7867 = scalar_lea.vmem [#allocation1], 17
        %7868 = vst [vmem:[%s7867] ss:$2 sm:$0xff] %v7737
        %v7869 = vld.sshfl [vmem:[#allocation1] sm:$0xff pattern:$0x75316420]
        %v7870 = vld.sshfl [vmem:[#allocation1 + $0x10] sm:$0xff pattern:$0x75316420]
        %v7873 = vpack.c.bf16 %v7750, %v7749
        %v7874 = vpack.c.bf16 %v7765, %v7764
        %v7875 = vpack.c.bf16 %v7780, %v7779
        %v7876 = vpack.c.bf16 %v7795, %v7794
        %v7877 = vpack.c.bf16 %v7810, %v7809
        %v7878 = vpack.c.bf16 %v7825, %v7824
        %v7879 = vpack.c.bf16 %v7840, %v7839
        %v7880 = vpack.c.bf16 %v7855, %v7854
        %v7881 = vpack.c.bf16 %v7870, %v7869
        %v7882 = vld [vmem:[%s11] sm:$0xf]
        %v7883 = vld [vmem:[%s11 + $0x4] sm:$0xf]
        %v7884 = vld [vmem:[%s11 + $0x8] sm:$0xf]
        %v7885 = vld [vmem:[%s11 + $0xc] sm:$0xf]
        %v7886 = vld [vmem:[%s11 + $0x10] sm:$0xf]
        %v7887 = vld [vmem:[%s11 + $0x14] sm:$0xf]
        %v7888 = vld [vmem:[%s11 + $0x18] sm:$0xf]
        %v7889 = vld [vmem:[%s11 + $0x1c] sm:$0xf]
        %v7890 = vld [vmem:[%s11 + $0x20] sm:$0xf]
        %v7891 = vld [vmem:[%s11 + $0x24] sm:$0xf]
        %v7892 = vld [vmem:[%s11 + $0x28] sm:$0xf]
        %v7893 = vld [vmem:[%s11 + $0x2c] sm:$0xf]
        %v7894 = vld [vmem:[%s11 + $0x30] sm:$0xf]
        %v7895 = vld [vmem:[%s11 + $0x34] sm:$0xf]
        %v7896 = vld [vmem:[%s11 + $0x38] sm:$0xf]
        %v7897 = vld [vmem:[%s11 + $0x3c] sm:$0xf]
        %v7898 = vld [vmem:[%s11 + $0x40] sm:$0xf]
        %v7899 = vld [vmem:[%s11 + $0x44] sm:$0xf]
        %v7900 = vld [vmem:[%s11 + $0x48] sm:$0xf]
        %v7901 = vld [vmem:[%s11 + $0x4c] sm:$0xf]
        %v7902 = vld [vmem:[%s11 + $0x50] sm:$0xf]
        %v7903 = vld [vmem:[%s11 + $0x54] sm:$0xf]
        %v7904 = vld [vmem:[%s11 + $0x58] sm:$0xf]
        %v7905 = vld [vmem:[%s11 + $0x5c] sm:$0xf]
        %v7906 = vld [vmem:[%s11 + $0x60] sm:$0xf]
        %v7907 = vld [vmem:[%s11 + $0x64] sm:$0xf]
        %v7908 = vld [vmem:[%s11 + $0x68] sm:$0xf]
        %v7909 = vld [vmem:[%s11 + $0x6c] sm:$0xf]
        %v7910 = vld [vmem:[%s11 + $0x70] sm:$0xf]
        %v7911 = vld [vmem:[%s11 + $0x74] sm:$0xf]
        %v7912 = vld [vmem:[%s11 + $0x78] sm:$0xf]
        %v7913 = vld [vmem:[%s11 + $0x7c] sm:$0xf]
        %v7914 = vld [vmem:[%s11 + $0x80] sm:$0xf]
        %v7915 = vld [vmem:[%s11 + $0x84] sm:$0xf]
        %v7916 = vld [vmem:[%s11 + $0x88] sm:$0xf]
        %v7917 = vld [vmem:[%s11 + $0x8c] sm:$0xf]
        %v7918 = vld [vmem:[%s11 + $0x90] sm:$0xf]
        %v7919 = vld [vmem:[%s11 + $0x94] sm:$0xf]
        %v7920 = vld [vmem:[%s11 + $0x98] sm:$0xf]
        %v7921 = vld [vmem:[%s11 + $0x9c] sm:$0xf]
        %v7922 = vld [vmem:[%s11 + $0xa0] sm:$0xf]
        %v7923 = vld [vmem:[%s11 + $0xa4] sm:$0xf]
        %v7924 = vld [vmem:[%s11 + $0xa8] sm:$0xf]
        %v7925 = vld [vmem:[%s11 + $0xac] sm:$0xf]
        %v7926 = vld [vmem:[%s11 + $0xb0] sm:$0xf]
        %v7927 = vld [vmem:[%s11 + $0xb4] sm:$0xf]
        %v7928 = vld [vmem:[%s11 + $0xb8] sm:$0xf]
        %v7929 = vld [vmem:[%s11 + $0xbc] sm:$0xf]
        %v7930 = vld [vmem:[%s11 + $0xc0] sm:$0xf]
        %v7931 = vld [vmem:[%s11 + $0xc4] sm:$0xf]
        %v7932 = vld [vmem:[%s11 + $0xc8] sm:$0xf]
        %v7933 = vld [vmem:[%s11 + $0xcc] sm:$0xf]
        %v7934 = vld [vmem:[%s11 + $0xd0] sm:$0xf]
        %v7935 = vld [vmem:[%s11 + $0xd4] sm:$0xf]
        %v7936 = vld [vmem:[%s11 + $0xd8] sm:$0xf]
        %v7937 = vld [vmem:[%s11 + $0xdc] sm:$0xf]
        %v7938 = vld [vmem:[%s11 + $0xe0] sm:$0xf]
        %v7939 = vld [vmem:[%s11 + $0xe4] sm:$0xf]
        %v7940 = vld [vmem:[%s11 + $0xe8] sm:$0xf]
        %v7941 = vld [vmem:[%s11 + $0xec] sm:$0xf]
        %v7942 = vld [vmem:[%s11 + $0xf0] sm:$0xf]
        %v7943 = vld [vmem:[%s11 + $0xf4] sm:$0xf]
        %v7944 = vld [vmem:[%s11 + $0xf8] sm:$0xf]
        %v7945 = vld [vmem:[%s11 + $0xfc] sm:$0xf]
        %v7946 = vld [vmem:[%s11 + $0x100] sm:$0xf]
        %v7947 = vld [vmem:[%s11 + $0x104] sm:$0xf]
        %v7948 = vld [vmem:[%s11 + $0x108] sm:$0xf]
        %v7949 = vld [vmem:[%s11 + $0x10c] sm:$0xf]
        %v7950 = vld [vmem:[%s11 + $0x110] sm:$0xf]
        %v7951 = vld [vmem:[%s11 + $0x114] sm:$0xf]
        %v7952 = vld [vmem:[%s11 + $0x118] sm:$0xf]
        %v7953 = vld [vmem:[%s11 + $0x11c] sm:$0xf]
        %v7954 = vld [vmem:[%s11 + $0x120] sm:$0xf]
        %v7955 = vld [vmem:[%s11 + $0x124] sm:$0xf]
        %v7956 = vld [vmem:[%s11 + $0x128] sm:$0xf]
        %v7957 = vld [vmem:[%s11 + $0x12c] sm:$0xf]
        %v7958 = vld [vmem:[%s11 + $0x130] sm:$0xf]
        %v7959 = vld [vmem:[%s11 + $0x134] sm:$0xf]
        %v7960 = vld [vmem:[%s11 + $0x138] sm:$0xf]
        %v7961 = vld [vmem:[%s11 + $0x13c] sm:$0xf]
        %v7962 = vld [vmem:[%s11 + $0x140] sm:$0xf]
        %v7963 = vld [vmem:[%s11 + $0x144] sm:$0xf]
        %v7964 = vld [vmem:[%s11 + $0x148] sm:$0xf]
        %v7965 = vld [vmem:[%s11 + $0x14c] sm:$0xf]
        %v7966 = vld [vmem:[%s11 + $0x150] sm:$0xf]
        %v7967 = vld [vmem:[%s11 + $0x154] sm:$0xf]
        %v7968 = vld [vmem:[%s11 + $0x158] sm:$0xf]
        %v7969 = vld [vmem:[%s11 + $0x15c] sm:$0xf]
        %v7970 = vld [vmem:[%s11 + $0x160] sm:$0xf]
        %v7971 = vld [vmem:[%s11 + $0x164] sm:$0xf]
        %v7972 = vld [vmem:[%s11 + $0x168] sm:$0xf]
        %v7973 = vld [vmem:[%s11 + $0x16c] sm:$0xf]
        %v7974 = vld [vmem:[%s11 + $0x170] sm:$0xf]
        %v7975 = vld [vmem:[%s11 + $0x174] sm:$0xf]
        %v7976 = vld [vmem:[%s11 + $0x178] sm:$0xf]
        %v7977 = vld [vmem:[%s11 + $0x17c] sm:$0xf]
        %v7978 = vld [vmem:[%s11 + $0x180] sm:$0xf]
        %v7979 = vld [vmem:[%s11 + $0x184] sm:$0xf]
        %v7980 = vld [vmem:[%s11 + $0x188] sm:$0xf]
        %v7981 = vld [vmem:[%s11 + $0x18c] sm:$0xf]
        %v7982 = vld [vmem:[%s11 + $0x190] sm:$0xf]
        %v7983 = vld [vmem:[%s11 + $0x194] sm:$0xf]
        %v7984 = vld [vmem:[%s11 + $0x198] sm:$0xf]
        %v7985 = vld [vmem:[%s11 + $0x19c] sm:$0xf]
        %v7986 = vld [vmem:[%s11 + $0x1a0] sm:$0xf]
        %v7987 = vld [vmem:[%s11 + $0x1a4] sm:$0xf]
        %v7988 = vld [vmem:[%s11 + $0x1a8] sm:$0xf]
        %v7989 = vld [vmem:[%s11 + $0x1ac] sm:$0xf]
        %v7990 = vld [vmem:[%s11 + $0x1b0] sm:$0xf]
        %v7991 = vld [vmem:[%s11 + $0x1b4] sm:$0xf]
        %v7992 = vld [vmem:[%s11 + $0x1b8] sm:$0xf]
        %v7993 = vld [vmem:[%s11 + $0x1bc] sm:$0xf]
        %v7994 = vld [vmem:[%s11 + $0x1c0] sm:$0xf]
        %v7995 = vld [vmem:[%s11 + $0x1c4] sm:$0xf]
        %v7996 = vld [vmem:[%s11 + $0x1c8] sm:$0xf]
        %v7997 = vld [vmem:[%s11 + $0x1cc] sm:$0xf]
        %v7998 = vld [vmem:[%s11 + $0x1d0] sm:$0xf]
        %v7999 = vld [vmem:[%s11 + $0x1d4] sm:$0xf]
        %v8000 = vld [vmem:[%s11 + $0x1d8] sm:$0xf]
        %v8001 = vld [vmem:[%s11 + $0x1dc] sm:$0xf]
        %v8002 = vld [vmem:[%s11 + $0x1e0] sm:$0xf]
        %v8003 = vld [vmem:[%s11 + $0x1e4] sm:$0xf]
        %v8004 = vld [vmem:[%s11 + $0x1e8] sm:$0xf]
        %v8005 = vld [vmem:[%s11 + $0x1ec] sm:$0xf]
        %v8006 = vld [vmem:[%s11 + $0x1f0] sm:$0xf]
        %v8007 = vld [vmem:[%s11 + $0x1f4] sm:$0xf]
        %v8008 = vld [vmem:[%s11 + $0x1f8] sm:$0xf]
        %v8009 = vld [vmem:[%s11 + $0x1fc] sm:$0xf]
        %v8010 = vld [vmem:[%s11 + $0x200] sm:$0xf]
        %v8011 = vld [vmem:[%s11 + $0x204] sm:$0xf]
        %v8012 = vld [vmem:[%s11 + $0x208] sm:$0xf]
        %v8013 = vld [vmem:[%s11 + $0x20c] sm:$0xf]
        %v8014 = vld [vmem:[%s11 + $0x210] sm:$0xf]
        %v8015 = vld [vmem:[%s11 + $0x214] sm:$0xf]
        %v8016 = vld [vmem:[%s11 + $0x218] sm:$0xf]
        %v8017 = vld [vmem:[%s11 + $0x21c] sm:$0xf]
        %v8018 = vld [vmem:[%s11 + $0x220] sm:$0xf]
        %v8019 = vld [vmem:[%s11 + $0x224] sm:$0xf]
        %v8020 = vld [vmem:[%s11 + $0x228] sm:$0xf]
        %v8021 = vld [vmem:[%s11 + $0x22c] sm:$0xf]
        %v8022 = vld [vmem:[%s11 + $0x230] sm:$0xf]
        %v8023 = vld [vmem:[%s11 + $0x234] sm:$0xf]
        %v8024 = vld [vmem:[%s11 + $0x238] sm:$0xf]
        %v8025 = vld [vmem:[%s11 + $0x23c] sm:$0xf]
        %v8026 = vld [vmem:[%s12] sm:$0x1]
        %v8028 = vperm.slane %v8026, 0
        %v8174 = vunpack.c.l.b16 %v7882
        %v8175 = vunpack.c.l.b16 %v7883
        %v8176 = vunpack.c.l.b16 %v7884
        %v8177 = vunpack.c.l.b16 %v7885
        %v8178 = vunpack.c.l.b16 %v7886
        %v8179 = vunpack.c.l.b16 %v7887
        %v8180 = vunpack.c.l.b16 %v7888
        %v8181 = vunpack.c.l.b16 %v7889
        %v8182 = vunpack.c.l.b16 %v7890
        %v8183 = vunpack.c.l.b16 %v7891
        %v8184 = vunpack.c.l.b16 %v7892
        %v8185 = vunpack.c.l.b16 %v7893
        %v8186 = vunpack.c.l.b16 %v7894
        %v8187 = vunpack.c.l.b16 %v7895
        %v8188 = vunpack.c.l.b16 %v7896
        %v8189 = vunpack.c.l.b16 %v7897
        %v8190 = vunpack.c.l.b16 %v7898
        %v8191 = vunpack.c.l.b16 %v7899
        %v8192 = vunpack.c.l.b16 %v7900
        %v8193 = vunpack.c.l.b16 %v7901
        %v8194 = vunpack.c.l.b16 %v7902
        %v8195 = vunpack.c.l.b16 %v7903
        %v8196 = vunpack.c.l.b16 %v7904
        %v8197 = vunpack.c.l.b16 %v7905
        %v8198 = vunpack.c.l.b16 %v7906
        %v8199 = vunpack.c.l.b16 %v7907
        %v8200 = vunpack.c.l.b16 %v7908
        %v8201 = vunpack.c.l.b16 %v7909
        %v8202 = vunpack.c.l.b16 %v7910
        %v8203 = vunpack.c.l.b16 %v7911
        %v8204 = vunpack.c.l.b16 %v7912
        %v8205 = vunpack.c.l.b16 %v7913
        %v8206 = vunpack.c.l.b16 %v7914
        %v8207 = vunpack.c.l.b16 %v7915
        %v8208 = vunpack.c.l.b16 %v7916
        %v8209 = vunpack.c.l.b16 %v7917
        %v8210 = vunpack.c.l.b16 %v7918
        %v8211 = vunpack.c.l.b16 %v7919
        %v8212 = vunpack.c.l.b16 %v7920
        %v8213 = vunpack.c.l.b16 %v7921
        %v8214 = vunpack.c.l.b16 %v7922
        %v8215 = vunpack.c.l.b16 %v7923
        %v8216 = vunpack.c.l.b16 %v7924
        %v8217 = vunpack.c.l.b16 %v7925
        %v8218 = vunpack.c.l.b16 %v7926
        %v8219 = vunpack.c.l.b16 %v7927
        %v8220 = vunpack.c.l.b16 %v7928
        %v8221 = vunpack.c.l.b16 %v7929
        %v8222 = vunpack.c.l.b16 %v7930
        %v8223 = vunpack.c.l.b16 %v7931
        %v8224 = vunpack.c.l.b16 %v7932
        %v8225 = vunpack.c.l.b16 %v7933
        %v8226 = vunpack.c.l.b16 %v7934
        %v8227 = vunpack.c.l.b16 %v7935
        %v8228 = vunpack.c.l.b16 %v7936
        %v8229 = vunpack.c.l.b16 %v7937
        %v8230 = vunpack.c.l.b16 %v7938
        %v8231 = vunpack.c.l.b16 %v7939
        %v8232 = vunpack.c.l.b16 %v7940
        %v8233 = vunpack.c.l.b16 %v7941
        %v8234 = vunpack.c.l.b16 %v7942
        %v8235 = vunpack.c.l.b16 %v7943
        %v8236 = vunpack.c.l.b16 %v7944
        %v8237 = vunpack.c.l.b16 %v7945
        %v8238 = vunpack.c.l.b16 %v7946
        %v8239 = vunpack.c.l.b16 %v7947
        %v8240 = vunpack.c.l.b16 %v7948
        %v8241 = vunpack.c.l.b16 %v7949
        %v8242 = vunpack.c.l.b16 %v7950
        %v8243 = vunpack.c.l.b16 %v7951
        %v8244 = vunpack.c.l.b16 %v7952
        %v8245 = vunpack.c.l.b16 %v7953
        %v8246 = vunpack.c.l.b16 %v7954
        %v8247 = vunpack.c.l.b16 %v7955
        %v8248 = vunpack.c.l.b16 %v7956
        %v8249 = vunpack.c.l.b16 %v7957
        %v8250 = vunpack.c.l.b16 %v7958
        %v8251 = vunpack.c.l.b16 %v7959
        %v8252 = vunpack.c.l.b16 %v7960
        %v8253 = vunpack.c.l.b16 %v7961
        %v8254 = vunpack.c.l.b16 %v7962
        %v8255 = vunpack.c.l.b16 %v7963
        %v8256 = vunpack.c.l.b16 %v7964
        %v8257 = vunpack.c.l.b16 %v7965
        %v8258 = vunpack.c.l.b16 %v7966
        %v8259 = vunpack.c.l.b16 %v7967
        %v8260 = vunpack.c.l.b16 %v7968
        %v8261 = vunpack.c.l.b16 %v7969
        %v8262 = vunpack.c.l.b16 %v7970
        %v8263 = vunpack.c.l.b16 %v7971
        %v8264 = vunpack.c.l.b16 %v7972
        %v8265 = vunpack.c.l.b16 %v7973
        %v8266 = vunpack.c.l.b16 %v7974
        %v8267 = vunpack.c.l.b16 %v7975
        %v8268 = vunpack.c.l.b16 %v7976
        %v8269 = vunpack.c.l.b16 %v7977
        %v8270 = vunpack.c.l.b16 %v7978
        %v8271 = vunpack.c.l.b16 %v7979
        %v8272 = vunpack.c.l.b16 %v7980
        %v8273 = vunpack.c.l.b16 %v7981
        %v8274 = vunpack.c.l.b16 %v7982
        %v8275 = vunpack.c.l.b16 %v7983
        %v8276 = vunpack.c.l.b16 %v7984
        %v8277 = vunpack.c.l.b16 %v7985
        %v8278 = vunpack.c.l.b16 %v7986
        %v8279 = vunpack.c.l.b16 %v7987
        %v8280 = vunpack.c.l.b16 %v7988
        %v8281 = vunpack.c.l.b16 %v7989
        %v8282 = vunpack.c.l.b16 %v7990
        %v8283 = vunpack.c.l.b16 %v7991
        %v8284 = vunpack.c.l.b16 %v7992
        %v8285 = vunpack.c.l.b16 %v7993
        %v8286 = vunpack.c.l.b16 %v7994
        %v8287 = vunpack.c.l.b16 %v7995
        %v8288 = vunpack.c.l.b16 %v7996
        %v8289 = vunpack.c.l.b16 %v7997
        %v8290 = vunpack.c.l.b16 %v7998
        %v8291 = vunpack.c.l.b16 %v7999
        %v8292 = vunpack.c.l.b16 %v8000
        %v8293 = vunpack.c.l.b16 %v8001
        %v8294 = vunpack.c.l.b16 %v8002
        %v8295 = vunpack.c.l.b16 %v8003
        %v8296 = vunpack.c.l.b16 %v8004
        %v8297 = vunpack.c.l.b16 %v8005
        %v8298 = vunpack.c.l.b16 %v8006
        %v8299 = vunpack.c.l.b16 %v8007
        %v8300 = vunpack.c.l.b16 %v8008
        %v8301 = vunpack.c.l.b16 %v8009
        %v8302 = vunpack.c.l.b16 %v8010
        %v8303 = vunpack.c.l.b16 %v8011
        %v8304 = vunpack.c.l.b16 %v8012
        %v8305 = vunpack.c.l.b16 %v8013
        %v8306 = vunpack.c.l.b16 %v8014
        %v8307 = vunpack.c.l.b16 %v8015
        %v8308 = vunpack.c.l.b16 %v8016
        %v8309 = vunpack.c.l.b16 %v8017
        %v8310 = vunpack.c.l.b16 %v8018
        %v8311 = vunpack.c.l.b16 %v8019
        %v8312 = vunpack.c.l.b16 %v8020
        %v8313 = vunpack.c.l.b16 %v8021
        %v8314 = vunpack.c.l.b16 %v8022
        %v8315 = vunpack.c.l.b16 %v8023
        %v8316 = vunpack.c.l.b16 %v8024
        %v8317 = vunpack.c.l.b16 %v8025
        %v8318 = vpack.c.b16 %v8175, %v8174
        %v8319 = vpack.c.b16 %v8177, %v8176
        %v8320 = vpack.c.b16 %v8179, %v8178
        %v8321 = vpack.c.b16 %v8181, %v8180
        %v8322 = vpack.c.b16 %v8183, %v8182
        %v8323 = vpack.c.b16 %v8185, %v8184
        %v8324 = vpack.c.b16 %v8187, %v8186
        %v8325 = vpack.c.b16 %v8189, %v8188
        %v8326 = vpack.c.b16 %v8191, %v8190
        %v8327 = vpack.c.b16 %v8193, %v8192
        %v8328 = vpack.c.b16 %v8195, %v8194
        %v8329 = vpack.c.b16 %v8197, %v8196
        %v8330 = vpack.c.b16 %v8199, %v8198
        %v8331 = vpack.c.b16 %v8201, %v8200
        %v8332 = vpack.c.b16 %v8203, %v8202
        %v8333 = vpack.c.b16 %v8205, %v8204
        %v8334 = vpack.c.b16 %v8207, %v8206
        %v8335 = vpack.c.b16 %v8209, %v8208
        %v8336 = vpack.c.b16 %v8211, %v8210
        %v8337 = vpack.c.b16 %v8213, %v8212
        %v8338 = vpack.c.b16 %v8215, %v8214
        %v8339 = vpack.c.b16 %v8217, %v8216
        %v8340 = vpack.c.b16 %v8219, %v8218
        %v8341 = vpack.c.b16 %v8221, %v8220
        %v8342 = vpack.c.b16 %v8223, %v8222
        %v8343 = vpack.c.b16 %v8225, %v8224
        %v8344 = vpack.c.b16 %v8227, %v8226
        %v8345 = vpack.c.b16 %v8229, %v8228
        %v8346 = vpack.c.b16 %v8231, %v8230
        %v8347 = vpack.c.b16 %v8233, %v8232
        %v8348 = vpack.c.b16 %v8235, %v8234
        %v8349 = vpack.c.b16 %v8237, %v8236
        %v8350 = vpack.c.b16 %v8239, %v8238
        %v8351 = vpack.c.b16 %v8241, %v8240
        %v8352 = vpack.c.b16 %v8243, %v8242
        %v8353 = vpack.c.b16 %v8245, %v8244
        %v8354 = vpack.c.b16 %v8247, %v8246
        %v8355 = vpack.c.b16 %v8249, %v8248
        %v8356 = vpack.c.b16 %v8251, %v8250
        %v8357 = vpack.c.b16 %v8253, %v8252
        %v8358 = vpack.c.b16 %v8255, %v8254
        %v8359 = vpack.c.b16 %v8257, %v8256
        %v8360 = vpack.c.b16 %v8259, %v8258
        %v8361 = vpack.c.b16 %v8261, %v8260
        %v8362 = vpack.c.b16 %v8263, %v8262
        %v8363 = vpack.c.b16 %v8265, %v8264
        %v8364 = vpack.c.b16 %v8267, %v8266
        %v8365 = vpack.c.b16 %v8269, %v8268
        %v8366 = vpack.c.b16 %v8271, %v8270
        %v8367 = vpack.c.b16 %v8273, %v8272
        %v8368 = vpack.c.b16 %v8275, %v8274
        %v8369 = vpack.c.b16 %v8277, %v8276
        %v8370 = vpack.c.b16 %v8279, %v8278
        %v8371 = vpack.c.b16 %v8281, %v8280
        %v8372 = vpack.c.b16 %v8283, %v8282
        %v8373 = vpack.c.b16 %v8285, %v8284
        %v8374 = vpack.c.b16 %v8287, %v8286
        %v8375 = vpack.c.b16 %v8289, %v8288
        %v8376 = vpack.c.b16 %v8291, %v8290
        %v8377 = vpack.c.b16 %v8293, %v8292
        %v8378 = vpack.c.b16 %v8295, %v8294
        %v8379 = vpack.c.b16 %v8297, %v8296
        %v8380 = vpack.c.b16 %v8299, %v8298
        %v8381 = vpack.c.b16 %v8301, %v8300
        %v8382 = vpack.c.b16 %v8303, %v8302
        %v8383 = vpack.c.b16 %v8305, %v8304
        %v8384 = vpack.c.b16 %v8307, %v8306
        %v8385 = vpack.c.b16 %v8309, %v8308
        %v8386 = vpack.c.b16 %v8311, %v8310
        %v8387 = vpack.c.b16 %v8313, %v8312
        %v8388 = vpack.c.b16 %v8315, %v8314
        %v8389 = vpack.c.b16 %v8317, %v8316
        %8462 = vmatpush.bf16.msra.mxu0 %v8325
        %8463 = vmatpush.bf16.msra.mxu0 %v8324
        %8464 = vmatpush.bf16.msra.mxu0 %v8323
        %8465 = vmatpush.bf16.msra.mxu0 %v8322
        %8466 = vmatpush.bf16.msra.mxu0 %v8321
        %8467 = vmatpush.bf16.msra.mxu0 %v8320
        %8468 = vmatpush.bf16.msra.mxu0 %v8319
        %8469 = vmatpush.bf16.msra.mxu0 %v8318
        %8470 = vmatmul.bf16.gmra.mxu0 %v7873
        %v8471 = vpop.f32.mrf.mxu0
        %v8472 = vadd.f32 %v8028, %v8471
        %v8473 = vpop.f32.mrf.mxu0
        %v8474 = vadd.f32 %v8028, %v8473
        %8475 = vdwg.mxu0
        %8476 = vmatpush.bf16.msra.mxu0 %v8333
        %8477 = vmatpush.bf16.msra.mxu0 %v8332
        %8478 = vmatpush.bf16.msra.mxu0 %v8331
        %8479 = vmatpush.bf16.msra.mxu0 %v8330
        %8480 = vmatpush.bf16.msra.mxu0 %v8329
        %8481 = vmatpush.bf16.msra.mxu0 %v8328
        %8482 = vmatpush.bf16.msra.mxu0 %v8327
        %8483 = vmatpush.bf16.msra.mxu0 %v8326
        %8484 = vmatmul.bf16.gmra.mxu0 %v7874
        %v8485 = vpop.f32.mrf.mxu0
        %v8486 = vadd.f32 %v8472, %v8485
        %v8487 = vpop.f32.mrf.mxu0
        %v8488 = vadd.f32 %v8474, %v8487
        %8489 = vdwg.mxu0
        %8490 = vmatpush.bf16.msra.mxu0 %v8341
        %8491 = vmatpush.bf16.msra.mxu0 %v8340
        %8492 = vmatpush.bf16.msra.mxu0 %v8339
        %8493 = vmatpush.bf16.msra.mxu0 %v8338
        %8494 = vmatpush.bf16.msra.mxu0 %v8337
        %8495 = vmatpush.bf16.msra.mxu0 %v8336
        %8496 = vmatpush.bf16.msra.mxu0 %v8335
        %8497 = vmatpush.bf16.msra.mxu0 %v8334
        %8498 = vmatmul.bf16.gmra.mxu0 %v7875
        %v8499 = vpop.f32.mrf.mxu0
        %v8500 = vadd.f32 %v8486, %v8499
        %v8501 = vpop.f32.mrf.mxu0
        %v8502 = vadd.f32 %v8488, %v8501
        %8503 = vdwg.mxu0
        %8504 = vmatpush.bf16.msra.mxu0 %v8349
        %8505 = vmatpush.bf16.msra.mxu0 %v8348
        %8506 = vmatpush.bf16.msra.mxu0 %v8347
        %8507 = vmatpush.bf16.msra.mxu0 %v8346
        %8508 = vmatpush.bf16.msra.mxu0 %v8345
        %8509 = vmatpush.bf16.msra.mxu0 %v8344
        %8510 = vmatpush.bf16.msra.mxu0 %v8343
        %8511 = vmatpush.bf16.msra.mxu0 %v8342
        %8512 = vmatmul.bf16.gmra.mxu0 %v7876
        %v8513 = vpop.f32.mrf.mxu0
        %v8514 = vadd.f32 %v8500, %v8513
        %v8515 = vpop.f32.mrf.mxu0
        %v8516 = vadd.f32 %v8502, %v8515
        %8517 = vdwg.mxu0
        %8518 = vmatpush.bf16.msra.mxu0 %v8357
        %8519 = vmatpush.bf16.msra.mxu0 %v8356
        %8520 = vmatpush.bf16.msra.mxu0 %v8355
        %8521 = vmatpush.bf16.msra.mxu0 %v8354
        %8522 = vmatpush.bf16.msra.mxu0 %v8353
        %8523 = vmatpush.bf16.msra.mxu0 %v8352
        %8524 = vmatpush.bf16.msra.mxu0 %v8351
        %8525 = vmatpush.bf16.msra.mxu0 %v8350
        %8526 = vmatmul.bf16.gmra.mxu0 %v7877
        %v8527 = vpop.f32.mrf.mxu0
        %v8528 = vadd.f32 %v8514, %v8527
        %v8529 = vpop.f32.mrf.mxu0
        %v8530 = vadd.f32 %v8516, %v8529
        %8531 = vdwg.mxu0
        %8532 = vmatpush.bf16.msra.mxu0 %v8365
        %8533 = vmatpush.bf16.msra.mxu0 %v8364
        %8534 = vmatpush.bf16.msra.mxu0 %v8363
        %8535 = vmatpush.bf16.msra.mxu0 %v8362
        %8536 = vmatpush.bf16.msra.mxu0 %v8361
        %8537 = vmatpush.bf16.msra.mxu0 %v8360
        %8538 = vmatpush.bf16.msra.mxu0 %v8359
        %8539 = vmatpush.bf16.msra.mxu0 %v8358
        %8540 = vmatmul.bf16.gmra.mxu0 %v7878
        %v8541 = vpop.f32.mrf.mxu0
        %v8542 = vadd.f32 %v8528, %v8541
        %v8543 = vpop.f32.mrf.mxu0
        %v8544 = vadd.f32 %v8530, %v8543
        %8545 = vdwg.mxu0
        %8546 = vmatpush.bf16.msra.mxu0 %v8373
        %8547 = vmatpush.bf16.msra.mxu0 %v8372
        %8548 = vmatpush.bf16.msra.mxu0 %v8371
        %8549 = vmatpush.bf16.msra.mxu0 %v8370
        %8550 = vmatpush.bf16.msra.mxu0 %v8369
        %8551 = vmatpush.bf16.msra.mxu0 %v8368
        %8552 = vmatpush.bf16.msra.mxu0 %v8367
        %8553 = vmatpush.bf16.msra.mxu0 %v8366
        %8554 = vmatmul.bf16.gmra.mxu0 %v7879
        %v8555 = vpop.f32.mrf.mxu0
        %v8556 = vadd.f32 %v8542, %v8555
        %v8557 = vpop.f32.mrf.mxu0
        %v8558 = vadd.f32 %v8544, %v8557
        %8559 = vdwg.mxu0
        %8560 = vmatpush.bf16.msra.mxu0 %v8381
        %8561 = vmatpush.bf16.msra.mxu0 %v8380
        %8562 = vmatpush.bf16.msra.mxu0 %v8379
        %8563 = vmatpush.bf16.msra.mxu0 %v8378
        %8564 = vmatpush.bf16.msra.mxu0 %v8377
        %8565 = vmatpush.bf16.msra.mxu0 %v8376
        %8566 = vmatpush.bf16.msra.mxu0 %v8375
        %8567 = vmatpush.bf16.msra.mxu0 %v8374
        %8568 = vmatmul.bf16.gmra.mxu0 %v7880
        %v8569 = vpop.f32.mrf.mxu0
        %v8570 = vadd.f32 %v8556, %v8569
        %v8571 = vpop.f32.mrf.mxu0
        %v8572 = vadd.f32 %v8558, %v8571
        %8573 = vdwg.mxu0
        %8574 = vmatpush.bf16.msra.mxu0 %v8389
        %8575 = vmatpush.bf16.msra.mxu0 %v8388
        %8576 = vmatpush.bf16.msra.mxu0 %v8387
        %8577 = vmatpush.bf16.msra.mxu0 %v8386
        %8578 = vmatpush.bf16.msra.mxu0 %v8385
        %8579 = vmatpush.bf16.msra.mxu0 %v8384
        %8580 = vmatpush.bf16.msra.mxu0 %v8383
        %8581 = vmatpush.bf16.msra.mxu0 %v8382
        %8582 = vmatmul.bf16.gmra.mxu0 %v7881
        %v8583 = vpop.f32.mrf.mxu0
        %v8584 = vadd.f32 %v8570, %v8583
        %v8585 = vpop.f32.mrf.mxu0
        %v8586 = vadd.f32 %v8572, %v8585
        %8587 = vdwg.mxu0
        %v8588 = vmax.f32 %v8584, 0.0
        %v8589 = vmax.f32 %v8586, 0.0
        %8590 = vst [vmem:[#allocation2] sm:$0x3f] 0.0
        %8591 = vst [vmem:[#allocation2 + $0x18] sm:$0x3f] 0.0
        %8592 = vst [vmem:[#allocation2 + $0x30] sm:$0x3f] 0.0
        %8593 = vst [vmem:[#allocation2 + $0x48] sm:$0x3f] 0.0
        %8594 = vst [vmem:[#allocation2 + $0x60] sm:$0x3f] 0.0
        %8595 = vst [vmem:[#allocation2 + $0x78] sm:$0x3f] 0.0
        %v8598 = vrot.slane %v8588, 4
        %v8599 = vrot.slane %v8589, 4
        %8602 = vst.msk [vmem:[%s779 + $0x1] sm:$0xf] %vm7697, %v8588
        %8603 = vst.msk [vmem:[%s779 + $0x19] sm:$0xf] %vm7697, %v8598
        %8604 = vst.msk [vmem:[%s779 + $0x31] sm:$0xf] %vm7697, %v8589
        %8605 = vst.msk [vmem:[%s779 + $0x49] sm:$0xf] %vm7697, %v8599
        %v8606 = vld [vmem:[#allocation2] sm:$0xf]
        %v8607 = vld [vmem:[#allocation2 + $0x18] sm:$0xf]
        %v8608 = vld [vmem:[#allocation2 + $0x30] sm:$0xf]
        %v8609 = vld [vmem:[#allocation2 + $0x48] sm:$0xf]
        %v8610 = vld [vmem:[#allocation2 + $0x1] sm:$0xf]
        %v8611 = vld [vmem:[#allocation2 + $0x19] sm:$0xf]
        %v8612 = vld [vmem:[#allocation2 + $0x31] sm:$0xf]
        %v8613 = vld [vmem:[#allocation2 + $0x49] sm:$0xf]
        %v8614 = vld [vmem:[#allocation2 + $0x2] sm:$0xf]
        %v8615 = vld [vmem:[#allocation2 + $0x1a] sm:$0xf]
        %v8616 = vld [vmem:[#allocation2 + $0x32] sm:$0xf]
        %v8617 = vld [vmem:[#allocation2 + $0x4a] sm:$0xf]
        %v8618 = vld [vmem:[%s779] sm:$0xf]
        %v8619 = vld [vmem:[%s779 + $0x18] sm:$0xf]
        %v8620 = vld [vmem:[%s779 + $0x30] sm:$0xf]
        %v8621 = vld [vmem:[%s779 + $0x48] sm:$0xf]
        %v8622 = vld [vmem:[%s779 + $0x1] sm:$0xf]
        %v8623 = vld [vmem:[%s779 + $0x19] sm:$0xf]
        %v8624 = vld [vmem:[%s779 + $0x31] sm:$0xf]
        %v8625 = vld [vmem:[%s779 + $0x49] sm:$0xf]
        %v8626 = vld [vmem:[%s779 + $0x2] sm:$0xf]
        %v8627 = vld [vmem:[%s779 + $0x1a] sm:$0xf]
        %v8628 = vld [vmem:[%s779 + $0x32] sm:$0xf]
        %v8629 = vld [vmem:[%s779 + $0x4a] sm:$0xf]
        %v8630 = vld [vmem:[%s1005] sm:$0xf]
        %v8631 = vld [vmem:[%s1005 + $0x18] sm:$0xf]
        %v8632 = vld [vmem:[%s1005 + $0x30] sm:$0xf]
        %v8633 = vld [vmem:[%s1005 + $0x48] sm:$0xf]
        %v8634 = vld [vmem:[%s1005 + $0x1] sm:$0xf]
        %v8635 = vld [vmem:[%s1005 + $0x19] sm:$0xf]
        %v8636 = vld [vmem:[%s1005 + $0x31] sm:$0xf]
        %v8637 = vld [vmem:[%s1005 + $0x49] sm:$0xf]
        %v8638 = vld [vmem:[%s1005 + $0x2] sm:$0xf]
        %v8639 = vld [vmem:[%s1005 + $0x1a] sm:$0xf]
        %v8640 = vld [vmem:[%s1005 + $0x32] sm:$0xf]
        %v8641 = vld [vmem:[%s1005 + $0x4a] sm:$0xf]
        %8646 = vst [vmem:[#allocation1] ss:$2 sm:$0xff] %v8606
        %s8647 = scalar_lea.vmem [#allocation1], 1
        %8648 = vst [vmem:[%s8647] ss:$2 sm:$0xff] %v8607
        %s8649 = scalar_lea.vmem [#allocation1], 16
        %8650 = vst [vmem:[%s8649] ss:$2 sm:$0xff] %v8608
        %s8651 = scalar_lea.vmem [#allocation1], 17
        %8652 = vst [vmem:[%s8651] ss:$2 sm:$0xff] %v8609
        %v8653 = vld.sshfl [vmem:[#allocation1] sm:$0xff pattern:$0x75316420]
        %v8654 = vld.sshfl [vmem:[#allocation1 + $0x10] sm:$0xff pattern:$0x75316420]
        %8661 = vst [vmem:[#allocation1] ss:$2 sm:$0xff] %v8610
        %s8662 = scalar_lea.vmem [#allocation1], 1
        %8663 = vst [vmem:[%s8662] ss:$2 sm:$0xff] %v8611
        %s8664 = scalar_lea.vmem [#allocation1], 16
        %8665 = vst [vmem:[%s8664] ss:$2 sm:$0xff] %v8612
        %s8666 = scalar_lea.vmem [#allocation1], 17
        %8667 = vst [vmem:[%s8666] ss:$2 sm:$0xff] %v8613
        %v8668 = vld.sshfl [vmem:[#allocation1] sm:$0xff pattern:$0x75316420]
        %v8669 = vld.sshfl [vmem:[#allocation1 + $0x10] sm:$0xff pattern:$0x75316420]
        %8676 = vst [vmem:[#allocation1] ss:$2 sm:$0xff] %v8614
        %s8677 = scalar_lea.vmem [#allocation1], 1
        %8678 = vst [vmem:[%s8677] ss:$2 sm:$0xff] %v8615
        %s8679 = scalar_lea.vmem [#allocation1], 16
        %8680 = vst [vmem:[%s8679] ss:$2 sm:$0xff] %v8616
        %s8681 = scalar_lea.vmem [#allocation1], 17
        %8682 = vst [vmem:[%s8681] ss:$2 sm:$0xff] %v8617
        %v8683 = vld.sshfl [vmem:[#allocation1] sm:$0xff pattern:$0x75316420]
        %v8684 = vld.sshfl [vmem:[#allocation1 + $0x10] sm:$0xff pattern:$0x75316420]
        %8691 = vst [vmem:[#allocation1] ss:$2 sm:$0xff] %v8618
        %s8692 = scalar_lea.vmem [#allocation1], 1
        %8693 = vst [vmem:[%s8692] ss:$2 sm:$0xff] %v8619
        %s8694 = scalar_lea.vmem [#allocation1], 16
        %8695 = vst [vmem:[%s8694] ss:$2 sm:$0xff] %v8620
        %s8696 = scalar_lea.vmem [#allocation1], 17
        %8697 = vst [vmem:[%s8696] ss:$2 sm:$0xff] %v8621
        %v8698 = vld.sshfl [vmem:[#allocation1] sm:$0xff pattern:$0x75316420]
        %v8699 = vld.sshfl [vmem:[#allocation1 + $0x10] sm:$0xff pattern:$0x75316420]
        %8706 = vst [vmem:[#allocation1] ss:$2 sm:$0xff] %v8622
        %s8707 = scalar_lea.vmem [#allocation1], 1
        %8708 = vst [vmem:[%s8707] ss:$2 sm:$0xff] %v8623
        %s8709 = scalar_lea.vmem [#allocation1], 16
        %8710 = vst [vmem:[%s8709] ss:$2 sm:$0xff] %v8624
        %s8711 = scalar_lea.vmem [#allocation1], 17
        %8712 = vst [vmem:[%s8711] ss:$2 sm:$0xff] %v8625
        %v8713 = vld.sshfl [vmem:[#allocation1] sm:$0xff pattern:$0x75316420]
        %v8714 = vld.sshfl [vmem:[#allocation1 + $0x10] sm:$0xff pattern:$0x75316420]
        %8721 = vst [vmem:[#allocation1] ss:$2 sm:$0xff] %v8626
        %s8722 = scalar_lea.vmem [#allocation1], 1
        %8723 = vst [vmem:[%s8722] ss:$2 sm:$0xff] %v8627
        %s8724 = scalar_lea.vmem [#allocation1], 16
        %8725 = vst [vmem:[%s8724] ss:$2 sm:$0xff] %v8628
        %s8726 = scalar_lea.vmem [#allocation1], 17
        %8727 = vst [vmem:[%s8726] ss:$2 sm:$0xff] %v8629
        %v8728 = vld.sshfl [vmem:[#allocation1] sm:$0xff pattern:$0x75316420]
        %v8729 = vld.sshfl [vmem:[#allocation1 + $0x10] sm:$0xff pattern:$0x75316420]
        %8736 = vst [vmem:[#allocation1] ss:$2 sm:$0xff] %v8630
        %s8737 = scalar_lea.vmem [#allocation1], 1
        %8738 = vst [vmem:[%s8737] ss:$2 sm:$0xff] %v8631
        %s8739 = scalar_lea.vmem [#allocation1], 16
        %8740 = vst [vmem:[%s8739] ss:$2 sm:$0xff] %v8632
        %s8741 = scalar_lea.vmem [#allocation1], 17
        %8742 = vst [vmem:[%s8741] ss:$2 sm:$0xff] %v8633
        %v8743 = vld.sshfl [vmem:[#allocation1] sm:$0xff pattern:$0x75316420]
        %v8744 = vld.sshfl [vmem:[#allocation1 + $0x10] sm:$0xff pattern:$0x75316420]
        %8751 = vst [vmem:[#allocation1] ss:$2 sm:$0xff] %v8634
        %s8752 = scalar_lea.vmem [#allocation1], 1
        %8753 = vst [vmem:[%s8752] ss:$2 sm:$0xff] %v8635
        %s8754 = scalar_lea.vmem [#allocation1], 16
        %8755 = vst [vmem:[%s8754] ss:$2 sm:$0xff] %v8636
        %s8756 = scalar_lea.vmem [#allocation1], 17
        %8757 = vst [vmem:[%s8756] ss:$2 sm:$0xff] %v8637
        %v8758 = vld.sshfl [vmem:[#allocation1] sm:$0xff pattern:$0x75316420]
        %v8759 = vld.sshfl [vmem:[#allocation1 + $0x10] sm:$0xff pattern:$0x75316420]
        %8766 = vst [vmem:[#allocation1] ss:$2 sm:$0xff] %v8638
        %s8767 = scalar_lea.vmem [#allocation1], 1
        %8768 = vst [vmem:[%s8767] ss:$2 sm:$0xff] %v8639
        %s8769 = scalar_lea.vmem [#allocation1], 16
        %8770 = vst [vmem:[%s8769] ss:$2 sm:$0xff] %v8640
        %s8771 = scalar_lea.vmem [#allocation1], 17
        %8772 = vst [vmem:[%s8771] ss:$2 sm:$0xff] %v8641
        %v8773 = vld.sshfl [vmem:[#allocation1] sm:$0xff pattern:$0x75316420]
        %v8774 = vld.sshfl [vmem:[#allocation1 + $0x10] sm:$0xff pattern:$0x75316420]
        %v8777 = vpack.c.bf16 %v8654, %v8653
        %v8778 = vpack.c.bf16 %v8669, %v8668
        %v8779 = vpack.c.bf16 %v8684, %v8683
        %v8780 = vpack.c.bf16 %v8699, %v8698
        %v8781 = vpack.c.bf16 %v8714, %v8713
        %v8782 = vpack.c.bf16 %v8729, %v8728
        %v8783 = vpack.c.bf16 %v8744, %v8743
        %v8784 = vpack.c.bf16 %v8759, %v8758
        %v8785 = vpack.c.bf16 %v8774, %v8773
        %v8786 = vld [vmem:[%s13] sm:$0xf]
        %v8787 = vld [vmem:[%s13 + $0x4] sm:$0xf]
        %v8788 = vld [vmem:[%s13 + $0x8] sm:$0xf]
        %v8789 = vld [vmem:[%s13 + $0xc] sm:$0xf]
        %v8790 = vld [vmem:[%s13 + $0x10] sm:$0xf]
        %v8791 = vld [vmem:[%s13 + $0x14] sm:$0xf]
        %v8792 = vld [vmem:[%s13 + $0x18] sm:$0xf]
        %v8793 = vld [vmem:[%s13 + $0x1c] sm:$0xf]
        %v8794 = vld [vmem:[%s13 + $0x20] sm:$0xf]
        %v8795 = vld [vmem:[%s13 + $0x24] sm:$0xf]
        %v8796 = vld [vmem:[%s13 + $0x28] sm:$0xf]
        %v8797 = vld [vmem:[%s13 + $0x2c] sm:$0xf]
        %v8798 = vld [vmem:[%s13 + $0x30] sm:$0xf]
        %v8799 = vld [vmem:[%s13 + $0x34] sm:$0xf]
        %v8800 = vld [vmem:[%s13 + $0x38] sm:$0xf]
        %v8801 = vld [vmem:[%s13 + $0x3c] sm:$0xf]
        %v8802 = vld [vmem:[%s13 + $0x40] sm:$0xf]
        %v8803 = vld [vmem:[%s13 + $0x44] sm:$0xf]
        %v8804 = vld [vmem:[%s13 + $0x48] sm:$0xf]
        %v8805 = vld [vmem:[%s13 + $0x4c] sm:$0xf]
        %v8806 = vld [vmem:[%s13 + $0x50] sm:$0xf]
        %v8807 = vld [vmem:[%s13 + $0x54] sm:$0xf]
        %v8808 = vld [vmem:[%s13 + $0x58] sm:$0xf]
        %v8809 = vld [vmem:[%s13 + $0x5c] sm:$0xf]
        %v8810 = vld [vmem:[%s13 + $0x60] sm:$0xf]
        %v8811 = vld [vmem:[%s13 + $0x64] sm:$0xf]
        %v8812 = vld [vmem:[%s13 + $0x68] sm:$0xf]
        %v8813 = vld [vmem:[%s13 + $0x6c] sm:$0xf]
        %v8814 = vld [vmem:[%s13 + $0x70] sm:$0xf]
        %v8815 = vld [vmem:[%s13 + $0x74] sm:$0xf]
        %v8816 = vld [vmem:[%s13 + $0x78] sm:$0xf]
        %v8817 = vld [vmem:[%s13 + $0x7c] sm:$0xf]
        %v8818 = vld [vmem:[%s13 + $0x80] sm:$0xf]
        %v8819 = vld [vmem:[%s13 + $0x84] sm:$0xf]
        %v8820 = vld [vmem:[%s13 + $0x88] sm:$0xf]
        %v8821 = vld [vmem:[%s13 + $0x8c] sm:$0xf]
        %v8822 = vld [vmem:[%s13 + $0x90] sm:$0xf]
        %v8823 = vld [vmem:[%s13 + $0x94] sm:$0xf]
        %v8824 = vld [vmem:[%s13 + $0x98] sm:$0xf]
        %v8825 = vld [vmem:[%s13 + $0x9c] sm:$0xf]
        %v8826 = vld [vmem:[%s13 + $0xa0] sm:$0xf]
        %v8827 = vld [vmem:[%s13 + $0xa4] sm:$0xf]
        %v8828 = vld [vmem:[%s13 + $0xa8] sm:$0xf]
        %v8829 = vld [vmem:[%s13 + $0xac] sm:$0xf]
        %v8830 = vld [vmem:[%s13 + $0xb0] sm:$0xf]
        %v8831 = vld [vmem:[%s13 + $0xb4] sm:$0xf]
        %v8832 = vld [vmem:[%s13 + $0xb8] sm:$0xf]
        %v8833 = vld [vmem:[%s13 + $0xbc] sm:$0xf]
        %v8834 = vld [vmem:[%s13 + $0xc0] sm:$0xf]
        %v8835 = vld [vmem:[%s13 + $0xc4] sm:$0xf]
        %v8836 = vld [vmem:[%s13 + $0xc8] sm:$0xf]
        %v8837 = vld [vmem:[%s13 + $0xcc] sm:$0xf]
        %v8838 = vld [vmem:[%s13 + $0xd0] sm:$0xf]
        %v8839 = vld [vmem:[%s13 + $0xd4] sm:$0xf]
        %v8840 = vld [vmem:[%s13 + $0xd8] sm:$0xf]
        %v8841 = vld [vmem:[%s13 + $0xdc] sm:$0xf]
        %v8842 = vld [vmem:[%s13 + $0xe0] sm:$0xf]
        %v8843 = vld [vmem:[%s13 + $0xe4] sm:$0xf]
        %v8844 = vld [vmem:[%s13 + $0xe8] sm:$0xf]
        %v8845 = vld [vmem:[%s13 + $0xec] sm:$0xf]
        %v8846 = vld [vmem:[%s13 + $0xf0] sm:$0xf]
        %v8847 = vld [vmem:[%s13 + $0xf4] sm:$0xf]
        %v8848 = vld [vmem:[%s13 + $0xf8] sm:$0xf]
        %v8849 = vld [vmem:[%s13 + $0xfc] sm:$0xf]
        %v8850 = vld [vmem:[%s13 + $0x100] sm:$0xf]
        %v8851 = vld [vmem:[%s13 + $0x104] sm:$0xf]
        %v8852 = vld [vmem:[%s13 + $0x108] sm:$0xf]
        %v8853 = vld [vmem:[%s13 + $0x10c] sm:$0xf]
        %v8854 = vld [vmem:[%s13 + $0x110] sm:$0xf]
        %v8855 = vld [vmem:[%s13 + $0x114] sm:$0xf]
        %v8856 = vld [vmem:[%s13 + $0x118] sm:$0xf]
        %v8857 = vld [vmem:[%s13 + $0x11c] sm:$0xf]
        %v8858 = vld [vmem:[%s13 + $0x120] sm:$0xf]
        %v8859 = vld [vmem:[%s13 + $0x124] sm:$0xf]
        %v8860 = vld [vmem:[%s13 + $0x128] sm:$0xf]
        %v8861 = vld [vmem:[%s13 + $0x12c] sm:$0xf]
        %v8862 = vld [vmem:[%s13 + $0x130] sm:$0xf]
        %v8863 = vld [vmem:[%s13 + $0x134] sm:$0xf]
        %v8864 = vld [vmem:[%s13 + $0x138] sm:$0xf]
        %v8865 = vld [vmem:[%s13 + $0x13c] sm:$0xf]
        %v8866 = vld [vmem:[%s13 + $0x140] sm:$0xf]
        %v8867 = vld [vmem:[%s13 + $0x144] sm:$0xf]
        %v8868 = vld [vmem:[%s13 + $0x148] sm:$0xf]
        %v8869 = vld [vmem:[%s13 + $0x14c] sm:$0xf]
        %v8870 = vld [vmem:[%s13 + $0x150] sm:$0xf]
        %v8871 = vld [vmem:[%s13 + $0x154] sm:$0xf]
        %v8872 = vld [vmem:[%s13 + $0x158] sm:$0xf]
        %v8873 = vld [vmem:[%s13 + $0x15c] sm:$0xf]
        %v8874 = vld [vmem:[%s13 + $0x160] sm:$0xf]
        %v8875 = vld [vmem:[%s13 + $0x164] sm:$0xf]
        %v8876 = vld [vmem:[%s13 + $0x168] sm:$0xf]
        %v8877 = vld [vmem:[%s13 + $0x16c] sm:$0xf]
        %v8878 = vld [vmem:[%s13 + $0x170] sm:$0xf]
        %v8879 = vld [vmem:[%s13 + $0x174] sm:$0xf]
        %v8880 = vld [vmem:[%s13 + $0x178] sm:$0xf]
        %v8881 = vld [vmem:[%s13 + $0x17c] sm:$0xf]
        %v8882 = vld [vmem:[%s13 + $0x180] sm:$0xf]
        %v8883 = vld [vmem:[%s13 + $0x184] sm:$0xf]
        %v8884 = vld [vmem:[%s13 + $0x188] sm:$0xf]
        %v8885 = vld [vmem:[%s13 + $0x18c] sm:$0xf]
        %v8886 = vld [vmem:[%s13 + $0x190] sm:$0xf]
        %v8887 = vld [vmem:[%s13 + $0x194] sm:$0xf]
        %v8888 = vld [vmem:[%s13 + $0x198] sm:$0xf]
        %v8889 = vld [vmem:[%s13 + $0x19c] sm:$0xf]
        %v8890 = vld [vmem:[%s13 + $0x1a0] sm:$0xf]
        %v8891 = vld [vmem:[%s13 + $0x1a4] sm:$0xf]
        %v8892 = vld [vmem:[%s13 + $0x1a8] sm:$0xf]
        %v8893 = vld [vmem:[%s13 + $0x1ac] sm:$0xf]
        %v8894 = vld [vmem:[%s13 + $0x1b0] sm:$0xf]
        %v8895 = vld [vmem:[%s13 + $0x1b4] sm:$0xf]
        %v8896 = vld [vmem:[%s13 + $0x1b8] sm:$0xf]
        %v8897 = vld [vmem:[%s13 + $0x1bc] sm:$0xf]
        %v8898 = vld [vmem:[%s13 + $0x1c0] sm:$0xf]
        %v8899 = vld [vmem:[%s13 + $0x1c4] sm:$0xf]
        %v8900 = vld [vmem:[%s13 + $0x1c8] sm:$0xf]
        %v8901 = vld [vmem:[%s13 + $0x1cc] sm:$0xf]
        %v8902 = vld [vmem:[%s13 + $0x1d0] sm:$0xf]
        %v8903 = vld [vmem:[%s13 + $0x1d4] sm:$0xf]
        %v8904 = vld [vmem:[%s13 + $0x1d8] sm:$0xf]
        %v8905 = vld [vmem:[%s13 + $0x1dc] sm:$0xf]
        %v8906 = vld [vmem:[%s13 + $0x1e0] sm:$0xf]
        %v8907 = vld [vmem:[%s13 + $0x1e4] sm:$0xf]
        %v8908 = vld [vmem:[%s13 + $0x1e8] sm:$0xf]
        %v8909 = vld [vmem:[%s13 + $0x1ec] sm:$0xf]
        %v8910 = vld [vmem:[%s13 + $0x1f0] sm:$0xf]
        %v8911 = vld [vmem:[%s13 + $0x1f4] sm:$0xf]
        %v8912 = vld [vmem:[%s13 + $0x1f8] sm:$0xf]
        %v8913 = vld [vmem:[%s13 + $0x1fc] sm:$0xf]
        %v8914 = vld [vmem:[%s13 + $0x200] sm:$0xf]
        %v8915 = vld [vmem:[%s13 + $0x204] sm:$0xf]
        %v8916 = vld [vmem:[%s13 + $0x208] sm:$0xf]
        %v8917 = vld [vmem:[%s13 + $0x20c] sm:$0xf]
        %v8918 = vld [vmem:[%s13 + $0x210] sm:$0xf]
        %v8919 = vld [vmem:[%s13 + $0x214] sm:$0xf]
        %v8920 = vld [vmem:[%s13 + $0x218] sm:$0xf]
        %v8921 = vld [vmem:[%s13 + $0x21c] sm:$0xf]
        %v8922 = vld [vmem:[%s13 + $0x220] sm:$0xf]
        %v8923 = vld [vmem:[%s13 + $0x224] sm:$0xf]
        %v8924 = vld [vmem:[%s13 + $0x228] sm:$0xf]
        %v8925 = vld [vmem:[%s13 + $0x22c] sm:$0xf]
        %v8926 = vld [vmem:[%s13 + $0x230] sm:$0xf]
        %v8927 = vld [vmem:[%s13 + $0x234] sm:$0xf]
        %v8928 = vld [vmem:[%s13 + $0x238] sm:$0xf]
        %v8929 = vld [vmem:[%s13 + $0x23c] sm:$0xf]
        %v8930 = vld [vmem:[%s14] sm:$0x1]
        %v8932 = vperm.slane %v8930, 0
        %v9078 = vunpack.c.l.b16 %v8786
        %v9079 = vunpack.c.l.b16 %v8787
        %v9080 = vunpack.c.l.b16 %v8788
        %v9081 = vunpack.c.l.b16 %v8789
        %v9082 = vunpack.c.l.b16 %v8790
        %v9083 = vunpack.c.l.b16 %v8791
        %v9084 = vunpack.c.l.b16 %v8792
        %v9085 = vunpack.c.l.b16 %v8793
        %v9086 = vunpack.c.l.b16 %v8794
        %v9087 = vunpack.c.l.b16 %v8795
        %v9088 = vunpack.c.l.b16 %v8796
        %v9089 = vunpack.c.l.b16 %v8797
        %v9090 = vunpack.c.l.b16 %v8798
        %v9091 = vunpack.c.l.b16 %v8799
        %v9092 = vunpack.c.l.b16 %v8800
        %v9093 = vunpack.c.l.b16 %v8801
        %v9094 = vunpack.c.l.b16 %v8802
        %v9095 = vunpack.c.l.b16 %v8803
        %v9096 = vunpack.c.l.b16 %v8804
        %v9097 = vunpack.c.l.b16 %v8805
        %v9098 = vunpack.c.l.b16 %v8806
        %v9099 = vunpack.c.l.b16 %v8807
        %v9100 = vunpack.c.l.b16 %v8808
        %v9101 = vunpack.c.l.b16 %v8809
        %v9102 = vunpack.c.l.b16 %v8810
        %v9103 = vunpack.c.l.b16 %v8811
        %v9104 = vunpack.c.l.b16 %v8812
        %v9105 = vunpack.c.l.b16 %v8813
        %v9106 = vunpack.c.l.b16 %v8814
        %v9107 = vunpack.c.l.b16 %v8815
        %v9108 = vunpack.c.l.b16 %v8816
        %v9109 = vunpack.c.l.b16 %v8817
        %v9110 = vunpack.c.l.b16 %v8818
        %v9111 = vunpack.c.l.b16 %v8819
        %v9112 = vunpack.c.l.b16 %v8820
        %v9113 = vunpack.c.l.b16 %v8821
        %v9114 = vunpack.c.l.b16 %v8822
        %v9115 = vunpack.c.l.b16 %v8823
        %v9116 = vunpack.c.l.b16 %v8824
        %v9117 = vunpack.c.l.b16 %v8825
        %v9118 = vunpack.c.l.b16 %v8826
        %v9119 = vunpack.c.l.b16 %v8827
        %v9120 = vunpack.c.l.b16 %v8828
        %v9121 = vunpack.c.l.b16 %v8829
        %v9122 = vunpack.c.l.b16 %v8830
        %v9123 = vunpack.c.l.b16 %v8831
        %v9124 = vunpack.c.l.b16 %v8832
        %v9125 = vunpack.c.l.b16 %v8833
        %v9126 = vunpack.c.l.b16 %v8834
        %v9127 = vunpack.c.l.b16 %v8835
        %v9128 = vunpack.c.l.b16 %v8836
        %v9129 = vunpack.c.l.b16 %v8837
        %v9130 = vunpack.c.l.b16 %v8838
        %v9131 = vunpack.c.l.b16 %v8839
        %v9132 = vunpack.c.l.b16 %v8840
        %v9133 = vunpack.c.l.b16 %v8841
        %v9134 = vunpack.c.l.b16 %v8842
        %v9135 = vunpack.c.l.b16 %v8843
        %v9136 = vunpack.c.l.b16 %v8844
        %v9137 = vunpack.c.l.b16 %v8845
        %v9138 = vunpack.c.l.b16 %v8846
        %v9139 = vunpack.c.l.b16 %v8847
        %v9140 = vunpack.c.l.b16 %v8848
        %v9141 = vunpack.c.l.b16 %v8849
        %v9142 = vunpack.c.l.b16 %v8850
        %v9143 = vunpack.c.l.b16 %v8851
        %v9144 = vunpack.c.l.b16 %v8852
        %v9145 = vunpack.c.l.b16 %v8853
        %v9146 = vunpack.c.l.b16 %v8854
        %v9147 = vunpack.c.l.b16 %v8855
        %v9148 = vunpack.c.l.b16 %v8856
        %v9149 = vunpack.c.l.b16 %v8857
        %v9150 = vunpack.c.l.b16 %v8858
        %v9151 = vunpack.c.l.b16 %v8859
        %v9152 = vunpack.c.l.b16 %v8860
        %v9153 = vunpack.c.l.b16 %v8861
        %v9154 = vunpack.c.l.b16 %v8862
        %v9155 = vunpack.c.l.b16 %v8863
        %v9156 = vunpack.c.l.b16 %v8864
        %v9157 = vunpack.c.l.b16 %v8865
        %v9158 = vunpack.c.l.b16 %v8866
        %v9159 = vunpack.c.l.b16 %v8867
        %v9160 = vunpack.c.l.b16 %v8868
        %v9161 = vunpack.c.l.b16 %v8869
        %v9162 = vunpack.c.l.b16 %v8870
        %v9163 = vunpack.c.l.b16 %v8871
        %v9164 = vunpack.c.l.b16 %v8872
        %v9165 = vunpack.c.l.b16 %v8873
        %v9166 = vunpack.c.l.b16 %v8874
        %v9167 = vunpack.c.l.b16 %v8875
        %v9168 = vunpack.c.l.b16 %v8876
        %v9169 = vunpack.c.l.b16 %v8877
        %v9170 = vunpack.c.l.b16 %v8878
        %v9171 = vunpack.c.l.b16 %v8879
        %v9172 = vunpack.c.l.b16 %v8880
        %v9173 = vunpack.c.l.b16 %v8881
        %v9174 = vunpack.c.l.b16 %v8882
        %v9175 = vunpack.c.l.b16 %v8883
        %v9176 = vunpack.c.l.b16 %v8884
        %v9177 = vunpack.c.l.b16 %v8885
        %v9178 = vunpack.c.l.b16 %v8886
        %v9179 = vunpack.c.l.b16 %v8887
        %v9180 = vunpack.c.l.b16 %v8888
        %v9181 = vunpack.c.l.b16 %v8889
        %v9182 = vunpack.c.l.b16 %v8890
        %v9183 = vunpack.c.l.b16 %v8891
        %v9184 = vunpack.c.l.b16 %v8892
        %v9185 = vunpack.c.l.b16 %v8893
        %v9186 = vunpack.c.l.b16 %v8894
        %v9187 = vunpack.c.l.b16 %v8895
        %v9188 = vunpack.c.l.b16 %v8896
        %v9189 = vunpack.c.l.b16 %v8897
        %v9190 = vunpack.c.l.b16 %v8898
        %v9191 = vunpack.c.l.b16 %v8899
        %v9192 = vunpack.c.l.b16 %v8900
        %v9193 = vunpack.c.l.b16 %v8901
        %v9194 = vunpack.c.l.b16 %v8902
        %v9195 = vunpack.c.l.b16 %v8903
        %v9196 = vunpack.c.l.b16 %v8904
        %v9197 = vunpack.c.l.b16 %v8905
        %v9198 = vunpack.c.l.b16 %v8906
        %v9199 = vunpack.c.l.b16 %v8907
        %v9200 = vunpack.c.l.b16 %v8908
        %v9201 = vunpack.c.l.b16 %v8909
        %v9202 = vunpack.c.l.b16 %v8910
        %v9203 = vunpack.c.l.b16 %v8911
        %v9204 = vunpack.c.l.b16 %v8912
        %v9205 = vunpack.c.l.b16 %v8913
        %v9206 = vunpack.c.l.b16 %v8914
        %v9207 = vunpack.c.l.b16 %v8915
        %v9208 = vunpack.c.l.b16 %v8916
        %v9209 = vunpack.c.l.b16 %v8917
        %v9210 = vunpack.c.l.b16 %v8918
        %v9211 = vunpack.c.l.b16 %v8919
        %v9212 = vunpack.c.l.b16 %v8920
        %v9213 = vunpack.c.l.b16 %v8921
        %v9214 = vunpack.c.l.b16 %v8922
        %v9215 = vunpack.c.l.b16 %v8923
        %v9216 = vunpack.c.l.b16 %v8924
        %v9217 = vunpack.c.l.b16 %v8925
        %v9218 = vunpack.c.l.b16 %v8926
        %v9219 = vunpack.c.l.b16 %v8927
        %v9220 = vunpack.c.l.b16 %v8928
        %v9221 = vunpack.c.l.b16 %v8929
        %v9222 = vpack.c.b16 %v9079, %v9078
        %v9223 = vpack.c.b16 %v9081, %v9080
        %v9224 = vpack.c.b16 %v9083, %v9082
        %v9225 = vpack.c.b16 %v9085, %v9084
        %v9226 = vpack.c.b16 %v9087, %v9086
        %v9227 = vpack.c.b16 %v9089, %v9088
        %v9228 = vpack.c.b16 %v9091, %v9090
        %v9229 = vpack.c.b16 %v9093, %v9092
        %v9230 = vpack.c.b16 %v9095, %v9094
        %v9231 = vpack.c.b16 %v9097, %v9096
        %v9232 = vpack.c.b16 %v9099, %v9098
        %v9233 = vpack.c.b16 %v9101, %v9100
        %v9234 = vpack.c.b16 %v9103, %v9102
        %v9235 = vpack.c.b16 %v9105, %v9104
        %v9236 = vpack.c.b16 %v9107, %v9106
        %v9237 = vpack.c.b16 %v9109, %v9108
        %v9238 = vpack.c.b16 %v9111, %v9110
        %v9239 = vpack.c.b16 %v9113, %v9112
        %v9240 = vpack.c.b16 %v9115, %v9114
        %v9241 = vpack.c.b16 %v9117, %v9116
        %v9242 = vpack.c.b16 %v9119, %v9118
        %v9243 = vpack.c.b16 %v9121, %v9120
        %v9244 = vpack.c.b16 %v9123, %v9122
        %v9245 = vpack.c.b16 %v9125, %v9124
        %v9246 = vpack.c.b16 %v9127, %v9126
        %v9247 = vpack.c.b16 %v9129, %v9128
        %v9248 = vpack.c.b16 %v9131, %v9130
        %v9249 = vpack.c.b16 %v9133, %v9132
        %v9250 = vpack.c.b16 %v9135, %v9134
        %v9251 = vpack.c.b16 %v9137, %v9136
        %v9252 = vpack.c.b16 %v9139, %v9138
        %v9253 = vpack.c.b16 %v9141, %v9140
        %v9254 = vpack.c.b16 %v9143, %v9142
        %v9255 = vpack.c.b16 %v9145, %v9144
        %v9256 = vpack.c.b16 %v9147, %v9146
        %v9257 = vpack.c.b16 %v9149, %v9148
        %v9258 = vpack.c.b16 %v9151, %v9150
        %v9259 = vpack.c.b16 %v9153, %v9152
        %v9260 = vpack.c.b16 %v9155, %v9154
        %v9261 = vpack.c.b16 %v9157, %v9156
        %v9262 = vpack.c.b16 %v9159, %v9158
        %v9263 = vpack.c.b16 %v9161, %v9160
        %v9264 = vpack.c.b16 %v9163, %v9162
        %v9265 = vpack.c.b16 %v9165, %v9164
        %v9266 = vpack.c.b16 %v9167, %v9166
        %v9267 = vpack.c.b16 %v9169, %v9168
        %v9268 = vpack.c.b16 %v9171, %v9170
        %v9269 = vpack.c.b16 %v9173, %v9172
        %v9270 = vpack.c.b16 %v9175, %v9174
        %v9271 = vpack.c.b16 %v9177, %v9176
        %v9272 = vpack.c.b16 %v9179, %v9178
        %v9273 = vpack.c.b16 %v9181, %v9180
        %v9274 = vpack.c.b16 %v9183, %v9182
        %v9275 = vpack.c.b16 %v9185, %v9184
        %v9276 = vpack.c.b16 %v9187, %v9186
        %v9277 = vpack.c.b16 %v9189, %v9188
        %v9278 = vpack.c.b16 %v9191, %v9190
        %v9279 = vpack.c.b16 %v9193, %v9192
        %v9280 = vpack.c.b16 %v9195, %v9194
        %v9281 = vpack.c.b16 %v9197, %v9196
        %v9282 = vpack.c.b16 %v9199, %v9198
        %v9283 = vpack.c.b16 %v9201, %v9200
        %v9284 = vpack.c.b16 %v9203, %v9202
        %v9285 = vpack.c.b16 %v9205, %v9204
        %v9286 = vpack.c.b16 %v9207, %v9206
        %v9287 = vpack.c.b16 %v9209, %v9208
        %v9288 = vpack.c.b16 %v9211, %v9210
        %v9289 = vpack.c.b16 %v9213, %v9212
        %v9290 = vpack.c.b16 %v9215, %v9214
        %v9291 = vpack.c.b16 %v9217, %v9216
        %v9292 = vpack.c.b16 %v9219, %v9218
        %v9293 = vpack.c.b16 %v9221, %v9220
        %9366 = vmatpush.bf16.msra.mxu0 %v9229
        %9367 = vmatpush.bf16.msra.mxu0 %v9228
        %9368 = vmatpush.bf16.msra.mxu0 %v9227
        %9369 = vmatpush.bf16.msra.mxu0 %v9226
        %9370 = vmatpush.bf16.msra.mxu0 %v9225
        %9371 = vmatpush.bf16.msra.mxu0 %v9224
        %9372 = vmatpush.bf16.msra.mxu0 %v9223
        %9373 = vmatpush.bf16.msra.mxu0 %v9222
        %9374 = vmatmul.bf16.gmra.mxu0 %v8777
        %v9375 = vpop.f32.mrf.mxu0
        %v9376 = vadd.f32 %v8932, %v9375
        %v9377 = vpop.f32.mrf.mxu0
        %v9378 = vadd.f32 %v8932, %v9377
        %9379 = vdwg.mxu0
        %9380 = vmatpush.bf16.msra.mxu0 %v9237
        %9381 = vmatpush.bf16.msra.mxu0 %v9236
        %9382 = vmatpush.bf16.msra.mxu0 %v9235
        %9383 = vmatpush.bf16.msra.mxu0 %v9234
        %9384 = vmatpush.bf16.msra.mxu0 %v9233
        %9385 = vmatpush.bf16.msra.mxu0 %v9232
        %9386 = vmatpush.bf16.msra.mxu0 %v9231
        %9387 = vmatpush.bf16.msra.mxu0 %v9230
        %9388 = vmatmul.bf16.gmra.mxu0 %v8778
        %v9389 = vpop.f32.mrf.mxu0
        %v9390 = vadd.f32 %v9376, %v9389
        %v9391 = vpop.f32.mrf.mxu0
        %v9392 = vadd.f32 %v9378, %v9391
        %9393 = vdwg.mxu0
        %9394 = vmatpush.bf16.msra.mxu0 %v9245
        %9395 = vmatpush.bf16.msra.mxu0 %v9244
        %9396 = vmatpush.bf16.msra.mxu0 %v9243
        %9397 = vmatpush.bf16.msra.mxu0 %v9242
        %9398 = vmatpush.bf16.msra.mxu0 %v9241
        %9399 = vmatpush.bf16.msra.mxu0 %v9240
        %9400 = vmatpush.bf16.msra.mxu0 %v9239
        %9401 = vmatpush.bf16.msra.mxu0 %v9238
        %9402 = vmatmul.bf16.gmra.mxu0 %v8779
        %v9403 = vpop.f32.mrf.mxu0
        %v9404 = vadd.f32 %v9390, %v9403
        %v9405 = vpop.f32.mrf.mxu0
        %v9406 = vadd.f32 %v9392, %v9405
        %9407 = vdwg.mxu0
        %9408 = vmatpush.bf16.msra.mxu0 %v9253
        %9409 = vmatpush.bf16.msra.mxu0 %v9252
        %9410 = vmatpush.bf16.msra.mxu0 %v9251
        %9411 = vmatpush.bf16.msra.mxu0 %v9250
        %9412 = vmatpush.bf16.msra.mxu0 %v9249
        %9413 = vmatpush.bf16.msra.mxu0 %v9248
        %9414 = vmatpush.bf16.msra.mxu0 %v9247
        %9415 = vmatpush.bf16.msra.mxu0 %v9246
        %9416 = vmatmul.bf16.gmra.mxu0 %v8780
        %v9417 = vpop.f32.mrf.mxu0
        %v9418 = vadd.f32 %v9404, %v9417
        %v9419 = vpop.f32.mrf.mxu0
        %v9420 = vadd.f32 %v9406, %v9419
        %9421 = vdwg.mxu0
        %9422 = vmatpush.bf16.msra.mxu0 %v9261
        %9423 = vmatpush.bf16.msra.mxu0 %v9260
        %9424 = vmatpush.bf16.msra.mxu0 %v9259
        %9425 = vmatpush.bf16.msra.mxu0 %v9258
        %9426 = vmatpush.bf16.msra.mxu0 %v9257
        %9427 = vmatpush.bf16.msra.mxu0 %v9256
        %9428 = vmatpush.bf16.msra.mxu0 %v9255
        %9429 = vmatpush.bf16.msra.mxu0 %v9254
        %9430 = vmatmul.bf16.gmra.mxu0 %v8781
        %v9431 = vpop.f32.mrf.mxu0
        %v9432 = vadd.f32 %v9418, %v9431
        %v9433 = vpop.f32.mrf.mxu0
        %v9434 = vadd.f32 %v9420, %v9433
        %9435 = vdwg.mxu0
        %9436 = vmatpush.bf16.msra.mxu0 %v9269
        %9437 = vmatpush.bf16.msra.mxu0 %v9268
        %9438 = vmatpush.bf16.msra.mxu0 %v9267
        %9439 = vmatpush.bf16.msra.mxu0 %v9266
        %9440 = vmatpush.bf16.msra.mxu0 %v9265
        %9441 = vmatpush.bf16.msra.mxu0 %v9264
        %9442 = vmatpush.bf16.msra.mxu0 %v9263
        %9443 = vmatpush.bf16.msra.mxu0 %v9262
        %9444 = vmatmul.bf16.gmra.mxu0 %v8782
        %v9445 = vpop.f32.mrf.mxu0
        %v9446 = vadd.f32 %v9432, %v9445
        %v9447 = vpop.f32.mrf.mxu0
        %v9448 = vadd.f32 %v9434, %v9447
        %9449 = vdwg.mxu0
        %9450 = vmatpush.bf16.msra.mxu0 %v9277
        %9451 = vmatpush.bf16.msra.mxu0 %v9276
        %9452 = vmatpush.bf16.msra.mxu0 %v9275
        %9453 = vmatpush.bf16.msra.mxu0 %v9274
        %9454 = vmatpush.bf16.msra.mxu0 %v9273
        %9455 = vmatpush.bf16.msra.mxu0 %v9272
        %9456 = vmatpush.bf16.msra.mxu0 %v9271
        %9457 = vmatpush.bf16.msra.mxu0 %v9270
        %9458 = vmatmul.bf16.gmra.mxu0 %v8783
        %v9459 = vpop.f32.mrf.mxu0
        %v9460 = vadd.f32 %v9446, %v9459
        %v9461 = vpop.f32.mrf.mxu0
        %v9462 = vadd.f32 %v9448, %v9461
        %9463 = vdwg.mxu0
        %9464 = vmatpush.bf16.msra.mxu0 %v9285
        %9465 = vmatpush.bf16.msra.mxu0 %v9284
        %9466 = vmatpush.bf16.msra.mxu0 %v9283
        %9467 = vmatpush.bf16.msra.mxu0 %v9282
        %9468 = vmatpush.bf16.msra.mxu0 %v9281
        %9469 = vmatpush.bf16.msra.mxu0 %v9280
        %9470 = vmatpush.bf16.msra.mxu0 %v9279
        %9471 = vmatpush.bf16.msra.mxu0 %v9278
        %9472 = vmatmul.bf16.gmra.mxu0 %v8784
        %v9473 = vpop.f32.mrf.mxu0
        %v9474 = vadd.f32 %v9460, %v9473
        %v9475 = vpop.f32.mrf.mxu0
        %v9476 = vadd.f32 %v9462, %v9475
        %9477 = vdwg.mxu0
        %9478 = vmatpush.bf16.msra.mxu0 %v9293
        %9479 = vmatpush.bf16.msra.mxu0 %v9292
        %9480 = vmatpush.bf16.msra.mxu0 %v9291
        %9481 = vmatpush.bf16.msra.mxu0 %v9290
        %9482 = vmatpush.bf16.msra.mxu0 %v9289
        %9483 = vmatpush.bf16.msra.mxu0 %v9288
        %9484 = vmatpush.bf16.msra.mxu0 %v9287
        %9485 = vmatpush.bf16.msra.mxu0 %v9286
        %9486 = vmatmul.bf16.gmra.mxu0 %v8785
        %v9487 = vpop.f32.mrf.mxu0
        %v9488 = vadd.f32 %v9474, %v9487
        %v9489 = vpop.f32.mrf.mxu0
        %v9490 = vadd.f32 %v9476, %v9489
        %9491 = vdwg.mxu0
        %v9492 = vadd.f32 %v7680, %v9488
        %v9493 = vadd.f32 %v7683, %v9490
        %v9494 = vmax.f32 %v9492, 0.0
        %v9495 = vmax.f32 %v9493, 0.0
        %9496 = vst [vmem:[#allocation2] sm:$0x3f] 0.0
        %9497 = vst [vmem:[#allocation2 + $0x18] sm:$0x3f] 0.0
        %9498 = vst [vmem:[#allocation2 + $0x30] sm:$0x3f] 0.0
        %9499 = vst [vmem:[#allocation2 + $0x48] sm:$0x3f] 0.0
        %9500 = vst [vmem:[#allocation2 + $0x60] sm:$0x3f] 0.0
        %9501 = vst [vmem:[#allocation2 + $0x78] sm:$0x3f] 0.0
        %v9504 = vrot.slane %v9494, 4
        %v9505 = vrot.slane %v9495, 4
        %9508 = vst.msk [vmem:[%s779 + $0x1] sm:$0xf] %vm7697, %v9494
        %9509 = vst.msk [vmem:[%s779 + $0x19] sm:$0xf] %vm7697, %v9504
        %9510 = vst.msk [vmem:[%s779 + $0x31] sm:$0xf] %vm7697, %v9495
        %9511 = vst.msk [vmem:[%s779 + $0x49] sm:$0xf] %vm7697, %v9505
        %v9512 = vld [vmem:[#allocation2] sm:$0xf]
        %v9513 = vld [vmem:[#allocation2 + $0x18] sm:$0xf]
        %v9514 = vld [vmem:[#allocation2 + $0x30] sm:$0xf]
        %v9515 = vld [vmem:[#allocation2 + $0x48] sm:$0xf]
        %v9516 = vld [vmem:[#allocation2 + $0x1] sm:$0xf]
        %v9517 = vld [vmem:[#allocation2 + $0x19] sm:$0xf]
        %v9518 = vld [vmem:[#allocation2 + $0x31] sm:$0xf]
        %v9519 = vld [vmem:[#allocation2 + $0x49] sm:$0xf]
        %v9520 = vld [vmem:[#allocation2 + $0x2] sm:$0xf]
        %v9521 = vld [vmem:[#allocation2 + $0x1a] sm:$0xf]
        %v9522 = vld [vmem:[#allocation2 + $0x32] sm:$0xf]
        %v9523 = vld [vmem:[#allocation2 + $0x4a] sm:$0xf]
        %v9524 = vld [vmem:[%s779] sm:$0xf]
        %v9525 = vld [vmem:[%s779 + $0x18] sm:$0xf]
        %v9526 = vld [vmem:[%s779 + $0x30] sm:$0xf]
        %v9527 = vld [vmem:[%s779 + $0x48] sm:$0xf]
        %v9528 = vld [vmem:[%s779 + $0x1] sm:$0xf]
        %v9529 = vld [vmem:[%s779 + $0x19] sm:$0xf]
        %v9530 = vld [vmem:[%s779 + $0x31] sm:$0xf]
        %v9531 = vld [vmem:[%s779 + $0x49] sm:$0xf]
        %v9532 = vld [vmem:[%s779 + $0x2] sm:$0xf]
        %v9533 = vld [vmem:[%s779 + $0x1a] sm:$0xf]
        %v9534 = vld [vmem:[%s779 + $0x32] sm:$0xf]
        %v9535 = vld [vmem:[%s779 + $0x4a] sm:$0xf]
        %v9536 = vld [vmem:[%s1005] sm:$0xf]
        %v9537 = vld [vmem:[%s1005 + $0x18] sm:$0xf]
        %v9538 = vld [vmem:[%s1005 + $0x30] sm:$0xf]
        %v9539 = vld [vmem:[%s1005 + $0x48] sm:$0xf]
        %v9540 = vld [vmem:[%s1005 + $0x1] sm:$0xf]
        %v9541 = vld [vmem:[%s1005 + $0x19] sm:$0xf]
        %v9542 = vld [vmem:[%s1005 + $0x31] sm:$0xf]
        %v9543 = vld [vmem:[%s1005 + $0x49] sm:$0xf]
        %v9544 = vld [vmem:[%s1005 + $0x2] sm:$0xf]
        %v9545 = vld [vmem:[%s1005 + $0x1a] sm:$0xf]
        %v9546 = vld [vmem:[%s1005 + $0x32] sm:$0xf]
        %v9547 = vld [vmem:[%s1005 + $0x4a] sm:$0xf]
        %9552 = vst [vmem:[#allocation1] ss:$2 sm:$0xff] %v9512
        %s9553 = scalar_lea.vmem [#allocation1], 1
        %9554 = vst [vmem:[%s9553] ss:$2 sm:$0xff] %v9513
        %s9555 = scalar_lea.vmem [#allocation1], 16
        %9556 = vst [vmem:[%s9555] ss:$2 sm:$0xff] %v9514
        %s9557 = scalar_lea.vmem [#allocation1], 17
        %9558 = vst [vmem:[%s9557] ss:$2 sm:$0xff] %v9515
        %v9559 = vld.sshfl [vmem:[#allocation1] sm:$0xff pattern:$0x75316420]
        %v9560 = vld.sshfl [vmem:[#allocation1 + $0x10] sm:$0xff pattern:$0x75316420]
        %9567 = vst [vmem:[#allocation1] ss:$2 sm:$0xff] %v9516
        %s9568 = scalar_lea.vmem [#allocation1], 1
        %9569 = vst [vmem:[%s9568] ss:$2 sm:$0xff] %v9517
        %s9570 = scalar_lea.vmem [#allocation1], 16
        %9571 = vst [vmem:[%s9570] ss:$2 sm:$0xff] %v9518
        %s9572 = scalar_lea.vmem [#allocation1], 17
        %9573 = vst [vmem:[%s9572] ss:$2 sm:$0xff] %v9519
        %v9574 = vld.sshfl [vmem:[#allocation1] sm:$0xff pattern:$0x75316420]
        %v9575 = vld.sshfl [vmem:[#allocation1 + $0x10] sm:$0xff pattern:$0x75316420]
        %9582 = vst [vmem:[#allocation1] ss:$2 sm:$0xff] %v9520
        %s9583 = scalar_lea.vmem [#allocation1], 1
        %9584 = vst [vmem:[%s9583] ss:$2 sm:$0xff] %v9521
        %s9585 = scalar_lea.vmem [#allocation1], 16
        %9586 = vst [vmem:[%s9585] ss:$2 sm:$0xff] %v9522
        %s9587 = scalar_lea.vmem [#allocation1], 17
        %9588 = vst [vmem:[%s9587] ss:$2 sm:$0xff] %v9523
        %v9589 = vld.sshfl [vmem:[#allocation1] sm:$0xff pattern:$0x75316420]
        %v9590 = vld.sshfl [vmem:[#allocation1 + $0x10] sm:$0xff pattern:$0x75316420]
        %9597 = vst [vmem:[#allocation1] ss:$2 sm:$0xff] %v9524
        %s9598 = scalar_lea.vmem [#allocation1], 1
        %9599 = vst [vmem:[%s9598] ss:$2 sm:$0xff] %v9525
        %s9600 = scalar_lea.vmem [#allocation1], 16
        %9601 = vst [vmem:[%s9600] ss:$2 sm:$0xff] %v9526
        %s9602 = scalar_lea.vmem [#allocation1], 17
        %9603 = vst [vmem:[%s9602] ss:$2 sm:$0xff] %v9527
        %v9604 = vld.sshfl [vmem:[#allocation1] sm:$0xff pattern:$0x75316420]
        %v9605 = vld.sshfl [vmem:[#allocation1 + $0x10] sm:$0xff pattern:$0x75316420]
        %9612 = vst [vmem:[#allocation1] ss:$2 sm:$0xff] %v9528
        %s9613 = scalar_lea.vmem [#allocation1], 1
        %9614 = vst [vmem:[%s9613] ss:$2 sm:$0xff] %v9529
        %s9615 = scalar_lea.vmem [#allocation1], 16
        %9616 = vst [vmem:[%s9615] ss:$2 sm:$0xff] %v9530
        %s9617 = scalar_lea.vmem [#allocation1], 17
        %9618 = vst [vmem:[%s9617] ss:$2 sm:$0xff] %v9531
        %v9619 = vld.sshfl [vmem:[#allocation1] sm:$0xff pattern:$0x75316420]
        %v9620 = vld.sshfl [vmem:[#allocation1 + $0x10] sm:$0xff pattern:$0x75316420]
        %9627 = vst [vmem:[#allocation1] ss:$2 sm:$0xff] %v9532
        %s9628 = scalar_lea.vmem [#allocation1], 1
        %9629 = vst [vmem:[%s9628] ss:$2 sm:$0xff] %v9533
        %s9630 = scalar_lea.vmem [#allocation1], 16
        %9631 = vst [vmem:[%s9630] ss:$2 sm:$0xff] %v9534
        %s9632 = scalar_lea.vmem [#allocation1], 17
        %9633 = vst [vmem:[%s9632] ss:$2 sm:$0xff] %v9535
        %v9634 = vld.sshfl [vmem:[#allocation1] sm:$0xff pattern:$0x75316420]
        %v9635 = vld.sshfl [vmem:[#allocation1 + $0x10] sm:$0xff pattern:$0x75316420]
        %9642 = vst [vmem:[#allocation1] ss:$2 sm:$0xff] %v9536
        %s9643 = scalar_lea.vmem [#allocation1], 1
        %9644 = vst [vmem:[%s9643] ss:$2 sm:$0xff] %v9537
        %s9645 = scalar_lea.vmem [#allocation1], 16
        %9646 = vst [vmem:[%s9645] ss:$2 sm:$0xff] %v9538
        %s9647 = scalar_lea.vmem [#allocation1], 17
        %9648 = vst [vmem:[%s9647] ss:$2 sm:$0xff] %v9539
        %v9649 = vld.sshfl [vmem:[#allocation1] sm:$0xff pattern:$0x75316420]
        %v9650 = vld.sshfl [vmem:[#allocation1 + $0x10] sm:$0xff pattern:$0x75316420]
        %9657 = vst [vmem:[#allocation1] ss:$2 sm:$0xff] %v9540
        %s9658 = scalar_lea.vmem [#allocation1], 1
        %9659 = vst [vmem:[%s9658] ss:$2 sm:$0xff] %v9541
        %s9660 = scalar_lea.vmem [#allocation1], 16
        %9661 = vst [vmem:[%s9660] ss:$2 sm:$0xff] %v9542
        %s9662 = scalar_lea.vmem [#allocation1], 17
        %9663 = vst [vmem:[%s9662] ss:$2 sm:$0xff] %v9543
        %v9664 = vld.sshfl [vmem:[#allocation1] sm:$0xff pattern:$0x75316420]
        %v9665 = vld.sshfl [vmem:[#allocation1 + $0x10] sm:$0xff pattern:$0x75316420]
        %9672 = vst [vmem:[#allocation1] ss:$2 sm:$0xff] %v9544
        %s9673 = scalar_lea.vmem [#allocation1], 1
        %9674 = vst [vmem:[%s9673] ss:$2 sm:$0xff] %v9545
        %s9675 = scalar_lea.vmem [#allocation1], 16
        %9676 = vst [vmem:[%s9675] ss:$2 sm:$0xff] %v9546
        %s9677 = scalar_lea.vmem [#allocation1], 17
        %9678 = vst [vmem:[%s9677] ss:$2 sm:$0xff] %v9547
        %v9679 = vld.sshfl [vmem:[#allocation1] sm:$0xff pattern:$0x75316420]
        %v9680 = vld.sshfl [vmem:[#allocation1 + $0x10] sm:$0xff pattern:$0x75316420]
        %v9683 = vpack.c.bf16 %v9560, %v9559
        %v9684 = vpack.c.bf16 %v9575, %v9574
        %v9685 = vpack.c.bf16 %v9590, %v9589
        %v9686 = vpack.c.bf16 %v9605, %v9604
        %v9687 = vpack.c.bf16 %v9620, %v9619
        %v9688 = vpack.c.bf16 %v9635, %v9634
        %v9689 = vpack.c.bf16 %v9650, %v9649
        %v9690 = vpack.c.bf16 %v9665, %v9664
        %v9691 = vpack.c.bf16 %v9680, %v9679
        %v9692 = vld [vmem:[%s15] sm:$0xf]
        %v9693 = vld [vmem:[%s15 + $0x4] sm:$0xf]
        %v9694 = vld [vmem:[%s15 + $0x8] sm:$0xf]
        %v9695 = vld [vmem:[%s15 + $0xc] sm:$0xf]
        %v9696 = vld [vmem:[%s15 + $0x10] sm:$0xf]
        %v9697 = vld [vmem:[%s15 + $0x14] sm:$0xf]
        %v9698 = vld [vmem:[%s15 + $0x18] sm:$0xf]
        %v9699 = vld [vmem:[%s15 + $0x1c] sm:$0xf]
        %v9700 = vld [vmem:[%s15 + $0x20] sm:$0xf]
        %v9701 = vld [vmem:[%s15 + $0x24] sm:$0xf]
        %v9702 = vld [vmem:[%s15 + $0x28] sm:$0xf]
        %v9703 = vld [vmem:[%s15 + $0x2c] sm:$0xf]
        %v9704 = vld [vmem:[%s15 + $0x30] sm:$0xf]
        %v9705 = vld [vmem:[%s15 + $0x34] sm:$0xf]
        %v9706 = vld [vmem:[%s15 + $0x38] sm:$0xf]
        %v9707 = vld [vmem:[%s15 + $0x3c] sm:$0xf]
        %v9708 = vld [vmem:[%s15 + $0x40] sm:$0xf]
        %v9709 = vld [vmem:[%s15 + $0x44] sm:$0xf]
        %v9710 = vld [vmem:[%s15 + $0x48] sm:$0xf]
        %v9711 = vld [vmem:[%s15 + $0x4c] sm:$0xf]
        %v9712 = vld [vmem:[%s15 + $0x50] sm:$0xf]
        %v9713 = vld [vmem:[%s15 + $0x54] sm:$0xf]
        %v9714 = vld [vmem:[%s15 + $0x58] sm:$0xf]
        %v9715 = vld [vmem:[%s15 + $0x5c] sm:$0xf]
        %v9716 = vld [vmem:[%s15 + $0x60] sm:$0xf]
        %v9717 = vld [vmem:[%s15 + $0x64] sm:$0xf]
        %v9718 = vld [vmem:[%s15 + $0x68] sm:$0xf]
        %v9719 = vld [vmem:[%s15 + $0x6c] sm:$0xf]
        %v9720 = vld [vmem:[%s15 + $0x70] sm:$0xf]
        %v9721 = vld [vmem:[%s15 + $0x74] sm:$0xf]
        %v9722 = vld [vmem:[%s15 + $0x78] sm:$0xf]
        %v9723 = vld [vmem:[%s15 + $0x7c] sm:$0xf]
        %v9724 = vld [vmem:[%s15 + $0x80] sm:$0xf]
        %v9725 = vld [vmem:[%s15 + $0x84] sm:$0xf]
        %v9726 = vld [vmem:[%s15 + $0x88] sm:$0xf]
        %v9727 = vld [vmem:[%s15 + $0x8c] sm:$0xf]
        %v9728 = vld [vmem:[%s15 + $0x90] sm:$0xf]
        %v9729 = vld [vmem:[%s15 + $0x94] sm:$0xf]
        %v9730 = vld [vmem:[%s15 + $0x98] sm:$0xf]
        %v9731 = vld [vmem:[%s15 + $0x9c] sm:$0xf]
        %v9732 = vld [vmem:[%s15 + $0xa0] sm:$0xf]
        %v9733 = vld [vmem:[%s15 + $0xa4] sm:$0xf]
        %v9734 = vld [vmem:[%s15 + $0xa8] sm:$0xf]
        %v9735 = vld [vmem:[%s15 + $0xac] sm:$0xf]
        %v9736 = vld [vmem:[%s15 + $0xb0] sm:$0xf]
        %v9737 = vld [vmem:[%s15 + $0xb4] sm:$0xf]
        %v9738 = vld [vmem:[%s15 + $0xb8] sm:$0xf]
        %v9739 = vld [vmem:[%s15 + $0xbc] sm:$0xf]
        %v9740 = vld [vmem:[%s15 + $0xc0] sm:$0xf]
        %v9741 = vld [vmem:[%s15 + $0xc4] sm:$0xf]
        %v9742 = vld [vmem:[%s15 + $0xc8] sm:$0xf]
        %v9743 = vld [vmem:[%s15 + $0xcc] sm:$0xf]
        %v9744 = vld [vmem:[%s15 + $0xd0] sm:$0xf]
        %v9745 = vld [vmem:[%s15 + $0xd4] sm:$0xf]
        %v9746 = vld [vmem:[%s15 + $0xd8] sm:$0xf]
        %v9747 = vld [vmem:[%s15 + $0xdc] sm:$0xf]
        %v9748 = vld [vmem:[%s15 + $0xe0] sm:$0xf]
        %v9749 = vld [vmem:[%s15 + $0xe4] sm:$0xf]
        %v9750 = vld [vmem:[%s15 + $0xe8] sm:$0xf]
        %v9751 = vld [vmem:[%s15 + $0xec] sm:$0xf]
        %v9752 = vld [vmem:[%s15 + $0xf0] sm:$0xf]
        %v9753 = vld [vmem:[%s15 + $0xf4] sm:$0xf]
        %v9754 = vld [vmem:[%s15 + $0xf8] sm:$0xf]
        %v9755 = vld [vmem:[%s15 + $0xfc] sm:$0xf]
        %v9756 = vld [vmem:[%s15 + $0x100] sm:$0xf]
        %v9757 = vld [vmem:[%s15 + $0x104] sm:$0xf]
        %v9758 = vld [vmem:[%s15 + $0x108] sm:$0xf]
        %v9759 = vld [vmem:[%s15 + $0x10c] sm:$0xf]
        %v9760 = vld [vmem:[%s15 + $0x110] sm:$0xf]
        %v9761 = vld [vmem:[%s15 + $0x114] sm:$0xf]
        %v9762 = vld [vmem:[%s15 + $0x118] sm:$0xf]
        %v9763 = vld [vmem:[%s15 + $0x11c] sm:$0xf]
        %v9764 = vld [vmem:[%s15 + $0x120] sm:$0xf]
        %v9765 = vld [vmem:[%s15 + $0x124] sm:$0xf]
        %v9766 = vld [vmem:[%s15 + $0x128] sm:$0xf]
        %v9767 = vld [vmem:[%s15 + $0x12c] sm:$0xf]
        %v9768 = vld [vmem:[%s15 + $0x130] sm:$0xf]
        %v9769 = vld [vmem:[%s15 + $0x134] sm:$0xf]
        %v9770 = vld [vmem:[%s15 + $0x138] sm:$0xf]
        %v9771 = vld [vmem:[%s15 + $0x13c] sm:$0xf]
        %v9772 = vld [vmem:[%s15 + $0x140] sm:$0xf]
        %v9773 = vld [vmem:[%s15 + $0x144] sm:$0xf]
        %v9774 = vld [vmem:[%s15 + $0x148] sm:$0xf]
        %v9775 = vld [vmem:[%s15 + $0x14c] sm:$0xf]
        %v9776 = vld [vmem:[%s15 + $0x150] sm:$0xf]
        %v9777 = vld [vmem:[%s15 + $0x154] sm:$0xf]
        %v9778 = vld [vmem:[%s15 + $0x158] sm:$0xf]
        %v9779 = vld [vmem:[%s15 + $0x15c] sm:$0xf]
        %v9780 = vld [vmem:[%s15 + $0x160] sm:$0xf]
        %v9781 = vld [vmem:[%s15 + $0x164] sm:$0xf]
        %v9782 = vld [vmem:[%s15 + $0x168] sm:$0xf]
        %v9783 = vld [vmem:[%s15 + $0x16c] sm:$0xf]
        %v9784 = vld [vmem:[%s15 + $0x170] sm:$0xf]
        %v9785 = vld [vmem:[%s15 + $0x174] sm:$0xf]
        %v9786 = vld [vmem:[%s15 + $0x178] sm:$0xf]
        %v9787 = vld [vmem:[%s15 + $0x17c] sm:$0xf]
        %v9788 = vld [vmem:[%s15 + $0x180] sm:$0xf]
        %v9789 = vld [vmem:[%s15 + $0x184] sm:$0xf]
        %v9790 = vld [vmem:[%s15 + $0x188] sm:$0xf]
        %v9791 = vld [vmem:[%s15 + $0x18c] sm:$0xf]
        %v9792 = vld [vmem:[%s15 + $0x190] sm:$0xf]
        %v9793 = vld [vmem:[%s15 + $0x194] sm:$0xf]
        %v9794 = vld [vmem:[%s15 + $0x198] sm:$0xf]
        %v9795 = vld [vmem:[%s15 + $0x19c] sm:$0xf]
        %v9796 = vld [vmem:[%s15 + $0x1a0] sm:$0xf]
        %v9797 = vld [vmem:[%s15 + $0x1a4] sm:$0xf]
        %v9798 = vld [vmem:[%s15 + $0x1a8] sm:$0xf]
        %v9799 = vld [vmem:[%s15 + $0x1ac] sm:$0xf]
        %v9800 = vld [vmem:[%s15 + $0x1b0] sm:$0xf]
        %v9801 = vld [vmem:[%s15 + $0x1b4] sm:$0xf]
        %v9802 = vld [vmem:[%s15 + $0x1b8] sm:$0xf]
        %v9803 = vld [vmem:[%s15 + $0x1bc] sm:$0xf]
        %v9804 = vld [vmem:[%s15 + $0x1c0] sm:$0xf]
        %v9805 = vld [vmem:[%s15 + $0x1c4] sm:$0xf]
        %v9806 = vld [vmem:[%s15 + $0x1c8] sm:$0xf]
        %v9807 = vld [vmem:[%s15 + $0x1cc] sm:$0xf]
        %v9808 = vld [vmem:[%s15 + $0x1d0] sm:$0xf]
        %v9809 = vld [vmem:[%s15 + $0x1d4] sm:$0xf]
        %v9810 = vld [vmem:[%s15 + $0x1d8] sm:$0xf]
        %v9811 = vld [vmem:[%s15 + $0x1dc] sm:$0xf]
        %v9812 = vld [vmem:[%s15 + $0x1e0] sm:$0xf]
        %v9813 = vld [vmem:[%s15 + $0x1e4] sm:$0xf]
        %v9814 = vld [vmem:[%s15 + $0x1e8] sm:$0xf]
        %v9815 = vld [vmem:[%s15 + $0x1ec] sm:$0xf]
        %v9816 = vld [vmem:[%s15 + $0x1f0] sm:$0xf]
        %v9817 = vld [vmem:[%s15 + $0x1f4] sm:$0xf]
        %v9818 = vld [vmem:[%s15 + $0x1f8] sm:$0xf]
        %v9819 = vld [vmem:[%s15 + $0x1fc] sm:$0xf]
        %v9820 = vld [vmem:[%s15 + $0x200] sm:$0xf]
        %v9821 = vld [vmem:[%s15 + $0x204] sm:$0xf]
        %v9822 = vld [vmem:[%s15 + $0x208] sm:$0xf]
        %v9823 = vld [vmem:[%s15 + $0x20c] sm:$0xf]
        %v9824 = vld [vmem:[%s15 + $0x210] sm:$0xf]
        %v9825 = vld [vmem:[%s15 + $0x214] sm:$0xf]
        %v9826 = vld [vmem:[%s15 + $0x218] sm:$0xf]
        %v9827 = vld [vmem:[%s15 + $0x21c] sm:$0xf]
        %v9828 = vld [vmem:[%s15 + $0x220] sm:$0xf]
        %v9829 = vld [vmem:[%s15 + $0x224] sm:$0xf]
        %v9830 = vld [vmem:[%s15 + $0x228] sm:$0xf]
        %v9831 = vld [vmem:[%s15 + $0x22c] sm:$0xf]
        %v9832 = vld [vmem:[%s15 + $0x230] sm:$0xf]
        %v9833 = vld [vmem:[%s15 + $0x234] sm:$0xf]
        %v9834 = vld [vmem:[%s15 + $0x238] sm:$0xf]
        %v9835 = vld [vmem:[%s15 + $0x23c] sm:$0xf]
        %v9836 = vld [vmem:[%s16] sm:$0x1]
        %v9838 = vperm.slane %v9836, 0
        %v9984 = vunpack.c.l.b16 %v9692
        %v9985 = vunpack.c.l.b16 %v9693
        %v9986 = vunpack.c.l.b16 %v9694
        %v9987 = vunpack.c.l.b16 %v9695
        %v9988 = vunpack.c.l.b16 %v9696
        %v9989 = vunpack.c.l.b16 %v9697
        %v9990 = vunpack.c.l.b16 %v9698
        %v9991 = vunpack.c.l.b16 %v9699
        %v9992 = vunpack.c.l.b16 %v9700
        %v9993 = vunpack.c.l.b16 %v9701
        %v9994 = vunpack.c.l.b16 %v9702
        %v9995 = vunpack.c.l.b16 %v9703
        %v9996 = vunpack.c.l.b16 %v9704
        %v9997 = vunpack.c.l.b16 %v9705
        %v9998 = vunpack.c.l.b16 %v9706
        %v9999 = vunpack.c.l.b16 %v9707
        %v10000 = vunpack.c.l.b16 %v9708
        %v10001 = vunpack.c.l.b16 %v9709
        %v10002 = vunpack.c.l.b16 %v9710
        %v10003 = vunpack.c.l.b16 %v9711
        %v10004 = vunpack.c.l.b16 %v9712
        %v10005 = vunpack.c.l.b16 %v9713
        %v10006 = vunpack.c.l.b16 %v9714
        %v10007 = vunpack.c.l.b16 %v9715
        %v10008 = vunpack.c.l.b16 %v9716
        %v10009 = vunpack.c.l.b16 %v9717
        %v10010 = vunpack.c.l.b16 %v9718
        %v10011 = vunpack.c.l.b16 %v9719
        %v10012 = vunpack.c.l.b16 %v9720
        %v10013 = vunpack.c.l.b16 %v9721
        %v10014 = vunpack.c.l.b16 %v9722
        %v10015 = vunpack.c.l.b16 %v9723
        %v10016 = vunpack.c.l.b16 %v9724
        %v10017 = vunpack.c.l.b16 %v9725
        %v10018 = vunpack.c.l.b16 %v9726
        %v10019 = vunpack.c.l.b16 %v9727
        %v10020 = vunpack.c.l.b16 %v9728
        %v10021 = vunpack.c.l.b16 %v9729
        %v10022 = vunpack.c.l.b16 %v9730
        %v10023 = vunpack.c.l.b16 %v9731
        %v10024 = vunpack.c.l.b16 %v9732
        %v10025 = vunpack.c.l.b16 %v9733
        %v10026 = vunpack.c.l.b16 %v9734
        %v10027 = vunpack.c.l.b16 %v9735
        %v10028 = vunpack.c.l.b16 %v9736
        %v10029 = vunpack.c.l.b16 %v9737
        %v10030 = vunpack.c.l.b16 %v9738
        %v10031 = vunpack.c.l.b16 %v9739
        %v10032 = vunpack.c.l.b16 %v9740
        %v10033 = vunpack.c.l.b16 %v9741
        %v10034 = vunpack.c.l.b16 %v9742
        %v10035 = vunpack.c.l.b16 %v9743
        %v10036 = vunpack.c.l.b16 %v9744
        %v10037 = vunpack.c.l.b16 %v9745
        %v10038 = vunpack.c.l.b16 %v9746
        %v10039 = vunpack.c.l.b16 %v9747
        %v10040 = vunpack.c.l.b16 %v9748
        %v10041 = vunpack.c.l.b16 %v9749
        %v10042 = vunpack.c.l.b16 %v9750
        %v10043 = vunpack.c.l.b16 %v9751
        %v10044 = vunpack.c.l.b16 %v9752
        %v10045 = vunpack.c.l.b16 %v9753
        %v10046 = vunpack.c.l.b16 %v9754
        %v10047 = vunpack.c.l.b16 %v9755
        %v10048 = vunpack.c.l.b16 %v9756
        %v10049 = vunpack.c.l.b16 %v9757
        %v10050 = vunpack.c.l.b16 %v9758
        %v10051 = vunpack.c.l.b16 %v9759
        %v10052 = vunpack.c.l.b16 %v9760
        %v10053 = vunpack.c.l.b16 %v9761
        %v10054 = vunpack.c.l.b16 %v9762
        %v10055 = vunpack.c.l.b16 %v9763
        %v10056 = vunpack.c.l.b16 %v9764
        %v10057 = vunpack.c.l.b16 %v9765
        %v10058 = vunpack.c.l.b16 %v9766
        %v10059 = vunpack.c.l.b16 %v9767
        %v10060 = vunpack.c.l.b16 %v9768
        %v10061 = vunpack.c.l.b16 %v9769
        %v10062 = vunpack.c.l.b16 %v9770
        %v10063 = vunpack.c.l.b16 %v9771
        %v10064 = vunpack.c.l.b16 %v9772
        %v10065 = vunpack.c.l.b16 %v9773
        %v10066 = vunpack.c.l.b16 %v9774
        %v10067 = vunpack.c.l.b16 %v9775
        %v10068 = vunpack.c.l.b16 %v9776
        %v10069 = vunpack.c.l.b16 %v9777
        %v10070 = vunpack.c.l.b16 %v9778
        %v10071 = vunpack.c.l.b16 %v9779
        %v10072 = vunpack.c.l.b16 %v9780
        %v10073 = vunpack.c.l.b16 %v9781
        %v10074 = vunpack.c.l.b16 %v9782
        %v10075 = vunpack.c.l.b16 %v9783
        %v10076 = vunpack.c.l.b16 %v9784
        %v10077 = vunpack.c.l.b16 %v9785
        %v10078 = vunpack.c.l.b16 %v9786
        %v10079 = vunpack.c.l.b16 %v9787
        %v10080 = vunpack.c.l.b16 %v9788
        %v10081 = vunpack.c.l.b16 %v9789
        %v10082 = vunpack.c.l.b16 %v9790
        %v10083 = vunpack.c.l.b16 %v9791
        %v10084 = vunpack.c.l.b16 %v9792
        %v10085 = vunpack.c.l.b16 %v9793
        %v10086 = vunpack.c.l.b16 %v9794
        %v10087 = vunpack.c.l.b16 %v9795
        %v10088 = vunpack.c.l.b16 %v9796
        %v10089 = vunpack.c.l.b16 %v9797
        %v10090 = vunpack.c.l.b16 %v9798
        %v10091 = vunpack.c.l.b16 %v9799
        %v10092 = vunpack.c.l.b16 %v9800
        %v10093 = vunpack.c.l.b16 %v9801
        %v10094 = vunpack.c.l.b16 %v9802
        %v10095 = vunpack.c.l.b16 %v9803
        %v10096 = vunpack.c.l.b16 %v9804
        %v10097 = vunpack.c.l.b16 %v9805
        %v10098 = vunpack.c.l.b16 %v9806
        %v10099 = vunpack.c.l.b16 %v9807
        %v10100 = vunpack.c.l.b16 %v9808
        %v10101 = vunpack.c.l.b16 %v9809
        %v10102 = vunpack.c.l.b16 %v9810
        %v10103 = vunpack.c.l.b16 %v9811
        %v10104 = vunpack.c.l.b16 %v9812
        %v10105 = vunpack.c.l.b16 %v9813
        %v10106 = vunpack.c.l.b16 %v9814
        %v10107 = vunpack.c.l.b16 %v9815
        %v10108 = vunpack.c.l.b16 %v9816
        %v10109 = vunpack.c.l.b16 %v9817
        %v10110 = vunpack.c.l.b16 %v9818
        %v10111 = vunpack.c.l.b16 %v9819
        %v10112 = vunpack.c.l.b16 %v9820
        %v10113 = vunpack.c.l.b16 %v9821
        %v10114 = vunpack.c.l.b16 %v9822
        %v10115 = vunpack.c.l.b16 %v9823
        %v10116 = vunpack.c.l.b16 %v9824
        %v10117 = vunpack.c.l.b16 %v9825
        %v10118 = vunpack.c.l.b16 %v9826
        %v10119 = vunpack.c.l.b16 %v9827
        %v10120 = vunpack.c.l.b16 %v9828
        %v10121 = vunpack.c.l.b16 %v9829
        %v10122 = vunpack.c.l.b16 %v9830
        %v10123 = vunpack.c.l.b16 %v9831
        %v10124 = vunpack.c.l.b16 %v9832
        %v10125 = vunpack.c.l.b16 %v9833
        %v10126 = vunpack.c.l.b16 %v9834
        %v10127 = vunpack.c.l.b16 %v9835
        %v10128 = vpack.c.b16 %v9985, %v9984
        %v10129 = vpack.c.b16 %v9987, %v9986
        %v10130 = vpack.c.b16 %v9989, %v9988
        %v10131 = vpack.c.b16 %v9991, %v9990
        %v10132 = vpack.c.b16 %v9993, %v9992
        %v10133 = vpack.c.b16 %v9995, %v9994
        %v10134 = vpack.c.b16 %v9997, %v9996
        %v10135 = vpack.c.b16 %v9999, %v9998
        %v10136 = vpack.c.b16 %v10001, %v10000
        %v10137 = vpack.c.b16 %v10003, %v10002
        %v10138 = vpack.c.b16 %v10005, %v10004
        %v10139 = vpack.c.b16 %v10007, %v10006
        %v10140 = vpack.c.b16 %v10009, %v10008
        %v10141 = vpack.c.b16 %v10011, %v10010
        %v10142 = vpack.c.b16 %v10013, %v10012
        %v10143 = vpack.c.b16 %v10015, %v10014
        %v10144 = vpack.c.b16 %v10017, %v10016
        %v10145 = vpack.c.b16 %v10019, %v10018
        %v10146 = vpack.c.b16 %v10021, %v10020
        %v10147 = vpack.c.b16 %v10023, %v10022
        %v10148 = vpack.c.b16 %v10025, %v10024
        %v10149 = vpack.c.b16 %v10027, %v10026
        %v10150 = vpack.c.b16 %v10029, %v10028
        %v10151 = vpack.c.b16 %v10031, %v10030
        %v10152 = vpack.c.b16 %v10033, %v10032
        %v10153 = vpack.c.b16 %v10035, %v10034
        %v10154 = vpack.c.b16 %v10037, %v10036
        %v10155 = vpack.c.b16 %v10039, %v10038
        %v10156 = vpack.c.b16 %v10041, %v10040
        %v10157 = vpack.c.b16 %v10043, %v10042
        %v10158 = vpack.c.b16 %v10045, %v10044
        %v10159 = vpack.c.b16 %v10047, %v10046
        %v10160 = vpack.c.b16 %v10049, %v10048
        %v10161 = vpack.c.b16 %v10051, %v10050
        %v10162 = vpack.c.b16 %v10053, %v10052
        %v10163 = vpack.c.b16 %v10055, %v10054
        %v10164 = vpack.c.b16 %v10057, %v10056
        %v10165 = vpack.c.b16 %v10059, %v10058
        %v10166 = vpack.c.b16 %v10061, %v10060
        %v10167 = vpack.c.b16 %v10063, %v10062
        %v10168 = vpack.c.b16 %v10065, %v10064
        %v10169 = vpack.c.b16 %v10067, %v10066
        %v10170 = vpack.c.b16 %v10069, %v10068
        %v10171 = vpack.c.b16 %v10071, %v10070
        %v10172 = vpack.c.b16 %v10073, %v10072
        %v10173 = vpack.c.b16 %v10075, %v10074
        %v10174 = vpack.c.b16 %v10077, %v10076
        %v10175 = vpack.c.b16 %v10079, %v10078
        %v10176 = vpack.c.b16 %v10081, %v10080
        %v10177 = vpack.c.b16 %v10083, %v10082
        %v10178 = vpack.c.b16 %v10085, %v10084
        %v10179 = vpack.c.b16 %v10087, %v10086
        %v10180 = vpack.c.b16 %v10089, %v10088
        %v10181 = vpack.c.b16 %v10091, %v10090
        %v10182 = vpack.c.b16 %v10093, %v10092
        %v10183 = vpack.c.b16 %v10095, %v10094
        %v10184 = vpack.c.b16 %v10097, %v10096
        %v10185 = vpack.c.b16 %v10099, %v10098
        %v10186 = vpack.c.b16 %v10101, %v10100
        %v10187 = vpack.c.b16 %v10103, %v10102
        %v10188 = vpack.c.b16 %v10105, %v10104
        %v10189 = vpack.c.b16 %v10107, %v10106
        %v10190 = vpack.c.b16 %v10109, %v10108
        %v10191 = vpack.c.b16 %v10111, %v10110
        %v10192 = vpack.c.b16 %v10113, %v10112
        %v10193 = vpack.c.b16 %v10115, %v10114
        %v10194 = vpack.c.b16 %v10117, %v10116
        %v10195 = vpack.c.b16 %v10119, %v10118
        %v10196 = vpack.c.b16 %v10121, %v10120
        %v10197 = vpack.c.b16 %v10123, %v10122
        %v10198 = vpack.c.b16 %v10125, %v10124
        %v10199 = vpack.c.b16 %v10127, %v10126
        %10272 = vmatpush.bf16.msra.mxu0 %v10135
        %10273 = vmatpush.bf16.msra.mxu0 %v10134
        %10274 = vmatpush.bf16.msra.mxu0 %v10133
        %10275 = vmatpush.bf16.msra.mxu0 %v10132
        %10276 = vmatpush.bf16.msra.mxu0 %v10131
        %10277 = vmatpush.bf16.msra.mxu0 %v10130
        %10278 = vmatpush.bf16.msra.mxu0 %v10129
        %10279 = vmatpush.bf16.msra.mxu0 %v10128
        %10280 = vmatmul.bf16.gmra.mxu0 %v9683
        %v10281 = vpop.f32.mrf.mxu0
        %v10282 = vadd.f32 %v9838, %v10281
        %v10283 = vpop.f32.mrf.mxu0
        %v10284 = vadd.f32 %v9838, %v10283
        %10285 = vdwg.mxu0
        %10286 = vmatpush.bf16.msra.mxu0 %v10143
        %10287 = vmatpush.bf16.msra.mxu0 %v10142
        %10288 = vmatpush.bf16.msra.mxu0 %v10141
        %10289 = vmatpush.bf16.msra.mxu0 %v10140
        %10290 = vmatpush.bf16.msra.mxu0 %v10139
        %10291 = vmatpush.bf16.msra.mxu0 %v10138
        %10292 = vmatpush.bf16.msra.mxu0 %v10137
        %10293 = vmatpush.bf16.msra.mxu0 %v10136
        %10294 = vmatmul.bf16.gmra.mxu0 %v9684
        %v10295 = vpop.f32.mrf.mxu0
        %v10296 = vadd.f32 %v10282, %v10295
        %v10297 = vpop.f32.mrf.mxu0
        %v10298 = vadd.f32 %v10284, %v10297
        %10299 = vdwg.mxu0
        %10300 = vmatpush.bf16.msra.mxu0 %v10151
        %10301 = vmatpush.bf16.msra.mxu0 %v10150
        %10302 = vmatpush.bf16.msra.mxu0 %v10149
        %10303 = vmatpush.bf16.msra.mxu0 %v10148
        %10304 = vmatpush.bf16.msra.mxu0 %v10147
        %10305 = vmatpush.bf16.msra.mxu0 %v10146
        %10306 = vmatpush.bf16.msra.mxu0 %v10145
        %10307 = vmatpush.bf16.msra.mxu0 %v10144
        %10308 = vmatmul.bf16.gmra.mxu0 %v9685
        %v10309 = vpop.f32.mrf.mxu0
        %v10310 = vadd.f32 %v10296, %v10309
        %v10311 = vpop.f32.mrf.mxu0
        %v10312 = vadd.f32 %v10298, %v10311
        %10313 = vdwg.mxu0
        %10314 = vmatpush.bf16.msra.mxu0 %v10159
        %10315 = vmatpush.bf16.msra.mxu0 %v10158
        %10316 = vmatpush.bf16.msra.mxu0 %v10157
        %10317 = vmatpush.bf16.msra.mxu0 %v10156
        %10318 = vmatpush.bf16.msra.mxu0 %v10155
        %10319 = vmatpush.bf16.msra.mxu0 %v10154
        %10320 = vmatpush.bf16.msra.mxu0 %v10153
        %10321 = vmatpush.bf16.msra.mxu0 %v10152
        %10322 = vmatmul.bf16.gmra.mxu0 %v9686
        %v10323 = vpop.f32.mrf.mxu0
        %v10324 = vadd.f32 %v10310, %v10323
        %v10325 = vpop.f32.mrf.mxu0
        %v10326 = vadd.f32 %v10312, %v10325
        %10327 = vdwg.mxu0
        %10328 = vmatpush.bf16.msra.mxu0 %v10167
        %10329 = vmatpush.bf16.msra.mxu0 %v10166
        %10330 = vmatpush.bf16.msra.mxu0 %v10165
        %10331 = vmatpush.bf16.msra.mxu0 %v10164
        %10332 = vmatpush.bf16.msra.mxu0 %v10163
        %10333 = vmatpush.bf16.msra.mxu0 %v10162
        %10334 = vmatpush.bf16.msra.mxu0 %v10161
        %10335 = vmatpush.bf16.msra.mxu0 %v10160
        %10336 = vmatmul.bf16.gmra.mxu0 %v9687
        %v10337 = vpop.f32.mrf.mxu0
        %v10338 = vadd.f32 %v10324, %v10337
        %v10339 = vpop.f32.mrf.mxu0
        %v10340 = vadd.f32 %v10326, %v10339
        %10341 = vdwg.mxu0
        %10342 = vmatpush.bf16.msra.mxu0 %v10175
        %10343 = vmatpush.bf16.msra.mxu0 %v10174
        %10344 = vmatpush.bf16.msra.mxu0 %v10173
        %10345 = vmatpush.bf16.msra.mxu0 %v10172
        %10346 = vmatpush.bf16.msra.mxu0 %v10171
        %10347 = vmatpush.bf16.msra.mxu0 %v10170
        %10348 = vmatpush.bf16.msra.mxu0 %v10169
        %10349 = vmatpush.bf16.msra.mxu0 %v10168
        %10350 = vmatmul.bf16.gmra.mxu0 %v9688
        %v10351 = vpop.f32.mrf.mxu0
        %v10352 = vadd.f32 %v10338, %v10351
        %v10353 = vpop.f32.mrf.mxu0
        %v10354 = vadd.f32 %v10340, %v10353
        %10355 = vdwg.mxu0
        %10356 = vmatpush.bf16.msra.mxu0 %v10183
        %10357 = vmatpush.bf16.msra.mxu0 %v10182
        %10358 = vmatpush.bf16.msra.mxu0 %v10181
        %10359 = vmatpush.bf16.msra.mxu0 %v10180
        %10360 = vmatpush.bf16.msra.mxu0 %v10179
        %10361 = vmatpush.bf16.msra.mxu0 %v10178
        %10362 = vmatpush.bf16.msra.mxu0 %v10177
        %10363 = vmatpush.bf16.msra.mxu0 %v10176
        %10364 = vmatmul.bf16.gmra.mxu0 %v9689
        %v10365 = vpop.f32.mrf.mxu0
        %v10366 = vadd.f32 %v10352, %v10365
        %v10367 = vpop.f32.mrf.mxu0
        %v10368 = vadd.f32 %v10354, %v10367
        %10369 = vdwg.mxu0
        %10370 = vmatpush.bf16.msra.mxu0 %v10191
        %10371 = vmatpush.bf16.msra.mxu0 %v10190
        %10372 = vmatpush.bf16.msra.mxu0 %v10189
        %10373 = vmatpush.bf16.msra.mxu0 %v10188
        %10374 = vmatpush.bf16.msra.mxu0 %v10187
        %10375 = vmatpush.bf16.msra.mxu0 %v10186
        %10376 = vmatpush.bf16.msra.mxu0 %v10185
        %10377 = vmatpush.bf16.msra.mxu0 %v10184
        %10378 = vmatmul.bf16.gmra.mxu0 %v9690
        %v10379 = vpop.f32.mrf.mxu0
        %v10380 = vadd.f32 %v10366, %v10379
        %v10381 = vpop.f32.mrf.mxu0
        %v10382 = vadd.f32 %v10368, %v10381
        %10383 = vdwg.mxu0
        %10384 = vmatpush.bf16.msra.mxu0 %v10199
        %10385 = vmatpush.bf16.msra.mxu0 %v10198
        %10386 = vmatpush.bf16.msra.mxu0 %v10197
        %10387 = vmatpush.bf16.msra.mxu0 %v10196
        %10388 = vmatpush.bf16.msra.mxu0 %v10195
        %10389 = vmatpush.bf16.msra.mxu0 %v10194
        %10390 = vmatpush.bf16.msra.mxu0 %v10193
        %10391 = vmatpush.bf16.msra.mxu0 %v10192
        %10392 = vmatmul.bf16.gmra.mxu0 %v9691
        %v10393 = vpop.f32.mrf.mxu0
        %v10394 = vadd.f32 %v10380, %v10393
        %v10395 = vpop.f32.mrf.mxu0
        %v10396 = vadd.f32 %v10382, %v10395
        %10397 = vdwg.mxu0
        %v10398 = vld [vmem:[%s17] sm:$0xf]
        %v10399 = vld [vmem:[%s17 + $0x4] sm:$0xf]
        %v10400 = vld [vmem:[%s17 + $0x8] sm:$0xf]
        %v10401 = vld [vmem:[%s17 + $0xc] sm:$0xf]
        %v10402 = vld [vmem:[%s17 + $0x10] sm:$0xf]
        %v10403 = vld [vmem:[%s17 + $0x14] sm:$0xf]
        %v10404 = vld [vmem:[%s17 + $0x18] sm:$0xf]
        %v10405 = vld [vmem:[%s17 + $0x1c] sm:$0xf]
        %v10406 = vld [vmem:[%s17 + $0x20] sm:$0xf]
        %v10407 = vld [vmem:[%s17 + $0x24] sm:$0xf]
        %v10408 = vld [vmem:[%s17 + $0x28] sm:$0xf]
        %v10409 = vld [vmem:[%s17 + $0x2c] sm:$0xf]
        %v10410 = vld [vmem:[%s17 + $0x30] sm:$0xf]
        %v10411 = vld [vmem:[%s17 + $0x34] sm:$0xf]
        %v10412 = vld [vmem:[%s17 + $0x38] sm:$0xf]
        %v10413 = vld [vmem:[%s17 + $0x3c] sm:$0xf]
        %v10414 = vld [vmem:[%s17 + $0x40] sm:$0xf]
        %v10415 = vld [vmem:[%s17 + $0x44] sm:$0xf]
        %v10416 = vld [vmem:[%s17 + $0x48] sm:$0xf]
        %v10417 = vld [vmem:[%s17 + $0x4c] sm:$0xf]
        %v10418 = vld [vmem:[%s17 + $0x50] sm:$0xf]
        %v10419 = vld [vmem:[%s17 + $0x54] sm:$0xf]
        %v10420 = vld [vmem:[%s17 + $0x58] sm:$0xf]
        %v10421 = vld [vmem:[%s17 + $0x5c] sm:$0xf]
        %v10422 = vld [vmem:[%s17 + $0x60] sm:$0xf]
        %v10423 = vld [vmem:[%s17 + $0x64] sm:$0xf]
        %v10424 = vld [vmem:[%s17 + $0x68] sm:$0xf]
        %v10425 = vld [vmem:[%s17 + $0x6c] sm:$0xf]
        %v10426 = vld [vmem:[%s17 + $0x70] sm:$0xf]
        %v10427 = vld [vmem:[%s17 + $0x74] sm:$0xf]
        %v10428 = vld [vmem:[%s17 + $0x78] sm:$0xf]
        %v10429 = vld [vmem:[%s17 + $0x7c] sm:$0xf]
        %v10430 = vld [vmem:[%s17 + $0x80] sm:$0xf]
        %v10431 = vld [vmem:[%s17 + $0x84] sm:$0xf]
        %v10432 = vld [vmem:[%s17 + $0x88] sm:$0xf]
        %v10433 = vld [vmem:[%s17 + $0x8c] sm:$0xf]
        %v10434 = vld [vmem:[%s17 + $0x90] sm:$0xf]
        %v10435 = vld [vmem:[%s17 + $0x94] sm:$0xf]
        %v10436 = vld [vmem:[%s17 + $0x98] sm:$0xf]
        %v10437 = vld [vmem:[%s17 + $0x9c] sm:$0xf]
        %v10438 = vld [vmem:[%s17 + $0xa0] sm:$0xf]
        %v10439 = vld [vmem:[%s17 + $0xa4] sm:$0xf]
        %v10440 = vld [vmem:[%s17 + $0xa8] sm:$0xf]
        %v10441 = vld [vmem:[%s17 + $0xac] sm:$0xf]
        %v10442 = vld [vmem:[%s17 + $0xb0] sm:$0xf]
        %v10443 = vld [vmem:[%s17 + $0xb4] sm:$0xf]
        %v10444 = vld [vmem:[%s17 + $0xb8] sm:$0xf]
        %v10445 = vld [vmem:[%s17 + $0xbc] sm:$0xf]
        %v10446 = vld [vmem:[%s17 + $0xc0] sm:$0xf]
        %v10447 = vld [vmem:[%s17 + $0xc4] sm:$0xf]
        %v10448 = vld [vmem:[%s17 + $0xc8] sm:$0xf]
        %v10449 = vld [vmem:[%s17 + $0xcc] sm:$0xf]
        %v10450 = vld [vmem:[%s17 + $0xd0] sm:$0xf]
        %v10451 = vld [vmem:[%s17 + $0xd4] sm:$0xf]
        %v10452 = vld [vmem:[%s17 + $0xd8] sm:$0xf]
        %v10453 = vld [vmem:[%s17 + $0xdc] sm:$0xf]
        %v10454 = vld [vmem:[%s17 + $0xe0] sm:$0xf]
        %v10455 = vld [vmem:[%s17 + $0xe4] sm:$0xf]
        %v10456 = vld [vmem:[%s17 + $0xe8] sm:$0xf]
        %v10457 = vld [vmem:[%s17 + $0xec] sm:$0xf]
        %v10458 = vld [vmem:[%s17 + $0xf0] sm:$0xf]
        %v10459 = vld [vmem:[%s17 + $0xf4] sm:$0xf]
        %v10460 = vld [vmem:[%s17 + $0xf8] sm:$0xf]
        %v10461 = vld [vmem:[%s17 + $0xfc] sm:$0xf]
        %v10462 = vld [vmem:[%s17 + $0x100] sm:$0xf]
        %v10463 = vld [vmem:[%s17 + $0x104] sm:$0xf]
        %v10464 = vld [vmem:[%s17 + $0x108] sm:$0xf]
        %v10465 = vld [vmem:[%s17 + $0x10c] sm:$0xf]
        %v10466 = vld [vmem:[%s17 + $0x110] sm:$0xf]
        %v10467 = vld [vmem:[%s17 + $0x114] sm:$0xf]
        %v10468 = vld [vmem:[%s17 + $0x118] sm:$0xf]
        %v10469 = vld [vmem:[%s17 + $0x11c] sm:$0xf]
        %v10470 = vld [vmem:[%s17 + $0x120] sm:$0xf]
        %v10471 = vld [vmem:[%s17 + $0x124] sm:$0xf]
        %v10472 = vld [vmem:[%s17 + $0x128] sm:$0xf]
        %v10473 = vld [vmem:[%s17 + $0x12c] sm:$0xf]
        %v10474 = vld [vmem:[%s17 + $0x130] sm:$0xf]
        %v10475 = vld [vmem:[%s17 + $0x134] sm:$0xf]
        %v10476 = vld [vmem:[%s17 + $0x138] sm:$0xf]
        %v10477 = vld [vmem:[%s17 + $0x13c] sm:$0xf]
        %v10478 = vld [vmem:[%s17 + $0x140] sm:$0xf]
        %v10479 = vld [vmem:[%s17 + $0x144] sm:$0xf]
        %v10480 = vld [vmem:[%s17 + $0x148] sm:$0xf]
        %v10481 = vld [vmem:[%s17 + $0x14c] sm:$0xf]
        %v10482 = vld [vmem:[%s17 + $0x150] sm:$0xf]
        %v10483 = vld [vmem:[%s17 + $0x154] sm:$0xf]
        %v10484 = vld [vmem:[%s17 + $0x158] sm:$0xf]
        %v10485 = vld [vmem:[%s17 + $0x15c] sm:$0xf]
        %v10486 = vld [vmem:[%s17 + $0x160] sm:$0xf]
        %v10487 = vld [vmem:[%s17 + $0x164] sm:$0xf]
        %v10488 = vld [vmem:[%s17 + $0x168] sm:$0xf]
        %v10489 = vld [vmem:[%s17 + $0x16c] sm:$0xf]
        %v10490 = vld [vmem:[%s17 + $0x170] sm:$0xf]
        %v10491 = vld [vmem:[%s17 + $0x174] sm:$0xf]
        %v10492 = vld [vmem:[%s17 + $0x178] sm:$0xf]
        %v10493 = vld [vmem:[%s17 + $0x17c] sm:$0xf]
        %v10494 = vld [vmem:[%s17 + $0x180] sm:$0xf]
        %v10495 = vld [vmem:[%s17 + $0x184] sm:$0xf]
        %v10496 = vld [vmem:[%s17 + $0x188] sm:$0xf]
        %v10497 = vld [vmem:[%s17 + $0x18c] sm:$0xf]
        %v10498 = vld [vmem:[%s17 + $0x190] sm:$0xf]
        %v10499 = vld [vmem:[%s17 + $0x194] sm:$0xf]
        %v10500 = vld [vmem:[%s17 + $0x198] sm:$0xf]
        %v10501 = vld [vmem:[%s17 + $0x19c] sm:$0xf]
        %v10502 = vld [vmem:[%s17 + $0x1a0] sm:$0xf]
        %v10503 = vld [vmem:[%s17 + $0x1a4] sm:$0xf]
        %v10504 = vld [vmem:[%s17 + $0x1a8] sm:$0xf]
        %v10505 = vld [vmem:[%s17 + $0x1ac] sm:$0xf]
        %v10506 = vld [vmem:[%s17 + $0x1b0] sm:$0xf]
        %v10507 = vld [vmem:[%s17 + $0x1b4] sm:$0xf]
        %v10508 = vld [vmem:[%s17 + $0x1b8] sm:$0xf]
        %v10509 = vld [vmem:[%s17 + $0x1bc] sm:$0xf]
        %v10510 = vld [vmem:[%s17 + $0x1c0] sm:$0xf]
        %v10511 = vld [vmem:[%s17 + $0x1c4] sm:$0xf]
        %v10512 = vld [vmem:[%s17 + $0x1c8] sm:$0xf]
        %v10513 = vld [vmem:[%s17 + $0x1cc] sm:$0xf]
        %v10514 = vld [vmem:[%s17 + $0x1d0] sm:$0xf]
        %v10515 = vld [vmem:[%s17 + $0x1d4] sm:$0xf]
        %v10516 = vld [vmem:[%s17 + $0x1d8] sm:$0xf]
        %v10517 = vld [vmem:[%s17 + $0x1dc] sm:$0xf]
        %v10518 = vld [vmem:[%s17 + $0x1e0] sm:$0xf]
        %v10519 = vld [vmem:[%s17 + $0x1e4] sm:$0xf]
        %v10520 = vld [vmem:[%s17 + $0x1e8] sm:$0xf]
        %v10521 = vld [vmem:[%s17 + $0x1ec] sm:$0xf]
        %v10522 = vld [vmem:[%s17 + $0x1f0] sm:$0xf]
        %v10523 = vld [vmem:[%s17 + $0x1f4] sm:$0xf]
        %v10524 = vld [vmem:[%s17 + $0x1f8] sm:$0xf]
        %v10525 = vld [vmem:[%s17 + $0x1fc] sm:$0xf]
        %v10526 = vld [vmem:[%s17 + $0x200] sm:$0xf]
        %v10527 = vld [vmem:[%s17 + $0x204] sm:$0xf]
        %v10528 = vld [vmem:[%s17 + $0x208] sm:$0xf]
        %v10529 = vld [vmem:[%s17 + $0x20c] sm:$0xf]
        %v10530 = vld [vmem:[%s17 + $0x210] sm:$0xf]
        %v10531 = vld [vmem:[%s17 + $0x214] sm:$0xf]
        %v10532 = vld [vmem:[%s17 + $0x218] sm:$0xf]
        %v10533 = vld [vmem:[%s17 + $0x21c] sm:$0xf]
        %v10534 = vld [vmem:[%s17 + $0x220] sm:$0xf]
        %v10535 = vld [vmem:[%s17 + $0x224] sm:$0xf]
        %v10536 = vld [vmem:[%s17 + $0x228] sm:$0xf]
        %v10537 = vld [vmem:[%s17 + $0x22c] sm:$0xf]
        %v10538 = vld [vmem:[%s17 + $0x230] sm:$0xf]
        %v10539 = vld [vmem:[%s17 + $0x234] sm:$0xf]
        %v10540 = vld [vmem:[%s17 + $0x238] sm:$0xf]
        %v10541 = vld [vmem:[%s17 + $0x23c] sm:$0xf]
        %v10542 = vld [vmem:[%s18] sm:$0x1]
        %v10544 = vperm.slane %v10542, 0
        %v10690 = vunpack.c.l.b16 %v10398
        %v10691 = vunpack.c.l.b16 %v10399
        %v10692 = vunpack.c.l.b16 %v10400
        %v10693 = vunpack.c.l.b16 %v10401
        %v10694 = vunpack.c.l.b16 %v10402
        %v10695 = vunpack.c.l.b16 %v10403
        %v10696 = vunpack.c.l.b16 %v10404
        %v10697 = vunpack.c.l.b16 %v10405
        %v10698 = vunpack.c.l.b16 %v10406
        %v10699 = vunpack.c.l.b16 %v10407
        %v10700 = vunpack.c.l.b16 %v10408
        %v10701 = vunpack.c.l.b16 %v10409
        %v10702 = vunpack.c.l.b16 %v10410
        %v10703 = vunpack.c.l.b16 %v10411
        %v10704 = vunpack.c.l.b16 %v10412
        %v10705 = vunpack.c.l.b16 %v10413
        %v10706 = vunpack.c.l.b16 %v10414
        %v10707 = vunpack.c.l.b16 %v10415
        %v10708 = vunpack.c.l.b16 %v10416
        %v10709 = vunpack.c.l.b16 %v10417
        %v10710 = vunpack.c.l.b16 %v10418
        %v10711 = vunpack.c.l.b16 %v10419
        %v10712 = vunpack.c.l.b16 %v10420
        %v10713 = vunpack.c.l.b16 %v10421
        %v10714 = vunpack.c.l.b16 %v10422
        %v10715 = vunpack.c.l.b16 %v10423
        %v10716 = vunpack.c.l.b16 %v10424
        %v10717 = vunpack.c.l.b16 %v10425
        %v10718 = vunpack.c.l.b16 %v10426
        %v10719 = vunpack.c.l.b16 %v10427
        %v10720 = vunpack.c.l.b16 %v10428
        %v10721 = vunpack.c.l.b16 %v10429
        %v10722 = vunpack.c.l.b16 %v10430
        %v10723 = vunpack.c.l.b16 %v10431
        %v10724 = vunpack.c.l.b16 %v10432
        %v10725 = vunpack.c.l.b16 %v10433
        %v10726 = vunpack.c.l.b16 %v10434
        %v10727 = vunpack.c.l.b16 %v10435
        %v10728 = vunpack.c.l.b16 %v10436
        %v10729 = vunpack.c.l.b16 %v10437
        %v10730 = vunpack.c.l.b16 %v10438
        %v10731 = vunpack.c.l.b16 %v10439
        %v10732 = vunpack.c.l.b16 %v10440
        %v10733 = vunpack.c.l.b16 %v10441
        %v10734 = vunpack.c.l.b16 %v10442
        %v10735 = vunpack.c.l.b16 %v10443
        %v10736 = vunpack.c.l.b16 %v10444
        %v10737 = vunpack.c.l.b16 %v10445
        %v10738 = vunpack.c.l.b16 %v10446
        %v10739 = vunpack.c.l.b16 %v10447
        %v10740 = vunpack.c.l.b16 %v10448
        %v10741 = vunpack.c.l.b16 %v10449
        %v10742 = vunpack.c.l.b16 %v10450
        %v10743 = vunpack.c.l.b16 %v10451
        %v10744 = vunpack.c.l.b16 %v10452
        %v10745 = vunpack.c.l.b16 %v10453
        %v10746 = vunpack.c.l.b16 %v10454
        %v10747 = vunpack.c.l.b16 %v10455
        %v10748 = vunpack.c.l.b16 %v10456
        %v10749 = vunpack.c.l.b16 %v10457
        %v10750 = vunpack.c.l.b16 %v10458
        %v10751 = vunpack.c.l.b16 %v10459
        %v10752 = vunpack.c.l.b16 %v10460
        %v10753 = vunpack.c.l.b16 %v10461
        %v10754 = vunpack.c.l.b16 %v10462
        %v10755 = vunpack.c.l.b16 %v10463
        %v10756 = vunpack.c.l.b16 %v10464
        %v10757 = vunpack.c.l.b16 %v10465
        %v10758 = vunpack.c.l.b16 %v10466
        %v10759 = vunpack.c.l.b16 %v10467
        %v10760 = vunpack.c.l.b16 %v10468
        %v10761 = vunpack.c.l.b16 %v10469
        %v10762 = vunpack.c.l.b16 %v10470
        %v10763 = vunpack.c.l.b16 %v10471
        %v10764 = vunpack.c.l.b16 %v10472
        %v10765 = vunpack.c.l.b16 %v10473
        %v10766 = vunpack.c.l.b16 %v10474
        %v10767 = vunpack.c.l.b16 %v10475
        %v10768 = vunpack.c.l.b16 %v10476
        %v10769 = vunpack.c.l.b16 %v10477
        %v10770 = vunpack.c.l.b16 %v10478
        %v10771 = vunpack.c.l.b16 %v10479
        %v10772 = vunpack.c.l.b16 %v10480
        %v10773 = vunpack.c.l.b16 %v10481
        %v10774 = vunpack.c.l.b16 %v10482
        %v10775 = vunpack.c.l.b16 %v10483
        %v10776 = vunpack.c.l.b16 %v10484
        %v10777 = vunpack.c.l.b16 %v10485
        %v10778 = vunpack.c.l.b16 %v10486
        %v10779 = vunpack.c.l.b16 %v10487
        %v10780 = vunpack.c.l.b16 %v10488
        %v10781 = vunpack.c.l.b16 %v10489
        %v10782 = vunpack.c.l.b16 %v10490
        %v10783 = vunpack.c.l.b16 %v10491
        %v10784 = vunpack.c.l.b16 %v10492
        %v10785 = vunpack.c.l.b16 %v10493
        %v10786 = vunpack.c.l.b16 %v10494
        %v10787 = vunpack.c.l.b16 %v10495
        %v10788 = vunpack.c.l.b16 %v10496
        %v10789 = vunpack.c.l.b16 %v10497
        %v10790 = vunpack.c.l.b16 %v10498
        %v10791 = vunpack.c.l.b16 %v10499
        %v10792 = vunpack.c.l.b16 %v10500
        %v10793 = vunpack.c.l.b16 %v10501
        %v10794 = vunpack.c.l.b16 %v10502
        %v10795 = vunpack.c.l.b16 %v10503
        %v10796 = vunpack.c.l.b16 %v10504
        %v10797 = vunpack.c.l.b16 %v10505
        %v10798 = vunpack.c.l.b16 %v10506
        %v10799 = vunpack.c.l.b16 %v10507
        %v10800 = vunpack.c.l.b16 %v10508
        %v10801 = vunpack.c.l.b16 %v10509
        %v10802 = vunpack.c.l.b16 %v10510
        %v10803 = vunpack.c.l.b16 %v10511
        %v10804 = vunpack.c.l.b16 %v10512
        %v10805 = vunpack.c.l.b16 %v10513
        %v10806 = vunpack.c.l.b16 %v10514
        %v10807 = vunpack.c.l.b16 %v10515
        %v10808 = vunpack.c.l.b16 %v10516
        %v10809 = vunpack.c.l.b16 %v10517
        %v10810 = vunpack.c.l.b16 %v10518
        %v10811 = vunpack.c.l.b16 %v10519
        %v10812 = vunpack.c.l.b16 %v10520
        %v10813 = vunpack.c.l.b16 %v10521
        %v10814 = vunpack.c.l.b16 %v10522
        %v10815 = vunpack.c.l.b16 %v10523
        %v10816 = vunpack.c.l.b16 %v10524
        %v10817 = vunpack.c.l.b16 %v10525
        %v10818 = vunpack.c.l.b16 %v10526
        %v10819 = vunpack.c.l.b16 %v10527
        %v10820 = vunpack.c.l.b16 %v10528
        %v10821 = vunpack.c.l.b16 %v10529
        %v10822 = vunpack.c.l.b16 %v10530
        %v10823 = vunpack.c.l.b16 %v10531
        %v10824 = vunpack.c.l.b16 %v10532
        %v10825 = vunpack.c.l.b16 %v10533
        %v10826 = vunpack.c.l.b16 %v10534
        %v10827 = vunpack.c.l.b16 %v10535
        %v10828 = vunpack.c.l.b16 %v10536
        %v10829 = vunpack.c.l.b16 %v10537
        %v10830 = vunpack.c.l.b16 %v10538
        %v10831 = vunpack.c.l.b16 %v10539
        %v10832 = vunpack.c.l.b16 %v10540
        %v10833 = vunpack.c.l.b16 %v10541
        %v10834 = vpack.c.b16 %v10691, %v10690
        %v10835 = vpack.c.b16 %v10693, %v10692
        %v10836 = vpack.c.b16 %v10695, %v10694
        %v10837 = vpack.c.b16 %v10697, %v10696
        %v10838 = vpack.c.b16 %v10699, %v10698
        %v10839 = vpack.c.b16 %v10701, %v10700
        %v10840 = vpack.c.b16 %v10703, %v10702
        %v10841 = vpack.c.b16 %v10705, %v10704
        %v10842 = vpack.c.b16 %v10707, %v10706
        %v10843 = vpack.c.b16 %v10709, %v10708
        %v10844 = vpack.c.b16 %v10711, %v10710
        %v10845 = vpack.c.b16 %v10713, %v10712
        %v10846 = vpack.c.b16 %v10715, %v10714
        %v10847 = vpack.c.b16 %v10717, %v10716
        %v10848 = vpack.c.b16 %v10719, %v10718
        %v10849 = vpack.c.b16 %v10721, %v10720
        %v10850 = vpack.c.b16 %v10723, %v10722
        %v10851 = vpack.c.b16 %v10725, %v10724
        %v10852 = vpack.c.b16 %v10727, %v10726
        %v10853 = vpack.c.b16 %v10729, %v10728
        %v10854 = vpack.c.b16 %v10731, %v10730
        %v10855 = vpack.c.b16 %v10733, %v10732
        %v10856 = vpack.c.b16 %v10735, %v10734
        %v10857 = vpack.c.b16 %v10737, %v10736
        %v10858 = vpack.c.b16 %v10739, %v10738
        %v10859 = vpack.c.b16 %v10741, %v10740
        %v10860 = vpack.c.b16 %v10743, %v10742
        %v10861 = vpack.c.b16 %v10745, %v10744
        %v10862 = vpack.c.b16 %v10747, %v10746
        %v10863 = vpack.c.b16 %v10749, %v10748
        %v10864 = vpack.c.b16 %v10751, %v10750
        %v10865 = vpack.c.b16 %v10753, %v10752
        %v10866 = vpack.c.b16 %v10755, %v10754
        %v10867 = vpack.c.b16 %v10757, %v10756
        %v10868 = vpack.c.b16 %v10759, %v10758
        %v10869 = vpack.c.b16 %v10761, %v10760
        %v10870 = vpack.c.b16 %v10763, %v10762
        %v10871 = vpack.c.b16 %v10765, %v10764
        %v10872 = vpack.c.b16 %v10767, %v10766
        %v10873 = vpack.c.b16 %v10769, %v10768
        %v10874 = vpack.c.b16 %v10771, %v10770
        %v10875 = vpack.c.b16 %v10773, %v10772
        %v10876 = vpack.c.b16 %v10775, %v10774
        %v10877 = vpack.c.b16 %v10777, %v10776
        %v10878 = vpack.c.b16 %v10779, %v10778
        %v10879 = vpack.c.b16 %v10781, %v10780
        %v10880 = vpack.c.b16 %v10783, %v10782
        %v10881 = vpack.c.b16 %v10785, %v10784
        %v10882 = vpack.c.b16 %v10787, %v10786
        %v10883 = vpack.c.b16 %v10789, %v10788
        %v10884 = vpack.c.b16 %v10791, %v10790
        %v10885 = vpack.c.b16 %v10793, %v10792
        %v10886 = vpack.c.b16 %v10795, %v10794
        %v10887 = vpack.c.b16 %v10797, %v10796
        %v10888 = vpack.c.b16 %v10799, %v10798
        %v10889 = vpack.c.b16 %v10801, %v10800
        %v10890 = vpack.c.b16 %v10803, %v10802
        %v10891 = vpack.c.b16 %v10805, %v10804
        %v10892 = vpack.c.b16 %v10807, %v10806
        %v10893 = vpack.c.b16 %v10809, %v10808
        %v10894 = vpack.c.b16 %v10811, %v10810
        %v10895 = vpack.c.b16 %v10813, %v10812
        %v10896 = vpack.c.b16 %v10815, %v10814
        %v10897 = vpack.c.b16 %v10817, %v10816
        %v10898 = vpack.c.b16 %v10819, %v10818
        %v10899 = vpack.c.b16 %v10821, %v10820
        %v10900 = vpack.c.b16 %v10823, %v10822
        %v10901 = vpack.c.b16 %v10825, %v10824
        %v10902 = vpack.c.b16 %v10827, %v10826
        %v10903 = vpack.c.b16 %v10829, %v10828
        %v10904 = vpack.c.b16 %v10831, %v10830
        %v10905 = vpack.c.b16 %v10833, %v10832
        %10978 = vmatpush.bf16.msra.mxu0 %v10841
        %10979 = vmatpush.bf16.msra.mxu0 %v10840
        %10980 = vmatpush.bf16.msra.mxu0 %v10839
        %10981 = vmatpush.bf16.msra.mxu0 %v10838
        %10982 = vmatpush.bf16.msra.mxu0 %v10837
        %10983 = vmatpush.bf16.msra.mxu0 %v10836
        %10984 = vmatpush.bf16.msra.mxu0 %v10835
        %10985 = vmatpush.bf16.msra.mxu0 %v10834
        %10986 = vmatmul.bf16.gmra.mxu0 %v9683
        %v10987 = vpop.f32.mrf.mxu0
        %v10988 = vadd.f32 %v10544, %v10987
        %v10989 = vpop.f32.mrf.mxu0
        %v10990 = vadd.f32 %v10544, %v10989
        %10991 = vdwg.mxu0
        %10992 = vmatpush.bf16.msra.mxu0 %v10849
        %10993 = vmatpush.bf16.msra.mxu0 %v10848
        %10994 = vmatpush.bf16.msra.mxu0 %v10847
        %10995 = vmatpush.bf16.msra.mxu0 %v10846
        %10996 = vmatpush.bf16.msra.mxu0 %v10845
        %10997 = vmatpush.bf16.msra.mxu0 %v10844
        %10998 = vmatpush.bf16.msra.mxu0 %v10843
        %10999 = vmatpush.bf16.msra.mxu0 %v10842
        %11000 = vmatmul.bf16.gmra.mxu0 %v9684
        %v11001 = vpop.f32.mrf.mxu0
        %v11002 = vadd.f32 %v10988, %v11001
        %v11003 = vpop.f32.mrf.mxu0
        %v11004 = vadd.f32 %v10990, %v11003
        %11005 = vdwg.mxu0
        %11006 = vmatpush.bf16.msra.mxu0 %v10857
        %11007 = vmatpush.bf16.msra.mxu0 %v10856
        %11008 = vmatpush.bf16.msra.mxu0 %v10855
        %11009 = vmatpush.bf16.msra.mxu0 %v10854
        %11010 = vmatpush.bf16.msra.mxu0 %v10853
        %11011 = vmatpush.bf16.msra.mxu0 %v10852
        %11012 = vmatpush.bf16.msra.mxu0 %v10851
        %11013 = vmatpush.bf16.msra.mxu0 %v10850
        %11014 = vmatmul.bf16.gmra.mxu0 %v9685
        %v11015 = vpop.f32.mrf.mxu0
        %v11016 = vadd.f32 %v11002, %v11015
        %v11017 = vpop.f32.mrf.mxu0
        %v11018 = vadd.f32 %v11004, %v11017
        %11019 = vdwg.mxu0
        %11020 = vmatpush.bf16.msra.mxu0 %v10865
        %11021 = vmatpush.bf16.msra.mxu0 %v10864
        %11022 = vmatpush.bf16.msra.mxu0 %v10863
        %11023 = vmatpush.bf16.msra.mxu0 %v10862
        %11024 = vmatpush.bf16.msra.mxu0 %v10861
        %11025 = vmatpush.bf16.msra.mxu0 %v10860
        %11026 = vmatpush.bf16.msra.mxu0 %v10859
        %11027 = vmatpush.bf16.msra.mxu0 %v10858
        %11028 = vmatmul.bf16.gmra.mxu0 %v9686
        %v11029 = vpop.f32.mrf.mxu0
        %v11030 = vadd.f32 %v11016, %v11029
        %v11031 = vpop.f32.mrf.mxu0
        %v11032 = vadd.f32 %v11018, %v11031
        %11033 = vdwg.mxu0
        %11034 = vmatpush.bf16.msra.mxu0 %v10873
        %11035 = vmatpush.bf16.msra.mxu0 %v10872
        %11036 = vmatpush.bf16.msra.mxu0 %v10871
        %11037 = vmatpush.bf16.msra.mxu0 %v10870
        %11038 = vmatpush.bf16.msra.mxu0 %v10869
        %11039 = vmatpush.bf16.msra.mxu0 %v10868
        %11040 = vmatpush.bf16.msra.mxu0 %v10867
        %11041 = vmatpush.bf16.msra.mxu0 %v10866
        %11042 = vmatmul.bf16.gmra.mxu0 %v9687
        %v11043 = vpop.f32.mrf.mxu0
        %v11044 = vadd.f32 %v11030, %v11043
        %v11045 = vpop.f32.mrf.mxu0
        %v11046 = vadd.f32 %v11032, %v11045
        %11047 = vdwg.mxu0
        %11048 = vmatpush.bf16.msra.mxu0 %v10881
        %11049 = vmatpush.bf16.msra.mxu0 %v10880
        %11050 = vmatpush.bf16.msra.mxu0 %v10879
        %11051 = vmatpush.bf16.msra.mxu0 %v10878
        %11052 = vmatpush.bf16.msra.mxu0 %v10877
        %11053 = vmatpush.bf16.msra.mxu0 %v10876
        %11054 = vmatpush.bf16.msra.mxu0 %v10875
        %11055 = vmatpush.bf16.msra.mxu0 %v10874
        %11056 = vmatmul.bf16.gmra.mxu0 %v9688
        %v11057 = vpop.f32.mrf.mxu0
        %v11058 = vadd.f32 %v11044, %v11057
        %v11059 = vpop.f32.mrf.mxu0
        %v11060 = vadd.f32 %v11046, %v11059
        %11061 = vdwg.mxu0
        %11062 = vmatpush.bf16.msra.mxu0 %v10889
        %11063 = vmatpush.bf16.msra.mxu0 %v10888
        %11064 = vmatpush.bf16.msra.mxu0 %v10887
        %11065 = vmatpush.bf16.msra.mxu0 %v10886
        %11066 = vmatpush.bf16.msra.mxu0 %v10885
        %11067 = vmatpush.bf16.msra.mxu0 %v10884
        %11068 = vmatpush.bf16.msra.mxu0 %v10883
        %11069 = vmatpush.bf16.msra.mxu0 %v10882
        %11070 = vmatmul.bf16.gmra.mxu0 %v9689
        %v11071 = vpop.f32.mrf.mxu0
        %v11072 = vadd.f32 %v11058, %v11071
        %v11073 = vpop.f32.mrf.mxu0
        %v11074 = vadd.f32 %v11060, %v11073
        %11075 = vdwg.mxu0
        %11076 = vmatpush.bf16.msra.mxu0 %v10897
        %11077 = vmatpush.bf16.msra.mxu0 %v10896
        %11078 = vmatpush.bf16.msra.mxu0 %v10895
        %11079 = vmatpush.bf16.msra.mxu0 %v10894
        %11080 = vmatpush.bf16.msra.mxu0 %v10893
        %11081 = vmatpush.bf16.msra.mxu0 %v10892
        %11082 = vmatpush.bf16.msra.mxu0 %v10891
        %11083 = vmatpush.bf16.msra.mxu0 %v10890
        %11084 = vmatmul.bf16.gmra.mxu0 %v9690
        %v11085 = vpop.f32.mrf.mxu0
        %v11086 = vadd.f32 %v11072, %v11085
        %v11087 = vpop.f32.mrf.mxu0
        %v11088 = vadd.f32 %v11074, %v11087
        %11089 = vdwg.mxu0
        %11090 = vmatpush.bf16.msra.mxu0 %v10905
        %11091 = vmatpush.bf16.msra.mxu0 %v10904
        %11092 = vmatpush.bf16.msra.mxu0 %v10903
        %11093 = vmatpush.bf16.msra.mxu0 %v10902
        %11094 = vmatpush.bf16.msra.mxu0 %v10901
        %11095 = vmatpush.bf16.msra.mxu0 %v10900
        %11096 = vmatpush.bf16.msra.mxu0 %v10899
        %11097 = vmatpush.bf16.msra.mxu0 %v10898
        %11098 = vmatmul.bf16.gmra.mxu0 %v9691
        %v11099 = vpop.f32.mrf.mxu0
        %v11100 = vadd.f32 %v11086, %v11099
        %v11101 = vpop.f32.mrf.mxu0
        %v11102 = vadd.f32 %v11088, %v11101
        %11103 = vdwg.mxu0
        %v11106 = vrot.slane %v10394, 4
        %v11107 = vrot.slane %v10396, 4
        %vm11110 = vcmask 27648
        %11111 = vst.msk [vmem:[%s680] sm:$0xf] %vm11110, %v10394
        %11112 = vst.msk [vmem:[%s680 + $0x4] sm:$0xf] %vm11110, %v11106
        %11113 = vst.msk [vmem:[%s680 + $0x8] sm:$0xf] %vm11110, %v10396
        %11114 = vst.msk [vmem:[%s680 + $0xc] sm:$0xf] %vm11110, %v11107
        %v11115 = vmax.f32 %v11100, 0.0
        %v11116 = vmax.f32 %v11102, 0.0
        %vm11117 = vcmp.ne.f32.partialorder %v11100, %v11100
        %vm11118 = vcmp.ne.f32.partialorder %v11102, %v11102
        %v11119 = vadd.f32 %v11100, 0.0
        %v11120 = vadd.f32 %v11102, 0.0
        %v11121 = vand.u32 2147483647, %v11100
        %v11122 = vand.u32 2147483647, %v11102
        %v11123 = vsub.f32 0.0, %v11121
        %v11124 = vsub.f32 0.0, %v11122
        %v11125 = vmul.f32 %v11123, 1.442695
        %v11126 = vpow.pop %v11125
        %v11127 = vmul.f32 %v11124, 1.442695
        %v11128 = vpow.pop %v11127
        %v11129 = vadd.f32 %v11126, 1.0
        %v11130 = vlog2.pop %v11129
        %v11131 = vmul.f32 %v11130, 0.6931472
        %v11132 = vmul.f32 -0.5, %v11126
        %v11133 = vadd.f32 %v11132, 1.0
        %v11134 = vmul.f32 %v11133, %v11126
        %v11135 = vand.u32 2147483647, %v11126
        %vm11136 = vcmp.lt.f32.partialorder %v11135, 0.0004427343
        %v11137 = vsel %vm11136, %v11134, %v11131
        %v11138 = vadd.f32 %v11128, 1.0
        %v11139 = vlog2.pop %v11138
        %v11140 = vmul.f32 %v11139, 0.6931472
        %v11141 = vmul.f32 -0.5, %v11128
        %v11142 = vadd.f32 %v11141, 1.0
        %v11143 = vmul.f32 %v11142, %v11128
        %v11144 = vand.u32 2147483647, %v11128
        %vm11145 = vcmp.lt.f32.partialorder %v11144, 0.0004427343
        %v11146 = vsel %vm11145, %v11143, %v11140
        %v11147 = vadd.f32 %v11115, %v11137
        %v11148 = vadd.f32 %v11116, %v11146
        %v11149 = vsel %vm11117, %v11119, %v11147
        %v11150 = vsel %vm11118, %v11120, %v11148
        %v11151 = vadd.f32 %v11149, 0.01
        %v11152 = vadd.f32 %v11150, 0.01
        %v11155 = vrot.slane %v11151, 4
        %v11156 = vrot.slane %v11152, 4
        %11159 = vst.msk [vmem:[%s687] sm:$0xf] %vm11110, %v11151
        %11160 = vst.msk [vmem:[%s687 + $0x4] sm:$0xf] %vm11110, %v11155
        %11161 = vst.msk [vmem:[%s687 + $0x8] sm:$0xf] %vm11110, %v11152
        %11162 = vst.msk [vmem:[%s687 + $0xc] sm:$0xf] %vm11110, %v11156
        %s11163 = sand.u32 %s494, 1
        %s11164 = scalar_lea.sflag [#allocation4], %s11163
        %s11165 = sand.u32 %s494, 1
        %s11166 = smul.addr %s11165, 16
        %s11167 = scalar_lea.vmem [#allocation3], %s11166
        %s11168 = sand.u32 %s520, 1
        %s11169 = scalar_lea.sflag [#allocation6], %s11168
        %s11170 = sand.u32 %s520, 1
        %s11171 = smul.addr %s11170, 16
        %s11172 = scalar_lea.vmem [#allocation5], %s11171
        // Predicated region
        $region105: #{tpu_custom_call.1} parent=103 // pred_check
          %p11173 = pneg %p504
        $region106: #{tpu_custom_call.1} parent=103 // pred_check_branch
          %11175 = sbr.rel (%p11173) target = $region108
        $region107: #{tpu_custom_call.1} parent=103 // pred_region
          %11177 = vsyncadd %s11164, 0
          %s11178 = smul.addr %s40, 4
          %s11179 = smul.addr %s11178, 4
          %s11180 = scalar_lea.hbm %s21, %s11179
          %s11181 = sshll.u32 %s11167, 4
          %s11182 = int_to_ptr.vmem [resolvable:$true] %s11181
          %s11183 = sshll.u32 %s11180, 4
          %s11184 = int_to_ptr.hbm [resolvable:$true] %s11183
          %11189 = dma.vmem_to_hbm [thread:$0]  %s11182, 256, %s11184, %s11164, 64, 64, 4
        $region108: #{tpu_custom_call.1} parent=103 // pred_fallthru
          _
        // Predicated region
        $region109: #{tpu_custom_call.1} parent=103 // pred_check
          %p11190 = pneg %p530
        $region110: #{tpu_custom_call.1} parent=103 // pred_check_branch
          %11192 = sbr.rel (%p11190) target = $region112
        $region111: #{tpu_custom_call.1} parent=103 // pred_region
          %11194 = vsyncadd %s11169, 0
          %s11195 = smul.addr %s40, 4
          %s11196 = smul.addr %s11195, 4
          %s11197 = scalar_lea.hbm %s22, %s11196
          %s11198 = sshll.u32 %s11172, 4
          %s11199 = int_to_ptr.vmem [resolvable:$true] %s11198
          %s11200 = sshll.u32 %s11197, 4
          %s11201 = int_to_ptr.hbm [resolvable:$true] %s11200
          %11206 = dma.vmem_to_hbm [thread:$0]  %s11199, 256, %s11201, %s11169, 64, 64, 4
        $region112: #{tpu_custom_call.1} parent=103 // pred_fallthru
          _
      $region104: #{tpu_custom_call.1} parent=5 // pred_fallthru
        _
      %p11207 = scmp.le.s32.totalorder 2, %s35
      // Predicated region
      $region113: #{tpu_custom_call.1} parent=5 // pred_check
        %p11208 = pneg %p11207
      $region114: #{tpu_custom_call.1} parent=5 // pred_check_branch
        %11210 = sbr.rel (%p11208) target = $region116
      $region115: #{tpu_custom_call.1} parent=5 // pred_region
        %s11211 = ssub.s32 %s35, 2
        // Predicated region
        $region117: #{tpu_custom_call.1} parent=115 // pred_check
          %p11212 = pneg %p510
        $region118: #{tpu_custom_call.1} parent=115 // pred_check_branch
          %11214 = sbr.rel (%p11212) target = $region120
        $region119: #{tpu_custom_call.1} parent=115 // pred_region
          %s11215 = sand.u32 %s495, 1
          %s11216 = scalar_lea.sflag [#allocation4], %s11215
          %s11217 = sand.u32 %s495, 1
          %s11218 = smul.addr %s11217, 16
          %s11219 = scalar_lea.vmem [#allocation3], %s11218
          %11221 = dma.done %s11216, 256
        $region120: #{tpu_custom_call.1} parent=115 // pred_fallthru
          _
        // Predicated region
        $region121: #{tpu_custom_call.1} parent=115 // pred_check
          %p11222 = pneg %p536
        $region122: #{tpu_custom_call.1} parent=115 // pred_check_branch
          %11224 = sbr.rel (%p11222) target = $region124
        $region123: #{tpu_custom_call.1} parent=115 // pred_region
          %s11225 = sand.u32 %s521, 1
          %s11226 = scalar_lea.sflag [#allocation6], %s11225
          %s11227 = sand.u32 %s521, 1
          %s11228 = smul.addr %s11227, 16
          %s11229 = scalar_lea.vmem [#allocation5], %s11228
          %11231 = dma.done %s11226, 256
        $region124: #{tpu_custom_call.1} parent=115 // pred_fallthru
          _
      $region116: #{tpu_custom_call.1} parent=5 // pred_fallthru
        _
    $region6: #{tpu_custom_call.1} parent=1 // loop_footer
      %s39 = sadd.s32 1, %s35
    $region7: #{tpu_custom_call.1} parent=1 // loop_footer_branch
      %34 = sbr.rel target = $region3
    $region8: #{tpu_custom_call.1} parent=1 // loop_exit
      _
    %11232 = vsyncpa [#allocation4], 1
    %s11233 = scalar_lea.sflag [#allocation4], 1
    %11234 = vsyncpa %s11233, 1
    %11235 = vsyncpa [#allocation6], 1
    %s11236 = scalar_lea.sflag [#allocation6], 1
    %11237 = vsyncpa %s11236, 1

</llo_original>
